<compile_context>
chip_gen: v5e
topology: v5e:2x2
jax: 0.10.0
libtpu: 0.0.40
codegen_flags: <defaults>
</compile_context>

<pallas_src>
import functools

import jax
import jax.numpy as jnp
from jax.experimental import pallas as pl
from jax.experimental.pallas import tpu as pltpu


# ----------------------------------------------------------------------------
# In-kernel building blocks (all operate on VMEM-resident values)
# ----------------------------------------------------------------------------
def _apply_act(acc, act):
    if act == "relu":
        return jnp.maximum(acc, 0.0)
    if act == "sigmoid":
        return jax.nn.sigmoid(acc)
    return acc


def _conv3x3_taps(xp, w_ref, b_ref, act):
    """3x3 conv via 9 chained dots (used for the tiny cin=4 layer).

    xp:    (Hp, Wp, cin) f32 value, already zero padded as needed
    w_ref: (9, cin, cout) bf16 ref   b_ref: (1, cout) f32 ref
    returns (Hp-2, Wp-2, cout) f32
    """
    Hp, Wp, cin = xp.shape
    H, W = Hp - 2, Wp - 2
    cout = w_ref.shape[-1]
    acc = None
    t = 0
    for dy in range(3):
        for dx in range(3):
            patch = xp[dy:dy + H, dx:dx + W, :].reshape(H * W, cin)
            d = jnp.dot(patch.astype(jnp.bfloat16), w_ref[t],
                        preferred_element_type=jnp.float32)
            acc = d if acc is None else acc + d
            t += 1
    acc = _apply_act(acc + b_ref[...], act)
    return acc.reshape(H, W, cout)


def _im2col_patches(xp):
    """(Hp, Wp, cin) f32 -> ((Hp-2)*(Wp-2), 9*cin) bf16 patch matrix."""
    Hp, Wp, cin = xp.shape
    H, W = Hp - 2, Wp - 2
    taps = [xp[dy:dy + H, dx:dx + W, :].reshape(H * W, cin)
            for dy in range(3) for dx in range(3)]
    return jnp.concatenate(taps, axis=-1).astype(jnp.bfloat16)


def _conv3x3_im2col(xp, w_ref, b_ref, act):
    """3x3 conv as a single im2col matmul (K = 9*cin fills the MXU).

    xp:    (Hp, Wp, cin) f32 value, already zero padded as needed
    w_ref: (9*cin, cout) bf16 ref   b_ref: (1, cout) f32 ref
    returns (Hp-2, Wp-2, cout) f32
    """
    Hp, Wp, _ = xp.shape
    H, W = Hp - 2, Wp - 2
    cout = w_ref.shape[-1]
    acc = jnp.dot(_im2col_patches(xp), w_ref[...],
                  preferred_element_type=jnp.float32)
    acc = _apply_act(acc + b_ref[...], act)
    return acc.reshape(H, W, cout)


def _maxpool2(x):
    """2x2 / stride-2 max pool: (H, W, C) -> (H//2, W//2, C)."""
    H, W, C = x.shape
    x = x.reshape(H // 2, 2, W // 2, 2, C)
    return jnp.max(jnp.max(x, axis=3), axis=1)


def _upsample2(x):
    """Nearest-neighbour 2x upsample: (H, W, C) -> (2H, 2W, C).

    Channels stay on the lane axis; only leading/sublane dims are regrouped.
    """
    H, W, C = x.shape
    xf = x.reshape(H * W, C)
    # duplicate along width: row (y*W + x) -> rows (y*2W + 2x + {0,1})
    xw = jnp.broadcast_to(xf[:, None, :], (H * W, 2, C)).reshape(H, 2 * W, C)
    # duplicate along height
    xh = jnp.broadcast_to(xw[:, None, :, :], (H, 2, 2 * W, C))
    return xh.reshape(2 * H, 2 * W, C)


# ----------------------------------------------------------------------------
# Fused forward kernel (one grid step == one batch element)
# ----------------------------------------------------------------------------
def _dae_kernel(x_ref, w1_ref, b1_ref, w2_ref, b2_ref, w3_ref, b3_ref,
                w4_ref, b4_ref, w5_ref, b5_ref, o_ref,
                p1, p2, p3, p4, *, H, W):
    H2, W2, H4, W4 = H // 2, W // 2, H // 4, W // 4
    Ho, Wo = H - 2, W - 2

    # NCHW (flattened to (4, H*W)) -> (H, W, 4): channels onto the lane axis.
    x = jnp.transpose(x_ref[0], (1, 0)).reshape(H, W, 4)

    # ---------------- encoder ----------------
    # Conv2d(4 -> 64, pad 1) + ReLU
    p1[...] = jnp.zeros_like(p1)
    p1[1:H + 1, 1:W + 1, :] = x
    h = _conv3x3_taps(p1[...], w1_ref, b1_ref, "relu")          # (H,  W,  64)
    h = _maxpool2(h)                                            # (H2, W2, 64)

    # Conv2d(64 -> 128, pad 1) + ReLU
    p2[...] = jnp.zeros_like(p2)
    p2[1:H2 + 1, 1:W2 + 1, :] = h
    h = _conv3x3_im2col(p2[...], w2_ref, b2_ref, "relu")        # (H2, W2, 128)
    h = _maxpool2(h)                                            # (H4, W4, 128)

    # ---------------- decoder ----------------
    # ConvTranspose2d(128 -> 128, p=1) == conv pad 1, + ReLU
    p3[...] = jnp.zeros_like(p3)
    p3[1:H4 + 1, 1:W4 + 1, :] = h
    h = _conv3x3_im2col(p3[...], w3_ref, b3_ref, "relu")        # (H4, W4, 128)
    h = _upsample2(h)                                           # (H2, W2, 128)

    # ConvTranspose2d(128 -> 64, p=1) == conv pad 1, + ReLU
    p4[...] = jnp.zeros_like(p4)
    p4[1:H2 + 1, 1:W2 + 1, :] = h
    h = _conv3x3_im2col(p4[...], w4_ref, b4_ref, "relu")        # (H2, W2, 64)
    h = _upsample2(h)                                           # (H,  W,  64)

    # ConvTranspose2d(64 -> 4, p=2) == valid conv (pad 0), + Sigmoid.
    # Compute flat and write the lane-dense NCHW-flattened output directly.
    acc = jnp.dot(_im2col_patches(h), w5_ref[...],
                  preferred_element_type=jnp.float32)           # (Ho*Wo, 4)
    acc = _apply_act(acc + b5_ref[...], "sigmoid")
    o_ref[0] = jnp.transpose(acc, (1, 0))                       # (4, Ho*Wo)


def _build_forward(N, H, W):
    assert H % 4 == 0 and W % 4 == 0, "spatial dims must be divisible by 4"
    Ho, Wo = H - 2, W - 2
    H2, W2, H4, W4 = H // 2, W // 2, H // 4, W // 4

    def full(shape):
        return pl.BlockSpec(shape, lambda n, _s=shape: (0,) * len(_s))

    grid_spec = pltpu.PrefetchScalarGridSpec(
        num_scalar_prefetch=0,
        grid=(N,),
        in_specs=[
            pl.BlockSpec((1, 4, H * W), lambda n: (n, 0, 0)),   # x
            full((9, 4, 64)),       full((1, 64)),              # enc1
            full((9 * 64, 128)),    full((1, 128)),             # enc2
            full((9 * 128, 128)),   full((1, 128)),             # dec1
            full((9 * 128, 64)),    full((1, 64)),              # dec2
            full((9 * 64, 4)),      full((1, 4)),               # dec3
        ],
        out_specs=pl.BlockSpec((1, 4, Ho * Wo), lambda n: (n, 0, 0)),
        scratch_shapes=[
            pltpu.VMEM((H + 2, W + 2, 4), jnp.float32),         # pad enc1
            pltpu.VMEM((H2 + 2, W2 + 2, 64), jnp.float32),      # pad enc2
            pltpu.VMEM((H4 + 2, W4 + 2, 128), jnp.float32),     # pad dec1
            pltpu.VMEM((H2 + 2, W2 + 2, 128), jnp.float32),     # pad dec2
        ],
    )
    return pl.pallas_call(
        functools.partial(_dae_kernel, H=H, W=W),
        out_shape=jax.ShapeDtypeStruct((N, 4, Ho * Wo), jnp.float32),
        grid_spec=grid_spec,
        compiler_params=pltpu.CompilerParams(
            dimension_semantics=("parallel",)),
    )


# ----------------------------------------------------------------------------
# Parameter init (deterministic, synthetic; PyTorch-style uniform fan-in)
# ----------------------------------------------------------------------------
def _conv_init(key, cin, cout):
    kw, kb = jax.random.split(key)
    bound = 1.0 / ((cin * 9) ** 0.5)
    w = jax.random.uniform(kw, (3, 3, cin, cout), jnp.float32, -bound, bound)
    b = jax.random.uniform(kb, (cout,), jnp.float32, -bound, bound)
    return w, b


def init_params(key):
    keys = jax.random.split(key, 5)
    p = {}
    p["enc1_w"], p["enc1_b"] = _conv_init(keys[0], 4, 64)
    p["enc2_w"], p["enc2_b"] = _conv_init(keys[1], 64, 128)
    # decoder ConvTranspose2d (stride 1) expressed as equivalent convs
    p["dec1_w"], p["dec1_b"] = _conv_init(keys[2], 128, 128)  # ct p=1 -> pad 1
    p["dec2_w"], p["dec2_b"] = _conv_init(keys[3], 128, 64)   # ct p=1 -> pad 1
    p["dec3_w"], p["dec3_b"] = _conv_init(keys[4], 64, 4)     # ct p=2 -> pad 0
    return p


# ----------------------------------------------------------------------------
# Forward pass (matches DenoisingAutoencoder.forward)
# ----------------------------------------------------------------------------
def denoising_autoencoder_forward(params, x):
    # Emulate the torch dim-handling prologue (input given as NCHW).
    if x.ndim == 2:
        x = x[None, None]
    elif x.ndim == 3:
        x = x[:, None]
    x = x.astype(jnp.float32)
    N, C, H, W = x.shape
    assert C == 4, "encoder expects 4 input channels"

    # im2col weight layout: (3,3,cin,cout) -> (9*cin, cout); bf16 MXU inputs,
    # f32 accumulation inside the kernel.  Biases stay f32.
    args = [
        params["enc1_w"].reshape(9, 4, 64).astype(jnp.bfloat16),
        params["enc1_b"].reshape(1, 64),
        params["enc2_w"].reshape(9 * 64, 128).astype(jnp.bfloat16),
        params["enc2_b"].reshape(1, 128),
        params["dec1_w"].reshape(9 * 128, 128).astype(jnp.bfloat16),
        params["dec1_b"].reshape(1, 128),
        params["dec2_w"].reshape(9 * 128, 64).astype(jnp.bfloat16),
        params["dec2_b"].reshape(1, 64),
        params["dec3_w"].reshape(9 * 64, 4).astype(jnp.bfloat16),
        params["dec3_b"].reshape(1, 4),
    ]

    fwd = _build_forward(N, H, W)
    out = fwd(x.reshape(N, 4, H * W), *args)        # (N, 4, (H-2)*(W-2))
    out = out.reshape(N, 4, H - 2, W - 2)           # free, layout-preserving

    # torch's .squeeze(1): only squeezes if that dim is size 1 (it is 4 here)
    if out.shape[1] == 1:
        out = jnp.squeeze(out, axis=1)
    return out


if __name__ == "__main__":
    key = jax.random.PRNGKey(0)
    kparam, kx = jax.random.split(key)
    params = init_params(kparam)

    # input: batch=2, channels=4, spatial=16x16 (NCHW, like the torch module)
    x = jax.random.normal(kx, (2, 4, 16, 16), dtype=jnp.float32)

    fwd = jax.jit(denoising_autoencoder_forward)
    out = jax.block_until_ready(fwd(params, x))

    # 16 -> pool 8 -> pool 4 -> up 8 -> up 16 -> final ConvTranspose(p=2): 14
    assert out.shape == (2, 4, 14, 14), out.shape
    assert bool(jnp.all(jnp.isfinite(out)))
    assert bool(jnp.all((out >= 0.0) & (out <= 1.0)))  # sigmoid output range
    print("KERNEL_OK")
</pallas_src>

<mosaic_0001>
module attributes {stable_mosaic.version = 11 : i64} {
  func.func @_dae_kernel(%arg0: i32, %arg1: memref<1x4x256xf32, #tpu.memory_space<vmem>>, %arg2: memref<9x4x64xbf16, #tpu.memory_space<vmem>>, %arg3: memref<1x64xf32, #tpu.memory_space<vmem>>, %arg4: memref<576x128xbf16, #tpu.memory_space<vmem>>, %arg5: memref<1x128xf32, #tpu.memory_space<vmem>>, %arg6: memref<1152x128xbf16, #tpu.memory_space<vmem>>, %arg7: memref<1x128xf32, #tpu.memory_space<vmem>>, %arg8: memref<1152x64xbf16, #tpu.memory_space<vmem>>, %arg9: memref<1x64xf32, #tpu.memory_space<vmem>>, %arg10: memref<576x4xbf16, #tpu.memory_space<vmem>>, %arg11: memref<1x4xf32, #tpu.memory_space<vmem>>, %arg12: memref<1x4x196xf32, #tpu.memory_space<vmem>>, %arg13: memref<18x18x4xf32, #tpu.memory_space<vmem>>, %arg14: memref<10x10x64xf32, #tpu.memory_space<vmem>>, %arg15: memref<6x6x128xf32, #tpu.memory_space<vmem>>, %arg16: memref<10x10x128xf32, #tpu.memory_space<vmem>>) attributes {dimension_semantics = [#tpu.dimension_semantics<parallel>], iteration_bounds = array<i64: 2>, scalar_prefetch = 0 : i64, scratch_operands = 4 : i64, tpu.core_type = #tpu.core_type<tc>, window_params = [{transform_indices = @transform_0, window_bounds = array<i64: 1, 4, 256>}, {pipeline_mode = #tpu.pipeline_mode<synchronous>, transform_indices = @transform_1, window_bounds = array<i64: 9, 4, 64>}, {pipeline_mode = #tpu.pipeline_mode<synchronous>, transform_indices = @transform_2, window_bounds = array<i64: 1, 64>}, {pipeline_mode = #tpu.pipeline_mode<synchronous>, transform_indices = @transform_3, window_bounds = array<i64: 576, 128>}, {pipeline_mode = #tpu.pipeline_mode<synchronous>, transform_indices = @transform_4, window_bounds = array<i64: 1, 128>}, {pipeline_mode = #tpu.pipeline_mode<synchronous>, transform_indices = @transform_5, window_bounds = array<i64: 1152, 128>}, {pipeline_mode = #tpu.pipeline_mode<synchronous>, transform_indices = @transform_6, window_bounds = array<i64: 1, 128>}, {pipeline_mode = #tpu.pipeline_mode<synchronous>, transform_indices = @transform_7, window_bounds = array<i64: 1152, 64>}, {pipeline_mode = #tpu.pipeline_mode<synchronous>, transform_indices = @transform_8, window_bounds = array<i64: 1, 64>}, {pipeline_mode = #tpu.pipeline_mode<synchronous>, transform_indices = @transform_9, window_bounds = array<i64: 576, 4>}, {pipeline_mode = #tpu.pipeline_mode<synchronous>, transform_indices = @transform_10, window_bounds = array<i64: 1, 4>}, {transform_indices = @transform_11, window_bounds = array<i64: 1, 4, 196>}]} {
    %c0 = arith.constant 0 : index
    %c0_0 = arith.constant 0 : index
    %c0_1 = arith.constant 0 : index
    %0 = vector.load %arg1[%c0, %c0_0, %c0_1] : memref<1x4x256xf32, #tpu.memory_space<vmem>>, vector<1x4x256xf32>
    %1 = vector.shape_cast %0 : vector<1x4x256xf32> to vector<4x256xf32>
    %2 = tpu.transpose %1, [1, 0] : vector<4x256xf32> -> vector<256x4xf32>
    %3 = vector.shape_cast %2 : vector<256x4xf32> to vector<16x16x4xf32>
    %cst = arith.constant 0.000000e+00 : f32
    %4 = vector.broadcast %cst : f32 to vector<18x18x4xf32>
    %c0_2 = arith.constant 0 : index
    %c0_3 = arith.constant 0 : index
    %c0_4 = arith.constant 0 : index
    %5 = vector.load %arg13[%c0_2, %c0_3, %c0_4] : memref<18x18x4xf32, #tpu.memory_space<vmem>>, vector<18x18x4xf32>
    tpu.vector_store %arg13[%c0_2, %c0_3, %c0_4], %4 {strides = array<i32>} : memref<18x18x4xf32, #tpu.memory_space<vmem>>, vector<18x18x4xf32>,
    %c1 = arith.constant 1 : index
    %c1_5 = arith.constant 1 : index
    %c0_6 = arith.constant 0 : index
    %6 = vector.load %arg13[%c1, %c1_5, %c0_6] : memref<18x18x4xf32, #tpu.memory_space<vmem>>, vector<16x16x4xf32>
    tpu.vector_store %arg13[%c1, %c1_5, %c0_6], %3 {strides = array<i32>} : memref<18x18x4xf32, #tpu.memory_space<vmem>>, vector<16x16x4xf32>,
    %c0_7 = arith.constant 0 : index
    %c0_8 = arith.constant 0 : index
    %c0_9 = arith.constant 0 : index
    %7 = vector.load %arg13[%c0_7, %c0_8, %c0_9] : memref<18x18x4xf32, #tpu.memory_space<vmem>>, vector<18x18x4xf32>
    %8 = vector.extract_strided_slice %7 {offsets = [0, 0, 0], sizes = [16, 16, 4], strides = [1, 1, 1]} : vector<18x18x4xf32> to vector<16x16x4xf32>
    %9 = vector.shape_cast %8 : vector<16x16x4xf32> to vector<256x4xf32>
    %10 = arith.truncf %9 : vector<256x4xf32> to vector<256x4xbf16>
    %c0_10 = arith.constant 0 : index
    %c0_11 = arith.constant 0 : index
    %c0_12 = arith.constant 0 : index
    %11 = vector.load %arg2[%c0_10, %c0_11, %c0_12] : memref<9x4x64xbf16, #tpu.memory_space<vmem>>, vector<1x4x64xbf16>
    %12 = vector.shape_cast %11 : vector<1x4x64xbf16> to vector<4x64xbf16>
    %cst_13 = arith.constant dense<0.000000e+00> : vector<256x64xf32>
    %13 = tpu.matmul %10, %12, %cst_13 {dimension_numbers = #tpu.dot_dimension_numbers<[1], [0], [0], [1], [0, 0, 1, 1], [], []>} : vector<256x4xbf16>, vector<4x64xbf16>, vector<256x64xf32> -> vector<256x64xf32>
    %14 = vector.extract_strided_slice %7 {offsets = [0, 1, 0], sizes = [16, 16, 4], strides = [1, 1, 1]} : vector<18x18x4xf32> to vector<16x16x4xf32>
    %15 = vector.shape_cast %14 : vector<16x16x4xf32> to vector<256x4xf32>
    %16 = arith.truncf %15 : vector<256x4xf32> to vector<256x4xbf16>
    %c1_14 = arith.constant 1 : index
    %c0_15 = arith.constant 0 : index
    %c0_16 = arith.constant 0 : index
    %17 = vector.load %arg2[%c1_14, %c0_15, %c0_16] : memref<9x4x64xbf16, #tpu.memory_space<vmem>>, vector<1x4x64xbf16>
    %18 = vector.shape_cast %17 : vector<1x4x64xbf16> to vector<4x64xbf16>
    %cst_17 = arith.constant dense<0.000000e+00> : vector<256x64xf32>
    %19 = tpu.matmul %16, %18, %cst_17 {dimension_numbers = #tpu.dot_dimension_numbers<[1], [0], [0], [1], [0, 0, 1, 1], [], []>} : vector<256x4xbf16>, vector<4x64xbf16>, vector<256x64xf32> -> vector<256x64xf32>
    %20 = arith.addf %13, %19 : vector<256x64xf32>
    %21 = vector.extract_strided_slice %7 {offsets = [0, 2, 0], sizes = [16, 16, 4], strides = [1, 1, 1]} : vector<18x18x4xf32> to vector<16x16x4xf32>
    %22 = vector.shape_cast %21 : vector<16x16x4xf32> to vector<256x4xf32>
    %23 = arith.truncf %22 : vector<256x4xf32> to vector<256x4xbf16>
    %c2 = arith.constant 2 : index
    %c0_18 = arith.constant 0 : index
    %c0_19 = arith.constant 0 : index
    %24 = vector.load %arg2[%c2, %c0_18, %c0_19] : memref<9x4x64xbf16, #tpu.memory_space<vmem>>, vector<1x4x64xbf16>
    %25 = vector.shape_cast %24 : vector<1x4x64xbf16> to vector<4x64xbf16>
    %cst_20 = arith.constant dense<0.000000e+00> : vector<256x64xf32>
    %26 = tpu.matmul %23, %25, %cst_20 {dimension_numbers = #tpu.dot_dimension_numbers<[1], [0], [0], [1], [0, 0, 1, 1], [], []>} : vector<256x4xbf16>, vector<4x64xbf16>, vector<256x64xf32> -> vector<256x64xf32>
    %27 = arith.addf %20, %26 : vector<256x64xf32>
    %28 = vector.extract_strided_slice %7 {offsets = [1, 0, 0], sizes = [16, 16, 4], strides = [1, 1, 1]} : vector<18x18x4xf32> to vector<16x16x4xf32>
    %29 = vector.shape_cast %28 : vector<16x16x4xf32> to vector<256x4xf32>
    %30 = arith.truncf %29 : vector<256x4xf32> to vector<256x4xbf16>
    %c3 = arith.constant 3 : index
    %c0_21 = arith.constant 0 : index
    %c0_22 = arith.constant 0 : index
    %31 = vector.load %arg2[%c3, %c0_21, %c0_22] : memref<9x4x64xbf16, #tpu.memory_space<vmem>>, vector<1x4x64xbf16>
    %32 = vector.shape_cast %31 : vector<1x4x64xbf16> to vector<4x64xbf16>
    %cst_23 = arith.constant dense<0.000000e+00> : vector<256x64xf32>
    %33 = tpu.matmul %30, %32, %cst_23 {dimension_numbers = #tpu.dot_dimension_numbers<[1], [0], [0], [1], [0, 0, 1, 1], [], []>} : vector<256x4xbf16>, vector<4x64xbf16>, vector<256x64xf32> -> vector<256x64xf32>
    %34 = arith.addf %27, %33 : vector<256x64xf32>
    %35 = vector.extract_strided_slice %7 {offsets = [1, 1, 0], sizes = [16, 16, 4], strides = [1, 1, 1]} : vector<18x18x4xf32> to vector<16x16x4xf32>
    %36 = vector.shape_cast %35 : vector<16x16x4xf32> to vector<256x4xf32>
    %37 = arith.truncf %36 : vector<256x4xf32> to vector<256x4xbf16>
    %c4 = arith.constant 4 : index
    %c0_24 = arith.constant 0 : index
    %c0_25 = arith.constant 0 : index
    %38 = vector.load %arg2[%c4, %c0_24, %c0_25] : memref<9x4x64xbf16, #tpu.memory_space<vmem>>, vector<1x4x64xbf16>
    %39 = vector.shape_cast %38 : vector<1x4x64xbf16> to vector<4x64xbf16>
    %cst_26 = arith.constant dense<0.000000e+00> : vector<256x64xf32>
    %40 = tpu.matmul %37, %39, %cst_26 {dimension_numbers = #tpu.dot_dimension_numbers<[1], [0], [0], [1], [0, 0, 1, 1], [], []>} : vector<256x4xbf16>, vector<4x64xbf16>, vector<256x64xf32> -> vector<256x64xf32>
    %41 = arith.addf %34, %40 : vector<256x64xf32>
    %42 = vector.extract_strided_slice %7 {offsets = [1, 2, 0], sizes = [16, 16, 4], strides = [1, 1, 1]} : vector<18x18x4xf32> to vector<16x16x4xf32>
    %43 = vector.shape_cast %42 : vector<16x16x4xf32> to vector<256x4xf32>
    %44 = arith.truncf %43 : vector<256x4xf32> to vector<256x4xbf16>
    %c5 = arith.constant 5 : index
    %c0_27 = arith.constant 0 : index
    %c0_28 = arith.constant 0 : index
    %45 = vector.load %arg2[%c5, %c0_27, %c0_28] : memref<9x4x64xbf16, #tpu.memory_space<vmem>>, vector<1x4x64xbf16>
    %46 = vector.shape_cast %45 : vector<1x4x64xbf16> to vector<4x64xbf16>
    %cst_29 = arith.constant dense<0.000000e+00> : vector<256x64xf32>
    %47 = tpu.matmul %44, %46, %cst_29 {dimension_numbers = #tpu.dot_dimension_numbers<[1], [0], [0], [1], [0, 0, 1, 1], [], []>} : vector<256x4xbf16>, vector<4x64xbf16>, vector<256x64xf32> -> vector<256x64xf32>
    %48 = arith.addf %41, %47 : vector<256x64xf32>
    %49 = vector.extract_strided_slice %7 {offsets = [2, 0, 0], sizes = [16, 16, 4], strides = [1, 1, 1]} : vector<18x18x4xf32> to vector<16x16x4xf32>
    %50 = vector.shape_cast %49 : vector<16x16x4xf32> to vector<256x4xf32>
    %51 = arith.truncf %50 : vector<256x4xf32> to vector<256x4xbf16>
    %c6 = arith.constant 6 : index
    %c0_30 = arith.constant 0 : index
    %c0_31 = arith.constant 0 : index
    %52 = vector.load %arg2[%c6, %c0_30, %c0_31] : memref<9x4x64xbf16, #tpu.memory_space<vmem>>, vector<1x4x64xbf16>
    %53 = vector.shape_cast %52 : vector<1x4x64xbf16> to vector<4x64xbf16>
    %cst_32 = arith.constant dense<0.000000e+00> : vector<256x64xf32>
    %54 = tpu.matmul %51, %53, %cst_32 {dimension_numbers = #tpu.dot_dimension_numbers<[1], [0], [0], [1], [0, 0, 1, 1], [], []>} : vector<256x4xbf16>, vector<4x64xbf16>, vector<256x64xf32> -> vector<256x64xf32>
    %55 = arith.addf %48, %54 : vector<256x64xf32>
    %56 = vector.extract_strided_slice %7 {offsets = [2, 1, 0], sizes = [16, 16, 4], strides = [1, 1, 1]} : vector<18x18x4xf32> to vector<16x16x4xf32>
    %57 = vector.shape_cast %56 : vector<16x16x4xf32> to vector<256x4xf32>
    %58 = arith.truncf %57 : vector<256x4xf32> to vector<256x4xbf16>
    %c7 = arith.constant 7 : index
    %c0_33 = arith.constant 0 : index
    %c0_34 = arith.constant 0 : index
    %59 = vector.load %arg2[%c7, %c0_33, %c0_34] : memref<9x4x64xbf16, #tpu.memory_space<vmem>>, vector<1x4x64xbf16>
    %60 = vector.shape_cast %59 : vector<1x4x64xbf16> to vector<4x64xbf16>
    %cst_35 = arith.constant dense<0.000000e+00> : vector<256x64xf32>
    %61 = tpu.matmul %58, %60, %cst_35 {dimension_numbers = #tpu.dot_dimension_numbers<[1], [0], [0], [1], [0, 0, 1, 1], [], []>} : vector<256x4xbf16>, vector<4x64xbf16>, vector<256x64xf32> -> vector<256x64xf32>
    %62 = arith.addf %55, %61 : vector<256x64xf32>
    %63 = vector.extract_strided_slice %7 {offsets = [2, 2, 0], sizes = [16, 16, 4], strides = [1, 1, 1]} : vector<18x18x4xf32> to vector<16x16x4xf32>
    %64 = vector.shape_cast %63 : vector<16x16x4xf32> to vector<256x4xf32>
    %65 = arith.truncf %64 : vector<256x4xf32> to vector<256x4xbf16>
    %c8 = arith.constant 8 : index
    %c0_36 = arith.constant 0 : index
    %c0_37 = arith.constant 0 : index
    %66 = vector.load %arg2[%c8, %c0_36, %c0_37] : memref<9x4x64xbf16, #tpu.memory_space<vmem>>, vector<1x4x64xbf16>
    %67 = vector.shape_cast %66 : vector<1x4x64xbf16> to vector<4x64xbf16>
    %cst_38 = arith.constant dense<0.000000e+00> : vector<256x64xf32>
    %68 = tpu.matmul %65, %67, %cst_38 {dimension_numbers = #tpu.dot_dimension_numbers<[1], [0], [0], [1], [0, 0, 1, 1], [], []>} : vector<256x4xbf16>, vector<4x64xbf16>, vector<256x64xf32> -> vector<256x64xf32>
    %69 = arith.addf %62, %68 : vector<256x64xf32>
    %c0_39 = arith.constant 0 : index
    %c0_40 = arith.constant 0 : index
    %70 = vector.load %arg3[%c0_39, %c0_40] : memref<1x64xf32, #tpu.memory_space<vmem>>, vector<1x64xf32>
    %71 = vector.broadcast %70 : vector<1x64xf32> to vector<256x64xf32>
    %72 = arith.addf %69, %71 : vector<256x64xf32>
    %cst_41 = arith.constant 0.000000e+00 : f32
    %73 = vector.broadcast %cst_41 : f32 to vector<256x64xf32>
    %74 = arith.maximumf %72, %73 : vector<256x64xf32>
    %75 = vector.shape_cast %74 : vector<256x64xf32> to vector<16x16x64xf32>
    %76 = vector.shape_cast %75 : vector<16x16x64xf32> to vector<8x2x8x2x64xf32>
    %cst_42 = arith.constant dense<0xFF800000> : vector<8x2x8x64xf32>
    %77 = vector.multi_reduction <maximumf>, %76, %cst_42 [3] : vector<8x2x8x2x64xf32> to vector<8x2x8x64xf32>
    %cst_43 = arith.constant dense<0xFF800000> : vector<8x8x64xf32>
    %78 = vector.multi_reduction <maximumf>, %77, %cst_43 [1] : vector<8x2x8x64xf32> to vector<8x8x64xf32>
    %cst_44 = arith.constant 0.000000e+00 : f32
    %79 = vector.broadcast %cst_44 : f32 to vector<10x10x64xf32>
    %c0_45 = arith.constant 0 : index
    %c0_46 = arith.constant 0 : index
    %c0_47 = arith.constant 0 : index
    %80 = vector.load %arg14[%c0_45, %c0_46, %c0_47] : memref<10x10x64xf32, #tpu.memory_space<vmem>>, vector<10x10x64xf32>
    tpu.vector_store %arg14[%c0_45, %c0_46, %c0_47], %79 {strides = array<i32>} : memref<10x10x64xf32, #tpu.memory_space<vmem>>, vector<10x10x64xf32>,
    %c1_48 = arith.constant 1 : index
    %c1_49 = arith.constant 1 : index
    %c0_50 = arith.constant 0 : index
    %81 = vector.load %arg14[%c1_48, %c1_49, %c0_50] : memref<10x10x64xf32, #tpu.memory_space<vmem>>, vector<8x8x64xf32>
    tpu.vector_store %arg14[%c1_48, %c1_49, %c0_50], %78 {strides = array<i32>} : memref<10x10x64xf32, #tpu.memory_space<vmem>>, vector<8x8x64xf32>,
    %c0_51 = arith.constant 0 : index
    %c0_52 = arith.constant 0 : index
    %c0_53 = arith.constant 0 : index
    %82 = vector.load %arg14[%c0_51, %c0_52, %c0_53] : memref<10x10x64xf32, #tpu.memory_space<vmem>>, vector<10x10x64xf32>
    %83 = vector.extract_strided_slice %82 {offsets = [0, 0, 0], sizes = [8, 8, 64], strides = [1, 1, 1]} : vector<10x10x64xf32> to vector<8x8x64xf32>
    %84 = vector.shape_cast %83 : vector<8x8x64xf32> to vector<64x64xf32>
    %85 = vector.extract_strided_slice %82 {offsets = [0, 1, 0], sizes = [8, 8, 64], strides = [1, 1, 1]} : vector<10x10x64xf32> to vector<8x8x64xf32>
    %86 = vector.shape_cast %85 : vector<8x8x64xf32> to vector<64x64xf32>
    %87 = vector.extract_strided_slice %82 {offsets = [0, 2, 0], sizes = [8, 8, 64], strides = [1, 1, 1]} : vector<10x10x64xf32> to vector<8x8x64xf32>
    %88 = vector.shape_cast %87 : vector<8x8x64xf32> to vector<64x64xf32>
    %89 = vector.extract_strided_slice %82 {offsets = [1, 0, 0], sizes = [8, 8, 64], strides = [1, 1, 1]} : vector<10x10x64xf32> to vector<8x8x64xf32>
    %90 = vector.shape_cast %89 : vector<8x8x64xf32> to vector<64x64xf32>
    %91 = vector.extract_strided_slice %82 {offsets = [1, 1, 0], sizes = [8, 8, 64], strides = [1, 1, 1]} : vector<10x10x64xf32> to vector<8x8x64xf32>
    %92 = vector.shape_cast %91 : vector<8x8x64xf32> to vector<64x64xf32>
    %93 = vector.extract_strided_slice %82 {offsets = [1, 2, 0], sizes = [8, 8, 64], strides = [1, 1, 1]} : vector<10x10x64xf32> to vector<8x8x64xf32>
    %94 = vector.shape_cast %93 : vector<8x8x64xf32> to vector<64x64xf32>
    %95 = vector.extract_strided_slice %82 {offsets = [2, 0, 0], sizes = [8, 8, 64], strides = [1, 1, 1]} : vector<10x10x64xf32> to vector<8x8x64xf32>
    %96 = vector.shape_cast %95 : vector<8x8x64xf32> to vector<64x64xf32>
    %97 = vector.extract_strided_slice %82 {offsets = [2, 1, 0], sizes = [8, 8, 64], strides = [1, 1, 1]} : vector<10x10x64xf32> to vector<8x8x64xf32>
    %98 = vector.shape_cast %97 : vector<8x8x64xf32> to vector<64x64xf32>
    %99 = vector.extract_strided_slice %82 {offsets = [2, 2, 0], sizes = [8, 8, 64], strides = [1, 1, 1]} : vector<10x10x64xf32> to vector<8x8x64xf32>
    %100 = vector.shape_cast %99 : vector<8x8x64xf32> to vector<64x64xf32>
    %101 = tpu.concatenate %84, %86, %88, %90, %92, %94, %96, %98, %100 in 1 : vector<64x64xf32>, vector<64x64xf32>, vector<64x64xf32>, vector<64x64xf32>, vector<64x64xf32>, vector<64x64xf32>, vector<64x64xf32>, vector<64x64xf32>, vector<64x64xf32> -> vector<64x576xf32>
    %102 = arith.truncf %101 : vector<64x576xf32> to vector<64x576xbf16>
    %c0_54 = arith.constant 0 : index
    %c0_55 = arith.constant 0 : index
    %103 = vector.load %arg4[%c0_54, %c0_55] : memref<576x128xbf16, #tpu.memory_space<vmem>>, vector<576x128xbf16>
    %cst_56 = arith.constant dense<0.000000e+00> : vector<64x128xf32>
    %104 = tpu.matmul %102, %103, %cst_56 {dimension_numbers = #tpu.dot_dimension_numbers<[1], [0], [0], [1], [0, 0, 1, 1], [], []>} : vector<64x576xbf16>, vector<576x128xbf16>, vector<64x128xf32> -> vector<64x128xf32>
    %c0_57 = arith.constant 0 : index
    %c0_58 = arith.constant 0 : index
    %105 = vector.load %arg5[%c0_57, %c0_58] : memref<1x128xf32, #tpu.memory_space<vmem>>, vector<1x128xf32>
    %106 = vector.broadcast %105 : vector<1x128xf32> to vector<64x128xf32>
    %107 = arith.addf %104, %106 : vector<64x128xf32>
    %cst_59 = arith.constant 0.000000e+00 : f32
    %108 = vector.broadcast %cst_59 : f32 to vector<64x128xf32>
    %109 = arith.maximumf %107, %108 : vector<64x128xf32>
    %110 = vector.shape_cast %109 : vector<64x128xf32> to vector<8x8x128xf32>
    %111 = vector.shape_cast %110 : vector<8x8x128xf32> to vector<4x2x4x2x128xf32>
    %cst_60 = arith.constant dense<0xFF800000> : vector<4x2x4x128xf32>
    %112 = vector.multi_reduction <maximumf>, %111, %cst_60 [3] : vector<4x2x4x2x128xf32> to vector<4x2x4x128xf32>
    %cst_61 = arith.constant dense<0xFF800000> : vector<4x4x128xf32>
    %113 = vector.multi_reduction <maximumf>, %112, %cst_61 [1] : vector<4x2x4x128xf32> to vector<4x4x128xf32>
    %cst_62 = arith.constant 0.000000e+00 : f32
    %114 = vector.broadcast %cst_62 : f32 to vector<6x6x128xf32>
    %c0_63 = arith.constant 0 : index
    %c0_64 = arith.constant 0 : index
    %c0_65 = arith.constant 0 : index
    %115 = vector.load %arg15[%c0_63, %c0_64, %c0_65] : memref<6x6x128xf32, #tpu.memory_space<vmem>>, vector<6x6x128xf32>
    tpu.vector_store %arg15[%c0_63, %c0_64, %c0_65], %114 {strides = array<i32>} : memref<6x6x128xf32, #tpu.memory_space<vmem>>, vector<6x6x128xf32>,
    %c1_66 = arith.constant 1 : index
    %c1_67 = arith.constant 1 : index
    %c0_68 = arith.constant 0 : index
    %116 = vector.load %arg15[%c1_66, %c1_67, %c0_68] : memref<6x6x128xf32, #tpu.memory_space<vmem>>, vector<4x4x128xf32>
    tpu.vector_store %arg15[%c1_66, %c1_67, %c0_68], %113 {strides = array<i32>} : memref<6x6x128xf32, #tpu.memory_space<vmem>>, vector<4x4x128xf32>,
    %c0_69 = arith.constant 0 : index
    %c0_70 = arith.constant 0 : index
    %c0_71 = arith.constant 0 : index
    %117 = vector.load %arg15[%c0_69, %c0_70, %c0_71] : memref<6x6x128xf32, #tpu.memory_space<vmem>>, vector<6x6x128xf32>
    %118 = vector.extract_strided_slice %117 {offsets = [0, 0, 0], sizes = [4, 4, 128], strides = [1, 1, 1]} : vector<6x6x128xf32> to vector<4x4x128xf32>
    %119 = vector.shape_cast %118 : vector<4x4x128xf32> to vector<16x128xf32>
    %120 = vector.extract_strided_slice %117 {offsets = [0, 1, 0], sizes = [4, 4, 128], strides = [1, 1, 1]} : vector<6x6x128xf32> to vector<4x4x128xf32>
    %121 = vector.shape_cast %120 : vector<4x4x128xf32> to vector<16x128xf32>
    %122 = vector.extract_strided_slice %117 {offsets = [0, 2, 0], sizes = [4, 4, 128], strides = [1, 1, 1]} : vector<6x6x128xf32> to vector<4x4x128xf32>
    %123 = vector.shape_cast %122 : vector<4x4x128xf32> to vector<16x128xf32>
    %124 = vector.extract_strided_slice %117 {offsets = [1, 0, 0], sizes = [4, 4, 128], strides = [1, 1, 1]} : vector<6x6x128xf32> to vector<4x4x128xf32>
    %125 = vector.shape_cast %124 : vector<4x4x128xf32> to vector<16x128xf32>
    %126 = vector.extract_strided_slice %117 {offsets = [1, 1, 0], sizes = [4, 4, 128], strides = [1, 1, 1]} : vector<6x6x128xf32> to vector<4x4x128xf32>
    %127 = vector.shape_cast %126 : vector<4x4x128xf32> to vector<16x128xf32>
    %128 = vector.extract_strided_slice %117 {offsets = [1, 2, 0], sizes = [4, 4, 128], strides = [1, 1, 1]} : vector<6x6x128xf32> to vector<4x4x128xf32>
    %129 = vector.shape_cast %128 : vector<4x4x128xf32> to vector<16x128xf32>
    %130 = vector.extract_strided_slice %117 {offsets = [2, 0, 0], sizes = [4, 4, 128], strides = [1, 1, 1]} : vector<6x6x128xf32> to vector<4x4x128xf32>
    %131 = vector.shape_cast %130 : vector<4x4x128xf32> to vector<16x128xf32>
    %132 = vector.extract_strided_slice %117 {offsets = [2, 1, 0], sizes = [4, 4, 128], strides = [1, 1, 1]} : vector<6x6x128xf32> to vector<4x4x128xf32>
    %133 = vector.shape_cast %132 : vector<4x4x128xf32> to vector<16x128xf32>
    %134 = vector.extract_strided_slice %117 {offsets = [2, 2, 0], sizes = [4, 4, 128], strides = [1, 1, 1]} : vector<6x6x128xf32> to vector<4x4x128xf32>
    %135 = vector.shape_cast %134 : vector<4x4x128xf32> to vector<16x128xf32>
    %136 = tpu.concatenate %119, %121, %123, %125, %127, %129, %131, %133, %135 in 1 : vector<16x128xf32>, vector<16x128xf32>, vector<16x128xf32>, vector<16x128xf32>, vector<16x128xf32>, vector<16x128xf32>, vector<16x128xf32>, vector<16x128xf32>, vector<16x128xf32> -> vector<16x1152xf32>
    %137 = arith.truncf %136 : vector<16x1152xf32> to vector<16x1152xbf16>
    %c0_72 = arith.constant 0 : index
    %c0_73 = arith.constant 0 : index
    %138 = vector.load %arg6[%c0_72, %c0_73] : memref<1152x128xbf16, #tpu.memory_space<vmem>>, vector<1152x128xbf16>
    %cst_74 = arith.constant dense<0.000000e+00> : vector<16x128xf32>
    %139 = tpu.matmul %137, %138, %cst_74 {dimension_numbers = #tpu.dot_dimension_numbers<[1], [0], [0], [1], [0, 0, 1, 1], [], []>} : vector<16x1152xbf16>, vector<1152x128xbf16>, vector<16x128xf32> -> vector<16x128xf32>
    %c0_75 = arith.constant 0 : index
    %c0_76 = arith.constant 0 : index
    %140 = vector.load %arg7[%c0_75, %c0_76] : memref<1x128xf32, #tpu.memory_space<vmem>>, vector<1x128xf32>
    %141 = vector.broadcast %140 : vector<1x128xf32> to vector<16x128xf32>
    %142 = arith.addf %139, %141 : vector<16x128xf32>
    %cst_77 = arith.constant 0.000000e+00 : f32
    %143 = vector.broadcast %cst_77 : f32 to vector<16x128xf32>
    %144 = arith.maximumf %142, %143 : vector<16x128xf32>
    %145 = vector.shape_cast %144 : vector<16x128xf32> to vector<4x4x128xf32>
    %146 = vector.shape_cast %145 : vector<4x4x128xf32> to vector<16x128xf32>
    %147 = vector.shape_cast %146 : vector<16x128xf32> to vector<16x1x128xf32>
    %148 = vector.shape_cast %147 : vector<16x1x128xf32> to vector<16x1x128xf32>
    %149 = vector.broadcast %148 : vector<16x1x128xf32> to vector<16x2x128xf32>
    %150 = vector.shape_cast %149 : vector<16x2x128xf32> to vector<4x8x128xf32>
    %151 = vector.shape_cast %150 : vector<4x8x128xf32> to vector<4x1x8x128xf32>
    %152 = vector.shape_cast %151 : vector<4x1x8x128xf32> to vector<4x1x8x128xf32>
    %153 = vector.broadcast %152 : vector<4x1x8x128xf32> to vector<4x2x8x128xf32>
    %154 = vector.shape_cast %153 : vector<4x2x8x128xf32> to vector<8x8x128xf32>
    %cst_78 = arith.constant 0.000000e+00 : f32
    %155 = vector.broadcast %cst_78 : f32 to vector<10x10x128xf32>
    %c0_79 = arith.constant 0 : index
    %c0_80 = arith.constant 0 : index
    %c0_81 = arith.constant 0 : index
    %156 = vector.load %arg16[%c0_79, %c0_80, %c0_81] : memref<10x10x128xf32, #tpu.memory_space<vmem>>, vector<10x10x128xf32>
    tpu.vector_store %arg16[%c0_79, %c0_80, %c0_81], %155 {strides = array<i32>} : memref<10x10x128xf32, #tpu.memory_space<vmem>>, vector<10x10x128xf32>,
    %c1_82 = arith.constant 1 : index
    %c1_83 = arith.constant 1 : index
    %c0_84 = arith.constant 0 : index
    %157 = vector.load %arg16[%c1_82, %c1_83, %c0_84] : memref<10x10x128xf32, #tpu.memory_space<vmem>>, vector<8x8x128xf32>
    tpu.vector_store %arg16[%c1_82, %c1_83, %c0_84], %154 {strides = array<i32>} : memref<10x10x128xf32, #tpu.memory_space<vmem>>, vector<8x8x128xf32>,
    %c0_85 = arith.constant 0 : index
    %c0_86 = arith.constant 0 : index
    %c0_87 = arith.constant 0 : index
    %158 = vector.load %arg16[%c0_85, %c0_86, %c0_87] : memref<10x10x128xf32, #tpu.memory_space<vmem>>, vector<10x10x128xf32>
    %159 = vector.extract_strided_slice %158 {offsets = [0, 0, 0], sizes = [8, 8, 128], strides = [1, 1, 1]} : vector<10x10x128xf32> to vector<8x8x128xf32>
    %160 = vector.shape_cast %159 : vector<8x8x128xf32> to vector<64x128xf32>
    %161 = vector.extract_strided_slice %158 {offsets = [0, 1, 0], sizes = [8, 8, 128], strides = [1, 1, 1]} : vector<10x10x128xf32> to vector<8x8x128xf32>
    %162 = vector.shape_cast %161 : vector<8x8x128xf32> to vector<64x128xf32>
    %163 = vector.extract_strided_slice %158 {offsets = [0, 2, 0], sizes = [8, 8, 128], strides = [1, 1, 1]} : vector<10x10x128xf32> to vector<8x8x128xf32>
    %164 = vector.shape_cast %163 : vector<8x8x128xf32> to vector<64x128xf32>
    %165 = vector.extract_strided_slice %158 {offsets = [1, 0, 0], sizes = [8, 8, 128], strides = [1, 1, 1]} : vector<10x10x128xf32> to vector<8x8x128xf32>
    %166 = vector.shape_cast %165 : vector<8x8x128xf32> to vector<64x128xf32>
    %167 = vector.extract_strided_slice %158 {offsets = [1, 1, 0], sizes = [8, 8, 128], strides = [1, 1, 1]} : vector<10x10x128xf32> to vector<8x8x128xf32>
    %168 = vector.shape_cast %167 : vector<8x8x128xf32> to vector<64x128xf32>
    %169 = vector.extract_strided_slice %158 {offsets = [1, 2, 0], sizes = [8, 8, 128], strides = [1, 1, 1]} : vector<10x10x128xf32> to vector<8x8x128xf32>
    %170 = vector.shape_cast %169 : vector<8x8x128xf32> to vector<64x128xf32>
    %171 = vector.extract_strided_slice %158 {offsets = [2, 0, 0], sizes = [8, 8, 128], strides = [1, 1, 1]} : vector<10x10x128xf32> to vector<8x8x128xf32>
    %172 = vector.shape_cast %171 : vector<8x8x128xf32> to vector<64x128xf32>
    %173 = vector.extract_strided_slice %158 {offsets = [2, 1, 0], sizes = [8, 8, 128], strides = [1, 1, 1]} : vector<10x10x128xf32> to vector<8x8x128xf32>
    %174 = vector.shape_cast %173 : vector<8x8x128xf32> to vector<64x128xf32>
    %175 = vector.extract_strided_slice %158 {offsets = [2, 2, 0], sizes = [8, 8, 128], strides = [1, 1, 1]} : vector<10x10x128xf32> to vector<8x8x128xf32>
    %176 = vector.shape_cast %175 : vector<8x8x128xf32> to vector<64x128xf32>
    %177 = tpu.concatenate %160, %162, %164, %166, %168, %170, %172, %174, %176 in 1 : vector<64x128xf32>, vector<64x128xf32>, vector<64x128xf32>, vector<64x128xf32>, vector<64x128xf32>, vector<64x128xf32>, vector<64x128xf32>, vector<64x128xf32>, vector<64x128xf32> -> vector<64x1152xf32>
    %178 = arith.truncf %177 : vector<64x1152xf32> to vector<64x1152xbf16>
    %c0_88 = arith.constant 0 : index
    %c0_89 = arith.constant 0 : index
    %179 = vector.load %arg8[%c0_88, %c0_89] : memref<1152x64xbf16, #tpu.memory_space<vmem>>, vector<1152x64xbf16>
    %cst_90 = arith.constant dense<0.000000e+00> : vector<64x64xf32>
    %180 = tpu.matmul %178, %179, %cst_90 {dimension_numbers = #tpu.dot_dimension_numbers<[1], [0], [0], [1], [0, 0, 1, 1], [], []>} : vector<64x1152xbf16>, vector<1152x64xbf16>, vector<64x64xf32> -> vector<64x64xf32>
    %c0_91 = arith.constant 0 : index
    %c0_92 = arith.constant 0 : index
    %181 = vector.load %arg9[%c0_91, %c0_92] : memref<1x64xf32, #tpu.memory_space<vmem>>, vector<1x64xf32>
    %182 = vector.broadcast %181 : vector<1x64xf32> to vector<64x64xf32>
    %183 = arith.addf %180, %182 : vector<64x64xf32>
    %cst_93 = arith.constant 0.000000e+00 : f32
    %184 = vector.broadcast %cst_93 : f32 to vector<64x64xf32>
    %185 = arith.maximumf %183, %184 : vector<64x64xf32>
    %186 = vector.shape_cast %185 : vector<64x64xf32> to vector<8x8x64xf32>
    %187 = vector.shape_cast %186 : vector<8x8x64xf32> to vector<64x64xf32>
    %188 = vector.shape_cast %187 : vector<64x64xf32> to vector<64x1x64xf32>
    %189 = vector.shape_cast %188 : vector<64x1x64xf32> to vector<64x1x64xf32>
    %190 = vector.broadcast %189 : vector<64x1x64xf32> to vector<64x2x64xf32>
    %191 = vector.shape_cast %190 : vector<64x2x64xf32> to vector<8x16x64xf32>
    %192 = vector.shape_cast %191 : vector<8x16x64xf32> to vector<8x1x16x64xf32>
    %193 = vector.shape_cast %192 : vector<8x1x16x64xf32> to vector<8x1x16x64xf32>
    %194 = vector.broadcast %193 : vector<8x1x16x64xf32> to vector<8x2x16x64xf32>
    %195 = vector.shape_cast %194 : vector<8x2x16x64xf32> to vector<16x16x64xf32>
    %196 = vector.extract_strided_slice %195 {offsets = [0, 0, 0], sizes = [14, 14, 64], strides = [1, 1, 1]} : vector<16x16x64xf32> to vector<14x14x64xf32>
    %197 = vector.shape_cast %196 : vector<14x14x64xf32> to vector<196x64xf32>
    %198 = vector.extract_strided_slice %195 {offsets = [0, 1, 0], sizes = [14, 14, 64], strides = [1, 1, 1]} : vector<16x16x64xf32> to vector<14x14x64xf32>
    %199 = vector.shape_cast %198 : vector<14x14x64xf32> to vector<196x64xf32>
    %200 = vector.extract_strided_slice %195 {offsets = [0, 2, 0], sizes = [14, 14, 64], strides = [1, 1, 1]} : vector<16x16x64xf32> to vector<14x14x64xf32>
    %201 = vector.shape_cast %200 : vector<14x14x64xf32> to vector<196x64xf32>
    %202 = vector.extract_strided_slice %195 {offsets = [1, 0, 0], sizes = [14, 14, 64], strides = [1, 1, 1]} : vector<16x16x64xf32> to vector<14x14x64xf32>
    %203 = vector.shape_cast %202 : vector<14x14x64xf32> to vector<196x64xf32>
    %204 = vector.extract_strided_slice %195 {offsets = [1, 1, 0], sizes = [14, 14, 64], strides = [1, 1, 1]} : vector<16x16x64xf32> to vector<14x14x64xf32>
    %205 = vector.shape_cast %204 : vector<14x14x64xf32> to vector<196x64xf32>
    %206 = vector.extract_strided_slice %195 {offsets = [1, 2, 0], sizes = [14, 14, 64], strides = [1, 1, 1]} : vector<16x16x64xf32> to vector<14x14x64xf32>
    %207 = vector.shape_cast %206 : vector<14x14x64xf32> to vector<196x64xf32>
    %208 = vector.extract_strided_slice %195 {offsets = [2, 0, 0], sizes = [14, 14, 64], strides = [1, 1, 1]} : vector<16x16x64xf32> to vector<14x14x64xf32>
    %209 = vector.shape_cast %208 : vector<14x14x64xf32> to vector<196x64xf32>
    %210 = vector.extract_strided_slice %195 {offsets = [2, 1, 0], sizes = [14, 14, 64], strides = [1, 1, 1]} : vector<16x16x64xf32> to vector<14x14x64xf32>
    %211 = vector.shape_cast %210 : vector<14x14x64xf32> to vector<196x64xf32>
    %212 = vector.extract_strided_slice %195 {offsets = [2, 2, 0], sizes = [14, 14, 64], strides = [1, 1, 1]} : vector<16x16x64xf32> to vector<14x14x64xf32>
    %213 = vector.shape_cast %212 : vector<14x14x64xf32> to vector<196x64xf32>
    %214 = tpu.concatenate %197, %199, %201, %203, %205, %207, %209, %211, %213 in 1 : vector<196x64xf32>, vector<196x64xf32>, vector<196x64xf32>, vector<196x64xf32>, vector<196x64xf32>, vector<196x64xf32>, vector<196x64xf32>, vector<196x64xf32>, vector<196x64xf32> -> vector<196x576xf32>
    %215 = arith.truncf %214 : vector<196x576xf32> to vector<196x576xbf16>
    %c0_94 = arith.constant 0 : index
    %c0_95 = arith.constant 0 : index
    %216 = vector.load %arg10[%c0_94, %c0_95] : memref<576x4xbf16, #tpu.memory_space<vmem>>, vector<576x4xbf16>
    %cst_96 = arith.constant dense<0.000000e+00> : vector<196x4xf32>
    %217 = tpu.matmul %215, %216, %cst_96 {dimension_numbers = #tpu.dot_dimension_numbers<[1], [0], [0], [1], [0, 0, 1, 1], [], []>} : vector<196x576xbf16>, vector<576x4xbf16>, vector<196x4xf32> -> vector<196x4xf32>
    %c0_97 = arith.constant 0 : index
    %c0_98 = arith.constant 0 : index
    %218 = vector.load %arg11[%c0_97, %c0_98] : memref<1x4xf32, #tpu.memory_space<vmem>>, vector<1x4xf32>
    %219 = vector.broadcast %218 : vector<1x4xf32> to vector<196x4xf32>
    %220 = arith.addf %217, %219 : vector<196x4xf32>
    %221 = arith.negf %220 : vector<196x4xf32>
    %222 = math.exp %221 : vector<196x4xf32>
    %cst_99 = arith.constant 1.000000e+00 : f32
    %223 = vector.broadcast %cst_99 : f32 to vector<196x4xf32>
    %224 = arith.addf %223, %222 : vector<196x4xf32>
    %225 = arith.divf %223, %224 : vector<196x4xf32>
    %226 = tpu.transpose %225, [1, 0] : vector<196x4xf32> -> vector<4x196xf32>
    %c0_100 = arith.constant 0 : index
    %c0_101 = arith.constant 0 : index
    %c0_102 = arith.constant 0 : index
    %227 = vector.load %arg12[%c0_100, %c0_101, %c0_102] : memref<1x4x196xf32, #tpu.memory_space<vmem>>, vector<1x4x196xf32>
    %228 = vector.shape_cast %227 : vector<1x4x196xf32> to vector<4x196xf32>
    %229 = vector.shape_cast %226 : vector<4x196xf32> to vector<1x4x196xf32>
    tpu.vector_store %arg12[%c0_100, %c0_101, %c0_102], %229 {strides = array<i32>} : memref<1x4x196xf32, #tpu.memory_space<vmem>>, vector<1x4x196xf32>,
    return
  }
  func.func @transform_0(%arg0: i32) -> (i32, i32, i32) {
    %c0_i32 = arith.constant 0 : i32
    %c0_i32_0 = arith.constant 0 : i32
    %c0_i32_1 = arith.constant 0 : i32
    return %arg0, %c0_i32, %c0_i32_0 : i32, i32, i32
  }
  func.func @transform_1(%arg0: i32) -> (i32, i32, i32) {
    %c0_i32 = arith.constant 0 : i32
    %c0_i32_0 = arith.constant 0 : i32
    %c0_i32_1 = arith.constant 0 : i32
    %c0_i32_2 = arith.constant 0 : i32
    return %c0_i32, %c0_i32_0, %c0_i32_1 : i32, i32, i32
  }
  func.func @transform_2(%arg0: i32) -> (i32, i32) {
    %c0_i32 = arith.constant 0 : i32
    %c0_i32_0 = arith.constant 0 : i32
    %c0_i32_1 = arith.constant 0 : i32
    return %c0_i32, %c0_i32_0 : i32, i32
  }
  func.func @transform_3(%arg0: i32) -> (i32, i32) {
    %c0_i32 = arith.constant 0 : i32
    %c0_i32_0 = arith.constant 0 : i32
    %c0_i32_1 = arith.constant 0 : i32
    return %c0_i32, %c0_i32_0 : i32, i32
  }
  func.func @transform_4(%arg0: i32) -> (i32, i32) {
    %c0_i32 = arith.constant 0 : i32
    %c0_i32_0 = arith.constant 0 : i32
    %c0_i32_1 = arith.constant 0 : i32
    return %c0_i32, %c0_i32_0 : i32, i32
  }
  func.func @transform_5(%arg0: i32) -> (i32, i32) {
    %c0_i32 = arith.constant 0 : i32
    %c0_i32_0 = arith.constant 0 : i32
    %c0_i32_1 = arith.constant 0 : i32
    return %c0_i32, %c0_i32_0 : i32, i32
  }
  func.func @transform_6(%arg0: i32) -> (i32, i32) {
    %c0_i32 = arith.constant 0 : i32
    %c0_i32_0 = arith.constant 0 : i32
    %c0_i32_1 = arith.constant 0 : i32
    return %c0_i32, %c0_i32_0 : i32, i32
  }
  func.func @transform_7(%arg0: i32) -> (i32, i32) {
    %c0_i32 = arith.constant 0 : i32
    %c0_i32_0 = arith.constant 0 : i32
    %c0_i32_1 = arith.constant 0 : i32
    return %c0_i32, %c0_i32_0 : i32, i32
  }
  func.func @transform_8(%arg0: i32) -> (i32, i32) {
    %c0_i32 = arith.constant 0 : i32
    %c0_i32_0 = arith.constant 0 : i32
    %c0_i32_1 = arith.constant 0 : i32
    return %c0_i32, %c0_i32_0 : i32, i32
  }
  func.func @transform_9(%arg0: i32) -> (i32, i32) {
    %c0_i32 = arith.constant 0 : i32
    %c0_i32_0 = arith.constant 0 : i32
    %c0_i32_1 = arith.constant 0 : i32
    return %c0_i32, %c0_i32_0 : i32, i32
  }
  func.func @transform_10(%arg0: i32) -> (i32, i32) {
    %c0_i32 = arith.constant 0 : i32
    %c0_i32_0 = arith.constant 0 : i32
    %c0_i32_1 = arith.constant 0 : i32
    return %c0_i32, %c0_i32_0 : i32, i32
  }
  func.func @transform_11(%arg0: i32) -> (i32, i32, i32) {
    %c0_i32 = arith.constant 0 : i32
    %c0_i32_0 = arith.constant 0 : i32
    %c0_i32_1 = arith.constant 0 : i32
    return %arg0, %c0_i32, %c0_i32_0 : i32, i32, i32
  }
}

</mosaic_0001>

<llo_original>
// kernel: denoising_autoencoder_forward.1
$region0: #{denoising_autoencoder_forward.1}
  #allocation0 [shape = 'u32[]', space=smem, size = 0x4, offset = 0x4, fixed_abs, tag = 'smem constant byte address 0x4 - core index']
  #allocation1 [shape = 'u32[72,128]{1,0:T(1,128)}', space=vmem, size = 0x9000, scoped, tag = 'internal scratch']
  #allocation2 [shape = 'f32[18,18,4]{2,1,0:T(8,128)}', space=vmem, size = 0x36000, scoped, tag = 'scratch operand']
  #allocation3 [shape = 'f32[10,10,64]{2,1,0:T(8,128)}', space=vmem, size = 0x14000, scoped, tag = 'scratch operand']
  #allocation4 [shape = 'f32[6,6,128]{2,1,0:T(8,128)}', space=vmem, size = 0x6000, scoped, tag = 'scratch operand']
  #allocation5 [shape = 'f32[10,10,128]{2,1,0:T(8,128)}', space=vmem, size = 0x14000, scoped, tag = 'scratch operand']
  %s0 = inlined_call_operand.vmem [shape: f32[2,4,256], index: 0, kind: input, shape index: {}]
  %s1 = inlined_call_operand.vmem [shape: bf16[9,4,64], index: 1, kind: input, shape index: {}]
  %s2 = inlined_call_operand.vmem [shape: f32[1,64], index: 2, kind: input, shape index: {}]
  %s3 = inlined_call_operand.vmem [shape: bf16[576,128], index: 3, kind: input, shape index: {}]
  %s4 = inlined_call_operand.vmem [shape: f32[1,128], index: 4, kind: input, shape index: {}]
  %s5 = inlined_call_operand.vmem [shape: bf16[1152,128], index: 5, kind: input, shape index: {}]
  %s6 = inlined_call_operand.vmem [shape: f32[1,128], index: 6, kind: input, shape index: {}]
  %s7 = inlined_call_operand.vmem [shape: bf16[1152,64], index: 7, kind: input, shape index: {}]
  %s8 = inlined_call_operand.vmem [shape: f32[1,64], index: 8, kind: input, shape index: {}]
  %s9 = inlined_call_operand.vmem [shape: bf16[576,4], index: 9, kind: input, shape index: {}]
  %s10 = inlined_call_operand.vmem [shape: f32[1,4], index: 10, kind: input, shape index: {}]
  %s11 = inlined_call_operand.vmem [shape: f32[2,4,196], index: 11, kind: output, shape index: {}]
  %s12 = sld [smem:[#allocation0]]
  $region77: #{denoising_autoencoder_forward.1} parent=0
    _
  %s14 = ssub.s32 1, %s12
  %s15 = scalar_select 0, %s14, %s12
  loop: start=0, step=1, limit=4
  $region2: #{denoising_autoencoder_forward.1} parent=0 // loop_pre_header
    _
  $region3: #{denoising_autoencoder_forward.1} parent=0 // loop_header
    %s17 = sphi 0, %s21
    %p18 = scmp.ge.s32.totalorder %s17, 4
    %s27 = sphi 0, %s29
    %s30 = sphi 0, %s27
    %s31 = sphi 0, %s30
    %s47 = sphi 0, %s31
    %s51 = sphi 0, %s51
    %s53 = sphi 0, %s51
    %s54 = sphi 0, %s53
    %s68 = sphi 0, %s54
    %s72 = sphi 0, %s72
    %s74 = sphi 0, %s72
    %s75 = sphi 0, %s74
    %s89 = sphi 0, %s75
    %s93 = sphi 0, %s93
    %s95 = sphi 0, %s93
    %s96 = sphi 0, %s95
    %s110 = sphi 0, %s96
    %s114 = sphi 0, %s114
    %s116 = sphi 0, %s114
    %s117 = sphi 0, %s116
    %s131 = sphi 0, %s117
    %s135 = sphi 0, %s135
    %s137 = sphi 0, %s135
    %s138 = sphi 0, %s137
    %s152 = sphi 0, %s138
    %s156 = sphi 0, %s156
    %s158 = sphi 0, %s156
    %s159 = sphi 0, %s158
    %s173 = sphi 0, %s159
    %s177 = sphi 0, %s177
    %s179 = sphi 0, %s177
    %s180 = sphi 0, %s179
    %s194 = sphi 0, %s180
    %s198 = sphi 0, %s198
    %s200 = sphi 0, %s198
    %s201 = sphi 0, %s200
    %s215 = sphi 0, %s201
    %s219 = sphi 0, %s219
    %s221 = sphi 0, %s219
    %s222 = sphi 0, %s221
    %s236 = sphi 0, %s222
    %s240 = sphi 0, %s240
    %s242 = sphi 0, %s240
    %s243 = sphi 0, %s242
    %s257 = sphi 0, %s243
    %s263 = sphi 0, %s265
    %s266 = sphi 0, %s263
    %s267 = sphi 0, %s266
    %s283 = sphi 0, %s267
  $region4: #{denoising_autoencoder_forward.1} parent=0 // loop_header_branch
    %20 = sbr.rel (%p18) target = $region8
  $region5: #{denoising_autoencoder_forward.1} parent=0 // loop_body
    %s22 = ssub.s32 %s17, 1
    %s23 = ssub.s32 %s17, 2
    %s24 = sadd.s32 %s17, 1
    %s25 = ssub.s32 %s17, %s24
    %p26 = scmp.eq.s32.totalorder %s25, 0
    %s28 = sadd.s32 %s27, 1
    %s29 = scalar_select %p26, %s27, %s28
    %p32 = pneg %p26
    %p33 = scmp.eq.s32.totalorder %s17, 1
    %p34 = por %p32, %p33
    %p35 = scmp.ne.s32.totalorder %s27, %s30
    %p36 = scmp.eq.s32.totalorder %s17, 0
    %p37 = por %p35, %p36
    %p38 = scmp.ne.s32.totalorder %s27, %s30
    %p39 = scmp.eq.s32.totalorder %s22, 1
    %p40 = por %p38, %p39
    %p41 = scmp.ne.s32.totalorder %s30, %s31
    %p42 = scmp.eq.s32.totalorder %s22, 0
    %p43 = por %p41, %p42
    %p44 = scmp.ne.s32.totalorder %s30, %s31
    %p45 = scmp.eq.s32.totalorder %s23, 1
    %p46 = por %p44, %p45
    %p48 = scmp.ne.s32.totalorder %s31, %s47
    %p49 = scmp.eq.s32.totalorder %s23, 0
    %p50 = por %p48, %p49
    %s52 = sadd.s32 %s51, 1
    %p55 = scmp.eq.s32.totalorder %s17, 1
    %p56 = scmp.ne.s32.totalorder %s51, %s53
    %p57 = scmp.eq.s32.totalorder %s17, 0
    %p58 = por %p56, %p57
    %p59 = scmp.ne.s32.totalorder %s51, %s53
    %p60 = scmp.eq.s32.totalorder %s22, 1
    %p61 = por %p59, %p60
    %p62 = scmp.ne.s32.totalorder %s53, %s54
    %p63 = scmp.eq.s32.totalorder %s22, 0
    %p64 = por %p62, %p63
    %p65 = scmp.ne.s32.totalorder %s53, %s54
    %p66 = scmp.eq.s32.totalorder %s23, 1
    %p67 = por %p65, %p66
    %p69 = scmp.ne.s32.totalorder %s54, %s68
    %p70 = scmp.eq.s32.totalorder %s23, 0
    %p71 = por %p69, %p70
    %s73 = sadd.s32 %s72, 1
    %p76 = scmp.eq.s32.totalorder %s17, 1
    %p77 = scmp.ne.s32.totalorder %s72, %s74
    %p78 = scmp.eq.s32.totalorder %s17, 0
    %p79 = por %p77, %p78
    %p80 = scmp.ne.s32.totalorder %s72, %s74
    %p81 = scmp.eq.s32.totalorder %s22, 1
    %p82 = por %p80, %p81
    %p83 = scmp.ne.s32.totalorder %s74, %s75
    %p84 = scmp.eq.s32.totalorder %s22, 0
    %p85 = por %p83, %p84
    %p86 = scmp.ne.s32.totalorder %s74, %s75
    %p87 = scmp.eq.s32.totalorder %s23, 1
    %p88 = por %p86, %p87
    %p90 = scmp.ne.s32.totalorder %s75, %s89
    %p91 = scmp.eq.s32.totalorder %s23, 0
    %p92 = por %p90, %p91
    %s94 = sadd.s32 %s93, 1
    %p97 = scmp.eq.s32.totalorder %s17, 1
    %p98 = scmp.ne.s32.totalorder %s93, %s95
    %p99 = scmp.eq.s32.totalorder %s17, 0
    %p100 = por %p98, %p99
    %p101 = scmp.ne.s32.totalorder %s93, %s95
    %p102 = scmp.eq.s32.totalorder %s22, 1
    %p103 = por %p101, %p102
    %p104 = scmp.ne.s32.totalorder %s95, %s96
    %p105 = scmp.eq.s32.totalorder %s22, 0
    %p106 = por %p104, %p105
    %p107 = scmp.ne.s32.totalorder %s95, %s96
    %p108 = scmp.eq.s32.totalorder %s23, 1
    %p109 = por %p107, %p108
    %p111 = scmp.ne.s32.totalorder %s96, %s110
    %p112 = scmp.eq.s32.totalorder %s23, 0
    %p113 = por %p111, %p112
    %s115 = sadd.s32 %s114, 1
    %p118 = scmp.eq.s32.totalorder %s17, 1
    %p119 = scmp.ne.s32.totalorder %s114, %s116
    %p120 = scmp.eq.s32.totalorder %s17, 0
    %p121 = por %p119, %p120
    %p122 = scmp.ne.s32.totalorder %s114, %s116
    %p123 = scmp.eq.s32.totalorder %s22, 1
    %p124 = por %p122, %p123
    %p125 = scmp.ne.s32.totalorder %s116, %s117
    %p126 = scmp.eq.s32.totalorder %s22, 0
    %p127 = por %p125, %p126
    %p128 = scmp.ne.s32.totalorder %s116, %s117
    %p129 = scmp.eq.s32.totalorder %s23, 1
    %p130 = por %p128, %p129
    %p132 = scmp.ne.s32.totalorder %s117, %s131
    %p133 = scmp.eq.s32.totalorder %s23, 0
    %p134 = por %p132, %p133
    %s136 = sadd.s32 %s135, 1
    %p139 = scmp.eq.s32.totalorder %s17, 1
    %p140 = scmp.ne.s32.totalorder %s135, %s137
    %p141 = scmp.eq.s32.totalorder %s17, 0
    %p142 = por %p140, %p141
    %p143 = scmp.ne.s32.totalorder %s135, %s137
    %p144 = scmp.eq.s32.totalorder %s22, 1
    %p145 = por %p143, %p144
    %p146 = scmp.ne.s32.totalorder %s137, %s138
    %p147 = scmp.eq.s32.totalorder %s22, 0
    %p148 = por %p146, %p147
    %p149 = scmp.ne.s32.totalorder %s137, %s138
    %p150 = scmp.eq.s32.totalorder %s23, 1
    %p151 = por %p149, %p150
    %p153 = scmp.ne.s32.totalorder %s138, %s152
    %p154 = scmp.eq.s32.totalorder %s23, 0
    %p155 = por %p153, %p154
    %s157 = sadd.s32 %s156, 1
    %p160 = scmp.eq.s32.totalorder %s17, 1
    %p161 = scmp.ne.s32.totalorder %s156, %s158
    %p162 = scmp.eq.s32.totalorder %s17, 0
    %p163 = por %p161, %p162
    %p164 = scmp.ne.s32.totalorder %s156, %s158
    %p165 = scmp.eq.s32.totalorder %s22, 1
    %p166 = por %p164, %p165
    %p167 = scmp.ne.s32.totalorder %s158, %s159
    %p168 = scmp.eq.s32.totalorder %s22, 0
    %p169 = por %p167, %p168
    %p170 = scmp.ne.s32.totalorder %s158, %s159
    %p171 = scmp.eq.s32.totalorder %s23, 1
    %p172 = por %p170, %p171
    %p174 = scmp.ne.s32.totalorder %s159, %s173
    %p175 = scmp.eq.s32.totalorder %s23, 0
    %p176 = por %p174, %p175
    %s178 = sadd.s32 %s177, 1
    %p181 = scmp.eq.s32.totalorder %s17, 1
    %p182 = scmp.ne.s32.totalorder %s177, %s179
    %p183 = scmp.eq.s32.totalorder %s17, 0
    %p184 = por %p182, %p183
    %p185 = scmp.ne.s32.totalorder %s177, %s179
    %p186 = scmp.eq.s32.totalorder %s22, 1
    %p187 = por %p185, %p186
    %p188 = scmp.ne.s32.totalorder %s179, %s180
    %p189 = scmp.eq.s32.totalorder %s22, 0
    %p190 = por %p188, %p189
    %p191 = scmp.ne.s32.totalorder %s179, %s180
    %p192 = scmp.eq.s32.totalorder %s23, 1
    %p193 = por %p191, %p192
    %p195 = scmp.ne.s32.totalorder %s180, %s194
    %p196 = scmp.eq.s32.totalorder %s23, 0
    %p197 = por %p195, %p196
    %s199 = sadd.s32 %s198, 1
    %p202 = scmp.eq.s32.totalorder %s17, 1
    %p203 = scmp.ne.s32.totalorder %s198, %s200
    %p204 = scmp.eq.s32.totalorder %s17, 0
    %p205 = por %p203, %p204
    %p206 = scmp.ne.s32.totalorder %s198, %s200
    %p207 = scmp.eq.s32.totalorder %s22, 1
    %p208 = por %p206, %p207
    %p209 = scmp.ne.s32.totalorder %s200, %s201
    %p210 = scmp.eq.s32.totalorder %s22, 0
    %p211 = por %p209, %p210
    %p212 = scmp.ne.s32.totalorder %s200, %s201
    %p213 = scmp.eq.s32.totalorder %s23, 1
    %p214 = por %p212, %p213
    %p216 = scmp.ne.s32.totalorder %s201, %s215
    %p217 = scmp.eq.s32.totalorder %s23, 0
    %p218 = por %p216, %p217
    %s220 = sadd.s32 %s219, 1
    %p223 = scmp.eq.s32.totalorder %s17, 1
    %p224 = scmp.ne.s32.totalorder %s219, %s221
    %p225 = scmp.eq.s32.totalorder %s17, 0
    %p226 = por %p224, %p225
    %p227 = scmp.ne.s32.totalorder %s219, %s221
    %p228 = scmp.eq.s32.totalorder %s22, 1
    %p229 = por %p227, %p228
    %p230 = scmp.ne.s32.totalorder %s221, %s222
    %p231 = scmp.eq.s32.totalorder %s22, 0
    %p232 = por %p230, %p231
    %p233 = scmp.ne.s32.totalorder %s221, %s222
    %p234 = scmp.eq.s32.totalorder %s23, 1
    %p235 = por %p233, %p234
    %p237 = scmp.ne.s32.totalorder %s222, %s236
    %p238 = scmp.eq.s32.totalorder %s23, 0
    %p239 = por %p237, %p238
    %s241 = sadd.s32 %s240, 1
    %p244 = scmp.eq.s32.totalorder %s17, 1
    %p245 = scmp.ne.s32.totalorder %s240, %s242
    %p246 = scmp.eq.s32.totalorder %s17, 0
    %p247 = por %p245, %p246
    %p248 = scmp.ne.s32.totalorder %s240, %s242
    %p249 = scmp.eq.s32.totalorder %s22, 1
    %p250 = por %p248, %p249
    %p251 = scmp.ne.s32.totalorder %s242, %s243
    %p252 = scmp.eq.s32.totalorder %s22, 0
    %p253 = por %p251, %p252
    %p254 = scmp.ne.s32.totalorder %s242, %s243
    %p255 = scmp.eq.s32.totalorder %s23, 1
    %p256 = por %p254, %p255
    %p258 = scmp.ne.s32.totalorder %s243, %s257
    %p259 = scmp.eq.s32.totalorder %s23, 0
    %p260 = por %p258, %p259
    %s261 = ssub.s32 %s17, %s24
    %p262 = scmp.eq.s32.totalorder %s261, 0
    %s264 = sadd.s32 %s263, 1
    %s265 = scalar_select %p262, %s263, %s264
    %p268 = pneg %p262
    %p269 = scmp.eq.s32.totalorder %s17, 1
    %p270 = por %p268, %p269
    %p271 = scmp.ne.s32.totalorder %s263, %s266
    %p272 = scmp.eq.s32.totalorder %s17, 0
    %p273 = por %p271, %p272
    %p274 = scmp.ne.s32.totalorder %s263, %s266
    %p275 = scmp.eq.s32.totalorder %s22, 1
    %p276 = por %p274, %p275
    %p277 = scmp.ne.s32.totalorder %s266, %s267
    %p278 = scmp.eq.s32.totalorder %s22, 0
    %p279 = por %p277, %p278
    %p280 = scmp.ne.s32.totalorder %s266, %s267
    %p281 = scmp.eq.s32.totalorder %s23, 1
    %p282 = por %p280, %p281
    %p284 = scmp.ne.s32.totalorder %s267, %s283
    %p285 = scmp.eq.s32.totalorder %s23, 0
    %p286 = por %p284, %p285
    %p287 = scmp.le.s32.totalorder 1, %s17
    %p288 = scmp.lt.s32.totalorder %s17, 3
    %p289 = pnand %p287, %p288
    %p290 = pneg %p289
    // Predicated region
    $region9: #{denoising_autoencoder_forward.1} parent=5 // pred_check
      _
    $region10: #{denoising_autoencoder_forward.1} parent=5 // pred_check_branch
      %292 = sbr.rel (%p289) target = $region12
    $region11: #{denoising_autoencoder_forward.1} parent=5 // pred_region
      %s293 = ssub.s32 %s17, 1
      // Predicated region
      $region13: #{denoising_autoencoder_forward.1} parent=11 // pred_check
        %p294 = pneg %p64
      $region14: #{denoising_autoencoder_forward.1} parent=11 // pred_check_branch
        %296 = sbr.rel (%p294) target = $region16
      $region15: #{denoising_autoencoder_forward.1} parent=11 // pred_region
        _
      $region16: #{denoising_autoencoder_forward.1} parent=11 // pred_fallthru
        _
      // Predicated region
      $region17: #{denoising_autoencoder_forward.1} parent=11 // pred_check
        %p297 = pneg %p85
      $region18: #{denoising_autoencoder_forward.1} parent=11 // pred_check_branch
        %299 = sbr.rel (%p297) target = $region20
      $region19: #{denoising_autoencoder_forward.1} parent=11 // pred_region
        _
      $region20: #{denoising_autoencoder_forward.1} parent=11 // pred_fallthru
        _
      // Predicated region
      $region21: #{denoising_autoencoder_forward.1} parent=11 // pred_check
        %p300 = pneg %p106
      $region22: #{denoising_autoencoder_forward.1} parent=11 // pred_check_branch
        %302 = sbr.rel (%p300) target = $region24
      $region23: #{denoising_autoencoder_forward.1} parent=11 // pred_region
        _
      $region24: #{denoising_autoencoder_forward.1} parent=11 // pred_fallthru
        _
      // Predicated region
      $region25: #{denoising_autoencoder_forward.1} parent=11 // pred_check
        %p303 = pneg %p127
      $region26: #{denoising_autoencoder_forward.1} parent=11 // pred_check_branch
        %305 = sbr.rel (%p303) target = $region28
      $region27: #{denoising_autoencoder_forward.1} parent=11 // pred_region
        _
      $region28: #{denoising_autoencoder_forward.1} parent=11 // pred_fallthru
        _
      // Predicated region
      $region29: #{denoising_autoencoder_forward.1} parent=11 // pred_check
        %p306 = pneg %p148
      $region30: #{denoising_autoencoder_forward.1} parent=11 // pred_check_branch
        %308 = sbr.rel (%p306) target = $region32
      $region31: #{denoising_autoencoder_forward.1} parent=11 // pred_region
        _
      $region32: #{denoising_autoencoder_forward.1} parent=11 // pred_fallthru
        _
      // Predicated region
      $region33: #{denoising_autoencoder_forward.1} parent=11 // pred_check
        %p309 = pneg %p169
      $region34: #{denoising_autoencoder_forward.1} parent=11 // pred_check_branch
        %311 = sbr.rel (%p309) target = $region36
      $region35: #{denoising_autoencoder_forward.1} parent=11 // pred_region
        _
      $region36: #{denoising_autoencoder_forward.1} parent=11 // pred_fallthru
        _
      // Predicated region
      $region37: #{denoising_autoencoder_forward.1} parent=11 // pred_check
        %p312 = pneg %p190
      $region38: #{denoising_autoencoder_forward.1} parent=11 // pred_check_branch
        %314 = sbr.rel (%p312) target = $region40
      $region39: #{denoising_autoencoder_forward.1} parent=11 // pred_region
        _
      $region40: #{denoising_autoencoder_forward.1} parent=11 // pred_fallthru
        _
      // Predicated region
      $region41: #{denoising_autoencoder_forward.1} parent=11 // pred_check
        %p315 = pneg %p211
      $region42: #{denoising_autoencoder_forward.1} parent=11 // pred_check_branch
        %317 = sbr.rel (%p315) target = $region44
      $region43: #{denoising_autoencoder_forward.1} parent=11 // pred_region
        _
      $region44: #{denoising_autoencoder_forward.1} parent=11 // pred_fallthru
        _
      // Predicated region
      $region45: #{denoising_autoencoder_forward.1} parent=11 // pred_check
        %p318 = pneg %p232
      $region46: #{denoising_autoencoder_forward.1} parent=11 // pred_check_branch
        %320 = sbr.rel (%p318) target = $region48
      $region47: #{denoising_autoencoder_forward.1} parent=11 // pred_region
        _
      $region48: #{denoising_autoencoder_forward.1} parent=11 // pred_fallthru
        _
      // Predicated region
      $region49: #{denoising_autoencoder_forward.1} parent=11 // pred_check
        %p321 = pneg %p253
      $region50: #{denoising_autoencoder_forward.1} parent=11 // pred_check_branch
        %323 = sbr.rel (%p321) target = $region52
      $region51: #{denoising_autoencoder_forward.1} parent=11 // pred_region
        _
      $region52: #{denoising_autoencoder_forward.1} parent=11 // pred_fallthru
        _
    $region12: #{denoising_autoencoder_forward.1} parent=5 // pred_fallthru
      _
    %p324 = scmp.lt.s32.totalorder %s17, 2
    // Predicated region
    $region53: #{denoising_autoencoder_forward.1} parent=5 // pred_check
      %p325 = pneg %p324
    $region54: #{denoising_autoencoder_forward.1} parent=5 // pred_check_branch
      %327 = sbr.rel (%p325) target = $region56
    $region55: #{denoising_autoencoder_forward.1} parent=5 // pred_region
      // Predicated region
      $region57: #{denoising_autoencoder_forward.1} parent=55 // pred_check
        %p328 = pneg %p37
      $region58: #{denoising_autoencoder_forward.1} parent=55 // pred_check_branch
        %330 = sbr.rel (%p328) target = $region60
      $region59: #{denoising_autoencoder_forward.1} parent=55 // pred_region
        %p331 = scmp.lt.s32.totalorder %s17, 1
        %s332 = scalar_select %p331, %s17, 1
        %s333 = smul.addr %s332, 2
        %s334 = smul.addr %s333, 4
        %s335 = scalar_lea.vmem %s0, %s334
      $region60: #{denoising_autoencoder_forward.1} parent=55 // pred_fallthru
        _
    $region56: #{denoising_autoencoder_forward.1} parent=5 // pred_fallthru
      _
    %p336 = scmp.le.s32.totalorder 1, %s17
    %p337 = scmp.lt.s32.totalorder %s17, 3
    %p338 = pnand %p336, %p337
    %p339 = pneg %p338
    // Predicated region
    $region61: #{denoising_autoencoder_forward.1} parent=5 // pred_check
      _
    $region62: #{denoising_autoencoder_forward.1} parent=5 // pred_check_branch
      %341 = sbr.rel (%p338) target = $region64
    $region63: #{denoising_autoencoder_forward.1} parent=5 // pred_region
      %s342 = ssub.s32 %s17, 1
      %p343 = scmp.lt.s32.totalorder %s22, 1
      %s344 = scalar_select %p343, %s22, 1
      %s345 = smul.addr %s344, 2
      %s346 = smul.addr %s345, 4
      %s347 = scalar_lea.vmem %s0, %s346
      %p348 = pneg %p43
      %p349 = pneg %p40
      %p350 = pneg %p64
      %p351 = pneg %p61
      %p352 = pneg %p85
      %p353 = pneg %p82
      %p354 = pneg %p106
      %p355 = pneg %p103
      %p356 = pneg %p127
      %p357 = pneg %p124
      %p358 = pneg %p148
      %p359 = pneg %p145
      %p360 = pneg %p169
      %p361 = pneg %p166
      %p362 = pneg %p190
      %p363 = pneg %p187
      %p364 = pneg %p211
      %p365 = pneg %p208
      %p366 = pneg %p232
      %p367 = pneg %p229
      %p368 = pneg %p253
      %p369 = pneg %p250
      %p370 = pneg %p279
      %p371 = pneg %p276
      %p372 = scmp.lt.s32.totalorder %s22, 1
      %s373 = scalar_select %p372, %s22, 1
      %s374 = smul.addr %s373, 2
      %s375 = smul.addr %s374, 4
      %s376 = scalar_lea.vmem %s11, %s375
      %p377 = scmp.lt.s32.totalorder %s22, 1
      %s378 = scalar_select %p377, %s22, 1
      %s379 = smul.addr %s378, 2
      %s380 = smul.addr %s379, 4
      %s381 = scalar_lea.vmem %s0, %s380
      %p382 = scmp.lt.s32.totalorder %s22, 1
      %s383 = scalar_select %p382, %s22, 1
      %s384 = smul.addr %s383, 2
      %s385 = smul.addr %s384, 4
      %s386 = scalar_lea.vmem %s11, %s385
      %v388 = vld [vmem:[%s381] sm:$0xff]
      %390 = vst [vmem:[#allocation1] ss:$2 sm:$0xff] %v388
      %v391 = vld.sshfl [vmem:[#allocation1] sm:$0xff pattern:$0x75316420]
      %v392 = vld.sshfl [vmem:[#allocation1 + $0x8] sm:$0xff pattern:$0x75316420]
      %395 = vxpose.xlu0.b32.start [1/16] %v391, 128
      %396 = vxpose.xlu0.b32.cont [2/16] 0.0, 128
      %397 = vxpose.xlu0.b32.cont [3/16] 0.0, 128
      %398 = vxpose.xlu0.b32.cont [4/16] 0.0, 128
      %399 = vxpose.xlu0.b32.cont [5/16] 0.0, 128
      %400 = vxpose.xlu0.b32.cont [6/16] 0.0, 128
      %401 = vxpose.xlu0.b32.cont [7/16] 0.0, 128
      %402 = vxpose.xlu0.b32.cont [8/16] 0.0, 128
      %403 = vxpose.xlu0.b32.cont [9/16] 0.0, 128
      %404 = vxpose.xlu0.b32.cont [10/16] 0.0, 128
      %405 = vxpose.xlu0.b32.cont [11/16] 0.0, 128
      %406 = vxpose.xlu0.b32.cont [12/16] 0.0, 128
      %407 = vxpose.xlu0.b32.cont [13/16] 0.0, 128
      %408 = vxpose.xlu0.b32.cont [14/16] 0.0, 128
      %409 = vxpose.xlu0.b32.cont [15/16] 0.0, 128
      %410 = vxpose.xlu0.b32.end [16/16] 0.0, 128
      %v411 = vpop.trf.xlu0
      %v412 = vpop.trf.xlu0
      %v413 = vpop.trf.xlu0
      %v414 = vpop.trf.xlu0
      %v415 = vpop.trf.xlu0
      %v416 = vpop.trf.xlu0
      %v417 = vpop.trf.xlu0
      %v418 = vpop.trf.xlu0
      %v419 = vpop.trf.xlu0
      %v420 = vpop.trf.xlu0
      %v421 = vpop.trf.xlu0
      %v422 = vpop.trf.xlu0
      %v423 = vpop.trf.xlu0
      %v424 = vpop.trf.xlu0
      %v425 = vpop.trf.xlu0
      %v426 = vpop.trf.xlu0
      %427 = vxpose.xlu0.b32.start [1/16] %v392, 128
      %428 = vxpose.xlu0.b32.cont [2/16] 0.0, 128
      %429 = vxpose.xlu0.b32.cont [3/16] 0.0, 128
      %430 = vxpose.xlu0.b32.cont [4/16] 0.0, 128
      %431 = vxpose.xlu0.b32.cont [5/16] 0.0, 128
      %432 = vxpose.xlu0.b32.cont [6/16] 0.0, 128
      %433 = vxpose.xlu0.b32.cont [7/16] 0.0, 128
      %434 = vxpose.xlu0.b32.cont [8/16] 0.0, 128
      %435 = vxpose.xlu0.b32.cont [9/16] 0.0, 128
      %436 = vxpose.xlu0.b32.cont [10/16] 0.0, 128
      %437 = vxpose.xlu0.b32.cont [11/16] 0.0, 128
      %438 = vxpose.xlu0.b32.cont [12/16] 0.0, 128
      %439 = vxpose.xlu0.b32.cont [13/16] 0.0, 128
      %440 = vxpose.xlu0.b32.cont [14/16] 0.0, 128
      %441 = vxpose.xlu0.b32.cont [15/16] 0.0, 128
      %442 = vxpose.xlu0.b32.end [16/16] 0.0, 128
      %v443 = vpop.trf.xlu0
      %v444 = vpop.trf.xlu0
      %v445 = vpop.trf.xlu0
      %v446 = vpop.trf.xlu0
      %v447 = vpop.trf.xlu0
      %v448 = vpop.trf.xlu0
      %v449 = vpop.trf.xlu0
      %v450 = vpop.trf.xlu0
      %v451 = vpop.trf.xlu0
      %v452 = vpop.trf.xlu0
      %v453 = vpop.trf.xlu0
      %v454 = vpop.trf.xlu0
      %v455 = vpop.trf.xlu0
      %v456 = vpop.trf.xlu0
      %v457 = vpop.trf.xlu0
      %v458 = vpop.trf.xlu0
      %vm459 = vcmask 31744
      %460 = vst.msk [vmem:[#allocation2] sm:$0xff] %vm459, 0.0
      %461 = vst.msk [vmem:[#allocation2 + $0x8] sm:$0xff] %vm459, 0.0
      %vm462 = vcmask 25600
      %463 = vst.msk [vmem:[#allocation2 + $0x10] sm:$0x3] %vm462, 0.0
      %464 = vst.msk [vmem:[#allocation2 + $0x18] sm:$0xff] %vm459, 0.0
      %465 = vst.msk [vmem:[#allocation2 + $0x20] sm:$0xff] %vm459, 0.0
      %466 = vst.msk [vmem:[#allocation2 + $0x28] sm:$0x3] %vm462, 0.0
      %467 = vst.msk [vmem:[#allocation2 + $0x30] sm:$0xff] %vm459, 0.0
      %468 = vst.msk [vmem:[#allocation2 + $0x38] sm:$0xff] %vm459, 0.0
      %469 = vst.msk [vmem:[#allocation2 + $0x40] sm:$0x3] %vm462, 0.0
      %470 = vst.msk [vmem:[#allocation2 + $0x48] sm:$0xff] %vm459, 0.0
      %471 = vst.msk [vmem:[#allocation2 + $0x50] sm:$0xff] %vm459, 0.0
      %472 = vst.msk [vmem:[#allocation2 + $0x58] sm:$0x3] %vm462, 0.0
      %473 = vst.msk [vmem:[#allocation2 + $0x60] sm:$0xff] %vm459, 0.0
      %474 = vst.msk [vmem:[#allocation2 + $0x68] sm:$0xff] %vm459, 0.0
      %475 = vst.msk [vmem:[#allocation2 + $0x70] sm:$0x3] %vm462, 0.0
      %476 = vst.msk [vmem:[#allocation2 + $0x78] sm:$0xff] %vm459, 0.0
      %477 = vst.msk [vmem:[#allocation2 + $0x80] sm:$0xff] %vm459, 0.0
      %478 = vst.msk [vmem:[#allocation2 + $0x88] sm:$0x3] %vm462, 0.0
      %479 = vst.msk [vmem:[#allocation2 + $0x90] sm:$0xff] %vm459, 0.0
      %480 = vst.msk [vmem:[#allocation2 + $0x98] sm:$0xff] %vm459, 0.0
      %481 = vst.msk [vmem:[#allocation2 + $0xa0] sm:$0x3] %vm462, 0.0
      %482 = vst.msk [vmem:[#allocation2 + $0xa8] sm:$0xff] %vm459, 0.0
      %483 = vst.msk [vmem:[#allocation2 + $0xb0] sm:$0xff] %vm459, 0.0
      %484 = vst.msk [vmem:[#allocation2 + $0xb8] sm:$0x3] %vm462, 0.0
      %485 = vst.msk [vmem:[#allocation2 + $0xc0] sm:$0xff] %vm459, 0.0
      %486 = vst.msk [vmem:[#allocation2 + $0xc8] sm:$0xff] %vm459, 0.0
      %487 = vst.msk [vmem:[#allocation2 + $0xd0] sm:$0x3] %vm462, 0.0
      %488 = vst.msk [vmem:[#allocation2 + $0xd8] sm:$0xff] %vm459, 0.0
      %489 = vst.msk [vmem:[#allocation2 + $0xe0] sm:$0xff] %vm459, 0.0
      %490 = vst.msk [vmem:[#allocation2 + $0xe8] sm:$0x3] %vm462, 0.0
      %491 = vst.msk [vmem:[#allocation2 + $0xf0] sm:$0xff] %vm459, 0.0
      %492 = vst.msk [vmem:[#allocation2 + $0xf8] sm:$0xff] %vm459, 0.0
      %493 = vst.msk [vmem:[#allocation2 + $0x100] sm:$0x3] %vm462, 0.0
      %494 = vst.msk [vmem:[#allocation2 + $0x108] sm:$0xff] %vm459, 0.0
      %495 = vst.msk [vmem:[#allocation2 + $0x110] sm:$0xff] %vm459, 0.0
      %496 = vst.msk [vmem:[#allocation2 + $0x118] sm:$0x3] %vm462, 0.0
      %497 = vst.msk [vmem:[#allocation2 + $0x120] sm:$0xff] %vm459, 0.0
      %498 = vst.msk [vmem:[#allocation2 + $0x128] sm:$0xff] %vm459, 0.0
      %499 = vst.msk [vmem:[#allocation2 + $0x130] sm:$0x3] %vm462, 0.0
      %500 = vst.msk [vmem:[#allocation2 + $0x138] sm:$0xff] %vm459, 0.0
      %501 = vst.msk [vmem:[#allocation2 + $0x140] sm:$0xff] %vm459, 0.0
      %502 = vst.msk [vmem:[#allocation2 + $0x148] sm:$0x3] %vm462, 0.0
      %503 = vst.msk [vmem:[#allocation2 + $0x150] sm:$0xff] %vm459, 0.0
      %504 = vst.msk [vmem:[#allocation2 + $0x158] sm:$0xff] %vm459, 0.0
      %505 = vst.msk [vmem:[#allocation2 + $0x160] sm:$0x3] %vm462, 0.0
      %506 = vst.msk [vmem:[#allocation2 + $0x168] sm:$0xff] %vm459, 0.0
      %507 = vst.msk [vmem:[#allocation2 + $0x170] sm:$0xff] %vm459, 0.0
      %508 = vst.msk [vmem:[#allocation2 + $0x178] sm:$0x3] %vm462, 0.0
      %509 = vst.msk [vmem:[#allocation2 + $0x180] sm:$0xff] %vm459, 0.0
      %510 = vst.msk [vmem:[#allocation2 + $0x188] sm:$0xff] %vm459, 0.0
      %511 = vst.msk [vmem:[#allocation2 + $0x190] sm:$0x3] %vm462, 0.0
      %512 = vst.msk [vmem:[#allocation2 + $0x198] sm:$0xff] %vm459, 0.0
      %513 = vst.msk [vmem:[#allocation2 + $0x1a0] sm:$0xff] %vm459, 0.0
      %514 = vst.msk [vmem:[#allocation2 + $0x1a8] sm:$0x3] %vm462, 0.0
      %s515 = scalar_lea.vmem [#allocation2], 24
      %516 = vst.msk [vmem:[%s515 + $0x1] sm:$0xff] %vm459, %v411
      %517 = vst.msk [vmem:[%s515 + $0x9] sm:$0xff] %vm459, %v412
      %518 = vst.msk [vmem:[%s515 + $0x19] sm:$0xff] %vm459, %v413
      %519 = vst.msk [vmem:[%s515 + $0x21] sm:$0xff] %vm459, %v414
      %520 = vst.msk [vmem:[%s515 + $0x31] sm:$0xff] %vm459, %v415
      %521 = vst.msk [vmem:[%s515 + $0x39] sm:$0xff] %vm459, %v416
      %522 = vst.msk [vmem:[%s515 + $0x49] sm:$0xff] %vm459, %v417
      %523 = vst.msk [vmem:[%s515 + $0x51] sm:$0xff] %vm459, %v418
      %524 = vst.msk [vmem:[%s515 + $0x61] sm:$0xff] %vm459, %v419
      %525 = vst.msk [vmem:[%s515 + $0x69] sm:$0xff] %vm459, %v420
      %526 = vst.msk [vmem:[%s515 + $0x79] sm:$0xff] %vm459, %v421
      %527 = vst.msk [vmem:[%s515 + $0x81] sm:$0xff] %vm459, %v422
      %528 = vst.msk [vmem:[%s515 + $0x91] sm:$0xff] %vm459, %v423
      %529 = vst.msk [vmem:[%s515 + $0x99] sm:$0xff] %vm459, %v424
      %530 = vst.msk [vmem:[%s515 + $0xa9] sm:$0xff] %vm459, %v425
      %531 = vst.msk [vmem:[%s515 + $0xb1] sm:$0xff] %vm459, %v426
      %532 = vst.msk [vmem:[%s515 + $0xc1] sm:$0xff] %vm459, %v443
      %533 = vst.msk [vmem:[%s515 + $0xc9] sm:$0xff] %vm459, %v444
      %534 = vst.msk [vmem:[%s515 + $0xd9] sm:$0xff] %vm459, %v445
      %535 = vst.msk [vmem:[%s515 + $0xe1] sm:$0xff] %vm459, %v446
      %536 = vst.msk [vmem:[%s515 + $0xf1] sm:$0xff] %vm459, %v447
      %537 = vst.msk [vmem:[%s515 + $0xf9] sm:$0xff] %vm459, %v448
      %538 = vst.msk [vmem:[%s515 + $0x109] sm:$0xff] %vm459, %v449
      %539 = vst.msk [vmem:[%s515 + $0x111] sm:$0xff] %vm459, %v450
      %540 = vst.msk [vmem:[%s515 + $0x121] sm:$0xff] %vm459, %v451
      %541 = vst.msk [vmem:[%s515 + $0x129] sm:$0xff] %vm459, %v452
      %542 = vst.msk [vmem:[%s515 + $0x139] sm:$0xff] %vm459, %v453
      %543 = vst.msk [vmem:[%s515 + $0x141] sm:$0xff] %vm459, %v454
      %544 = vst.msk [vmem:[%s515 + $0x151] sm:$0xff] %vm459, %v455
      %545 = vst.msk [vmem:[%s515 + $0x159] sm:$0xff] %vm459, %v456
      %546 = vst.msk [vmem:[%s515 + $0x169] sm:$0xff] %vm459, %v457
      %547 = vst.msk [vmem:[%s515 + $0x171] sm:$0xff] %vm459, %v458
      %v548 = vld [vmem:[#allocation2] sm:$0xff]
      %v549 = vld [vmem:[#allocation2 + $0x8] sm:$0xff]
      %v550 = vld [vmem:[#allocation2 + $0x10] sm:$0x3]
      %v551 = vld [vmem:[#allocation2 + $0x18] sm:$0xff]
      %v552 = vld [vmem:[#allocation2 + $0x20] sm:$0xff]
      %v553 = vld [vmem:[#allocation2 + $0x28] sm:$0x3]
      %v554 = vld [vmem:[#allocation2 + $0x30] sm:$0xff]
      %v555 = vld [vmem:[#allocation2 + $0x38] sm:$0xff]
      %v556 = vld [vmem:[#allocation2 + $0x40] sm:$0x3]
      %v557 = vld [vmem:[#allocation2 + $0x48] sm:$0xff]
      %v558 = vld [vmem:[#allocation2 + $0x50] sm:$0xff]
      %v559 = vld [vmem:[#allocation2 + $0x58] sm:$0x3]
      %v560 = vld [vmem:[#allocation2 + $0x60] sm:$0xff]
      %v561 = vld [vmem:[#allocation2 + $0x68] sm:$0xff]
      %v562 = vld [vmem:[#allocation2 + $0x70] sm:$0x3]
      %v563 = vld [vmem:[#allocation2 + $0x78] sm:$0xff]
      %v564 = vld [vmem:[#allocation2 + $0x80] sm:$0xff]
      %v565 = vld [vmem:[#allocation2 + $0x88] sm:$0x3]
      %v566 = vld [vmem:[#allocation2 + $0x90] sm:$0xff]
      %v567 = vld [vmem:[#allocation2 + $0x98] sm:$0xff]
      %v568 = vld [vmem:[#allocation2 + $0xa0] sm:$0x3]
      %v569 = vld [vmem:[#allocation2 + $0xa8] sm:$0xff]
      %v570 = vld [vmem:[#allocation2 + $0xb0] sm:$0xff]
      %v571 = vld [vmem:[#allocation2 + $0xb8] sm:$0x3]
      %v572 = vld [vmem:[#allocation2 + $0xc0] sm:$0xff]
      %v573 = vld [vmem:[#allocation2 + $0xc8] sm:$0xff]
      %v574 = vld [vmem:[#allocation2 + $0xd0] sm:$0x3]
      %v575 = vld [vmem:[#allocation2 + $0xd8] sm:$0xff]
      %v576 = vld [vmem:[#allocation2 + $0xe0] sm:$0xff]
      %v577 = vld [vmem:[#allocation2 + $0xe8] sm:$0x3]
      %v578 = vld [vmem:[#allocation2 + $0xf0] sm:$0xff]
      %v579 = vld [vmem:[#allocation2 + $0xf8] sm:$0xff]
      %v580 = vld [vmem:[#allocation2 + $0x100] sm:$0x3]
      %v581 = vld [vmem:[#allocation2 + $0x108] sm:$0xff]
      %v582 = vld [vmem:[#allocation2 + $0x110] sm:$0xff]
      %v583 = vld [vmem:[#allocation2 + $0x118] sm:$0x3]
      %v584 = vld [vmem:[#allocation2 + $0x120] sm:$0xff]
      %v585 = vld [vmem:[#allocation2 + $0x128] sm:$0xff]
      %v586 = vld [vmem:[#allocation2 + $0x130] sm:$0x3]
      %v587 = vld [vmem:[#allocation2 + $0x138] sm:$0xff]
      %v588 = vld [vmem:[#allocation2 + $0x140] sm:$0xff]
      %v589 = vld [vmem:[#allocation2 + $0x148] sm:$0x3]
      %v590 = vld [vmem:[#allocation2 + $0x150] sm:$0xff]
      %v591 = vld [vmem:[#allocation2 + $0x158] sm:$0xff]
      %v592 = vld [vmem:[#allocation2 + $0x160] sm:$0x3]
      %v593 = vld [vmem:[#allocation2 + $0x168] sm:$0xff]
      %v594 = vld [vmem:[#allocation2 + $0x170] sm:$0xff]
      %v595 = vld [vmem:[#allocation2 + $0x178] sm:$0x3]
      %v596 = vld [vmem:[#allocation2 + $0x180] sm:$0xff]
      %v597 = vld [vmem:[#allocation2 + $0x188] sm:$0xff]
      %v598 = vld [vmem:[#allocation2 + $0x190] sm:$0x3]
      %v599 = vld [vmem:[#allocation2 + $0x198] sm:$0xff]
      %v600 = vld [vmem:[#allocation2 + $0x1a0] sm:$0xff]
      %v601 = vld [vmem:[#allocation2 + $0x1a8] sm:$0x3]
      %v602 = vpack.c.bf16 %v549, %v548
      %v603 = vpack.c.bf16 %v552, %v551
      %v604 = vpack.c.bf16 %v555, %v554
      %v605 = vpack.c.bf16 %v558, %v557
      %v606 = vpack.c.bf16 %v561, %v560
      %v607 = vpack.c.bf16 %v564, %v563
      %v608 = vpack.c.bf16 %v567, %v566
      %v609 = vpack.c.bf16 %v570, %v569
      %v610 = vpack.c.bf16 %v573, %v572
      %v611 = vpack.c.bf16 %v576, %v575
      %v612 = vpack.c.bf16 %v579, %v578
      %v613 = vpack.c.bf16 %v582, %v581
      %v614 = vpack.c.bf16 %v585, %v584
      %v615 = vpack.c.bf16 %v588, %v587
      %v616 = vpack.c.bf16 %v591, %v590
      %v617 = vpack.c.bf16 %v594, %v593
      %v618 = vld [vmem:[%s1] sm:$0x3]
      %vm667 = vcmask 1046528
      %v668 = vrot.slane %v548, 1
      %v669 = vrot.slane %v549, 1
      %v670 = vsel %vm667, %v668, %v669
      %v671 = vrot.slane %v550, 1
      %v672 = vsel %vm667, %v669, %v671
      %v673 = vrot.slane %v551, 1
      %v674 = vrot.slane %v552, 1
      %v675 = vsel %vm667, %v673, %v674
      %v676 = vrot.slane %v553, 1
      %v677 = vsel %vm667, %v674, %v676
      %v678 = vrot.slane %v554, 1
      %v679 = vrot.slane %v555, 1
      %v680 = vsel %vm667, %v678, %v679
      %v681 = vrot.slane %v556, 1
      %v682 = vsel %vm667, %v679, %v681
      %v683 = vrot.slane %v557, 1
      %v684 = vrot.slane %v558, 1
      %v685 = vsel %vm667, %v683, %v684
      %v686 = vrot.slane %v559, 1
      %v687 = vsel %vm667, %v684, %v686
      %v688 = vrot.slane %v560, 1
      %v689 = vrot.slane %v561, 1
      %v690 = vsel %vm667, %v688, %v689
      %v691 = vrot.slane %v562, 1
      %v692 = vsel %vm667, %v689, %v691
      %v693 = vrot.slane %v563, 1
      %v694 = vrot.slane %v564, 1
      %v695 = vsel %vm667, %v693, %v694
      %v696 = vrot.slane %v565, 1
      %v697 = vsel %vm667, %v694, %v696
      %v698 = vrot.slane %v566, 1
      %v699 = vrot.slane %v567, 1
      %v700 = vsel %vm667, %v698, %v699
      %v701 = vrot.slane %v568, 1
      %v702 = vsel %vm667, %v699, %v701
      %v703 = vrot.slane %v569, 1
      %v704 = vrot.slane %v570, 1
      %v705 = vsel %vm667, %v703, %v704
      %v706 = vrot.slane %v571, 1
      %v707 = vsel %vm667, %v704, %v706
      %v708 = vrot.slane %v572, 1
      %v709 = vrot.slane %v573, 1
      %v710 = vsel %vm667, %v708, %v709
      %v711 = vrot.slane %v574, 1
      %v712 = vsel %vm667, %v709, %v711
      %v713 = vrot.slane %v575, 1
      %v714 = vrot.slane %v576, 1
      %v715 = vsel %vm667, %v713, %v714
      %v716 = vrot.slane %v577, 1
      %v717 = vsel %vm667, %v714, %v716
      %v718 = vrot.slane %v578, 1
      %v719 = vrot.slane %v579, 1
      %v720 = vsel %vm667, %v718, %v719
      %v721 = vrot.slane %v580, 1
      %v722 = vsel %vm667, %v719, %v721
      %v723 = vrot.slane %v581, 1
      %v724 = vrot.slane %v582, 1
      %v725 = vsel %vm667, %v723, %v724
      %v726 = vrot.slane %v583, 1
      %v727 = vsel %vm667, %v724, %v726
      %v728 = vrot.slane %v584, 1
      %v729 = vrot.slane %v585, 1
      %v730 = vsel %vm667, %v728, %v729
      %v731 = vrot.slane %v586, 1
      %v732 = vsel %vm667, %v729, %v731
      %v733 = vrot.slane %v587, 1
      %v734 = vrot.slane %v588, 1
      %v735 = vsel %vm667, %v733, %v734
      %v736 = vrot.slane %v589, 1
      %v737 = vsel %vm667, %v734, %v736
      %v738 = vrot.slane %v590, 1
      %v739 = vrot.slane %v591, 1
      %v740 = vsel %vm667, %v738, %v739
      %v741 = vrot.slane %v592, 1
      %v742 = vsel %vm667, %v739, %v741
      %v743 = vrot.slane %v593, 1
      %v744 = vrot.slane %v594, 1
      %v745 = vsel %vm667, %v743, %v744
      %v746 = vrot.slane %v595, 1
      %v747 = vsel %vm667, %v744, %v746
      %v780 = vpack.c.bf16 %v672, %v670
      %v781 = vpack.c.bf16 %v677, %v675
      %v782 = vpack.c.bf16 %v682, %v680
      %v783 = vpack.c.bf16 %v687, %v685
      %v784 = vpack.c.bf16 %v692, %v690
      %v785 = vpack.c.bf16 %v697, %v695
      %v786 = vpack.c.bf16 %v702, %v700
      %v787 = vpack.c.bf16 %v707, %v705
      %v788 = vpack.c.bf16 %v712, %v710
      %v789 = vpack.c.bf16 %v717, %v715
      %v790 = vpack.c.bf16 %v722, %v720
      %v791 = vpack.c.bf16 %v727, %v725
      %v792 = vpack.c.bf16 %v732, %v730
      %v793 = vpack.c.bf16 %v737, %v735
      %v794 = vpack.c.bf16 %v742, %v740
      %v795 = vpack.c.bf16 %v747, %v745
      %s796 = scalar_lea.vmem %s1, 2
      %v797 = vld [vmem:[%s796] sm:$0x3]
      %v799 = vsel %vm459, %v780, 0
      %v802 = vsel %vm459, %v781, 0
      %v805 = vsel %vm459, %v782, 0
      %v808 = vsel %vm459, %v783, 0
      %v811 = vsel %vm459, %v784, 0
      %v814 = vsel %vm459, %v785, 0
      %v817 = vsel %vm459, %v786, 0
      %v820 = vsel %vm459, %v787, 0
      %v823 = vsel %vm459, %v788, 0
      %v826 = vsel %vm459, %v789, 0
      %v829 = vsel %vm459, %v790, 0
      %v832 = vsel %vm459, %v791, 0
      %v835 = vsel %vm459, %v792, 0
      %v838 = vsel %vm459, %v793, 0
      %v841 = vsel %vm459, %v794, 0
      %v844 = vsel %vm459, %v795, 0
      %vm846 = vcmask 1041408
      %v848 = vsel %vm846, %v797, 0
      %850 = vmatpush.bf16.msra.mxu0 0
      %851 = vmatpush.bf16.msra.mxu0 0
      %852 = vmatpush.bf16.msra.mxu0 0
      %853 = vmatpush.bf16.msra.mxu0 0
      %854 = vmatpush.bf16.msra.mxu0 0
      %855 = vmatpush.bf16.msra.mxu0 0
      %856 = vmatpush.bf16.msra.mxu0 0
      %857 = vmatpush.bf16.msra.mxu0 %v848
      %858 = vmatmul.bf16.gmra.mxu0 %v799
      %v859 = vpop.f32.mrf.mxu0
      %v860 = vadd.f32 0.0, %v859
      %v861 = vpop.f32.mrf.mxu0
      %v862 = vadd.f32 0.0, %v861
      %863 = vmatmul.bf16.gmra.mxu0 %v802
      %v864 = vpop.f32.mrf.mxu0
      %v865 = vadd.f32 0.0, %v864
      %v866 = vpop.f32.mrf.mxu0
      %v867 = vadd.f32 0.0, %v866
      %868 = vmatmul.bf16.gmra.mxu0 %v805
      %v869 = vpop.f32.mrf.mxu0
      %v870 = vadd.f32 0.0, %v869
      %v871 = vpop.f32.mrf.mxu0
      %v872 = vadd.f32 0.0, %v871
      %873 = vmatmul.bf16.gmra.mxu0 %v808
      %v874 = vpop.f32.mrf.mxu0
      %v875 = vadd.f32 0.0, %v874
      %v876 = vpop.f32.mrf.mxu0
      %v877 = vadd.f32 0.0, %v876
      %878 = vmatmul.bf16.gmra.mxu0 %v811
      %v879 = vpop.f32.mrf.mxu0
      %v880 = vadd.f32 0.0, %v879
      %v881 = vpop.f32.mrf.mxu0
      %v882 = vadd.f32 0.0, %v881
      %883 = vmatmul.bf16.gmra.mxu0 %v814
      %v884 = vpop.f32.mrf.mxu0
      %v885 = vadd.f32 0.0, %v884
      %v886 = vpop.f32.mrf.mxu0
      %v887 = vadd.f32 0.0, %v886
      %888 = vmatmul.bf16.gmra.mxu0 %v817
      %v889 = vpop.f32.mrf.mxu0
      %v890 = vadd.f32 0.0, %v889
      %v891 = vpop.f32.mrf.mxu0
      %v892 = vadd.f32 0.0, %v891
      %893 = vmatmul.bf16.gmra.mxu0 %v820
      %v894 = vpop.f32.mrf.mxu0
      %v895 = vadd.f32 0.0, %v894
      %v896 = vpop.f32.mrf.mxu0
      %v897 = vadd.f32 0.0, %v896
      %898 = vmatmul.bf16.gmra.mxu0 %v823
      %v899 = vpop.f32.mrf.mxu0
      %v900 = vadd.f32 0.0, %v899
      %v901 = vpop.f32.mrf.mxu0
      %v902 = vadd.f32 0.0, %v901
      %903 = vmatmul.bf16.gmra.mxu0 %v826
      %v904 = vpop.f32.mrf.mxu0
      %v905 = vadd.f32 0.0, %v904
      %v906 = vpop.f32.mrf.mxu0
      %v907 = vadd.f32 0.0, %v906
      %908 = vmatmul.bf16.gmra.mxu0 %v829
      %v909 = vpop.f32.mrf.mxu0
      %v910 = vadd.f32 0.0, %v909
      %v911 = vpop.f32.mrf.mxu0
      %v912 = vadd.f32 0.0, %v911
      %913 = vmatmul.bf16.gmra.mxu0 %v832
      %v914 = vpop.f32.mrf.mxu0
      %v915 = vadd.f32 0.0, %v914
      %v916 = vpop.f32.mrf.mxu0
      %v917 = vadd.f32 0.0, %v916
      %918 = vmatmul.bf16.gmra.mxu0 %v835
      %v919 = vpop.f32.mrf.mxu0
      %v920 = vadd.f32 0.0, %v919
      %v921 = vpop.f32.mrf.mxu0
      %v922 = vadd.f32 0.0, %v921
      %923 = vmatmul.bf16.gmra.mxu0 %v838
      %v924 = vpop.f32.mrf.mxu0
      %v925 = vadd.f32 0.0, %v924
      %v926 = vpop.f32.mrf.mxu0
      %v927 = vadd.f32 0.0, %v926
      %928 = vmatmul.bf16.gmra.mxu0 %v841
      %v929 = vpop.f32.mrf.mxu0
      %v930 = vadd.f32 0.0, %v929
      %v931 = vpop.f32.mrf.mxu0
      %v932 = vadd.f32 0.0, %v931
      %933 = vmatmul.bf16.gmra.mxu0 %v844
      %v934 = vpop.f32.mrf.mxu0
      %v935 = vadd.f32 0.0, %v934
      %v936 = vpop.f32.mrf.mxu0
      %v937 = vadd.f32 0.0, %v936
      %938 = vdwg.mxu0
      %v940 = vsel %vm459, %v602, 0
      %v943 = vsel %vm459, %v603, 0
      %v946 = vsel %vm459, %v604, 0
      %v949 = vsel %vm459, %v605, 0
      %v952 = vsel %vm459, %v606, 0
      %v955 = vsel %vm459, %v607, 0
      %v958 = vsel %vm459, %v608, 0
      %v961 = vsel %vm459, %v609, 0
      %v964 = vsel %vm459, %v610, 0
      %v967 = vsel %vm459, %v611, 0
      %v970 = vsel %vm459, %v612, 0
      %v973 = vsel %vm459, %v613, 0
      %v976 = vsel %vm459, %v614, 0
      %v979 = vsel %vm459, %v615, 0
      %v982 = vsel %vm459, %v616, 0
      %v985 = vsel %vm459, %v617, 0
      %v988 = vsel %vm846, %v618, 0
      %990 = vmatpush.bf16.msra.mxu0 0
      %991 = vmatpush.bf16.msra.mxu0 0
      %992 = vmatpush.bf16.msra.mxu0 0
      %993 = vmatpush.bf16.msra.mxu0 0
      %994 = vmatpush.bf16.msra.mxu0 0
      %995 = vmatpush.bf16.msra.mxu0 0
      %996 = vmatpush.bf16.msra.mxu0 0
      %997 = vmatpush.bf16.msra.mxu0 %v988
      %998 = vmatmul.bf16.gmra.mxu0 %v940
      %v999 = vpop.f32.mrf.mxu0
      %v1000 = vadd.f32 %v860, %v999
      %v1001 = vpop.f32.mrf.mxu0
      %v1002 = vadd.f32 %v862, %v1001
      %1003 = vmatmul.bf16.gmra.mxu0 %v943
      %v1004 = vpop.f32.mrf.mxu0
      %v1005 = vadd.f32 %v865, %v1004
      %v1006 = vpop.f32.mrf.mxu0
      %v1007 = vadd.f32 %v867, %v1006
      %1008 = vmatmul.bf16.gmra.mxu0 %v946
      %v1009 = vpop.f32.mrf.mxu0
      %v1010 = vadd.f32 %v870, %v1009
      %v1011 = vpop.f32.mrf.mxu0
      %v1012 = vadd.f32 %v872, %v1011
      %1013 = vmatmul.bf16.gmra.mxu0 %v949
      %v1014 = vpop.f32.mrf.mxu0
      %v1015 = vadd.f32 %v875, %v1014
      %v1016 = vpop.f32.mrf.mxu0
      %v1017 = vadd.f32 %v877, %v1016
      %1018 = vmatmul.bf16.gmra.mxu0 %v952
      %v1019 = vpop.f32.mrf.mxu0
      %v1020 = vadd.f32 %v880, %v1019
      %v1021 = vpop.f32.mrf.mxu0
      %v1022 = vadd.f32 %v882, %v1021
      %1023 = vmatmul.bf16.gmra.mxu0 %v955
      %v1024 = vpop.f32.mrf.mxu0
      %v1025 = vadd.f32 %v885, %v1024
      %v1026 = vpop.f32.mrf.mxu0
      %v1027 = vadd.f32 %v887, %v1026
      %1028 = vmatmul.bf16.gmra.mxu0 %v958
      %v1029 = vpop.f32.mrf.mxu0
      %v1030 = vadd.f32 %v890, %v1029
      %v1031 = vpop.f32.mrf.mxu0
      %v1032 = vadd.f32 %v892, %v1031
      %1033 = vmatmul.bf16.gmra.mxu0 %v961
      %v1034 = vpop.f32.mrf.mxu0
      %v1035 = vadd.f32 %v895, %v1034
      %v1036 = vpop.f32.mrf.mxu0
      %v1037 = vadd.f32 %v897, %v1036
      %1038 = vmatmul.bf16.gmra.mxu0 %v964
      %v1039 = vpop.f32.mrf.mxu0
      %v1040 = vadd.f32 %v900, %v1039
      %v1041 = vpop.f32.mrf.mxu0
      %v1042 = vadd.f32 %v902, %v1041
      %1043 = vmatmul.bf16.gmra.mxu0 %v967
      %v1044 = vpop.f32.mrf.mxu0
      %v1045 = vadd.f32 %v905, %v1044
      %v1046 = vpop.f32.mrf.mxu0
      %v1047 = vadd.f32 %v907, %v1046
      %1048 = vmatmul.bf16.gmra.mxu0 %v970
      %v1049 = vpop.f32.mrf.mxu0
      %v1050 = vadd.f32 %v910, %v1049
      %v1051 = vpop.f32.mrf.mxu0
      %v1052 = vadd.f32 %v912, %v1051
      %1053 = vmatmul.bf16.gmra.mxu0 %v973
      %v1054 = vpop.f32.mrf.mxu0
      %v1055 = vadd.f32 %v915, %v1054
      %v1056 = vpop.f32.mrf.mxu0
      %v1057 = vadd.f32 %v917, %v1056
      %1058 = vmatmul.bf16.gmra.mxu0 %v976
      %v1059 = vpop.f32.mrf.mxu0
      %v1060 = vadd.f32 %v920, %v1059
      %v1061 = vpop.f32.mrf.mxu0
      %v1062 = vadd.f32 %v922, %v1061
      %1063 = vmatmul.bf16.gmra.mxu0 %v979
      %v1064 = vpop.f32.mrf.mxu0
      %v1065 = vadd.f32 %v925, %v1064
      %v1066 = vpop.f32.mrf.mxu0
      %v1067 = vadd.f32 %v927, %v1066
      %1068 = vmatmul.bf16.gmra.mxu0 %v982
      %v1069 = vpop.f32.mrf.mxu0
      %v1070 = vadd.f32 %v930, %v1069
      %v1071 = vpop.f32.mrf.mxu0
      %v1072 = vadd.f32 %v932, %v1071
      %1073 = vmatmul.bf16.gmra.mxu0 %v985
      %v1074 = vpop.f32.mrf.mxu0
      %v1075 = vadd.f32 %v935, %v1074
      %v1076 = vpop.f32.mrf.mxu0
      %v1077 = vadd.f32 %v937, %v1076
      %1078 = vdwg.mxu0
      %vm1079 = vcmask 1045504
      %v1080 = vrot.slane %v548, 2
      %v1081 = vrot.slane %v549, 2
      %v1082 = vsel %vm1079, %v1080, %v1081
      %v1083 = vrot.slane %v550, 2
      %v1084 = vsel %vm1079, %v1081, %v1083
      %v1085 = vrot.slane %v551, 2
      %v1086 = vrot.slane %v552, 2
      %v1087 = vsel %vm1079, %v1085, %v1086
      %v1088 = vrot.slane %v553, 2
      %v1089 = vsel %vm1079, %v1086, %v1088
      %v1090 = vrot.slane %v554, 2
      %v1091 = vrot.slane %v555, 2
      %v1092 = vsel %vm1079, %v1090, %v1091
      %v1093 = vrot.slane %v556, 2
      %v1094 = vsel %vm1079, %v1091, %v1093
      %v1095 = vrot.slane %v557, 2
      %v1096 = vrot.slane %v558, 2
      %v1097 = vsel %vm1079, %v1095, %v1096
      %v1098 = vrot.slane %v559, 2
      %v1099 = vsel %vm1079, %v1096, %v1098
      %v1100 = vrot.slane %v560, 2
      %v1101 = vrot.slane %v561, 2
      %v1102 = vsel %vm1079, %v1100, %v1101
      %v1103 = vrot.slane %v562, 2
      %v1104 = vsel %vm1079, %v1101, %v1103
      %v1105 = vrot.slane %v563, 2
      %v1106 = vrot.slane %v564, 2
      %v1107 = vsel %vm1079, %v1105, %v1106
      %v1108 = vrot.slane %v565, 2
      %v1109 = vsel %vm1079, %v1106, %v1108
      %v1110 = vrot.slane %v566, 2
      %v1111 = vrot.slane %v567, 2
      %v1112 = vsel %vm1079, %v1110, %v1111
      %v1113 = vrot.slane %v568, 2
      %v1114 = vsel %vm1079, %v1111, %v1113
      %v1115 = vrot.slane %v569, 2
      %v1116 = vrot.slane %v570, 2
      %v1117 = vsel %vm1079, %v1115, %v1116
      %v1118 = vrot.slane %v571, 2
      %v1119 = vsel %vm1079, %v1116, %v1118
      %v1120 = vrot.slane %v572, 2
      %v1121 = vrot.slane %v573, 2
      %v1122 = vsel %vm1079, %v1120, %v1121
      %v1123 = vrot.slane %v574, 2
      %v1124 = vsel %vm1079, %v1121, %v1123
      %v1125 = vrot.slane %v575, 2
      %v1126 = vrot.slane %v576, 2
      %v1127 = vsel %vm1079, %v1125, %v1126
      %v1128 = vrot.slane %v577, 2
      %v1129 = vsel %vm1079, %v1126, %v1128
      %v1130 = vrot.slane %v578, 2
      %v1131 = vrot.slane %v579, 2
      %v1132 = vsel %vm1079, %v1130, %v1131
      %v1133 = vrot.slane %v580, 2
      %v1134 = vsel %vm1079, %v1131, %v1133
      %v1135 = vrot.slane %v581, 2
      %v1136 = vrot.slane %v582, 2
      %v1137 = vsel %vm1079, %v1135, %v1136
      %v1138 = vrot.slane %v583, 2
      %v1139 = vsel %vm1079, %v1136, %v1138
      %v1140 = vrot.slane %v584, 2
      %v1141 = vrot.slane %v585, 2
      %v1142 = vsel %vm1079, %v1140, %v1141
      %v1143 = vrot.slane %v586, 2
      %v1144 = vsel %vm1079, %v1141, %v1143
      %v1145 = vrot.slane %v587, 2
      %v1146 = vrot.slane %v588, 2
      %v1147 = vsel %vm1079, %v1145, %v1146
      %v1148 = vrot.slane %v589, 2
      %v1149 = vsel %vm1079, %v1146, %v1148
      %v1150 = vrot.slane %v590, 2
      %v1151 = vrot.slane %v591, 2
      %v1152 = vsel %vm1079, %v1150, %v1151
      %v1153 = vrot.slane %v592, 2
      %v1154 = vsel %vm1079, %v1151, %v1153
      %v1155 = vrot.slane %v593, 2
      %v1156 = vrot.slane %v594, 2
      %v1157 = vsel %vm1079, %v1155, %v1156
      %v1158 = vrot.slane %v595, 2
      %v1159 = vsel %vm1079, %v1156, %v1158
      %v1192 = vpack.c.bf16 %v1084, %v1082
      %v1193 = vpack.c.bf16 %v1089, %v1087
      %v1194 = vpack.c.bf16 %v1094, %v1092
      %v1195 = vpack.c.bf16 %v1099, %v1097
      %v1196 = vpack.c.bf16 %v1104, %v1102
      %v1197 = vpack.c.bf16 %v1109, %v1107
      %v1198 = vpack.c.bf16 %v1114, %v1112
      %v1199 = vpack.c.bf16 %v1119, %v1117
      %v1200 = vpack.c.bf16 %v1124, %v1122
      %v1201 = vpack.c.bf16 %v1129, %v1127
      %v1202 = vpack.c.bf16 %v1134, %v1132
      %v1203 = vpack.c.bf16 %v1139, %v1137
      %v1204 = vpack.c.bf16 %v1144, %v1142
      %v1205 = vpack.c.bf16 %v1149, %v1147
      %v1206 = vpack.c.bf16 %v1154, %v1152
      %v1207 = vpack.c.bf16 %v1159, %v1157
      %s1208 = scalar_lea.vmem %s1, 4
      %v1209 = vld [vmem:[%s1208] sm:$0x3]
      %v1211 = vsel %vm459, %v1192, 0
      %v1214 = vsel %vm459, %v1193, 0
      %v1217 = vsel %vm459, %v1194, 0
      %v1220 = vsel %vm459, %v1195, 0
      %v1223 = vsel %vm459, %v1196, 0
      %v1226 = vsel %vm459, %v1197, 0
      %v1229 = vsel %vm459, %v1198, 0
      %v1232 = vsel %vm459, %v1199, 0
      %v1235 = vsel %vm459, %v1200, 0
      %v1238 = vsel %vm459, %v1201, 0
      %v1241 = vsel %vm459, %v1202, 0
      %v1244 = vsel %vm459, %v1203, 0
      %v1247 = vsel %vm459, %v1204, 0
      %v1250 = vsel %vm459, %v1205, 0
      %v1253 = vsel %vm459, %v1206, 0
      %v1256 = vsel %vm459, %v1207, 0
      %v1259 = vsel %vm846, %v1209, 0
      %1261 = vmatpush.bf16.msra.mxu0 0
      %1262 = vmatpush.bf16.msra.mxu0 0
      %1263 = vmatpush.bf16.msra.mxu0 0
      %1264 = vmatpush.bf16.msra.mxu0 0
      %1265 = vmatpush.bf16.msra.mxu0 0
      %1266 = vmatpush.bf16.msra.mxu0 0
      %1267 = vmatpush.bf16.msra.mxu0 0
      %1268 = vmatpush.bf16.msra.mxu0 %v1259
      %1269 = vmatmul.bf16.gmra.mxu0 %v1211
      %v1270 = vpop.f32.mrf.mxu0
      %v1271 = vadd.f32 0.0, %v1270
      %v1272 = vpop.f32.mrf.mxu0
      %v1273 = vadd.f32 0.0, %v1272
      %1274 = vmatmul.bf16.gmra.mxu0 %v1214
      %v1275 = vpop.f32.mrf.mxu0
      %v1276 = vadd.f32 0.0, %v1275
      %v1277 = vpop.f32.mrf.mxu0
      %v1278 = vadd.f32 0.0, %v1277
      %1279 = vmatmul.bf16.gmra.mxu0 %v1217
      %v1280 = vpop.f32.mrf.mxu0
      %v1281 = vadd.f32 0.0, %v1280
      %v1282 = vpop.f32.mrf.mxu0
      %v1283 = vadd.f32 0.0, %v1282
      %1284 = vmatmul.bf16.gmra.mxu0 %v1220
      %v1285 = vpop.f32.mrf.mxu0
      %v1286 = vadd.f32 0.0, %v1285
      %v1287 = vpop.f32.mrf.mxu0
      %v1288 = vadd.f32 0.0, %v1287
      %1289 = vmatmul.bf16.gmra.mxu0 %v1223
      %v1290 = vpop.f32.mrf.mxu0
      %v1291 = vadd.f32 0.0, %v1290
      %v1292 = vpop.f32.mrf.mxu0
      %v1293 = vadd.f32 0.0, %v1292
      %1294 = vmatmul.bf16.gmra.mxu0 %v1226
      %v1295 = vpop.f32.mrf.mxu0
      %v1296 = vadd.f32 0.0, %v1295
      %v1297 = vpop.f32.mrf.mxu0
      %v1298 = vadd.f32 0.0, %v1297
      %1299 = vmatmul.bf16.gmra.mxu0 %v1229
      %v1300 = vpop.f32.mrf.mxu0
      %v1301 = vadd.f32 0.0, %v1300
      %v1302 = vpop.f32.mrf.mxu0
      %v1303 = vadd.f32 0.0, %v1302
      %1304 = vmatmul.bf16.gmra.mxu0 %v1232
      %v1305 = vpop.f32.mrf.mxu0
      %v1306 = vadd.f32 0.0, %v1305
      %v1307 = vpop.f32.mrf.mxu0
      %v1308 = vadd.f32 0.0, %v1307
      %1309 = vmatmul.bf16.gmra.mxu0 %v1235
      %v1310 = vpop.f32.mrf.mxu0
      %v1311 = vadd.f32 0.0, %v1310
      %v1312 = vpop.f32.mrf.mxu0
      %v1313 = vadd.f32 0.0, %v1312
      %1314 = vmatmul.bf16.gmra.mxu0 %v1238
      %v1315 = vpop.f32.mrf.mxu0
      %v1316 = vadd.f32 0.0, %v1315
      %v1317 = vpop.f32.mrf.mxu0
      %v1318 = vadd.f32 0.0, %v1317
      %1319 = vmatmul.bf16.gmra.mxu0 %v1241
      %v1320 = vpop.f32.mrf.mxu0
      %v1321 = vadd.f32 0.0, %v1320
      %v1322 = vpop.f32.mrf.mxu0
      %v1323 = vadd.f32 0.0, %v1322
      %1324 = vmatmul.bf16.gmra.mxu0 %v1244
      %v1325 = vpop.f32.mrf.mxu0
      %v1326 = vadd.f32 0.0, %v1325
      %v1327 = vpop.f32.mrf.mxu0
      %v1328 = vadd.f32 0.0, %v1327
      %1329 = vmatmul.bf16.gmra.mxu0 %v1247
      %v1330 = vpop.f32.mrf.mxu0
      %v1331 = vadd.f32 0.0, %v1330
      %v1332 = vpop.f32.mrf.mxu0
      %v1333 = vadd.f32 0.0, %v1332
      %1334 = vmatmul.bf16.gmra.mxu0 %v1250
      %v1335 = vpop.f32.mrf.mxu0
      %v1336 = vadd.f32 0.0, %v1335
      %v1337 = vpop.f32.mrf.mxu0
      %v1338 = vadd.f32 0.0, %v1337
      %1339 = vmatmul.bf16.gmra.mxu0 %v1253
      %v1340 = vpop.f32.mrf.mxu0
      %v1341 = vadd.f32 0.0, %v1340
      %v1342 = vpop.f32.mrf.mxu0
      %v1343 = vadd.f32 0.0, %v1342
      %1344 = vmatmul.bf16.gmra.mxu0 %v1256
      %v1345 = vpop.f32.mrf.mxu0
      %v1346 = vadd.f32 0.0, %v1345
      %v1347 = vpop.f32.mrf.mxu0
      %v1348 = vadd.f32 0.0, %v1347
      %1349 = vdwg.mxu0
      %v1350 = vadd.f32 %v1000, %v1271
      %v1351 = vadd.f32 %v1002, %v1273
      %v1352 = vadd.f32 %v1005, %v1276
      %v1353 = vadd.f32 %v1007, %v1278
      %v1354 = vadd.f32 %v1010, %v1281
      %v1355 = vadd.f32 %v1012, %v1283
      %v1356 = vadd.f32 %v1015, %v1286
      %v1357 = vadd.f32 %v1017, %v1288
      %v1358 = vadd.f32 %v1020, %v1291
      %v1359 = vadd.f32 %v1022, %v1293
      %v1360 = vadd.f32 %v1025, %v1296
      %v1361 = vadd.f32 %v1027, %v1298
      %v1362 = vadd.f32 %v1030, %v1301
      %v1363 = vadd.f32 %v1032, %v1303
      %v1364 = vadd.f32 %v1035, %v1306
      %v1365 = vadd.f32 %v1037, %v1308
      %v1366 = vadd.f32 %v1040, %v1311
      %v1367 = vadd.f32 %v1042, %v1313
      %v1368 = vadd.f32 %v1045, %v1316
      %v1369 = vadd.f32 %v1047, %v1318
      %v1370 = vadd.f32 %v1050, %v1321
      %v1371 = vadd.f32 %v1052, %v1323
      %v1372 = vadd.f32 %v1055, %v1326
      %v1373 = vadd.f32 %v1057, %v1328
      %v1374 = vadd.f32 %v1060, %v1331
      %v1375 = vadd.f32 %v1062, %v1333
      %v1376 = vadd.f32 %v1065, %v1336
      %v1377 = vadd.f32 %v1067, %v1338
      %v1378 = vadd.f32 %v1070, %v1341
      %v1379 = vadd.f32 %v1072, %v1343
      %v1380 = vadd.f32 %v1075, %v1346
      %v1381 = vadd.f32 %v1077, %v1348
      %v1382 = vpack.c.bf16 %v597, %v596
      %s1383 = scalar_lea.vmem %s1, 6
      %v1384 = vld [vmem:[%s1383] sm:$0x3]
      %v1386 = vsel %vm459, %v1382, 0
      %v1389 = vsel %vm846, %v1384, 0
      %1391 = vmatpush.bf16.msra.mxu0 0
      %1392 = vmatpush.bf16.msra.mxu0 0
      %1393 = vmatpush.bf16.msra.mxu0 0
      %1394 = vmatpush.bf16.msra.mxu0 0
      %1395 = vmatpush.bf16.msra.mxu0 0
      %1396 = vmatpush.bf16.msra.mxu0 0
      %1397 = vmatpush.bf16.msra.mxu0 0
      %1398 = vmatpush.bf16.msra.mxu0 %v1389
      %1399 = vmatmul.bf16.gmra.mxu0 %v943
      %v1400 = vpop.f32.mrf.mxu0
      %v1401 = vadd.f32 0.0, %v1400
      %v1402 = vpop.f32.mrf.mxu0
      %v1403 = vadd.f32 0.0, %v1402
      %1404 = vmatmul.bf16.gmra.mxu0 %v946
      %v1405 = vpop.f32.mrf.mxu0
      %v1406 = vadd.f32 0.0, %v1405
      %v1407 = vpop.f32.mrf.mxu0
      %v1408 = vadd.f32 0.0, %v1407
      %1409 = vmatmul.bf16.gmra.mxu0 %v949
      %v1410 = vpop.f32.mrf.mxu0
      %v1411 = vadd.f32 0.0, %v1410
      %v1412 = vpop.f32.mrf.mxu0
      %v1413 = vadd.f32 0.0, %v1412
      %1414 = vmatmul.bf16.gmra.mxu0 %v952
      %v1415 = vpop.f32.mrf.mxu0
      %v1416 = vadd.f32 0.0, %v1415
      %v1417 = vpop.f32.mrf.mxu0
      %v1418 = vadd.f32 0.0, %v1417
      %1419 = vmatmul.bf16.gmra.mxu0 %v955
      %v1420 = vpop.f32.mrf.mxu0
      %v1421 = vadd.f32 0.0, %v1420
      %v1422 = vpop.f32.mrf.mxu0
      %v1423 = vadd.f32 0.0, %v1422
      %1424 = vmatmul.bf16.gmra.mxu0 %v958
      %v1425 = vpop.f32.mrf.mxu0
      %v1426 = vadd.f32 0.0, %v1425
      %v1427 = vpop.f32.mrf.mxu0
      %v1428 = vadd.f32 0.0, %v1427
      %1429 = vmatmul.bf16.gmra.mxu0 %v961
      %v1430 = vpop.f32.mrf.mxu0
      %v1431 = vadd.f32 0.0, %v1430
      %v1432 = vpop.f32.mrf.mxu0
      %v1433 = vadd.f32 0.0, %v1432
      %1434 = vmatmul.bf16.gmra.mxu0 %v964
      %v1435 = vpop.f32.mrf.mxu0
      %v1436 = vadd.f32 0.0, %v1435
      %v1437 = vpop.f32.mrf.mxu0
      %v1438 = vadd.f32 0.0, %v1437
      %1439 = vmatmul.bf16.gmra.mxu0 %v967
      %v1440 = vpop.f32.mrf.mxu0
      %v1441 = vadd.f32 0.0, %v1440
      %v1442 = vpop.f32.mrf.mxu0
      %v1443 = vadd.f32 0.0, %v1442
      %1444 = vmatmul.bf16.gmra.mxu0 %v970
      %v1445 = vpop.f32.mrf.mxu0
      %v1446 = vadd.f32 0.0, %v1445
      %v1447 = vpop.f32.mrf.mxu0
      %v1448 = vadd.f32 0.0, %v1447
      %1449 = vmatmul.bf16.gmra.mxu0 %v973
      %v1450 = vpop.f32.mrf.mxu0
      %v1451 = vadd.f32 0.0, %v1450
      %v1452 = vpop.f32.mrf.mxu0
      %v1453 = vadd.f32 0.0, %v1452
      %1454 = vmatmul.bf16.gmra.mxu0 %v976
      %v1455 = vpop.f32.mrf.mxu0
      %v1456 = vadd.f32 0.0, %v1455
      %v1457 = vpop.f32.mrf.mxu0
      %v1458 = vadd.f32 0.0, %v1457
      %1459 = vmatmul.bf16.gmra.mxu0 %v979
      %v1460 = vpop.f32.mrf.mxu0
      %v1461 = vadd.f32 0.0, %v1460
      %v1462 = vpop.f32.mrf.mxu0
      %v1463 = vadd.f32 0.0, %v1462
      %1464 = vmatmul.bf16.gmra.mxu0 %v982
      %v1465 = vpop.f32.mrf.mxu0
      %v1466 = vadd.f32 0.0, %v1465
      %v1467 = vpop.f32.mrf.mxu0
      %v1468 = vadd.f32 0.0, %v1467
      %1469 = vmatmul.bf16.gmra.mxu0 %v985
      %v1470 = vpop.f32.mrf.mxu0
      %v1471 = vadd.f32 0.0, %v1470
      %v1472 = vpop.f32.mrf.mxu0
      %v1473 = vadd.f32 0.0, %v1472
      %1474 = vmatmul.bf16.gmra.mxu0 %v1386
      %v1475 = vpop.f32.mrf.mxu0
      %v1476 = vadd.f32 0.0, %v1475
      %v1477 = vpop.f32.mrf.mxu0
      %v1478 = vadd.f32 0.0, %v1477
      %1479 = vdwg.mxu0
      %v1480 = vadd.f32 %v1350, %v1401
      %v1481 = vadd.f32 %v1351, %v1403
      %v1482 = vadd.f32 %v1352, %v1406
      %v1483 = vadd.f32 %v1353, %v1408
      %v1484 = vadd.f32 %v1354, %v1411
      %v1485 = vadd.f32 %v1355, %v1413
      %v1486 = vadd.f32 %v1356, %v1416
      %v1487 = vadd.f32 %v1357, %v1418
      %v1488 = vadd.f32 %v1358, %v1421
      %v1489 = vadd.f32 %v1359, %v1423
      %v1490 = vadd.f32 %v1360, %v1426
      %v1491 = vadd.f32 %v1361, %v1428
      %v1492 = vadd.f32 %v1362, %v1431
      %v1493 = vadd.f32 %v1363, %v1433
      %v1494 = vadd.f32 %v1364, %v1436
      %v1495 = vadd.f32 %v1365, %v1438
      %v1496 = vadd.f32 %v1366, %v1441
      %v1497 = vadd.f32 %v1367, %v1443
      %v1498 = vadd.f32 %v1368, %v1446
      %v1499 = vadd.f32 %v1369, %v1448
      %v1500 = vadd.f32 %v1370, %v1451
      %v1501 = vadd.f32 %v1371, %v1453
      %v1502 = vadd.f32 %v1372, %v1456
      %v1503 = vadd.f32 %v1373, %v1458
      %v1504 = vadd.f32 %v1374, %v1461
      %v1505 = vadd.f32 %v1375, %v1463
      %v1506 = vadd.f32 %v1376, %v1466
      %v1507 = vadd.f32 %v1377, %v1468
      %v1508 = vadd.f32 %v1378, %v1471
      %v1509 = vadd.f32 %v1379, %v1473
      %v1510 = vadd.f32 %v1380, %v1476
      %v1511 = vadd.f32 %v1381, %v1478
      %v1515 = vrot.slane %v596, 1
      %v1516 = vrot.slane %v597, 1
      %v1517 = vsel %vm667, %v1515, %v1516
      %v1518 = vrot.slane %v598, 1
      %v1519 = vsel %vm667, %v1516, %v1518
      %v1522 = vpack.c.bf16 %v1519, %v1517
      %s1523 = scalar_lea.vmem %s1, 8
      %v1524 = vld [vmem:[%s1523] sm:$0x3]
      %v1526 = vsel %vm459, %v1522, 0
      %v1529 = vsel %vm846, %v1524, 0
      %1531 = vmatpush.bf16.msra.mxu0 0
      %1532 = vmatpush.bf16.msra.mxu0 0
      %1533 = vmatpush.bf16.msra.mxu0 0
      %1534 = vmatpush.bf16.msra.mxu0 0
      %1535 = vmatpush.bf16.msra.mxu0 0
      %1536 = vmatpush.bf16.msra.mxu0 0
      %1537 = vmatpush.bf16.msra.mxu0 0
      %1538 = vmatpush.bf16.msra.mxu0 %v1529
      %1539 = vmatmul.bf16.gmra.mxu0 %v802
      %v1540 = vpop.f32.mrf.mxu0
      %v1541 = vadd.f32 0.0, %v1540
      %v1542 = vpop.f32.mrf.mxu0
      %v1543 = vadd.f32 0.0, %v1542
      %1544 = vmatmul.bf16.gmra.mxu0 %v805
      %v1545 = vpop.f32.mrf.mxu0
      %v1546 = vadd.f32 0.0, %v1545
      %v1547 = vpop.f32.mrf.mxu0
      %v1548 = vadd.f32 0.0, %v1547
      %1549 = vmatmul.bf16.gmra.mxu0 %v808
      %v1550 = vpop.f32.mrf.mxu0
      %v1551 = vadd.f32 0.0, %v1550
      %v1552 = vpop.f32.mrf.mxu0
      %v1553 = vadd.f32 0.0, %v1552
      %1554 = vmatmul.bf16.gmra.mxu0 %v811
      %v1555 = vpop.f32.mrf.mxu0
      %v1556 = vadd.f32 0.0, %v1555
      %v1557 = vpop.f32.mrf.mxu0
      %v1558 = vadd.f32 0.0, %v1557
      %1559 = vmatmul.bf16.gmra.mxu0 %v814
      %v1560 = vpop.f32.mrf.mxu0
      %v1561 = vadd.f32 0.0, %v1560
      %v1562 = vpop.f32.mrf.mxu0
      %v1563 = vadd.f32 0.0, %v1562
      %1564 = vmatmul.bf16.gmra.mxu0 %v817
      %v1565 = vpop.f32.mrf.mxu0
      %v1566 = vadd.f32 0.0, %v1565
      %v1567 = vpop.f32.mrf.mxu0
      %v1568 = vadd.f32 0.0, %v1567
      %1569 = vmatmul.bf16.gmra.mxu0 %v820
      %v1570 = vpop.f32.mrf.mxu0
      %v1571 = vadd.f32 0.0, %v1570
      %v1572 = vpop.f32.mrf.mxu0
      %v1573 = vadd.f32 0.0, %v1572
      %1574 = vmatmul.bf16.gmra.mxu0 %v823
      %v1575 = vpop.f32.mrf.mxu0
      %v1576 = vadd.f32 0.0, %v1575
      %v1577 = vpop.f32.mrf.mxu0
      %v1578 = vadd.f32 0.0, %v1577
      %1579 = vmatmul.bf16.gmra.mxu0 %v826
      %v1580 = vpop.f32.mrf.mxu0
      %v1581 = vadd.f32 0.0, %v1580
      %v1582 = vpop.f32.mrf.mxu0
      %v1583 = vadd.f32 0.0, %v1582
      %1584 = vmatmul.bf16.gmra.mxu0 %v829
      %v1585 = vpop.f32.mrf.mxu0
      %v1586 = vadd.f32 0.0, %v1585
      %v1587 = vpop.f32.mrf.mxu0
      %v1588 = vadd.f32 0.0, %v1587
      %1589 = vmatmul.bf16.gmra.mxu0 %v832
      %v1590 = vpop.f32.mrf.mxu0
      %v1591 = vadd.f32 0.0, %v1590
      %v1592 = vpop.f32.mrf.mxu0
      %v1593 = vadd.f32 0.0, %v1592
      %1594 = vmatmul.bf16.gmra.mxu0 %v835
      %v1595 = vpop.f32.mrf.mxu0
      %v1596 = vadd.f32 0.0, %v1595
      %v1597 = vpop.f32.mrf.mxu0
      %v1598 = vadd.f32 0.0, %v1597
      %1599 = vmatmul.bf16.gmra.mxu0 %v838
      %v1600 = vpop.f32.mrf.mxu0
      %v1601 = vadd.f32 0.0, %v1600
      %v1602 = vpop.f32.mrf.mxu0
      %v1603 = vadd.f32 0.0, %v1602
      %1604 = vmatmul.bf16.gmra.mxu0 %v841
      %v1605 = vpop.f32.mrf.mxu0
      %v1606 = vadd.f32 0.0, %v1605
      %v1607 = vpop.f32.mrf.mxu0
      %v1608 = vadd.f32 0.0, %v1607
      %1609 = vmatmul.bf16.gmra.mxu0 %v844
      %v1610 = vpop.f32.mrf.mxu0
      %v1611 = vadd.f32 0.0, %v1610
      %v1612 = vpop.f32.mrf.mxu0
      %v1613 = vadd.f32 0.0, %v1612
      %1614 = vmatmul.bf16.gmra.mxu0 %v1526
      %v1615 = vpop.f32.mrf.mxu0
      %v1616 = vadd.f32 0.0, %v1615
      %v1617 = vpop.f32.mrf.mxu0
      %v1618 = vadd.f32 0.0, %v1617
      %1619 = vdwg.mxu0
      %v1620 = vadd.f32 %v1480, %v1541
      %v1621 = vadd.f32 %v1481, %v1543
      %v1622 = vadd.f32 %v1482, %v1546
      %v1623 = vadd.f32 %v1483, %v1548
      %v1624 = vadd.f32 %v1484, %v1551
      %v1625 = vadd.f32 %v1485, %v1553
      %v1626 = vadd.f32 %v1486, %v1556
      %v1627 = vadd.f32 %v1487, %v1558
      %v1628 = vadd.f32 %v1488, %v1561
      %v1629 = vadd.f32 %v1489, %v1563
      %v1630 = vadd.f32 %v1490, %v1566
      %v1631 = vadd.f32 %v1491, %v1568
      %v1632 = vadd.f32 %v1492, %v1571
      %v1633 = vadd.f32 %v1493, %v1573
      %v1634 = vadd.f32 %v1494, %v1576
      %v1635 = vadd.f32 %v1495, %v1578
      %v1636 = vadd.f32 %v1496, %v1581
      %v1637 = vadd.f32 %v1497, %v1583
      %v1638 = vadd.f32 %v1498, %v1586
      %v1639 = vadd.f32 %v1499, %v1588
      %v1640 = vadd.f32 %v1500, %v1591
      %v1641 = vadd.f32 %v1501, %v1593
      %v1642 = vadd.f32 %v1502, %v1596
      %v1643 = vadd.f32 %v1503, %v1598
      %v1644 = vadd.f32 %v1504, %v1601
      %v1645 = vadd.f32 %v1505, %v1603
      %v1646 = vadd.f32 %v1506, %v1606
      %v1647 = vadd.f32 %v1507, %v1608
      %v1648 = vadd.f32 %v1508, %v1611
      %v1649 = vadd.f32 %v1509, %v1613
      %v1650 = vadd.f32 %v1510, %v1616
      %v1651 = vadd.f32 %v1511, %v1618
      %v1652 = vrot.slane %v596, 2
      %v1653 = vrot.slane %v597, 2
      %v1654 = vsel %vm1079, %v1652, %v1653
      %v1655 = vrot.slane %v598, 2
      %v1656 = vsel %vm1079, %v1653, %v1655
      %v1659 = vpack.c.bf16 %v1656, %v1654
      %s1660 = scalar_lea.vmem %s1, 10
      %v1661 = vld [vmem:[%s1660] sm:$0x3]
      %v1663 = vsel %vm459, %v1659, 0
      %v1666 = vsel %vm846, %v1661, 0
      %1668 = vmatpush.bf16.msra.mxu0 0
      %1669 = vmatpush.bf16.msra.mxu0 0
      %1670 = vmatpush.bf16.msra.mxu0 0
      %1671 = vmatpush.bf16.msra.mxu0 0
      %1672 = vmatpush.bf16.msra.mxu0 0
      %1673 = vmatpush.bf16.msra.mxu0 0
      %1674 = vmatpush.bf16.msra.mxu0 0
      %1675 = vmatpush.bf16.msra.mxu0 %v1666
      %1676 = vmatmul.bf16.gmra.mxu0 %v1214
      %v1677 = vpop.f32.mrf.mxu0
      %v1678 = vadd.f32 0.0, %v1677
      %v1679 = vpop.f32.mrf.mxu0
      %v1680 = vadd.f32 0.0, %v1679
      %1681 = vmatmul.bf16.gmra.mxu0 %v1217
      %v1682 = vpop.f32.mrf.mxu0
      %v1683 = vadd.f32 0.0, %v1682
      %v1684 = vpop.f32.mrf.mxu0
      %v1685 = vadd.f32 0.0, %v1684
      %1686 = vmatmul.bf16.gmra.mxu0 %v1220
      %v1687 = vpop.f32.mrf.mxu0
      %v1688 = vadd.f32 0.0, %v1687
      %v1689 = vpop.f32.mrf.mxu0
      %v1690 = vadd.f32 0.0, %v1689
      %1691 = vmatmul.bf16.gmra.mxu0 %v1223
      %v1692 = vpop.f32.mrf.mxu0
      %v1693 = vadd.f32 0.0, %v1692
      %v1694 = vpop.f32.mrf.mxu0
      %v1695 = vadd.f32 0.0, %v1694
      %1696 = vmatmul.bf16.gmra.mxu0 %v1226
      %v1697 = vpop.f32.mrf.mxu0
      %v1698 = vadd.f32 0.0, %v1697
      %v1699 = vpop.f32.mrf.mxu0
      %v1700 = vadd.f32 0.0, %v1699
      %1701 = vmatmul.bf16.gmra.mxu0 %v1229
      %v1702 = vpop.f32.mrf.mxu0
      %v1703 = vadd.f32 0.0, %v1702
      %v1704 = vpop.f32.mrf.mxu0
      %v1705 = vadd.f32 0.0, %v1704
      %1706 = vmatmul.bf16.gmra.mxu0 %v1232
      %v1707 = vpop.f32.mrf.mxu0
      %v1708 = vadd.f32 0.0, %v1707
      %v1709 = vpop.f32.mrf.mxu0
      %v1710 = vadd.f32 0.0, %v1709
      %1711 = vmatmul.bf16.gmra.mxu0 %v1235
      %v1712 = vpop.f32.mrf.mxu0
      %v1713 = vadd.f32 0.0, %v1712
      %v1714 = vpop.f32.mrf.mxu0
      %v1715 = vadd.f32 0.0, %v1714
      %1716 = vmatmul.bf16.gmra.mxu0 %v1238
      %v1717 = vpop.f32.mrf.mxu0
      %v1718 = vadd.f32 0.0, %v1717
      %v1719 = vpop.f32.mrf.mxu0
      %v1720 = vadd.f32 0.0, %v1719
      %1721 = vmatmul.bf16.gmra.mxu0 %v1241
      %v1722 = vpop.f32.mrf.mxu0
      %v1723 = vadd.f32 0.0, %v1722
      %v1724 = vpop.f32.mrf.mxu0
      %v1725 = vadd.f32 0.0, %v1724
      %1726 = vmatmul.bf16.gmra.mxu0 %v1244
      %v1727 = vpop.f32.mrf.mxu0
      %v1728 = vadd.f32 0.0, %v1727
      %v1729 = vpop.f32.mrf.mxu0
      %v1730 = vadd.f32 0.0, %v1729
      %1731 = vmatmul.bf16.gmra.mxu0 %v1247
      %v1732 = vpop.f32.mrf.mxu0
      %v1733 = vadd.f32 0.0, %v1732
      %v1734 = vpop.f32.mrf.mxu0
      %v1735 = vadd.f32 0.0, %v1734
      %1736 = vmatmul.bf16.gmra.mxu0 %v1250
      %v1737 = vpop.f32.mrf.mxu0
      %v1738 = vadd.f32 0.0, %v1737
      %v1739 = vpop.f32.mrf.mxu0
      %v1740 = vadd.f32 0.0, %v1739
      %1741 = vmatmul.bf16.gmra.mxu0 %v1253
      %v1742 = vpop.f32.mrf.mxu0
      %v1743 = vadd.f32 0.0, %v1742
      %v1744 = vpop.f32.mrf.mxu0
      %v1745 = vadd.f32 0.0, %v1744
      %1746 = vmatmul.bf16.gmra.mxu0 %v1256
      %v1747 = vpop.f32.mrf.mxu0
      %v1748 = vadd.f32 0.0, %v1747
      %v1749 = vpop.f32.mrf.mxu0
      %v1750 = vadd.f32 0.0, %v1749
      %1751 = vmatmul.bf16.gmra.mxu0 %v1663
      %v1752 = vpop.f32.mrf.mxu0
      %v1753 = vadd.f32 0.0, %v1752
      %v1754 = vpop.f32.mrf.mxu0
      %v1755 = vadd.f32 0.0, %v1754
      %1756 = vdwg.mxu0
      %v1757 = vadd.f32 %v1620, %v1678
      %v1758 = vadd.f32 %v1621, %v1680
      %v1759 = vadd.f32 %v1622, %v1683
      %v1760 = vadd.f32 %v1623, %v1685
      %v1761 = vadd.f32 %v1624, %v1688
      %v1762 = vadd.f32 %v1625, %v1690
      %v1763 = vadd.f32 %v1626, %v1693
      %v1764 = vadd.f32 %v1627, %v1695
      %v1765 = vadd.f32 %v1628, %v1698
      %v1766 = vadd.f32 %v1629, %v1700
      %v1767 = vadd.f32 %v1630, %v1703
      %v1768 = vadd.f32 %v1631, %v1705
      %v1769 = vadd.f32 %v1632, %v1708
      %v1770 = vadd.f32 %v1633, %v1710
      %v1771 = vadd.f32 %v1634, %v1713
      %v1772 = vadd.f32 %v1635, %v1715
      %v1773 = vadd.f32 %v1636, %v1718
      %v1774 = vadd.f32 %v1637, %v1720
      %v1775 = vadd.f32 %v1638, %v1723
      %v1776 = vadd.f32 %v1639, %v1725
      %v1777 = vadd.f32 %v1640, %v1728
      %v1778 = vadd.f32 %v1641, %v1730
      %v1779 = vadd.f32 %v1642, %v1733
      %v1780 = vadd.f32 %v1643, %v1735
      %v1781 = vadd.f32 %v1644, %v1738
      %v1782 = vadd.f32 %v1645, %v1740
      %v1783 = vadd.f32 %v1646, %v1743
      %v1784 = vadd.f32 %v1647, %v1745
      %v1785 = vadd.f32 %v1648, %v1748
      %v1786 = vadd.f32 %v1649, %v1750
      %v1787 = vadd.f32 %v1650, %v1753
      %v1788 = vadd.f32 %v1651, %v1755
      %v1789 = vpack.c.bf16 %v600, %v599
      %s1790 = scalar_lea.vmem %s1, 12
      %v1791 = vld [vmem:[%s1790] sm:$0x3]
      %v1793 = vsel %vm459, %v1789, 0
      %v1796 = vsel %vm846, %v1791, 0
      %1798 = vmatpush.bf16.msra.mxu0 0
      %1799 = vmatpush.bf16.msra.mxu0 0
      %1800 = vmatpush.bf16.msra.mxu0 0
      %1801 = vmatpush.bf16.msra.mxu0 0
      %1802 = vmatpush.bf16.msra.mxu0 0
      %1803 = vmatpush.bf16.msra.mxu0 0
      %1804 = vmatpush.bf16.msra.mxu0 0
      %1805 = vmatpush.bf16.msra.mxu0 %v1796
      %1806 = vmatmul.bf16.gmra.mxu0 %v946
      %v1807 = vpop.f32.mrf.mxu0
      %v1808 = vadd.f32 0.0, %v1807
      %v1809 = vpop.f32.mrf.mxu0
      %v1810 = vadd.f32 0.0, %v1809
      %1811 = vmatmul.bf16.gmra.mxu0 %v949
      %v1812 = vpop.f32.mrf.mxu0
      %v1813 = vadd.f32 0.0, %v1812
      %v1814 = vpop.f32.mrf.mxu0
      %v1815 = vadd.f32 0.0, %v1814
      %1816 = vmatmul.bf16.gmra.mxu0 %v952
      %v1817 = vpop.f32.mrf.mxu0
      %v1818 = vadd.f32 0.0, %v1817
      %v1819 = vpop.f32.mrf.mxu0
      %v1820 = vadd.f32 0.0, %v1819
      %1821 = vmatmul.bf16.gmra.mxu0 %v955
      %v1822 = vpop.f32.mrf.mxu0
      %v1823 = vadd.f32 0.0, %v1822
      %v1824 = vpop.f32.mrf.mxu0
      %v1825 = vadd.f32 0.0, %v1824
      %1826 = vmatmul.bf16.gmra.mxu0 %v958
      %v1827 = vpop.f32.mrf.mxu0
      %v1828 = vadd.f32 0.0, %v1827
      %v1829 = vpop.f32.mrf.mxu0
      %v1830 = vadd.f32 0.0, %v1829
      %1831 = vmatmul.bf16.gmra.mxu0 %v961
      %v1832 = vpop.f32.mrf.mxu0
      %v1833 = vadd.f32 0.0, %v1832
      %v1834 = vpop.f32.mrf.mxu0
      %v1835 = vadd.f32 0.0, %v1834
      %1836 = vmatmul.bf16.gmra.mxu0 %v964
      %v1837 = vpop.f32.mrf.mxu0
      %v1838 = vadd.f32 0.0, %v1837
      %v1839 = vpop.f32.mrf.mxu0
      %v1840 = vadd.f32 0.0, %v1839
      %1841 = vmatmul.bf16.gmra.mxu0 %v967
      %v1842 = vpop.f32.mrf.mxu0
      %v1843 = vadd.f32 0.0, %v1842
      %v1844 = vpop.f32.mrf.mxu0
      %v1845 = vadd.f32 0.0, %v1844
      %1846 = vmatmul.bf16.gmra.mxu0 %v970
      %v1847 = vpop.f32.mrf.mxu0
      %v1848 = vadd.f32 0.0, %v1847
      %v1849 = vpop.f32.mrf.mxu0
      %v1850 = vadd.f32 0.0, %v1849
      %1851 = vmatmul.bf16.gmra.mxu0 %v973
      %v1852 = vpop.f32.mrf.mxu0
      %v1853 = vadd.f32 0.0, %v1852
      %v1854 = vpop.f32.mrf.mxu0
      %v1855 = vadd.f32 0.0, %v1854
      %1856 = vmatmul.bf16.gmra.mxu0 %v976
      %v1857 = vpop.f32.mrf.mxu0
      %v1858 = vadd.f32 0.0, %v1857
      %v1859 = vpop.f32.mrf.mxu0
      %v1860 = vadd.f32 0.0, %v1859
      %1861 = vmatmul.bf16.gmra.mxu0 %v979
      %v1862 = vpop.f32.mrf.mxu0
      %v1863 = vadd.f32 0.0, %v1862
      %v1864 = vpop.f32.mrf.mxu0
      %v1865 = vadd.f32 0.0, %v1864
      %1866 = vmatmul.bf16.gmra.mxu0 %v982
      %v1867 = vpop.f32.mrf.mxu0
      %v1868 = vadd.f32 0.0, %v1867
      %v1869 = vpop.f32.mrf.mxu0
      %v1870 = vadd.f32 0.0, %v1869
      %1871 = vmatmul.bf16.gmra.mxu0 %v985
      %v1872 = vpop.f32.mrf.mxu0
      %v1873 = vadd.f32 0.0, %v1872
      %v1874 = vpop.f32.mrf.mxu0
      %v1875 = vadd.f32 0.0, %v1874
      %1876 = vmatmul.bf16.gmra.mxu0 %v1386
      %v1877 = vpop.f32.mrf.mxu0
      %v1878 = vadd.f32 0.0, %v1877
      %v1879 = vpop.f32.mrf.mxu0
      %v1880 = vadd.f32 0.0, %v1879
      %1881 = vmatmul.bf16.gmra.mxu0 %v1793
      %v1882 = vpop.f32.mrf.mxu0
      %v1883 = vadd.f32 0.0, %v1882
      %v1884 = vpop.f32.mrf.mxu0
      %v1885 = vadd.f32 0.0, %v1884
      %1886 = vdwg.mxu0
      %v1887 = vadd.f32 %v1757, %v1808
      %v1888 = vadd.f32 %v1758, %v1810
      %v1889 = vadd.f32 %v1759, %v1813
      %v1890 = vadd.f32 %v1760, %v1815
      %v1891 = vadd.f32 %v1761, %v1818
      %v1892 = vadd.f32 %v1762, %v1820
      %v1893 = vadd.f32 %v1763, %v1823
      %v1894 = vadd.f32 %v1764, %v1825
      %v1895 = vadd.f32 %v1765, %v1828
      %v1896 = vadd.f32 %v1766, %v1830
      %v1897 = vadd.f32 %v1767, %v1833
      %v1898 = vadd.f32 %v1768, %v1835
      %v1899 = vadd.f32 %v1769, %v1838
      %v1900 = vadd.f32 %v1770, %v1840
      %v1901 = vadd.f32 %v1771, %v1843
      %v1902 = vadd.f32 %v1772, %v1845
      %v1903 = vadd.f32 %v1773, %v1848
      %v1904 = vadd.f32 %v1774, %v1850
      %v1905 = vadd.f32 %v1775, %v1853
      %v1906 = vadd.f32 %v1776, %v1855
      %v1907 = vadd.f32 %v1777, %v1858
      %v1908 = vadd.f32 %v1778, %v1860
      %v1909 = vadd.f32 %v1779, %v1863
      %v1910 = vadd.f32 %v1780, %v1865
      %v1911 = vadd.f32 %v1781, %v1868
      %v1912 = vadd.f32 %v1782, %v1870
      %v1913 = vadd.f32 %v1783, %v1873
      %v1914 = vadd.f32 %v1784, %v1875
      %v1915 = vadd.f32 %v1785, %v1878
      %v1916 = vadd.f32 %v1786, %v1880
      %v1917 = vadd.f32 %v1787, %v1883
      %v1918 = vadd.f32 %v1788, %v1885
      %v1922 = vrot.slane %v599, 1
      %v1923 = vrot.slane %v600, 1
      %v1924 = vsel %vm667, %v1922, %v1923
      %v1925 = vrot.slane %v601, 1
      %v1926 = vsel %vm667, %v1923, %v1925
      %v1929 = vpack.c.bf16 %v1926, %v1924
      %s1930 = scalar_lea.vmem %s1, 14
      %v1931 = vld [vmem:[%s1930] sm:$0x3]
      %v1933 = vsel %vm459, %v1929, 0
      %v1936 = vsel %vm846, %v1931, 0
      %1938 = vmatpush.bf16.msra.mxu0 0
      %1939 = vmatpush.bf16.msra.mxu0 0
      %1940 = vmatpush.bf16.msra.mxu0 0
      %1941 = vmatpush.bf16.msra.mxu0 0
      %1942 = vmatpush.bf16.msra.mxu0 0
      %1943 = vmatpush.bf16.msra.mxu0 0
      %1944 = vmatpush.bf16.msra.mxu0 0
      %1945 = vmatpush.bf16.msra.mxu0 %v1936
      %1946 = vmatmul.bf16.gmra.mxu0 %v805
      %v1947 = vpop.f32.mrf.mxu0
      %v1948 = vadd.f32 0.0, %v1947
      %v1949 = vpop.f32.mrf.mxu0
      %v1950 = vadd.f32 0.0, %v1949
      %1951 = vmatmul.bf16.gmra.mxu0 %v808
      %v1952 = vpop.f32.mrf.mxu0
      %v1953 = vadd.f32 0.0, %v1952
      %v1954 = vpop.f32.mrf.mxu0
      %v1955 = vadd.f32 0.0, %v1954
      %1956 = vmatmul.bf16.gmra.mxu0 %v811
      %v1957 = vpop.f32.mrf.mxu0
      %v1958 = vadd.f32 0.0, %v1957
      %v1959 = vpop.f32.mrf.mxu0
      %v1960 = vadd.f32 0.0, %v1959
      %1961 = vmatmul.bf16.gmra.mxu0 %v814
      %v1962 = vpop.f32.mrf.mxu0
      %v1963 = vadd.f32 0.0, %v1962
      %v1964 = vpop.f32.mrf.mxu0
      %v1965 = vadd.f32 0.0, %v1964
      %1966 = vmatmul.bf16.gmra.mxu0 %v817
      %v1967 = vpop.f32.mrf.mxu0
      %v1968 = vadd.f32 0.0, %v1967
      %v1969 = vpop.f32.mrf.mxu0
      %v1970 = vadd.f32 0.0, %v1969
      %1971 = vmatmul.bf16.gmra.mxu0 %v820
      %v1972 = vpop.f32.mrf.mxu0
      %v1973 = vadd.f32 0.0, %v1972
      %v1974 = vpop.f32.mrf.mxu0
      %v1975 = vadd.f32 0.0, %v1974
      %1976 = vmatmul.bf16.gmra.mxu0 %v823
      %v1977 = vpop.f32.mrf.mxu0
      %v1978 = vadd.f32 0.0, %v1977
      %v1979 = vpop.f32.mrf.mxu0
      %v1980 = vadd.f32 0.0, %v1979
      %1981 = vmatmul.bf16.gmra.mxu0 %v826
      %v1982 = vpop.f32.mrf.mxu0
      %v1983 = vadd.f32 0.0, %v1982
      %v1984 = vpop.f32.mrf.mxu0
      %v1985 = vadd.f32 0.0, %v1984
      %1986 = vmatmul.bf16.gmra.mxu0 %v829
      %v1987 = vpop.f32.mrf.mxu0
      %v1988 = vadd.f32 0.0, %v1987
      %v1989 = vpop.f32.mrf.mxu0
      %v1990 = vadd.f32 0.0, %v1989
      %1991 = vmatmul.bf16.gmra.mxu0 %v832
      %v1992 = vpop.f32.mrf.mxu0
      %v1993 = vadd.f32 0.0, %v1992
      %v1994 = vpop.f32.mrf.mxu0
      %v1995 = vadd.f32 0.0, %v1994
      %1996 = vmatmul.bf16.gmra.mxu0 %v835
      %v1997 = vpop.f32.mrf.mxu0
      %v1998 = vadd.f32 0.0, %v1997
      %v1999 = vpop.f32.mrf.mxu0
      %v2000 = vadd.f32 0.0, %v1999
      %2001 = vmatmul.bf16.gmra.mxu0 %v838
      %v2002 = vpop.f32.mrf.mxu0
      %v2003 = vadd.f32 0.0, %v2002
      %v2004 = vpop.f32.mrf.mxu0
      %v2005 = vadd.f32 0.0, %v2004
      %2006 = vmatmul.bf16.gmra.mxu0 %v841
      %v2007 = vpop.f32.mrf.mxu0
      %v2008 = vadd.f32 0.0, %v2007
      %v2009 = vpop.f32.mrf.mxu0
      %v2010 = vadd.f32 0.0, %v2009
      %2011 = vmatmul.bf16.gmra.mxu0 %v844
      %v2012 = vpop.f32.mrf.mxu0
      %v2013 = vadd.f32 0.0, %v2012
      %v2014 = vpop.f32.mrf.mxu0
      %v2015 = vadd.f32 0.0, %v2014
      %2016 = vmatmul.bf16.gmra.mxu0 %v1526
      %v2017 = vpop.f32.mrf.mxu0
      %v2018 = vadd.f32 0.0, %v2017
      %v2019 = vpop.f32.mrf.mxu0
      %v2020 = vadd.f32 0.0, %v2019
      %2021 = vmatmul.bf16.gmra.mxu0 %v1933
      %v2022 = vpop.f32.mrf.mxu0
      %v2023 = vadd.f32 0.0, %v2022
      %v2024 = vpop.f32.mrf.mxu0
      %v2025 = vadd.f32 0.0, %v2024
      %2026 = vdwg.mxu0
      %v2027 = vadd.f32 %v1887, %v1948
      %v2028 = vadd.f32 %v1888, %v1950
      %v2029 = vadd.f32 %v1889, %v1953
      %v2030 = vadd.f32 %v1890, %v1955
      %v2031 = vadd.f32 %v1891, %v1958
      %v2032 = vadd.f32 %v1892, %v1960
      %v2033 = vadd.f32 %v1893, %v1963
      %v2034 = vadd.f32 %v1894, %v1965
      %v2035 = vadd.f32 %v1895, %v1968
      %v2036 = vadd.f32 %v1896, %v1970
      %v2037 = vadd.f32 %v1897, %v1973
      %v2038 = vadd.f32 %v1898, %v1975
      %v2039 = vadd.f32 %v1899, %v1978
      %v2040 = vadd.f32 %v1900, %v1980
      %v2041 = vadd.f32 %v1901, %v1983
      %v2042 = vadd.f32 %v1902, %v1985
      %v2043 = vadd.f32 %v1903, %v1988
      %v2044 = vadd.f32 %v1904, %v1990
      %v2045 = vadd.f32 %v1905, %v1993
      %v2046 = vadd.f32 %v1906, %v1995
      %v2047 = vadd.f32 %v1907, %v1998
      %v2048 = vadd.f32 %v1908, %v2000
      %v2049 = vadd.f32 %v1909, %v2003
      %v2050 = vadd.f32 %v1910, %v2005
      %v2051 = vadd.f32 %v1911, %v2008
      %v2052 = vadd.f32 %v1912, %v2010
      %v2053 = vadd.f32 %v1913, %v2013
      %v2054 = vadd.f32 %v1914, %v2015
      %v2055 = vadd.f32 %v1915, %v2018
      %v2056 = vadd.f32 %v1916, %v2020
      %v2057 = vadd.f32 %v1917, %v2023
      %v2058 = vadd.f32 %v1918, %v2025
      %v2059 = vrot.slane %v599, 2
      %v2060 = vrot.slane %v600, 2
      %v2061 = vsel %vm1079, %v2059, %v2060
      %v2062 = vrot.slane %v601, 2
      %v2063 = vsel %vm1079, %v2060, %v2062
      %v2066 = vpack.c.bf16 %v2063, %v2061
      %s2067 = scalar_lea.vmem %s1, 16
      %v2068 = vld [vmem:[%s2067] sm:$0x3]
      %v2070 = vsel %vm459, %v2066, 0
      %v2073 = vsel %vm846, %v2068, 0
      %2075 = vmatpush.bf16.msra.mxu0 0
      %2076 = vmatpush.bf16.msra.mxu0 0
      %2077 = vmatpush.bf16.msra.mxu0 0
      %2078 = vmatpush.bf16.msra.mxu0 0
      %2079 = vmatpush.bf16.msra.mxu0 0
      %2080 = vmatpush.bf16.msra.mxu0 0
      %2081 = vmatpush.bf16.msra.mxu0 0
      %2082 = vmatpush.bf16.msra.mxu0 %v2073
      %2083 = vmatmul.bf16.gmra.mxu0 %v1217
      %v2084 = vpop.f32.mrf.mxu0
      %v2085 = vadd.f32 0.0, %v2084
      %v2086 = vpop.f32.mrf.mxu0
      %v2087 = vadd.f32 0.0, %v2086
      %2088 = vmatmul.bf16.gmra.mxu0 %v1220
      %v2089 = vpop.f32.mrf.mxu0
      %v2090 = vadd.f32 0.0, %v2089
      %v2091 = vpop.f32.mrf.mxu0
      %v2092 = vadd.f32 0.0, %v2091
      %2093 = vmatmul.bf16.gmra.mxu0 %v1223
      %v2094 = vpop.f32.mrf.mxu0
      %v2095 = vadd.f32 0.0, %v2094
      %v2096 = vpop.f32.mrf.mxu0
      %v2097 = vadd.f32 0.0, %v2096
      %2098 = vmatmul.bf16.gmra.mxu0 %v1226
      %v2099 = vpop.f32.mrf.mxu0
      %v2100 = vadd.f32 0.0, %v2099
      %v2101 = vpop.f32.mrf.mxu0
      %v2102 = vadd.f32 0.0, %v2101
      %2103 = vmatmul.bf16.gmra.mxu0 %v1229
      %v2104 = vpop.f32.mrf.mxu0
      %v2105 = vadd.f32 0.0, %v2104
      %v2106 = vpop.f32.mrf.mxu0
      %v2107 = vadd.f32 0.0, %v2106
      %2108 = vmatmul.bf16.gmra.mxu0 %v1232
      %v2109 = vpop.f32.mrf.mxu0
      %v2110 = vadd.f32 0.0, %v2109
      %v2111 = vpop.f32.mrf.mxu0
      %v2112 = vadd.f32 0.0, %v2111
      %2113 = vmatmul.bf16.gmra.mxu0 %v1235
      %v2114 = vpop.f32.mrf.mxu0
      %v2115 = vadd.f32 0.0, %v2114
      %v2116 = vpop.f32.mrf.mxu0
      %v2117 = vadd.f32 0.0, %v2116
      %2118 = vmatmul.bf16.gmra.mxu0 %v1238
      %v2119 = vpop.f32.mrf.mxu0
      %v2120 = vadd.f32 0.0, %v2119
      %v2121 = vpop.f32.mrf.mxu0
      %v2122 = vadd.f32 0.0, %v2121
      %2123 = vmatmul.bf16.gmra.mxu0 %v1241
      %v2124 = vpop.f32.mrf.mxu0
      %v2125 = vadd.f32 0.0, %v2124
      %v2126 = vpop.f32.mrf.mxu0
      %v2127 = vadd.f32 0.0, %v2126
      %2128 = vmatmul.bf16.gmra.mxu0 %v1244
      %v2129 = vpop.f32.mrf.mxu0
      %v2130 = vadd.f32 0.0, %v2129
      %v2131 = vpop.f32.mrf.mxu0
      %v2132 = vadd.f32 0.0, %v2131
      %2133 = vmatmul.bf16.gmra.mxu0 %v1247
      %v2134 = vpop.f32.mrf.mxu0
      %v2135 = vadd.f32 0.0, %v2134
      %v2136 = vpop.f32.mrf.mxu0
      %v2137 = vadd.f32 0.0, %v2136
      %2138 = vmatmul.bf16.gmra.mxu0 %v1250
      %v2139 = vpop.f32.mrf.mxu0
      %v2140 = vadd.f32 0.0, %v2139
      %v2141 = vpop.f32.mrf.mxu0
      %v2142 = vadd.f32 0.0, %v2141
      %2143 = vmatmul.bf16.gmra.mxu0 %v1253
      %v2144 = vpop.f32.mrf.mxu0
      %v2145 = vadd.f32 0.0, %v2144
      %v2146 = vpop.f32.mrf.mxu0
      %v2147 = vadd.f32 0.0, %v2146
      %2148 = vmatmul.bf16.gmra.mxu0 %v1256
      %v2149 = vpop.f32.mrf.mxu0
      %v2150 = vadd.f32 0.0, %v2149
      %v2151 = vpop.f32.mrf.mxu0
      %v2152 = vadd.f32 0.0, %v2151
      %2153 = vmatmul.bf16.gmra.mxu0 %v1663
      %v2154 = vpop.f32.mrf.mxu0
      %v2155 = vadd.f32 0.0, %v2154
      %v2156 = vpop.f32.mrf.mxu0
      %v2157 = vadd.f32 0.0, %v2156
      %2158 = vmatmul.bf16.gmra.mxu0 %v2070
      %v2159 = vpop.f32.mrf.mxu0
      %v2160 = vadd.f32 0.0, %v2159
      %v2161 = vpop.f32.mrf.mxu0
      %v2162 = vadd.f32 0.0, %v2161
      %2163 = vdwg.mxu0
      %v2164 = vadd.f32 %v2027, %v2085
      %v2165 = vadd.f32 %v2028, %v2087
      %v2166 = vadd.f32 %v2029, %v2090
      %v2167 = vadd.f32 %v2030, %v2092
      %v2168 = vadd.f32 %v2031, %v2095
      %v2169 = vadd.f32 %v2032, %v2097
      %v2170 = vadd.f32 %v2033, %v2100
      %v2171 = vadd.f32 %v2034, %v2102
      %v2172 = vadd.f32 %v2035, %v2105
      %v2173 = vadd.f32 %v2036, %v2107
      %v2174 = vadd.f32 %v2037, %v2110
      %v2175 = vadd.f32 %v2038, %v2112
      %v2176 = vadd.f32 %v2039, %v2115
      %v2177 = vadd.f32 %v2040, %v2117
      %v2178 = vadd.f32 %v2041, %v2120
      %v2179 = vadd.f32 %v2042, %v2122
      %v2180 = vadd.f32 %v2043, %v2125
      %v2181 = vadd.f32 %v2044, %v2127
      %v2182 = vadd.f32 %v2045, %v2130
      %v2183 = vadd.f32 %v2046, %v2132
      %v2184 = vadd.f32 %v2047, %v2135
      %v2185 = vadd.f32 %v2048, %v2137
      %v2186 = vadd.f32 %v2049, %v2140
      %v2187 = vadd.f32 %v2050, %v2142
      %v2188 = vadd.f32 %v2051, %v2145
      %v2189 = vadd.f32 %v2052, %v2147
      %v2190 = vadd.f32 %v2053, %v2150
      %v2191 = vadd.f32 %v2054, %v2152
      %v2192 = vadd.f32 %v2055, %v2155
      %v2193 = vadd.f32 %v2056, %v2157
      %v2194 = vadd.f32 %v2057, %v2160
      %v2195 = vadd.f32 %v2058, %v2162
      %v2196 = vld [vmem:[%s2] sm:$0x1]
      %v2198 = vperm.slane %v2196, 0
      %v2200 = vadd.f32 %v2164, %v2198
      %v2201 = vadd.f32 %v2165, %v2198
      %v2202 = vadd.f32 %v2166, %v2198
      %v2203 = vadd.f32 %v2167, %v2198
      %v2204 = vadd.f32 %v2168, %v2198
      %v2205 = vadd.f32 %v2169, %v2198
      %v2206 = vadd.f32 %v2170, %v2198
      %v2207 = vadd.f32 %v2171, %v2198
      %v2208 = vadd.f32 %v2172, %v2198
      %v2209 = vadd.f32 %v2173, %v2198
      %v2210 = vadd.f32 %v2174, %v2198
      %v2211 = vadd.f32 %v2175, %v2198
      %v2212 = vadd.f32 %v2176, %v2198
      %v2213 = vadd.f32 %v2177, %v2198
      %v2214 = vadd.f32 %v2178, %v2198
      %v2215 = vadd.f32 %v2179, %v2198
      %v2216 = vadd.f32 %v2180, %v2198
      %v2217 = vadd.f32 %v2181, %v2198
      %v2218 = vadd.f32 %v2182, %v2198
      %v2219 = vadd.f32 %v2183, %v2198
      %v2220 = vadd.f32 %v2184, %v2198
      %v2221 = vadd.f32 %v2185, %v2198
      %v2222 = vadd.f32 %v2186, %v2198
      %v2223 = vadd.f32 %v2187, %v2198
      %v2224 = vadd.f32 %v2188, %v2198
      %v2225 = vadd.f32 %v2189, %v2198
      %v2226 = vadd.f32 %v2190, %v2198
      %v2227 = vadd.f32 %v2191, %v2198
      %v2228 = vadd.f32 %v2192, %v2198
      %v2229 = vadd.f32 %v2193, %v2198
      %v2230 = vadd.f32 %v2194, %v2198
      %v2231 = vadd.f32 %v2195, %v2198
      %v2232 = vmax.f32 %v2200, 0.0
      %v2233 = vmax.f32 %v2201, 0.0
      %v2234 = vmax.f32 %v2202, 0.0
      %v2235 = vmax.f32 %v2203, 0.0
      %v2236 = vmax.f32 %v2204, 0.0
      %v2237 = vmax.f32 %v2205, 0.0
      %v2238 = vmax.f32 %v2206, 0.0
      %v2239 = vmax.f32 %v2207, 0.0
      %v2240 = vmax.f32 %v2208, 0.0
      %v2241 = vmax.f32 %v2209, 0.0
      %v2242 = vmax.f32 %v2210, 0.0
      %v2243 = vmax.f32 %v2211, 0.0
      %v2244 = vmax.f32 %v2212, 0.0
      %v2245 = vmax.f32 %v2213, 0.0
      %v2246 = vmax.f32 %v2214, 0.0
      %v2247 = vmax.f32 %v2215, 0.0
      %v2248 = vmax.f32 %v2216, 0.0
      %v2249 = vmax.f32 %v2217, 0.0
      %v2250 = vmax.f32 %v2218, 0.0
      %v2251 = vmax.f32 %v2219, 0.0
      %v2252 = vmax.f32 %v2220, 0.0
      %v2253 = vmax.f32 %v2221, 0.0
      %v2254 = vmax.f32 %v2222, 0.0
      %v2255 = vmax.f32 %v2223, 0.0
      %v2256 = vmax.f32 %v2224, 0.0
      %v2257 = vmax.f32 %v2225, 0.0
      %v2258 = vmax.f32 %v2226, 0.0
      %v2259 = vmax.f32 %v2227, 0.0
      %v2260 = vmax.f32 %v2228, 0.0
      %v2261 = vmax.f32 %v2229, 0.0
      %v2262 = vmax.f32 %v2230, 0.0
      %v2263 = vmax.f32 %v2231, 0.0
      %v2296 = vrot.slane %v2232, 2
      %v2297 = vrot.slane %v2232, 4
      %v2298 = vrot.slane %v2232, 6
      %v2299 = vrot.slane %v2233, 2
      %v2300 = vrot.slane %v2233, 4
      %v2301 = vrot.slane %v2233, 6
      %v2302 = vrot.slane %v2234, 2
      %v2303 = vrot.slane %v2234, 4
      %v2304 = vrot.slane %v2234, 6
      %v2305 = vrot.slane %v2235, 2
      %v2306 = vrot.slane %v2235, 4
      %v2307 = vrot.slane %v2235, 6
      %v2308 = vrot.slane %v2236, 2
      %v2309 = vrot.slane %v2236, 4
      %v2310 = vrot.slane %v2236, 6
      %v2311 = vrot.slane %v2237, 2
      %v2312 = vrot.slane %v2237, 4
      %v2313 = vrot.slane %v2237, 6
      %v2314 = vrot.slane %v2238, 2
      %v2315 = vrot.slane %v2238, 4
      %v2316 = vrot.slane %v2238, 6
      %v2317 = vrot.slane %v2239, 2
      %v2318 = vrot.slane %v2239, 4
      %v2319 = vrot.slane %v2239, 6
      %v2320 = vrot.slane %v2240, 2
      %v2321 = vrot.slane %v2240, 4
      %v2322 = vrot.slane %v2240, 6
      %v2323 = vrot.slane %v2241, 2
      %v2324 = vrot.slane %v2241, 4
      %v2325 = vrot.slane %v2241, 6
      %v2326 = vrot.slane %v2242, 2
      %v2327 = vrot.slane %v2242, 4
      %v2328 = vrot.slane %v2242, 6
      %v2329 = vrot.slane %v2243, 2
      %v2330 = vrot.slane %v2243, 4
      %v2331 = vrot.slane %v2243, 6
      %v2332 = vrot.slane %v2244, 2
      %v2333 = vrot.slane %v2244, 4
      %v2334 = vrot.slane %v2244, 6
      %v2335 = vrot.slane %v2245, 2
      %v2336 = vrot.slane %v2245, 4
      %v2337 = vrot.slane %v2245, 6
      %v2338 = vrot.slane %v2246, 2
      %v2339 = vrot.slane %v2246, 4
      %v2340 = vrot.slane %v2246, 6
      %v2341 = vrot.slane %v2247, 2
      %v2342 = vrot.slane %v2247, 4
      %v2343 = vrot.slane %v2247, 6
      %v2344 = vrot.slane %v2248, 2
      %v2345 = vrot.slane %v2248, 4
      %v2346 = vrot.slane %v2248, 6
      %v2347 = vrot.slane %v2249, 2
      %v2348 = vrot.slane %v2249, 4
      %v2349 = vrot.slane %v2249, 6
      %v2350 = vrot.slane %v2250, 2
      %v2351 = vrot.slane %v2250, 4
      %v2352 = vrot.slane %v2250, 6
      %v2353 = vrot.slane %v2251, 2
      %v2354 = vrot.slane %v2251, 4
      %v2355 = vrot.slane %v2251, 6
      %v2356 = vrot.slane %v2252, 2
      %v2357 = vrot.slane %v2252, 4
      %v2358 = vrot.slane %v2252, 6
      %v2359 = vrot.slane %v2253, 2
      %v2360 = vrot.slane %v2253, 4
      %v2361 = vrot.slane %v2253, 6
      %v2362 = vrot.slane %v2254, 2
      %v2363 = vrot.slane %v2254, 4
      %v2364 = vrot.slane %v2254, 6
      %v2365 = vrot.slane %v2255, 2
      %v2366 = vrot.slane %v2255, 4
      %v2367 = vrot.slane %v2255, 6
      %v2368 = vrot.slane %v2256, 2
      %v2369 = vrot.slane %v2256, 4
      %v2370 = vrot.slane %v2256, 6
      %v2371 = vrot.slane %v2257, 2
      %v2372 = vrot.slane %v2257, 4
      %v2373 = vrot.slane %v2257, 6
      %v2374 = vrot.slane %v2258, 2
      %v2375 = vrot.slane %v2258, 4
      %v2376 = vrot.slane %v2258, 6
      %v2377 = vrot.slane %v2259, 2
      %v2378 = vrot.slane %v2259, 4
      %v2379 = vrot.slane %v2259, 6
      %v2380 = vrot.slane %v2260, 2
      %v2381 = vrot.slane %v2260, 4
      %v2382 = vrot.slane %v2260, 6
      %v2383 = vrot.slane %v2261, 2
      %v2384 = vrot.slane %v2261, 4
      %v2385 = vrot.slane %v2261, 6
      %v2386 = vrot.slane %v2262, 2
      %v2387 = vrot.slane %v2262, 4
      %v2388 = vrot.slane %v2262, 6
      %v2389 = vrot.slane %v2263, 2
      %v2390 = vrot.slane %v2263, 4
      %v2391 = vrot.slane %v2263, 6
      %vm2488 = vcmask 517120
      %v2489 = vsel %vm2488, %v2232, -inf
      %v2490 = vrot.slane %v2489, 4
      %v2491 = vmax.f32 %v2489, %v2490
      %v2492 = vrot.slane %v2491, 2
      %v2493 = vmax.f32 %v2491, %v2492
      %v2494 = vrot.slane %v2493, 1
      %v2495 = vmax.f32 %v2493, %v2494
      %v2496 = vsel %vm2488, %v2296, -inf
      %v2497 = vrot.slane %v2496, 4
      %v2498 = vmax.f32 %v2496, %v2497
      %v2499 = vrot.slane %v2498, 2
      %v2500 = vmax.f32 %v2498, %v2499
      %v2501 = vrot.slane %v2500, 1
      %v2502 = vmax.f32 %v2500, %v2501
      %v2503 = vsel %vm2488, %v2297, -inf
      %v2504 = vrot.slane %v2503, 4
      %v2505 = vmax.f32 %v2503, %v2504
      %v2506 = vrot.slane %v2505, 2
      %v2507 = vmax.f32 %v2505, %v2506
      %v2508 = vrot.slane %v2507, 1
      %v2509 = vmax.f32 %v2507, %v2508
      %v2510 = vsel %vm2488, %v2298, -inf
      %v2511 = vrot.slane %v2510, 4
      %v2512 = vmax.f32 %v2510, %v2511
      %v2513 = vrot.slane %v2512, 2
      %v2514 = vmax.f32 %v2512, %v2513
      %v2515 = vrot.slane %v2514, 1
      %v2516 = vmax.f32 %v2514, %v2515
      %v2517 = vsel %vm2488, %v2233, -inf
      %v2518 = vrot.slane %v2517, 4
      %v2519 = vmax.f32 %v2517, %v2518
      %v2520 = vrot.slane %v2519, 2
      %v2521 = vmax.f32 %v2519, %v2520
      %v2522 = vrot.slane %v2521, 1
      %v2523 = vmax.f32 %v2521, %v2522
      %v2524 = vsel %vm2488, %v2299, -inf
      %v2525 = vrot.slane %v2524, 4
      %v2526 = vmax.f32 %v2524, %v2525
      %v2527 = vrot.slane %v2526, 2
      %v2528 = vmax.f32 %v2526, %v2527
      %v2529 = vrot.slane %v2528, 1
      %v2530 = vmax.f32 %v2528, %v2529
      %v2531 = vsel %vm2488, %v2300, -inf
      %v2532 = vrot.slane %v2531, 4
      %v2533 = vmax.f32 %v2531, %v2532
      %v2534 = vrot.slane %v2533, 2
      %v2535 = vmax.f32 %v2533, %v2534
      %v2536 = vrot.slane %v2535, 1
      %v2537 = vmax.f32 %v2535, %v2536
      %v2538 = vsel %vm2488, %v2301, -inf
      %v2539 = vrot.slane %v2538, 4
      %v2540 = vmax.f32 %v2538, %v2539
      %v2541 = vrot.slane %v2540, 2
      %v2542 = vmax.f32 %v2540, %v2541
      %v2543 = vrot.slane %v2542, 1
      %v2544 = vmax.f32 %v2542, %v2543
      %v2545 = vsel %vm2488, %v2234, -inf
      %v2546 = vrot.slane %v2545, 4
      %v2547 = vmax.f32 %v2545, %v2546
      %v2548 = vrot.slane %v2547, 2
      %v2549 = vmax.f32 %v2547, %v2548
      %v2550 = vrot.slane %v2549, 1
      %v2551 = vmax.f32 %v2549, %v2550
      %v2552 = vsel %vm2488, %v2302, -inf
      %v2553 = vrot.slane %v2552, 4
      %v2554 = vmax.f32 %v2552, %v2553
      %v2555 = vrot.slane %v2554, 2
      %v2556 = vmax.f32 %v2554, %v2555
      %v2557 = vrot.slane %v2556, 1
      %v2558 = vmax.f32 %v2556, %v2557
      %v2559 = vsel %vm2488, %v2303, -inf
      %v2560 = vrot.slane %v2559, 4
      %v2561 = vmax.f32 %v2559, %v2560
      %v2562 = vrot.slane %v2561, 2
      %v2563 = vmax.f32 %v2561, %v2562
      %v2564 = vrot.slane %v2563, 1
      %v2565 = vmax.f32 %v2563, %v2564
      %v2566 = vsel %vm2488, %v2304, -inf
      %v2567 = vrot.slane %v2566, 4
      %v2568 = vmax.f32 %v2566, %v2567
      %v2569 = vrot.slane %v2568, 2
      %v2570 = vmax.f32 %v2568, %v2569
      %v2571 = vrot.slane %v2570, 1
      %v2572 = vmax.f32 %v2570, %v2571
      %v2573 = vsel %vm2488, %v2235, -inf
      %v2574 = vrot.slane %v2573, 4
      %v2575 = vmax.f32 %v2573, %v2574
      %v2576 = vrot.slane %v2575, 2
      %v2577 = vmax.f32 %v2575, %v2576
      %v2578 = vrot.slane %v2577, 1
      %v2579 = vmax.f32 %v2577, %v2578
      %v2580 = vsel %vm2488, %v2305, -inf
      %v2581 = vrot.slane %v2580, 4
      %v2582 = vmax.f32 %v2580, %v2581
      %v2583 = vrot.slane %v2582, 2
      %v2584 = vmax.f32 %v2582, %v2583
      %v2585 = vrot.slane %v2584, 1
      %v2586 = vmax.f32 %v2584, %v2585
      %v2587 = vsel %vm2488, %v2306, -inf
      %v2588 = vrot.slane %v2587, 4
      %v2589 = vmax.f32 %v2587, %v2588
      %v2590 = vrot.slane %v2589, 2
      %v2591 = vmax.f32 %v2589, %v2590
      %v2592 = vrot.slane %v2591, 1
      %v2593 = vmax.f32 %v2591, %v2592
      %v2594 = vsel %vm2488, %v2307, -inf
      %v2595 = vrot.slane %v2594, 4
      %v2596 = vmax.f32 %v2594, %v2595
      %v2597 = vrot.slane %v2596, 2
      %v2598 = vmax.f32 %v2596, %v2597
      %v2599 = vrot.slane %v2598, 1
      %v2600 = vmax.f32 %v2598, %v2599
      %v2601 = vsel %vm2488, %v2236, -inf
      %v2602 = vrot.slane %v2601, 4
      %v2603 = vmax.f32 %v2601, %v2602
      %v2604 = vrot.slane %v2603, 2
      %v2605 = vmax.f32 %v2603, %v2604
      %v2606 = vrot.slane %v2605, 1
      %v2607 = vmax.f32 %v2605, %v2606
      %v2608 = vsel %vm2488, %v2308, -inf
      %v2609 = vrot.slane %v2608, 4
      %v2610 = vmax.f32 %v2608, %v2609
      %v2611 = vrot.slane %v2610, 2
      %v2612 = vmax.f32 %v2610, %v2611
      %v2613 = vrot.slane %v2612, 1
      %v2614 = vmax.f32 %v2612, %v2613
      %v2615 = vsel %vm2488, %v2309, -inf
      %v2616 = vrot.slane %v2615, 4
      %v2617 = vmax.f32 %v2615, %v2616
      %v2618 = vrot.slane %v2617, 2
      %v2619 = vmax.f32 %v2617, %v2618
      %v2620 = vrot.slane %v2619, 1
      %v2621 = vmax.f32 %v2619, %v2620
      %v2622 = vsel %vm2488, %v2310, -inf
      %v2623 = vrot.slane %v2622, 4
      %v2624 = vmax.f32 %v2622, %v2623
      %v2625 = vrot.slane %v2624, 2
      %v2626 = vmax.f32 %v2624, %v2625
      %v2627 = vrot.slane %v2626, 1
      %v2628 = vmax.f32 %v2626, %v2627
      %v2629 = vsel %vm2488, %v2237, -inf
      %v2630 = vrot.slane %v2629, 4
      %v2631 = vmax.f32 %v2629, %v2630
      %v2632 = vrot.slane %v2631, 2
      %v2633 = vmax.f32 %v2631, %v2632
      %v2634 = vrot.slane %v2633, 1
      %v2635 = vmax.f32 %v2633, %v2634
      %v2636 = vsel %vm2488, %v2311, -inf
      %v2637 = vrot.slane %v2636, 4
      %v2638 = vmax.f32 %v2636, %v2637
      %v2639 = vrot.slane %v2638, 2
      %v2640 = vmax.f32 %v2638, %v2639
      %v2641 = vrot.slane %v2640, 1
      %v2642 = vmax.f32 %v2640, %v2641
      %v2643 = vsel %vm2488, %v2312, -inf
      %v2644 = vrot.slane %v2643, 4
      %v2645 = vmax.f32 %v2643, %v2644
      %v2646 = vrot.slane %v2645, 2
      %v2647 = vmax.f32 %v2645, %v2646
      %v2648 = vrot.slane %v2647, 1
      %v2649 = vmax.f32 %v2647, %v2648
      %v2650 = vsel %vm2488, %v2313, -inf
      %v2651 = vrot.slane %v2650, 4
      %v2652 = vmax.f32 %v2650, %v2651
      %v2653 = vrot.slane %v2652, 2
      %v2654 = vmax.f32 %v2652, %v2653
      %v2655 = vrot.slane %v2654, 1
      %v2656 = vmax.f32 %v2654, %v2655
      %v2657 = vsel %vm2488, %v2238, -inf
      %v2658 = vrot.slane %v2657, 4
      %v2659 = vmax.f32 %v2657, %v2658
      %v2660 = vrot.slane %v2659, 2
      %v2661 = vmax.f32 %v2659, %v2660
      %v2662 = vrot.slane %v2661, 1
      %v2663 = vmax.f32 %v2661, %v2662
      %v2664 = vsel %vm2488, %v2314, -inf
      %v2665 = vrot.slane %v2664, 4
      %v2666 = vmax.f32 %v2664, %v2665
      %v2667 = vrot.slane %v2666, 2
      %v2668 = vmax.f32 %v2666, %v2667
      %v2669 = vrot.slane %v2668, 1
      %v2670 = vmax.f32 %v2668, %v2669
      %v2671 = vsel %vm2488, %v2315, -inf
      %v2672 = vrot.slane %v2671, 4
      %v2673 = vmax.f32 %v2671, %v2672
      %v2674 = vrot.slane %v2673, 2
      %v2675 = vmax.f32 %v2673, %v2674
      %v2676 = vrot.slane %v2675, 1
      %v2677 = vmax.f32 %v2675, %v2676
      %v2678 = vsel %vm2488, %v2316, -inf
      %v2679 = vrot.slane %v2678, 4
      %v2680 = vmax.f32 %v2678, %v2679
      %v2681 = vrot.slane %v2680, 2
      %v2682 = vmax.f32 %v2680, %v2681
      %v2683 = vrot.slane %v2682, 1
      %v2684 = vmax.f32 %v2682, %v2683
      %v2685 = vsel %vm2488, %v2239, -inf
      %v2686 = vrot.slane %v2685, 4
      %v2687 = vmax.f32 %v2685, %v2686
      %v2688 = vrot.slane %v2687, 2
      %v2689 = vmax.f32 %v2687, %v2688
      %v2690 = vrot.slane %v2689, 1
      %v2691 = vmax.f32 %v2689, %v2690
      %v2692 = vsel %vm2488, %v2317, -inf
      %v2693 = vrot.slane %v2692, 4
      %v2694 = vmax.f32 %v2692, %v2693
      %v2695 = vrot.slane %v2694, 2
      %v2696 = vmax.f32 %v2694, %v2695
      %v2697 = vrot.slane %v2696, 1
      %v2698 = vmax.f32 %v2696, %v2697
      %v2699 = vsel %vm2488, %v2318, -inf
      %v2700 = vrot.slane %v2699, 4
      %v2701 = vmax.f32 %v2699, %v2700
      %v2702 = vrot.slane %v2701, 2
      %v2703 = vmax.f32 %v2701, %v2702
      %v2704 = vrot.slane %v2703, 1
      %v2705 = vmax.f32 %v2703, %v2704
      %v2706 = vsel %vm2488, %v2319, -inf
      %v2707 = vrot.slane %v2706, 4
      %v2708 = vmax.f32 %v2706, %v2707
      %v2709 = vrot.slane %v2708, 2
      %v2710 = vmax.f32 %v2708, %v2709
      %v2711 = vrot.slane %v2710, 1
      %v2712 = vmax.f32 %v2710, %v2711
      %v2713 = vsel %vm2488, %v2240, -inf
      %v2714 = vrot.slane %v2713, 4
      %v2715 = vmax.f32 %v2713, %v2714
      %v2716 = vrot.slane %v2715, 2
      %v2717 = vmax.f32 %v2715, %v2716
      %v2718 = vrot.slane %v2717, 1
      %v2719 = vmax.f32 %v2717, %v2718
      %v2720 = vsel %vm2488, %v2320, -inf
      %v2721 = vrot.slane %v2720, 4
      %v2722 = vmax.f32 %v2720, %v2721
      %v2723 = vrot.slane %v2722, 2
      %v2724 = vmax.f32 %v2722, %v2723
      %v2725 = vrot.slane %v2724, 1
      %v2726 = vmax.f32 %v2724, %v2725
      %v2727 = vsel %vm2488, %v2321, -inf
      %v2728 = vrot.slane %v2727, 4
      %v2729 = vmax.f32 %v2727, %v2728
      %v2730 = vrot.slane %v2729, 2
      %v2731 = vmax.f32 %v2729, %v2730
      %v2732 = vrot.slane %v2731, 1
      %v2733 = vmax.f32 %v2731, %v2732
      %v2734 = vsel %vm2488, %v2322, -inf
      %v2735 = vrot.slane %v2734, 4
      %v2736 = vmax.f32 %v2734, %v2735
      %v2737 = vrot.slane %v2736, 2
      %v2738 = vmax.f32 %v2736, %v2737
      %v2739 = vrot.slane %v2738, 1
      %v2740 = vmax.f32 %v2738, %v2739
      %v2741 = vsel %vm2488, %v2241, -inf
      %v2742 = vrot.slane %v2741, 4
      %v2743 = vmax.f32 %v2741, %v2742
      %v2744 = vrot.slane %v2743, 2
      %v2745 = vmax.f32 %v2743, %v2744
      %v2746 = vrot.slane %v2745, 1
      %v2747 = vmax.f32 %v2745, %v2746
      %v2748 = vsel %vm2488, %v2323, -inf
      %v2749 = vrot.slane %v2748, 4
      %v2750 = vmax.f32 %v2748, %v2749
      %v2751 = vrot.slane %v2750, 2
      %v2752 = vmax.f32 %v2750, %v2751
      %v2753 = vrot.slane %v2752, 1
      %v2754 = vmax.f32 %v2752, %v2753
      %v2755 = vsel %vm2488, %v2324, -inf
      %v2756 = vrot.slane %v2755, 4
      %v2757 = vmax.f32 %v2755, %v2756
      %v2758 = vrot.slane %v2757, 2
      %v2759 = vmax.f32 %v2757, %v2758
      %v2760 = vrot.slane %v2759, 1
      %v2761 = vmax.f32 %v2759, %v2760
      %v2762 = vsel %vm2488, %v2325, -inf
      %v2763 = vrot.slane %v2762, 4
      %v2764 = vmax.f32 %v2762, %v2763
      %v2765 = vrot.slane %v2764, 2
      %v2766 = vmax.f32 %v2764, %v2765
      %v2767 = vrot.slane %v2766, 1
      %v2768 = vmax.f32 %v2766, %v2767
      %v2769 = vsel %vm2488, %v2242, -inf
      %v2770 = vrot.slane %v2769, 4
      %v2771 = vmax.f32 %v2769, %v2770
      %v2772 = vrot.slane %v2771, 2
      %v2773 = vmax.f32 %v2771, %v2772
      %v2774 = vrot.slane %v2773, 1
      %v2775 = vmax.f32 %v2773, %v2774
      %v2776 = vsel %vm2488, %v2326, -inf
      %v2777 = vrot.slane %v2776, 4
      %v2778 = vmax.f32 %v2776, %v2777
      %v2779 = vrot.slane %v2778, 2
      %v2780 = vmax.f32 %v2778, %v2779
      %v2781 = vrot.slane %v2780, 1
      %v2782 = vmax.f32 %v2780, %v2781
      %v2783 = vsel %vm2488, %v2327, -inf
      %v2784 = vrot.slane %v2783, 4
      %v2785 = vmax.f32 %v2783, %v2784
      %v2786 = vrot.slane %v2785, 2
      %v2787 = vmax.f32 %v2785, %v2786
      %v2788 = vrot.slane %v2787, 1
      %v2789 = vmax.f32 %v2787, %v2788
      %v2790 = vsel %vm2488, %v2328, -inf
      %v2791 = vrot.slane %v2790, 4
      %v2792 = vmax.f32 %v2790, %v2791
      %v2793 = vrot.slane %v2792, 2
      %v2794 = vmax.f32 %v2792, %v2793
      %v2795 = vrot.slane %v2794, 1
      %v2796 = vmax.f32 %v2794, %v2795
      %v2797 = vsel %vm2488, %v2243, -inf
      %v2798 = vrot.slane %v2797, 4
      %v2799 = vmax.f32 %v2797, %v2798
      %v2800 = vrot.slane %v2799, 2
      %v2801 = vmax.f32 %v2799, %v2800
      %v2802 = vrot.slane %v2801, 1
      %v2803 = vmax.f32 %v2801, %v2802
      %v2804 = vsel %vm2488, %v2329, -inf
      %v2805 = vrot.slane %v2804, 4
      %v2806 = vmax.f32 %v2804, %v2805
      %v2807 = vrot.slane %v2806, 2
      %v2808 = vmax.f32 %v2806, %v2807
      %v2809 = vrot.slane %v2808, 1
      %v2810 = vmax.f32 %v2808, %v2809
      %v2811 = vsel %vm2488, %v2330, -inf
      %v2812 = vrot.slane %v2811, 4
      %v2813 = vmax.f32 %v2811, %v2812
      %v2814 = vrot.slane %v2813, 2
      %v2815 = vmax.f32 %v2813, %v2814
      %v2816 = vrot.slane %v2815, 1
      %v2817 = vmax.f32 %v2815, %v2816
      %v2818 = vsel %vm2488, %v2331, -inf
      %v2819 = vrot.slane %v2818, 4
      %v2820 = vmax.f32 %v2818, %v2819
      %v2821 = vrot.slane %v2820, 2
      %v2822 = vmax.f32 %v2820, %v2821
      %v2823 = vrot.slane %v2822, 1
      %v2824 = vmax.f32 %v2822, %v2823
      %v2825 = vsel %vm2488, %v2244, -inf
      %v2826 = vrot.slane %v2825, 4
      %v2827 = vmax.f32 %v2825, %v2826
      %v2828 = vrot.slane %v2827, 2
      %v2829 = vmax.f32 %v2827, %v2828
      %v2830 = vrot.slane %v2829, 1
      %v2831 = vmax.f32 %v2829, %v2830
      %v2832 = vsel %vm2488, %v2332, -inf
      %v2833 = vrot.slane %v2832, 4
      %v2834 = vmax.f32 %v2832, %v2833
      %v2835 = vrot.slane %v2834, 2
      %v2836 = vmax.f32 %v2834, %v2835
      %v2837 = vrot.slane %v2836, 1
      %v2838 = vmax.f32 %v2836, %v2837
      %v2839 = vsel %vm2488, %v2333, -inf
      %v2840 = vrot.slane %v2839, 4
      %v2841 = vmax.f32 %v2839, %v2840
      %v2842 = vrot.slane %v2841, 2
      %v2843 = vmax.f32 %v2841, %v2842
      %v2844 = vrot.slane %v2843, 1
      %v2845 = vmax.f32 %v2843, %v2844
      %v2846 = vsel %vm2488, %v2334, -inf
      %v2847 = vrot.slane %v2846, 4
      %v2848 = vmax.f32 %v2846, %v2847
      %v2849 = vrot.slane %v2848, 2
      %v2850 = vmax.f32 %v2848, %v2849
      %v2851 = vrot.slane %v2850, 1
      %v2852 = vmax.f32 %v2850, %v2851
      %v2853 = vsel %vm2488, %v2245, -inf
      %v2854 = vrot.slane %v2853, 4
      %v2855 = vmax.f32 %v2853, %v2854
      %v2856 = vrot.slane %v2855, 2
      %v2857 = vmax.f32 %v2855, %v2856
      %v2858 = vrot.slane %v2857, 1
      %v2859 = vmax.f32 %v2857, %v2858
      %v2860 = vsel %vm2488, %v2335, -inf
      %v2861 = vrot.slane %v2860, 4
      %v2862 = vmax.f32 %v2860, %v2861
      %v2863 = vrot.slane %v2862, 2
      %v2864 = vmax.f32 %v2862, %v2863
      %v2865 = vrot.slane %v2864, 1
      %v2866 = vmax.f32 %v2864, %v2865
      %v2867 = vsel %vm2488, %v2336, -inf
      %v2868 = vrot.slane %v2867, 4
      %v2869 = vmax.f32 %v2867, %v2868
      %v2870 = vrot.slane %v2869, 2
      %v2871 = vmax.f32 %v2869, %v2870
      %v2872 = vrot.slane %v2871, 1
      %v2873 = vmax.f32 %v2871, %v2872
      %v2874 = vsel %vm2488, %v2337, -inf
      %v2875 = vrot.slane %v2874, 4
      %v2876 = vmax.f32 %v2874, %v2875
      %v2877 = vrot.slane %v2876, 2
      %v2878 = vmax.f32 %v2876, %v2877
      %v2879 = vrot.slane %v2878, 1
      %v2880 = vmax.f32 %v2878, %v2879
      %v2881 = vsel %vm2488, %v2246, -inf
      %v2882 = vrot.slane %v2881, 4
      %v2883 = vmax.f32 %v2881, %v2882
      %v2884 = vrot.slane %v2883, 2
      %v2885 = vmax.f32 %v2883, %v2884
      %v2886 = vrot.slane %v2885, 1
      %v2887 = vmax.f32 %v2885, %v2886
      %v2888 = vsel %vm2488, %v2338, -inf
      %v2889 = vrot.slane %v2888, 4
      %v2890 = vmax.f32 %v2888, %v2889
      %v2891 = vrot.slane %v2890, 2
      %v2892 = vmax.f32 %v2890, %v2891
      %v2893 = vrot.slane %v2892, 1
      %v2894 = vmax.f32 %v2892, %v2893
      %v2895 = vsel %vm2488, %v2339, -inf
      %v2896 = vrot.slane %v2895, 4
      %v2897 = vmax.f32 %v2895, %v2896
      %v2898 = vrot.slane %v2897, 2
      %v2899 = vmax.f32 %v2897, %v2898
      %v2900 = vrot.slane %v2899, 1
      %v2901 = vmax.f32 %v2899, %v2900
      %v2902 = vsel %vm2488, %v2340, -inf
      %v2903 = vrot.slane %v2902, 4
      %v2904 = vmax.f32 %v2902, %v2903
      %v2905 = vrot.slane %v2904, 2
      %v2906 = vmax.f32 %v2904, %v2905
      %v2907 = vrot.slane %v2906, 1
      %v2908 = vmax.f32 %v2906, %v2907
      %v2909 = vsel %vm2488, %v2247, -inf
      %v2910 = vrot.slane %v2909, 4
      %v2911 = vmax.f32 %v2909, %v2910
      %v2912 = vrot.slane %v2911, 2
      %v2913 = vmax.f32 %v2911, %v2912
      %v2914 = vrot.slane %v2913, 1
      %v2915 = vmax.f32 %v2913, %v2914
      %v2916 = vsel %vm2488, %v2341, -inf
      %v2917 = vrot.slane %v2916, 4
      %v2918 = vmax.f32 %v2916, %v2917
      %v2919 = vrot.slane %v2918, 2
      %v2920 = vmax.f32 %v2918, %v2919
      %v2921 = vrot.slane %v2920, 1
      %v2922 = vmax.f32 %v2920, %v2921
      %v2923 = vsel %vm2488, %v2342, -inf
      %v2924 = vrot.slane %v2923, 4
      %v2925 = vmax.f32 %v2923, %v2924
      %v2926 = vrot.slane %v2925, 2
      %v2927 = vmax.f32 %v2925, %v2926
      %v2928 = vrot.slane %v2927, 1
      %v2929 = vmax.f32 %v2927, %v2928
      %v2930 = vsel %vm2488, %v2343, -inf
      %v2931 = vrot.slane %v2930, 4
      %v2932 = vmax.f32 %v2930, %v2931
      %v2933 = vrot.slane %v2932, 2
      %v2934 = vmax.f32 %v2932, %v2933
      %v2935 = vrot.slane %v2934, 1
      %v2936 = vmax.f32 %v2934, %v2935
      %v2937 = vsel %vm2488, %v2248, -inf
      %v2938 = vrot.slane %v2937, 4
      %v2939 = vmax.f32 %v2937, %v2938
      %v2940 = vrot.slane %v2939, 2
      %v2941 = vmax.f32 %v2939, %v2940
      %v2942 = vrot.slane %v2941, 1
      %v2943 = vmax.f32 %v2941, %v2942
      %v2944 = vsel %vm2488, %v2344, -inf
      %v2945 = vrot.slane %v2944, 4
      %v2946 = vmax.f32 %v2944, %v2945
      %v2947 = vrot.slane %v2946, 2
      %v2948 = vmax.f32 %v2946, %v2947
      %v2949 = vrot.slane %v2948, 1
      %v2950 = vmax.f32 %v2948, %v2949
      %v2951 = vsel %vm2488, %v2345, -inf
      %v2952 = vrot.slane %v2951, 4
      %v2953 = vmax.f32 %v2951, %v2952
      %v2954 = vrot.slane %v2953, 2
      %v2955 = vmax.f32 %v2953, %v2954
      %v2956 = vrot.slane %v2955, 1
      %v2957 = vmax.f32 %v2955, %v2956
      %v2958 = vsel %vm2488, %v2346, -inf
      %v2959 = vrot.slane %v2958, 4
      %v2960 = vmax.f32 %v2958, %v2959
      %v2961 = vrot.slane %v2960, 2
      %v2962 = vmax.f32 %v2960, %v2961
      %v2963 = vrot.slane %v2962, 1
      %v2964 = vmax.f32 %v2962, %v2963
      %v2965 = vsel %vm2488, %v2249, -inf
      %v2966 = vrot.slane %v2965, 4
      %v2967 = vmax.f32 %v2965, %v2966
      %v2968 = vrot.slane %v2967, 2
      %v2969 = vmax.f32 %v2967, %v2968
      %v2970 = vrot.slane %v2969, 1
      %v2971 = vmax.f32 %v2969, %v2970
      %v2972 = vsel %vm2488, %v2347, -inf
      %v2973 = vrot.slane %v2972, 4
      %v2974 = vmax.f32 %v2972, %v2973
      %v2975 = vrot.slane %v2974, 2
      %v2976 = vmax.f32 %v2974, %v2975
      %v2977 = vrot.slane %v2976, 1
      %v2978 = vmax.f32 %v2976, %v2977
      %v2979 = vsel %vm2488, %v2348, -inf
      %v2980 = vrot.slane %v2979, 4
      %v2981 = vmax.f32 %v2979, %v2980
      %v2982 = vrot.slane %v2981, 2
      %v2983 = vmax.f32 %v2981, %v2982
      %v2984 = vrot.slane %v2983, 1
      %v2985 = vmax.f32 %v2983, %v2984
      %v2986 = vsel %vm2488, %v2349, -inf
      %v2987 = vrot.slane %v2986, 4
      %v2988 = vmax.f32 %v2986, %v2987
      %v2989 = vrot.slane %v2988, 2
      %v2990 = vmax.f32 %v2988, %v2989
      %v2991 = vrot.slane %v2990, 1
      %v2992 = vmax.f32 %v2990, %v2991
      %v2993 = vsel %vm2488, %v2250, -inf
      %v2994 = vrot.slane %v2993, 4
      %v2995 = vmax.f32 %v2993, %v2994
      %v2996 = vrot.slane %v2995, 2
      %v2997 = vmax.f32 %v2995, %v2996
      %v2998 = vrot.slane %v2997, 1
      %v2999 = vmax.f32 %v2997, %v2998
      %v3000 = vsel %vm2488, %v2350, -inf
      %v3001 = vrot.slane %v3000, 4
      %v3002 = vmax.f32 %v3000, %v3001
      %v3003 = vrot.slane %v3002, 2
      %v3004 = vmax.f32 %v3002, %v3003
      %v3005 = vrot.slane %v3004, 1
      %v3006 = vmax.f32 %v3004, %v3005
      %v3007 = vsel %vm2488, %v2351, -inf
      %v3008 = vrot.slane %v3007, 4
      %v3009 = vmax.f32 %v3007, %v3008
      %v3010 = vrot.slane %v3009, 2
      %v3011 = vmax.f32 %v3009, %v3010
      %v3012 = vrot.slane %v3011, 1
      %v3013 = vmax.f32 %v3011, %v3012
      %v3014 = vsel %vm2488, %v2352, -inf
      %v3015 = vrot.slane %v3014, 4
      %v3016 = vmax.f32 %v3014, %v3015
      %v3017 = vrot.slane %v3016, 2
      %v3018 = vmax.f32 %v3016, %v3017
      %v3019 = vrot.slane %v3018, 1
      %v3020 = vmax.f32 %v3018, %v3019
      %v3021 = vsel %vm2488, %v2251, -inf
      %v3022 = vrot.slane %v3021, 4
      %v3023 = vmax.f32 %v3021, %v3022
      %v3024 = vrot.slane %v3023, 2
      %v3025 = vmax.f32 %v3023, %v3024
      %v3026 = vrot.slane %v3025, 1
      %v3027 = vmax.f32 %v3025, %v3026
      %v3028 = vsel %vm2488, %v2353, -inf
      %v3029 = vrot.slane %v3028, 4
      %v3030 = vmax.f32 %v3028, %v3029
      %v3031 = vrot.slane %v3030, 2
      %v3032 = vmax.f32 %v3030, %v3031
      %v3033 = vrot.slane %v3032, 1
      %v3034 = vmax.f32 %v3032, %v3033
      %v3035 = vsel %vm2488, %v2354, -inf
      %v3036 = vrot.slane %v3035, 4
      %v3037 = vmax.f32 %v3035, %v3036
      %v3038 = vrot.slane %v3037, 2
      %v3039 = vmax.f32 %v3037, %v3038
      %v3040 = vrot.slane %v3039, 1
      %v3041 = vmax.f32 %v3039, %v3040
      %v3042 = vsel %vm2488, %v2355, -inf
      %v3043 = vrot.slane %v3042, 4
      %v3044 = vmax.f32 %v3042, %v3043
      %v3045 = vrot.slane %v3044, 2
      %v3046 = vmax.f32 %v3044, %v3045
      %v3047 = vrot.slane %v3046, 1
      %v3048 = vmax.f32 %v3046, %v3047
      %v3049 = vsel %vm2488, %v2252, -inf
      %v3050 = vrot.slane %v3049, 4
      %v3051 = vmax.f32 %v3049, %v3050
      %v3052 = vrot.slane %v3051, 2
      %v3053 = vmax.f32 %v3051, %v3052
      %v3054 = vrot.slane %v3053, 1
      %v3055 = vmax.f32 %v3053, %v3054
      %v3056 = vsel %vm2488, %v2356, -inf
      %v3057 = vrot.slane %v3056, 4
      %v3058 = vmax.f32 %v3056, %v3057
      %v3059 = vrot.slane %v3058, 2
      %v3060 = vmax.f32 %v3058, %v3059
      %v3061 = vrot.slane %v3060, 1
      %v3062 = vmax.f32 %v3060, %v3061
      %v3063 = vsel %vm2488, %v2357, -inf
      %v3064 = vrot.slane %v3063, 4
      %v3065 = vmax.f32 %v3063, %v3064
      %v3066 = vrot.slane %v3065, 2
      %v3067 = vmax.f32 %v3065, %v3066
      %v3068 = vrot.slane %v3067, 1
      %v3069 = vmax.f32 %v3067, %v3068
      %v3070 = vsel %vm2488, %v2358, -inf
      %v3071 = vrot.slane %v3070, 4
      %v3072 = vmax.f32 %v3070, %v3071
      %v3073 = vrot.slane %v3072, 2
      %v3074 = vmax.f32 %v3072, %v3073
      %v3075 = vrot.slane %v3074, 1
      %v3076 = vmax.f32 %v3074, %v3075
      %v3077 = vsel %vm2488, %v2253, -inf
      %v3078 = vrot.slane %v3077, 4
      %v3079 = vmax.f32 %v3077, %v3078
      %v3080 = vrot.slane %v3079, 2
      %v3081 = vmax.f32 %v3079, %v3080
      %v3082 = vrot.slane %v3081, 1
      %v3083 = vmax.f32 %v3081, %v3082
      %v3084 = vsel %vm2488, %v2359, -inf
      %v3085 = vrot.slane %v3084, 4
      %v3086 = vmax.f32 %v3084, %v3085
      %v3087 = vrot.slane %v3086, 2
      %v3088 = vmax.f32 %v3086, %v3087
      %v3089 = vrot.slane %v3088, 1
      %v3090 = vmax.f32 %v3088, %v3089
      %v3091 = vsel %vm2488, %v2360, -inf
      %v3092 = vrot.slane %v3091, 4
      %v3093 = vmax.f32 %v3091, %v3092
      %v3094 = vrot.slane %v3093, 2
      %v3095 = vmax.f32 %v3093, %v3094
      %v3096 = vrot.slane %v3095, 1
      %v3097 = vmax.f32 %v3095, %v3096
      %v3098 = vsel %vm2488, %v2361, -inf
      %v3099 = vrot.slane %v3098, 4
      %v3100 = vmax.f32 %v3098, %v3099
      %v3101 = vrot.slane %v3100, 2
      %v3102 = vmax.f32 %v3100, %v3101
      %v3103 = vrot.slane %v3102, 1
      %v3104 = vmax.f32 %v3102, %v3103
      %v3105 = vsel %vm2488, %v2254, -inf
      %v3106 = vrot.slane %v3105, 4
      %v3107 = vmax.f32 %v3105, %v3106
      %v3108 = vrot.slane %v3107, 2
      %v3109 = vmax.f32 %v3107, %v3108
      %v3110 = vrot.slane %v3109, 1
      %v3111 = vmax.f32 %v3109, %v3110
      %v3112 = vsel %vm2488, %v2362, -inf
      %v3113 = vrot.slane %v3112, 4
      %v3114 = vmax.f32 %v3112, %v3113
      %v3115 = vrot.slane %v3114, 2
      %v3116 = vmax.f32 %v3114, %v3115
      %v3117 = vrot.slane %v3116, 1
      %v3118 = vmax.f32 %v3116, %v3117
      %v3119 = vsel %vm2488, %v2363, -inf
      %v3120 = vrot.slane %v3119, 4
      %v3121 = vmax.f32 %v3119, %v3120
      %v3122 = vrot.slane %v3121, 2
      %v3123 = vmax.f32 %v3121, %v3122
      %v3124 = vrot.slane %v3123, 1
      %v3125 = vmax.f32 %v3123, %v3124
      %v3126 = vsel %vm2488, %v2364, -inf
      %v3127 = vrot.slane %v3126, 4
      %v3128 = vmax.f32 %v3126, %v3127
      %v3129 = vrot.slane %v3128, 2
      %v3130 = vmax.f32 %v3128, %v3129
      %v3131 = vrot.slane %v3130, 1
      %v3132 = vmax.f32 %v3130, %v3131
      %v3133 = vsel %vm2488, %v2255, -inf
      %v3134 = vrot.slane %v3133, 4
      %v3135 = vmax.f32 %v3133, %v3134
      %v3136 = vrot.slane %v3135, 2
      %v3137 = vmax.f32 %v3135, %v3136
      %v3138 = vrot.slane %v3137, 1
      %v3139 = vmax.f32 %v3137, %v3138
      %v3140 = vsel %vm2488, %v2365, -inf
      %v3141 = vrot.slane %v3140, 4
      %v3142 = vmax.f32 %v3140, %v3141
      %v3143 = vrot.slane %v3142, 2
      %v3144 = vmax.f32 %v3142, %v3143
      %v3145 = vrot.slane %v3144, 1
      %v3146 = vmax.f32 %v3144, %v3145
      %v3147 = vsel %vm2488, %v2366, -inf
      %v3148 = vrot.slane %v3147, 4
      %v3149 = vmax.f32 %v3147, %v3148
      %v3150 = vrot.slane %v3149, 2
      %v3151 = vmax.f32 %v3149, %v3150
      %v3152 = vrot.slane %v3151, 1
      %v3153 = vmax.f32 %v3151, %v3152
      %v3154 = vsel %vm2488, %v2367, -inf
      %v3155 = vrot.slane %v3154, 4
      %v3156 = vmax.f32 %v3154, %v3155
      %v3157 = vrot.slane %v3156, 2
      %v3158 = vmax.f32 %v3156, %v3157
      %v3159 = vrot.slane %v3158, 1
      %v3160 = vmax.f32 %v3158, %v3159
      %v3161 = vsel %vm2488, %v2256, -inf
      %v3162 = vrot.slane %v3161, 4
      %v3163 = vmax.f32 %v3161, %v3162
      %v3164 = vrot.slane %v3163, 2
      %v3165 = vmax.f32 %v3163, %v3164
      %v3166 = vrot.slane %v3165, 1
      %v3167 = vmax.f32 %v3165, %v3166
      %v3168 = vsel %vm2488, %v2368, -inf
      %v3169 = vrot.slane %v3168, 4
      %v3170 = vmax.f32 %v3168, %v3169
      %v3171 = vrot.slane %v3170, 2
      %v3172 = vmax.f32 %v3170, %v3171
      %v3173 = vrot.slane %v3172, 1
      %v3174 = vmax.f32 %v3172, %v3173
      %v3175 = vsel %vm2488, %v2369, -inf
      %v3176 = vrot.slane %v3175, 4
      %v3177 = vmax.f32 %v3175, %v3176
      %v3178 = vrot.slane %v3177, 2
      %v3179 = vmax.f32 %v3177, %v3178
      %v3180 = vrot.slane %v3179, 1
      %v3181 = vmax.f32 %v3179, %v3180
      %v3182 = vsel %vm2488, %v2370, -inf
      %v3183 = vrot.slane %v3182, 4
      %v3184 = vmax.f32 %v3182, %v3183
      %v3185 = vrot.slane %v3184, 2
      %v3186 = vmax.f32 %v3184, %v3185
      %v3187 = vrot.slane %v3186, 1
      %v3188 = vmax.f32 %v3186, %v3187
      %v3189 = vsel %vm2488, %v2257, -inf
      %v3190 = vrot.slane %v3189, 4
      %v3191 = vmax.f32 %v3189, %v3190
      %v3192 = vrot.slane %v3191, 2
      %v3193 = vmax.f32 %v3191, %v3192
      %v3194 = vrot.slane %v3193, 1
      %v3195 = vmax.f32 %v3193, %v3194
      %v3196 = vsel %vm2488, %v2371, -inf
      %v3197 = vrot.slane %v3196, 4
      %v3198 = vmax.f32 %v3196, %v3197
      %v3199 = vrot.slane %v3198, 2
      %v3200 = vmax.f32 %v3198, %v3199
      %v3201 = vrot.slane %v3200, 1
      %v3202 = vmax.f32 %v3200, %v3201
      %v3203 = vsel %vm2488, %v2372, -inf
      %v3204 = vrot.slane %v3203, 4
      %v3205 = vmax.f32 %v3203, %v3204
      %v3206 = vrot.slane %v3205, 2
      %v3207 = vmax.f32 %v3205, %v3206
      %v3208 = vrot.slane %v3207, 1
      %v3209 = vmax.f32 %v3207, %v3208
      %v3210 = vsel %vm2488, %v2373, -inf
      %v3211 = vrot.slane %v3210, 4
      %v3212 = vmax.f32 %v3210, %v3211
      %v3213 = vrot.slane %v3212, 2
      %v3214 = vmax.f32 %v3212, %v3213
      %v3215 = vrot.slane %v3214, 1
      %v3216 = vmax.f32 %v3214, %v3215
      %v3217 = vsel %vm2488, %v2258, -inf
      %v3218 = vrot.slane %v3217, 4
      %v3219 = vmax.f32 %v3217, %v3218
      %v3220 = vrot.slane %v3219, 2
      %v3221 = vmax.f32 %v3219, %v3220
      %v3222 = vrot.slane %v3221, 1
      %v3223 = vmax.f32 %v3221, %v3222
      %v3224 = vsel %vm2488, %v2374, -inf
      %v3225 = vrot.slane %v3224, 4
      %v3226 = vmax.f32 %v3224, %v3225
      %v3227 = vrot.slane %v3226, 2
      %v3228 = vmax.f32 %v3226, %v3227
      %v3229 = vrot.slane %v3228, 1
      %v3230 = vmax.f32 %v3228, %v3229
      %v3231 = vsel %vm2488, %v2375, -inf
      %v3232 = vrot.slane %v3231, 4
      %v3233 = vmax.f32 %v3231, %v3232
      %v3234 = vrot.slane %v3233, 2
      %v3235 = vmax.f32 %v3233, %v3234
      %v3236 = vrot.slane %v3235, 1
      %v3237 = vmax.f32 %v3235, %v3236
      %v3238 = vsel %vm2488, %v2376, -inf
      %v3239 = vrot.slane %v3238, 4
      %v3240 = vmax.f32 %v3238, %v3239
      %v3241 = vrot.slane %v3240, 2
      %v3242 = vmax.f32 %v3240, %v3241
      %v3243 = vrot.slane %v3242, 1
      %v3244 = vmax.f32 %v3242, %v3243
      %v3245 = vsel %vm2488, %v2259, -inf
      %v3246 = vrot.slane %v3245, 4
      %v3247 = vmax.f32 %v3245, %v3246
      %v3248 = vrot.slane %v3247, 2
      %v3249 = vmax.f32 %v3247, %v3248
      %v3250 = vrot.slane %v3249, 1
      %v3251 = vmax.f32 %v3249, %v3250
      %v3252 = vsel %vm2488, %v2377, -inf
      %v3253 = vrot.slane %v3252, 4
      %v3254 = vmax.f32 %v3252, %v3253
      %v3255 = vrot.slane %v3254, 2
      %v3256 = vmax.f32 %v3254, %v3255
      %v3257 = vrot.slane %v3256, 1
      %v3258 = vmax.f32 %v3256, %v3257
      %v3259 = vsel %vm2488, %v2378, -inf
      %v3260 = vrot.slane %v3259, 4
      %v3261 = vmax.f32 %v3259, %v3260
      %v3262 = vrot.slane %v3261, 2
      %v3263 = vmax.f32 %v3261, %v3262
      %v3264 = vrot.slane %v3263, 1
      %v3265 = vmax.f32 %v3263, %v3264
      %v3266 = vsel %vm2488, %v2379, -inf
      %v3267 = vrot.slane %v3266, 4
      %v3268 = vmax.f32 %v3266, %v3267
      %v3269 = vrot.slane %v3268, 2
      %v3270 = vmax.f32 %v3268, %v3269
      %v3271 = vrot.slane %v3270, 1
      %v3272 = vmax.f32 %v3270, %v3271
      %v3273 = vsel %vm2488, %v2260, -inf
      %v3274 = vrot.slane %v3273, 4
      %v3275 = vmax.f32 %v3273, %v3274
      %v3276 = vrot.slane %v3275, 2
      %v3277 = vmax.f32 %v3275, %v3276
      %v3278 = vrot.slane %v3277, 1
      %v3279 = vmax.f32 %v3277, %v3278
      %v3280 = vsel %vm2488, %v2380, -inf
      %v3281 = vrot.slane %v3280, 4
      %v3282 = vmax.f32 %v3280, %v3281
      %v3283 = vrot.slane %v3282, 2
      %v3284 = vmax.f32 %v3282, %v3283
      %v3285 = vrot.slane %v3284, 1
      %v3286 = vmax.f32 %v3284, %v3285
      %v3287 = vsel %vm2488, %v2381, -inf
      %v3288 = vrot.slane %v3287, 4
      %v3289 = vmax.f32 %v3287, %v3288
      %v3290 = vrot.slane %v3289, 2
      %v3291 = vmax.f32 %v3289, %v3290
      %v3292 = vrot.slane %v3291, 1
      %v3293 = vmax.f32 %v3291, %v3292
      %v3294 = vsel %vm2488, %v2382, -inf
      %v3295 = vrot.slane %v3294, 4
      %v3296 = vmax.f32 %v3294, %v3295
      %v3297 = vrot.slane %v3296, 2
      %v3298 = vmax.f32 %v3296, %v3297
      %v3299 = vrot.slane %v3298, 1
      %v3300 = vmax.f32 %v3298, %v3299
      %v3301 = vsel %vm2488, %v2261, -inf
      %v3302 = vrot.slane %v3301, 4
      %v3303 = vmax.f32 %v3301, %v3302
      %v3304 = vrot.slane %v3303, 2
      %v3305 = vmax.f32 %v3303, %v3304
      %v3306 = vrot.slane %v3305, 1
      %v3307 = vmax.f32 %v3305, %v3306
      %v3308 = vsel %vm2488, %v2383, -inf
      %v3309 = vrot.slane %v3308, 4
      %v3310 = vmax.f32 %v3308, %v3309
      %v3311 = vrot.slane %v3310, 2
      %v3312 = vmax.f32 %v3310, %v3311
      %v3313 = vrot.slane %v3312, 1
      %v3314 = vmax.f32 %v3312, %v3313
      %v3315 = vsel %vm2488, %v2384, -inf
      %v3316 = vrot.slane %v3315, 4
      %v3317 = vmax.f32 %v3315, %v3316
      %v3318 = vrot.slane %v3317, 2
      %v3319 = vmax.f32 %v3317, %v3318
      %v3320 = vrot.slane %v3319, 1
      %v3321 = vmax.f32 %v3319, %v3320
      %v3322 = vsel %vm2488, %v2385, -inf
      %v3323 = vrot.slane %v3322, 4
      %v3324 = vmax.f32 %v3322, %v3323
      %v3325 = vrot.slane %v3324, 2
      %v3326 = vmax.f32 %v3324, %v3325
      %v3327 = vrot.slane %v3326, 1
      %v3328 = vmax.f32 %v3326, %v3327
      %v3329 = vsel %vm2488, %v2262, -inf
      %v3330 = vrot.slane %v3329, 4
      %v3331 = vmax.f32 %v3329, %v3330
      %v3332 = vrot.slane %v3331, 2
      %v3333 = vmax.f32 %v3331, %v3332
      %v3334 = vrot.slane %v3333, 1
      %v3335 = vmax.f32 %v3333, %v3334
      %v3336 = vsel %vm2488, %v2386, -inf
      %v3337 = vrot.slane %v3336, 4
      %v3338 = vmax.f32 %v3336, %v3337
      %v3339 = vrot.slane %v3338, 2
      %v3340 = vmax.f32 %v3338, %v3339
      %v3341 = vrot.slane %v3340, 1
      %v3342 = vmax.f32 %v3340, %v3341
      %v3343 = vsel %vm2488, %v2387, -inf
      %v3344 = vrot.slane %v3343, 4
      %v3345 = vmax.f32 %v3343, %v3344
      %v3346 = vrot.slane %v3345, 2
      %v3347 = vmax.f32 %v3345, %v3346
      %v3348 = vrot.slane %v3347, 1
      %v3349 = vmax.f32 %v3347, %v3348
      %v3350 = vsel %vm2488, %v2388, -inf
      %v3351 = vrot.slane %v3350, 4
      %v3352 = vmax.f32 %v3350, %v3351
      %v3353 = vrot.slane %v3352, 2
      %v3354 = vmax.f32 %v3352, %v3353
      %v3355 = vrot.slane %v3354, 1
      %v3356 = vmax.f32 %v3354, %v3355
      %v3357 = vsel %vm2488, %v2263, -inf
      %v3358 = vrot.slane %v3357, 4
      %v3359 = vmax.f32 %v3357, %v3358
      %v3360 = vrot.slane %v3359, 2
      %v3361 = vmax.f32 %v3359, %v3360
      %v3362 = vrot.slane %v3361, 1
      %v3363 = vmax.f32 %v3361, %v3362
      %v3364 = vsel %vm2488, %v2389, -inf
      %v3365 = vrot.slane %v3364, 4
      %v3366 = vmax.f32 %v3364, %v3365
      %v3367 = vrot.slane %v3366, 2
      %v3368 = vmax.f32 %v3366, %v3367
      %v3369 = vrot.slane %v3368, 1
      %v3370 = vmax.f32 %v3368, %v3369
      %v3371 = vsel %vm2488, %v2390, -inf
      %v3372 = vrot.slane %v3371, 4
      %v3373 = vmax.f32 %v3371, %v3372
      %v3374 = vrot.slane %v3373, 2
      %v3375 = vmax.f32 %v3373, %v3374
      %v3376 = vrot.slane %v3375, 1
      %v3377 = vmax.f32 %v3375, %v3376
      %v3378 = vsel %vm2488, %v2391, -inf
      %v3379 = vrot.slane %v3378, 4
      %v3380 = vmax.f32 %v3378, %v3379
      %v3381 = vrot.slane %v3380, 2
      %v3382 = vmax.f32 %v3380, %v3381
      %v3383 = vrot.slane %v3382, 1
      %v3384 = vmax.f32 %v3382, %v3383
      %vm3385 = vcmask 523264
      %v3386 = vsel %vm3385, %v2495, -inf
      %v3387 = vsel %vm3385, %v2551, -inf
      %v3388 = vmax.f32 %v3386, %v3387
      %v3389 = vsel %vm3385, %v2502, -inf
      %v3390 = vsel %vm3385, %v2558, -inf
      %v3391 = vmax.f32 %v3389, %v3390
      %v3392 = vsel %vm3385, %v2509, -inf
      %v3393 = vsel %vm3385, %v2565, -inf
      %v3394 = vmax.f32 %v3392, %v3393
      %v3395 = vsel %vm3385, %v2516, -inf
      %v3396 = vsel %vm3385, %v2572, -inf
      %v3397 = vmax.f32 %v3395, %v3396
      %v3398 = vsel %vm3385, %v2523, -inf
      %v3399 = vsel %vm3385, %v2579, -inf
      %v3400 = vmax.f32 %v3398, %v3399
      %v3401 = vsel %vm3385, %v2530, -inf
      %v3402 = vsel %vm3385, %v2586, -inf
      %v3403 = vmax.f32 %v3401, %v3402
      %v3404 = vsel %vm3385, %v2537, -inf
      %v3405 = vsel %vm3385, %v2593, -inf
      %v3406 = vmax.f32 %v3404, %v3405
      %v3407 = vsel %vm3385, %v2544, -inf
      %v3408 = vsel %vm3385, %v2600, -inf
      %v3409 = vmax.f32 %v3407, %v3408
      %v3410 = vsel %vm3385, %v2607, -inf
      %v3411 = vsel %vm3385, %v2663, -inf
      %v3412 = vmax.f32 %v3410, %v3411
      %v3413 = vsel %vm3385, %v2614, -inf
      %v3414 = vsel %vm3385, %v2670, -inf
      %v3415 = vmax.f32 %v3413, %v3414
      %v3416 = vsel %vm3385, %v2621, -inf
      %v3417 = vsel %vm3385, %v2677, -inf
      %v3418 = vmax.f32 %v3416, %v3417
      %v3419 = vsel %vm3385, %v2628, -inf
      %v3420 = vsel %vm3385, %v2684, -inf
      %v3421 = vmax.f32 %v3419, %v3420
      %v3422 = vsel %vm3385, %v2635, -inf
      %v3423 = vsel %vm3385, %v2691, -inf
      %v3424 = vmax.f32 %v3422, %v3423
      %v3425 = vsel %vm3385, %v2642, -inf
      %v3426 = vsel %vm3385, %v2698, -inf
      %v3427 = vmax.f32 %v3425, %v3426
      %v3428 = vsel %vm3385, %v2649, -inf
      %v3429 = vsel %vm3385, %v2705, -inf
      %v3430 = vmax.f32 %v3428, %v3429
      %v3431 = vsel %vm3385, %v2656, -inf
      %v3432 = vsel %vm3385, %v2712, -inf
      %v3433 = vmax.f32 %v3431, %v3432
      %v3434 = vsel %vm3385, %v2719, -inf
      %v3435 = vsel %vm3385, %v2775, -inf
      %v3436 = vmax.f32 %v3434, %v3435
      %v3437 = vsel %vm3385, %v2726, -inf
      %v3438 = vsel %vm3385, %v2782, -inf
      %v3439 = vmax.f32 %v3437, %v3438
      %v3440 = vsel %vm3385, %v2733, -inf
      %v3441 = vsel %vm3385, %v2789, -inf
      %v3442 = vmax.f32 %v3440, %v3441
      %v3443 = vsel %vm3385, %v2740, -inf
      %v3444 = vsel %vm3385, %v2796, -inf
      %v3445 = vmax.f32 %v3443, %v3444
      %v3446 = vsel %vm3385, %v2747, -inf
      %v3447 = vsel %vm3385, %v2803, -inf
      %v3448 = vmax.f32 %v3446, %v3447
      %v3449 = vsel %vm3385, %v2754, -inf
      %v3450 = vsel %vm3385, %v2810, -inf
      %v3451 = vmax.f32 %v3449, %v3450
      %v3452 = vsel %vm3385, %v2761, -inf
      %v3453 = vsel %vm3385, %v2817, -inf
      %v3454 = vmax.f32 %v3452, %v3453
      %v3455 = vsel %vm3385, %v2768, -inf
      %v3456 = vsel %vm3385, %v2824, -inf
      %v3457 = vmax.f32 %v3455, %v3456
      %v3458 = vsel %vm3385, %v2831, -inf
      %v3459 = vsel %vm3385, %v2887, -inf
      %v3460 = vmax.f32 %v3458, %v3459
      %v3461 = vsel %vm3385, %v2838, -inf
      %v3462 = vsel %vm3385, %v2894, -inf
      %v3463 = vmax.f32 %v3461, %v3462
      %v3464 = vsel %vm3385, %v2845, -inf
      %v3465 = vsel %vm3385, %v2901, -inf
      %v3466 = vmax.f32 %v3464, %v3465
      %v3467 = vsel %vm3385, %v2852, -inf
      %v3468 = vsel %vm3385, %v2908, -inf
      %v3469 = vmax.f32 %v3467, %v3468
      %v3470 = vsel %vm3385, %v2859, -inf
      %v3471 = vsel %vm3385, %v2915, -inf
      %v3472 = vmax.f32 %v3470, %v3471
      %v3473 = vsel %vm3385, %v2866, -inf
      %v3474 = vsel %vm3385, %v2922, -inf
      %v3475 = vmax.f32 %v3473, %v3474
      %v3476 = vsel %vm3385, %v2873, -inf
      %v3477 = vsel %vm3385, %v2929, -inf
      %v3478 = vmax.f32 %v3476, %v3477
      %v3479 = vsel %vm3385, %v2880, -inf
      %v3480 = vsel %vm3385, %v2936, -inf
      %v3481 = vmax.f32 %v3479, %v3480
      %v3482 = vsel %vm3385, %v2943, -inf
      %v3483 = vsel %vm3385, %v2999, -inf
      %v3484 = vmax.f32 %v3482, %v3483
      %v3485 = vsel %vm3385, %v2950, -inf
      %v3486 = vsel %vm3385, %v3006, -inf
      %v3487 = vmax.f32 %v3485, %v3486
      %v3488 = vsel %vm3385, %v2957, -inf
      %v3489 = vsel %vm3385, %v3013, -inf
      %v3490 = vmax.f32 %v3488, %v3489
      %v3491 = vsel %vm3385, %v2964, -inf
      %v3492 = vsel %vm3385, %v3020, -inf
      %v3493 = vmax.f32 %v3491, %v3492
      %v3494 = vsel %vm3385, %v2971, -inf
      %v3495 = vsel %vm3385, %v3027, -inf
      %v3496 = vmax.f32 %v3494, %v3495
      %v3497 = vsel %vm3385, %v2978, -inf
      %v3498 = vsel %vm3385, %v3034, -inf
      %v3499 = vmax.f32 %v3497, %v3498
      %v3500 = vsel %vm3385, %v2985, -inf
      %v3501 = vsel %vm3385, %v3041, -inf
      %v3502 = vmax.f32 %v3500, %v3501
      %v3503 = vsel %vm3385, %v2992, -inf
      %v3504 = vsel %vm3385, %v3048, -inf
      %v3505 = vmax.f32 %v3503, %v3504
      %v3506 = vsel %vm3385, %v3055, -inf
      %v3507 = vsel %vm3385, %v3111, -inf
      %v3508 = vmax.f32 %v3506, %v3507
      %v3509 = vsel %vm3385, %v3062, -inf
      %v3510 = vsel %vm3385, %v3118, -inf
      %v3511 = vmax.f32 %v3509, %v3510
      %v3512 = vsel %vm3385, %v3069, -inf
      %v3513 = vsel %vm3385, %v3125, -inf
      %v3514 = vmax.f32 %v3512, %v3513
      %v3515 = vsel %vm3385, %v3076, -inf
      %v3516 = vsel %vm3385, %v3132, -inf
      %v3517 = vmax.f32 %v3515, %v3516
      %v3518 = vsel %vm3385, %v3083, -inf
      %v3519 = vsel %vm3385, %v3139, -inf
      %v3520 = vmax.f32 %v3518, %v3519
      %v3521 = vsel %vm3385, %v3090, -inf
      %v3522 = vsel %vm3385, %v3146, -inf
      %v3523 = vmax.f32 %v3521, %v3522
      %v3524 = vsel %vm3385, %v3097, -inf
      %v3525 = vsel %vm3385, %v3153, -inf
      %v3526 = vmax.f32 %v3524, %v3525
      %v3527 = vsel %vm3385, %v3104, -inf
      %v3528 = vsel %vm3385, %v3160, -inf
      %v3529 = vmax.f32 %v3527, %v3528
      %v3530 = vsel %vm3385, %v3167, -inf
      %v3531 = vsel %vm3385, %v3223, -inf
      %v3532 = vmax.f32 %v3530, %v3531
      %v3533 = vsel %vm3385, %v3174, -inf
      %v3534 = vsel %vm3385, %v3230, -inf
      %v3535 = vmax.f32 %v3533, %v3534
      %v3536 = vsel %vm3385, %v3181, -inf
      %v3537 = vsel %vm3385, %v3237, -inf
      %v3538 = vmax.f32 %v3536, %v3537
      %v3539 = vsel %vm3385, %v3188, -inf
      %v3540 = vsel %vm3385, %v3244, -inf
      %v3541 = vmax.f32 %v3539, %v3540
      %v3542 = vsel %vm3385, %v3195, -inf
      %v3543 = vsel %vm3385, %v3251, -inf
      %v3544 = vmax.f32 %v3542, %v3543
      %v3545 = vsel %vm3385, %v3202, -inf
      %v3546 = vsel %vm3385, %v3258, -inf
      %v3547 = vmax.f32 %v3545, %v3546
      %v3548 = vsel %vm3385, %v3209, -inf
      %v3549 = vsel %vm3385, %v3265, -inf
      %v3550 = vmax.f32 %v3548, %v3549
      %v3551 = vsel %vm3385, %v3216, -inf
      %v3552 = vsel %vm3385, %v3272, -inf
      %v3553 = vmax.f32 %v3551, %v3552
      %v3554 = vsel %vm3385, %v3279, -inf
      %v3555 = vsel %vm3385, %v3335, -inf
      %v3556 = vmax.f32 %v3554, %v3555
      %v3557 = vsel %vm3385, %v3286, -inf
      %v3558 = vsel %vm3385, %v3342, -inf
      %v3559 = vmax.f32 %v3557, %v3558
      %v3560 = vsel %vm3385, %v3293, -inf
      %v3561 = vsel %vm3385, %v3349, -inf
      %v3562 = vmax.f32 %v3560, %v3561
      %v3563 = vsel %vm3385, %v3300, -inf
      %v3564 = vsel %vm3385, %v3356, -inf
      %v3565 = vmax.f32 %v3563, %v3564
      %v3566 = vsel %vm3385, %v3307, -inf
      %v3567 = vsel %vm3385, %v3363, -inf
      %v3568 = vmax.f32 %v3566, %v3567
      %v3569 = vsel %vm3385, %v3314, -inf
      %v3570 = vsel %vm3385, %v3370, -inf
      %v3571 = vmax.f32 %v3569, %v3570
      %v3572 = vsel %vm3385, %v3321, -inf
      %v3573 = vsel %vm3385, %v3377, -inf
      %v3574 = vmax.f32 %v3572, %v3573
      %v3575 = vsel %vm3385, %v3328, -inf
      %v3576 = vsel %vm3385, %v3384, -inf
      %v3577 = vmax.f32 %v3575, %v3576
      %3578 = vst.msk [vmem:[#allocation3] sm:$0xff] %vm3385, 0.0
      %3579 = vst.msk [vmem:[#allocation3 + $0x8] sm:$0x3] %vm2488, 0.0
      %3580 = vst.msk [vmem:[#allocation3 + $0x10] sm:$0xff] %vm3385, 0.0
      %3581 = vst.msk [vmem:[#allocation3 + $0x18] sm:$0x3] %vm2488, 0.0
      %3582 = vst.msk [vmem:[#allocation3 + $0x20] sm:$0xff] %vm3385, 0.0
      %3583 = vst.msk [vmem:[#allocation3 + $0x28] sm:$0x3] %vm2488, 0.0
      %3584 = vst.msk [vmem:[#allocation3 + $0x30] sm:$0xff] %vm3385, 0.0
      %3585 = vst.msk [vmem:[#allocation3 + $0x38] sm:$0x3] %vm2488, 0.0
      %3586 = vst.msk [vmem:[#allocation3 + $0x40] sm:$0xff] %vm3385, 0.0
      %3587 = vst.msk [vmem:[#allocation3 + $0x48] sm:$0x3] %vm2488, 0.0
      %3588 = vst.msk [vmem:[#allocation3 + $0x50] sm:$0xff] %vm3385, 0.0
      %3589 = vst.msk [vmem:[#allocation3 + $0x58] sm:$0x3] %vm2488, 0.0
      %3590 = vst.msk [vmem:[#allocation3 + $0x60] sm:$0xff] %vm3385, 0.0
      %3591 = vst.msk [vmem:[#allocation3 + $0x68] sm:$0x3] %vm2488, 0.0
      %3592 = vst.msk [vmem:[#allocation3 + $0x70] sm:$0xff] %vm3385, 0.0
      %3593 = vst.msk [vmem:[#allocation3 + $0x78] sm:$0x3] %vm2488, 0.0
      %3594 = vst.msk [vmem:[#allocation3 + $0x80] sm:$0xff] %vm3385, 0.0
      %3595 = vst.msk [vmem:[#allocation3 + $0x88] sm:$0x3] %vm2488, 0.0
      %3596 = vst.msk [vmem:[#allocation3 + $0x90] sm:$0xff] %vm3385, 0.0
      %3597 = vst.msk [vmem:[#allocation3 + $0x98] sm:$0x3] %vm2488, 0.0
      %vm3662 = vcmask 1041409
      %v3663 = vsel %vm3662, %v3391, %v3388
      %vm3664 = vcmask 1042434
      %v3665 = vsel %vm3664, %v3394, %v3663
      %vm3666 = vcmask 1043459
      %v3667 = vsel %vm3666, %v3397, %v3665
      %vm3668 = vcmask 1044484
      %v3669 = vsel %vm3668, %v3400, %v3667
      %vm3670 = vcmask 1045509
      %v3671 = vsel %vm3670, %v3403, %v3669
      %vm3672 = vcmask 1046534
      %v3673 = vsel %vm3672, %v3406, %v3671
      %vm3674 = vcmask 1047559
      %v3675 = vsel %vm3674, %v3409, %v3673
      %v3676 = vsel %vm3662, %v3415, %v3412
      %v3677 = vsel %vm3664, %v3418, %v3676
      %v3678 = vsel %vm3666, %v3421, %v3677
      %v3679 = vsel %vm3668, %v3424, %v3678
      %v3680 = vsel %vm3670, %v3427, %v3679
      %v3681 = vsel %vm3672, %v3430, %v3680
      %v3682 = vsel %vm3674, %v3433, %v3681
      %v3683 = vsel %vm3662, %v3439, %v3436
      %v3684 = vsel %vm3664, %v3442, %v3683
      %v3685 = vsel %vm3666, %v3445, %v3684
      %v3686 = vsel %vm3668, %v3448, %v3685
      %v3687 = vsel %vm3670, %v3451, %v3686
      %v3688 = vsel %vm3672, %v3454, %v3687
      %v3689 = vsel %vm3674, %v3457, %v3688
      %v3690 = vsel %vm3662, %v3463, %v3460
      %v3691 = vsel %vm3664, %v3466, %v3690
      %v3692 = vsel %vm3666, %v3469, %v3691
      %v3693 = vsel %vm3668, %v3472, %v3692
      %v3694 = vsel %vm3670, %v3475, %v3693
      %v3695 = vsel %vm3672, %v3478, %v3694
      %v3696 = vsel %vm3674, %v3481, %v3695
      %v3697 = vsel %vm3662, %v3487, %v3484
      %v3698 = vsel %vm3664, %v3490, %v3697
      %v3699 = vsel %vm3666, %v3493, %v3698
      %v3700 = vsel %vm3668, %v3496, %v3699
      %v3701 = vsel %vm3670, %v3499, %v3700
      %v3702 = vsel %vm3672, %v3502, %v3701
      %v3703 = vsel %vm3674, %v3505, %v3702
      %v3704 = vsel %vm3662, %v3511, %v3508
      %v3705 = vsel %vm3664, %v3514, %v3704
      %v3706 = vsel %vm3666, %v3517, %v3705
      %v3707 = vsel %vm3668, %v3520, %v3706
      %v3708 = vsel %vm3670, %v3523, %v3707
      %v3709 = vsel %vm3672, %v3526, %v3708
      %v3710 = vsel %vm3674, %v3529, %v3709
      %v3711 = vsel %vm3662, %v3535, %v3532
      %v3712 = vsel %vm3664, %v3538, %v3711
      %v3713 = vsel %vm3666, %v3541, %v3712
      %v3714 = vsel %vm3668, %v3544, %v3713
      %v3715 = vsel %vm3670, %v3547, %v3714
      %v3716 = vsel %vm3672, %v3550, %v3715
      %v3717 = vsel %vm3674, %v3553, %v3716
      %v3718 = vsel %vm3662, %v3559, %v3556
      %v3719 = vsel %vm3664, %v3562, %v3718
      %v3720 = vsel %vm3666, %v3565, %v3719
      %v3721 = vsel %vm3668, %v3568, %v3720
      %v3722 = vsel %vm3670, %v3571, %v3721
      %v3723 = vsel %vm3672, %v3574, %v3722
      %v3724 = vsel %vm3674, %v3577, %v3723
      %s3733 = scalar_lea.vmem [#allocation3], 16
      %3734 = vst.msk [vmem:[%s3733 + $0x1] sm:$0xff] %vm3385, %v3675
      %3735 = vst.msk [vmem:[%s3733 + $0x11] sm:$0xff] %vm3385, %v3682
      %3736 = vst.msk [vmem:[%s3733 + $0x21] sm:$0xff] %vm3385, %v3689
      %3737 = vst.msk [vmem:[%s3733 + $0x31] sm:$0xff] %vm3385, %v3696
      %3738 = vst.msk [vmem:[%s3733 + $0x41] sm:$0xff] %vm3385, %v3703
      %3739 = vst.msk [vmem:[%s3733 + $0x51] sm:$0xff] %vm3385, %v3710
      %3740 = vst.msk [vmem:[%s3733 + $0x61] sm:$0xff] %vm3385, %v3717
      %3741 = vst.msk [vmem:[%s3733 + $0x71] sm:$0xff] %vm3385, %v3724
      %v3742 = vld [vmem:[#allocation3] sm:$0xff]
      %v3743 = vld [vmem:[#allocation3 + $0x8] sm:$0x3]
      %v3744 = vld [vmem:[#allocation3 + $0x10] sm:$0xff]
      %v3745 = vld [vmem:[#allocation3 + $0x18] sm:$0x3]
      %v3746 = vld [vmem:[#allocation3 + $0x20] sm:$0xff]
      %v3747 = vld [vmem:[#allocation3 + $0x28] sm:$0x3]
      %v3748 = vld [vmem:[#allocation3 + $0x30] sm:$0xff]
      %v3749 = vld [vmem:[#allocation3 + $0x38] sm:$0x3]
      %v3750 = vld [vmem:[#allocation3 + $0x40] sm:$0xff]
      %v3751 = vld [vmem:[#allocation3 + $0x48] sm:$0x3]
      %v3752 = vld [vmem:[#allocation3 + $0x50] sm:$0xff]
      %v3753 = vld [vmem:[#allocation3 + $0x58] sm:$0x3]
      %v3754 = vld [vmem:[#allocation3 + $0x60] sm:$0xff]
      %v3755 = vld [vmem:[#allocation3 + $0x68] sm:$0x3]
      %v3756 = vld [vmem:[#allocation3 + $0x70] sm:$0xff]
      %v3757 = vld [vmem:[#allocation3 + $0x78] sm:$0x3]
      %v3758 = vld [vmem:[#allocation3 + $0x80] sm:$0xff]
      %v3759 = vld [vmem:[#allocation3 + $0x88] sm:$0x3]
      %v3760 = vld [vmem:[#allocation3 + $0x90] sm:$0xff]
      %v3761 = vld [vmem:[#allocation3 + $0x98] sm:$0x3]
      %v3778 = vrot.slane %v3742, 1
      %v3779 = vrot.slane %v3743, 1
      %v3780 = vsel %vm667, %v3778, %v3779
      %v3781 = vrot.slane %v3744, 1
      %v3782 = vrot.slane %v3745, 1
      %v3783 = vsel %vm667, %v3781, %v3782
      %v3784 = vrot.slane %v3746, 1
      %v3785 = vrot.slane %v3747, 1
      %v3786 = vsel %vm667, %v3784, %v3785
      %v3787 = vrot.slane %v3748, 1
      %v3788 = vrot.slane %v3749, 1
      %v3789 = vsel %vm667, %v3787, %v3788
      %v3790 = vrot.slane %v3750, 1
      %v3791 = vrot.slane %v3751, 1
      %v3792 = vsel %vm667, %v3790, %v3791
      %v3793 = vrot.slane %v3752, 1
      %v3794 = vrot.slane %v3753, 1
      %v3795 = vsel %vm667, %v3793, %v3794
      %v3796 = vrot.slane %v3754, 1
      %v3797 = vrot.slane %v3755, 1
      %v3798 = vsel %vm667, %v3796, %v3797
      %v3799 = vrot.slane %v3756, 1
      %v3800 = vrot.slane %v3757, 1
      %v3801 = vsel %vm667, %v3799, %v3800
      %v3802 = vrot.slane %v3742, 2
      %v3803 = vrot.slane %v3743, 2
      %v3804 = vsel %vm1079, %v3802, %v3803
      %v3805 = vrot.slane %v3744, 2
      %v3806 = vrot.slane %v3745, 2
      %v3807 = vsel %vm1079, %v3805, %v3806
      %v3808 = vrot.slane %v3746, 2
      %v3809 = vrot.slane %v3747, 2
      %v3810 = vsel %vm1079, %v3808, %v3809
      %v3811 = vrot.slane %v3748, 2
      %v3812 = vrot.slane %v3749, 2
      %v3813 = vsel %vm1079, %v3811, %v3812
      %v3814 = vrot.slane %v3750, 2
      %v3815 = vrot.slane %v3751, 2
      %v3816 = vsel %vm1079, %v3814, %v3815
      %v3817 = vrot.slane %v3752, 2
      %v3818 = vrot.slane %v3753, 2
      %v3819 = vsel %vm1079, %v3817, %v3818
      %v3820 = vrot.slane %v3754, 2
      %v3821 = vrot.slane %v3755, 2
      %v3822 = vsel %vm1079, %v3820, %v3821
      %v3823 = vrot.slane %v3756, 2
      %v3824 = vrot.slane %v3757, 2
      %v3825 = vsel %vm1079, %v3823, %v3824
      %v3836 = vrot.slane %v3758, 1
      %v3837 = vrot.slane %v3759, 1
      %v3838 = vsel %vm667, %v3836, %v3837
      %v3847 = vrot.slane %v3758, 2
      %v3848 = vrot.slane %v3759, 2
      %v3849 = vsel %vm1079, %v3847, %v3848
      %v3852 = vrot.slane %v3760, 1
      %v3853 = vrot.slane %v3761, 1
      %v3854 = vsel %vm667, %v3852, %v3853
      %v3855 = vrot.slane %v3760, 2
      %v3856 = vrot.slane %v3761, 2
      %v3857 = vsel %vm1079, %v3855, %v3856
      %3860 = vrot.lane.b32.xlu0 %v3780, 64
      %v3861 = vpop.permute.xlu0 %3860
      %3862 = vrot.lane.b32.xlu0 %v3783, 64
      %v3863 = vpop.permute.xlu0 %3862
      %3864 = vrot.lane.b32.xlu0 %v3786, 64
      %v3865 = vpop.permute.xlu0 %3864
      %3866 = vrot.lane.b32.xlu0 %v3789, 64
      %v3867 = vpop.permute.xlu0 %3866
      %3868 = vrot.lane.b32.xlu0 %v3792, 64
      %v3869 = vpop.permute.xlu0 %3868
      %3870 = vrot.lane.b32.xlu0 %v3795, 64
      %v3871 = vpop.permute.xlu0 %3870
      %3872 = vrot.lane.b32.xlu0 %v3798, 64
      %v3873 = vpop.permute.xlu0 %3872
      %3874 = vrot.lane.b32.xlu0 %v3801, 64
      %v3875 = vpop.permute.xlu0 %3874
      %3884 = vrot.lane.b32.xlu0 %v3744, 64
      %v3885 = vpop.permute.xlu0 %3884
      %3886 = vrot.lane.b32.xlu0 %v3746, 64
      %v3887 = vpop.permute.xlu0 %3886
      %3888 = vrot.lane.b32.xlu0 %v3748, 64
      %v3889 = vpop.permute.xlu0 %3888
      %3890 = vrot.lane.b32.xlu0 %v3750, 64
      %v3891 = vpop.permute.xlu0 %3890
      %3892 = vrot.lane.b32.xlu0 %v3752, 64
      %v3893 = vpop.permute.xlu0 %3892
      %3894 = vrot.lane.b32.xlu0 %v3754, 64
      %v3895 = vpop.permute.xlu0 %3894
      %3896 = vrot.lane.b32.xlu0 %v3756, 64
      %v3897 = vpop.permute.xlu0 %3896
      %3898 = vrot.lane.b32.xlu0 %v3758, 64
      %v3899 = vpop.permute.xlu0 %3898
      %3908 = vrot.lane.b32.xlu0 %v3807, 64
      %v3909 = vpop.permute.xlu0 %3908
      %3910 = vrot.lane.b32.xlu0 %v3810, 64
      %v3911 = vpop.permute.xlu0 %3910
      %3912 = vrot.lane.b32.xlu0 %v3813, 64
      %v3913 = vpop.permute.xlu0 %3912
      %3914 = vrot.lane.b32.xlu0 %v3816, 64
      %v3915 = vpop.permute.xlu0 %3914
      %3916 = vrot.lane.b32.xlu0 %v3819, 64
      %v3917 = vpop.permute.xlu0 %3916
      %3918 = vrot.lane.b32.xlu0 %v3822, 64
      %v3919 = vpop.permute.xlu0 %3918
      %3920 = vrot.lane.b32.xlu0 %v3825, 64
      %v3921 = vpop.permute.xlu0 %3920
      %3922 = vrot.lane.b32.xlu0 %v3849, 64
      %v3923 = vpop.permute.xlu0 %3922
      %3932 = vrot.lane.b32.xlu0 %v3838, 64
      %v3933 = vpop.permute.xlu0 %3932
      %3934 = vrot.lane.b32.xlu0 %v3854, 64
      %v3935 = vpop.permute.xlu0 %3934
      %v3938 = vsel %vm3385, %v3742, %v3861
      %v3939 = vsel %vm3385, %v3744, %v3863
      %v3940 = vsel %vm3385, %v3746, %v3865
      %v3941 = vsel %vm3385, %v3748, %v3867
      %v3942 = vsel %vm3385, %v3750, %v3869
      %v3943 = vsel %vm3385, %v3752, %v3871
      %v3944 = vsel %vm3385, %v3754, %v3873
      %v3945 = vsel %vm3385, %v3756, %v3875
      %v3946 = vsel %vm3385, %v3804, %v3885
      %v3947 = vsel %vm3385, %v3807, %v3887
      %v3948 = vsel %vm3385, %v3810, %v3889
      %v3949 = vsel %vm3385, %v3813, %v3891
      %v3950 = vsel %vm3385, %v3816, %v3893
      %v3951 = vsel %vm3385, %v3819, %v3895
      %v3952 = vsel %vm3385, %v3822, %v3897
      %v3953 = vsel %vm3385, %v3825, %v3899
      %v3954 = vsel %vm3385, %v3783, %v3909
      %v3955 = vsel %vm3385, %v3786, %v3911
      %v3956 = vsel %vm3385, %v3789, %v3913
      %v3957 = vsel %vm3385, %v3792, %v3915
      %v3958 = vsel %vm3385, %v3795, %v3917
      %v3959 = vsel %vm3385, %v3798, %v3919
      %v3960 = vsel %vm3385, %v3801, %v3921
      %v3961 = vsel %vm3385, %v3838, %v3923
      %v3962 = vsel %vm3385, %v3758, %v3933
      %v3963 = vsel %vm3385, %v3760, %v3935
      %v3964 = vpack.c.bf16 %v3939, %v3938
      %v3965 = vpack.c.bf16 %v3947, %v3946
      %v3966 = vpack.c.bf16 %v3955, %v3954
      %v3967 = vpack.c.bf16 %v3941, %v3940
      %v3968 = vpack.c.bf16 %v3813, %v3810
      %v3969 = vpack.c.bf16 %v3949, %v3948
      %v3970 = vpack.c.bf16 %v3957, %v3956
      %v3971 = vpack.c.bf16 %v3943, %v3942
      %v3972 = vpack.c.bf16 %v3819, %v3816
      %v3973 = vpack.c.bf16 %v3951, %v3950
      %v3974 = vpack.c.bf16 %v3959, %v3958
      %v3975 = vpack.c.bf16 %v3945, %v3944
      %v3976 = vpack.c.bf16 %v3825, %v3822
      %v3977 = vpack.c.bf16 %v3953, %v3952
      %v3978 = vpack.c.bf16 %v3961, %v3960
      %v3979 = vpack.c.bf16 %v3963, %v3962
      %v3980 = vpack.c.bf16 %v3857, %v3849
      %v3981 = vld [vmem:[%s3] sm:$0xf]
      %v3982 = vld [vmem:[%s3 + $0x4] sm:$0xf]
      %v3983 = vld [vmem:[%s3 + $0x8] sm:$0xf]
      %v3984 = vld [vmem:[%s3 + $0xc] sm:$0xf]
      %v3985 = vld [vmem:[%s3 + $0x10] sm:$0xf]
      %v3986 = vld [vmem:[%s3 + $0x14] sm:$0xf]
      %v3987 = vld [vmem:[%s3 + $0x18] sm:$0xf]
      %v3988 = vld [vmem:[%s3 + $0x1c] sm:$0xf]
      %v3989 = vld [vmem:[%s3 + $0x20] sm:$0xf]
      %v3990 = vld [vmem:[%s3 + $0x24] sm:$0xf]
      %v3991 = vld [vmem:[%s3 + $0x28] sm:$0xf]
      %v3992 = vld [vmem:[%s3 + $0x2c] sm:$0xf]
      %v3993 = vld [vmem:[%s3 + $0x30] sm:$0xf]
      %v3994 = vld [vmem:[%s3 + $0x34] sm:$0xf]
      %v3995 = vld [vmem:[%s3 + $0x38] sm:$0xf]
      %v3996 = vld [vmem:[%s3 + $0x3c] sm:$0xf]
      %v3997 = vld [vmem:[%s3 + $0x40] sm:$0xf]
      %v3998 = vld [vmem:[%s3 + $0x44] sm:$0xf]
      %v3999 = vld [vmem:[%s3 + $0x48] sm:$0xf]
      %v4000 = vld [vmem:[%s3 + $0x4c] sm:$0xf]
      %v4001 = vld [vmem:[%s3 + $0x50] sm:$0xf]
      %v4002 = vld [vmem:[%s3 + $0x54] sm:$0xf]
      %v4003 = vld [vmem:[%s3 + $0x58] sm:$0xf]
      %v4004 = vld [vmem:[%s3 + $0x5c] sm:$0xf]
      %v4005 = vld [vmem:[%s3 + $0x60] sm:$0xf]
      %v4006 = vld [vmem:[%s3 + $0x64] sm:$0xf]
      %v4007 = vld [vmem:[%s3 + $0x68] sm:$0xf]
      %v4008 = vld [vmem:[%s3 + $0x6c] sm:$0xf]
      %v4009 = vld [vmem:[%s3 + $0x70] sm:$0xf]
      %v4010 = vld [vmem:[%s3 + $0x74] sm:$0xf]
      %v4011 = vld [vmem:[%s3 + $0x78] sm:$0xf]
      %v4012 = vld [vmem:[%s3 + $0x7c] sm:$0xf]
      %v4013 = vld [vmem:[%s3 + $0x80] sm:$0xf]
      %v4014 = vld [vmem:[%s3 + $0x84] sm:$0xf]
      %v4015 = vld [vmem:[%s3 + $0x88] sm:$0xf]
      %v4016 = vld [vmem:[%s3 + $0x8c] sm:$0xf]
      %v4017 = vld [vmem:[%s3 + $0x90] sm:$0xf]
      %v4018 = vld [vmem:[%s3 + $0x94] sm:$0xf]
      %v4019 = vld [vmem:[%s3 + $0x98] sm:$0xf]
      %v4020 = vld [vmem:[%s3 + $0x9c] sm:$0xf]
      %v4021 = vld [vmem:[%s3 + $0xa0] sm:$0xf]
      %v4022 = vld [vmem:[%s3 + $0xa4] sm:$0xf]
      %v4023 = vld [vmem:[%s3 + $0xa8] sm:$0xf]
      %v4024 = vld [vmem:[%s3 + $0xac] sm:$0xf]
      %v4025 = vld [vmem:[%s3 + $0xb0] sm:$0xf]
      %v4026 = vld [vmem:[%s3 + $0xb4] sm:$0xf]
      %v4027 = vld [vmem:[%s3 + $0xb8] sm:$0xf]
      %v4028 = vld [vmem:[%s3 + $0xbc] sm:$0xf]
      %v4029 = vld [vmem:[%s3 + $0xc0] sm:$0xf]
      %v4030 = vld [vmem:[%s3 + $0xc4] sm:$0xf]
      %v4031 = vld [vmem:[%s3 + $0xc8] sm:$0xf]
      %v4032 = vld [vmem:[%s3 + $0xcc] sm:$0xf]
      %v4033 = vld [vmem:[%s3 + $0xd0] sm:$0xf]
      %v4034 = vld [vmem:[%s3 + $0xd4] sm:$0xf]
      %v4035 = vld [vmem:[%s3 + $0xd8] sm:$0xf]
      %v4036 = vld [vmem:[%s3 + $0xdc] sm:$0xf]
      %v4037 = vld [vmem:[%s3 + $0xe0] sm:$0xf]
      %v4038 = vld [vmem:[%s3 + $0xe4] sm:$0xf]
      %v4039 = vld [vmem:[%s3 + $0xe8] sm:$0xf]
      %v4040 = vld [vmem:[%s3 + $0xec] sm:$0xf]
      %v4041 = vld [vmem:[%s3 + $0xf0] sm:$0xf]
      %v4042 = vld [vmem:[%s3 + $0xf4] sm:$0xf]
      %v4043 = vld [vmem:[%s3 + $0xf8] sm:$0xf]
      %v4044 = vld [vmem:[%s3 + $0xfc] sm:$0xf]
      %v4045 = vld [vmem:[%s3 + $0x100] sm:$0xf]
      %v4046 = vld [vmem:[%s3 + $0x104] sm:$0xf]
      %v4047 = vld [vmem:[%s3 + $0x108] sm:$0xf]
      %v4048 = vld [vmem:[%s3 + $0x10c] sm:$0xf]
      %v4049 = vld [vmem:[%s3 + $0x110] sm:$0xf]
      %v4050 = vld [vmem:[%s3 + $0x114] sm:$0xf]
      %v4051 = vld [vmem:[%s3 + $0x118] sm:$0xf]
      %v4052 = vld [vmem:[%s3 + $0x11c] sm:$0xf]
      %v4053 = vld [vmem:[%s4] sm:$0x1]
      %v4055 = vperm.slane %v4053, 0
      %v4129 = vunpack.c.l.b16 %v3981
      %v4130 = vunpack.c.l.b16 %v3982
      %v4131 = vunpack.c.l.b16 %v3983
      %v4132 = vunpack.c.l.b16 %v3984
      %v4133 = vunpack.c.l.b16 %v3985
      %v4134 = vunpack.c.l.b16 %v3986
      %v4135 = vunpack.c.l.b16 %v3987
      %v4136 = vunpack.c.l.b16 %v3988
      %v4137 = vunpack.c.l.b16 %v3989
      %v4138 = vunpack.c.l.b16 %v3990
      %v4139 = vunpack.c.l.b16 %v3991
      %v4140 = vunpack.c.l.b16 %v3992
      %v4141 = vunpack.c.l.b16 %v3993
      %v4142 = vunpack.c.l.b16 %v3994
      %v4143 = vunpack.c.l.b16 %v3995
      %v4144 = vunpack.c.l.b16 %v3996
      %v4145 = vunpack.c.l.b16 %v3997
      %v4146 = vunpack.c.l.b16 %v3998
      %v4147 = vunpack.c.l.b16 %v3999
      %v4148 = vunpack.c.l.b16 %v4000
      %v4149 = vunpack.c.l.b16 %v4001
      %v4150 = vunpack.c.l.b16 %v4002
      %v4151 = vunpack.c.l.b16 %v4003
      %v4152 = vunpack.c.l.b16 %v4004
      %v4153 = vunpack.c.l.b16 %v4005
      %v4154 = vunpack.c.l.b16 %v4006
      %v4155 = vunpack.c.l.b16 %v4007
      %v4156 = vunpack.c.l.b16 %v4008
      %v4157 = vunpack.c.l.b16 %v4009
      %v4158 = vunpack.c.l.b16 %v4010
      %v4159 = vunpack.c.l.b16 %v4011
      %v4160 = vunpack.c.l.b16 %v4012
      %v4161 = vunpack.c.l.b16 %v4013
      %v4162 = vunpack.c.l.b16 %v4014
      %v4163 = vunpack.c.l.b16 %v4015
      %v4164 = vunpack.c.l.b16 %v4016
      %v4165 = vunpack.c.l.b16 %v4017
      %v4166 = vunpack.c.l.b16 %v4018
      %v4167 = vunpack.c.l.b16 %v4019
      %v4168 = vunpack.c.l.b16 %v4020
      %v4169 = vunpack.c.l.b16 %v4021
      %v4170 = vunpack.c.l.b16 %v4022
      %v4171 = vunpack.c.l.b16 %v4023
      %v4172 = vunpack.c.l.b16 %v4024
      %v4173 = vunpack.c.l.b16 %v4025
      %v4174 = vunpack.c.l.b16 %v4026
      %v4175 = vunpack.c.l.b16 %v4027
      %v4176 = vunpack.c.l.b16 %v4028
      %v4177 = vunpack.c.l.b16 %v4029
      %v4178 = vunpack.c.l.b16 %v4030
      %v4179 = vunpack.c.l.b16 %v4031
      %v4180 = vunpack.c.l.b16 %v4032
      %v4181 = vunpack.c.l.b16 %v4033
      %v4182 = vunpack.c.l.b16 %v4034
      %v4183 = vunpack.c.l.b16 %v4035
      %v4184 = vunpack.c.l.b16 %v4036
      %v4185 = vunpack.c.l.b16 %v4037
      %v4186 = vunpack.c.l.b16 %v4038
      %v4187 = vunpack.c.l.b16 %v4039
      %v4188 = vunpack.c.l.b16 %v4040
      %v4189 = vunpack.c.l.b16 %v4041
      %v4190 = vunpack.c.l.b16 %v4042
      %v4191 = vunpack.c.l.b16 %v4043
      %v4192 = vunpack.c.l.b16 %v4044
      %v4193 = vunpack.c.l.b16 %v4045
      %v4194 = vunpack.c.l.b16 %v4046
      %v4195 = vunpack.c.l.b16 %v4047
      %v4196 = vunpack.c.l.b16 %v4048
      %v4197 = vunpack.c.l.b16 %v4049
      %v4198 = vunpack.c.l.b16 %v4050
      %v4199 = vunpack.c.l.b16 %v4051
      %v4200 = vunpack.c.l.b16 %v4052
      %v4201 = vpack.c.b16 %v4130, %v4129
      %v4202 = vpack.c.b16 %v4132, %v4131
      %v4203 = vpack.c.b16 %v4134, %v4133
      %v4204 = vpack.c.b16 %v4136, %v4135
      %v4205 = vpack.c.b16 %v4138, %v4137
      %v4206 = vpack.c.b16 %v4140, %v4139
      %v4207 = vpack.c.b16 %v4142, %v4141
      %v4208 = vpack.c.b16 %v4144, %v4143
      %v4209 = vpack.c.b16 %v4146, %v4145
      %v4210 = vpack.c.b16 %v4148, %v4147
      %v4211 = vpack.c.b16 %v4150, %v4149
      %v4212 = vpack.c.b16 %v4152, %v4151
      %v4213 = vpack.c.b16 %v4154, %v4153
      %v4214 = vpack.c.b16 %v4156, %v4155
      %v4215 = vpack.c.b16 %v4158, %v4157
      %v4216 = vpack.c.b16 %v4160, %v4159
      %v4217 = vpack.c.b16 %v4162, %v4161
      %v4218 = vpack.c.b16 %v4164, %v4163
      %v4219 = vpack.c.b16 %v4166, %v4165
      %v4220 = vpack.c.b16 %v4168, %v4167
      %v4221 = vpack.c.b16 %v4170, %v4169
      %v4222 = vpack.c.b16 %v4172, %v4171
      %v4223 = vpack.c.b16 %v4174, %v4173
      %v4224 = vpack.c.b16 %v4176, %v4175
      %v4225 = vpack.c.b16 %v4178, %v4177
      %v4226 = vpack.c.b16 %v4180, %v4179
      %v4227 = vpack.c.b16 %v4182, %v4181
      %v4228 = vpack.c.b16 %v4184, %v4183
      %v4229 = vpack.c.b16 %v4186, %v4185
      %v4230 = vpack.c.b16 %v4188, %v4187
      %v4231 = vpack.c.b16 %v4190, %v4189
      %v4232 = vpack.c.b16 %v4192, %v4191
      %v4233 = vpack.c.b16 %v4194, %v4193
      %v4234 = vpack.c.b16 %v4196, %v4195
      %v4235 = vpack.c.b16 %v4198, %v4197
      %v4236 = vpack.c.b16 %v4200, %v4199
      %v4274 = vsel %vm3385, %v3968, 0
      %v4277 = vsel %vm3385, %v3972, 0
      %v4280 = vsel %vm3385, %v3976, 0
      %v4283 = vsel %vm3385, %v3980, 0
      %4285 = vmatpush.bf16.msra.mxu0 %v4208
      %4286 = vmatpush.bf16.msra.mxu0 %v4207
      %4287 = vmatpush.bf16.msra.mxu0 %v4206
      %4288 = vmatpush.bf16.msra.mxu0 %v4205
      %4289 = vmatpush.bf16.msra.mxu0 %v4204
      %4290 = vmatpush.bf16.msra.mxu0 %v4203
      %4291 = vmatpush.bf16.msra.mxu0 %v4202
      %4292 = vmatpush.bf16.msra.mxu0 %v4201
      %4293 = vmatmul.bf16.gmra.mxu0 %v3964
      %v4294 = vpop.f32.mrf.mxu0
      %v4295 = vadd.f32 %v4055, %v4294
      %v4296 = vpop.f32.mrf.mxu0
      %v4297 = vadd.f32 %v4055, %v4296
      %4298 = vmatmul.bf16.gmra.mxu0 %v3967
      %v4299 = vpop.f32.mrf.mxu0
      %v4300 = vadd.f32 %v4055, %v4299
      %v4301 = vpop.f32.mrf.mxu0
      %v4302 = vadd.f32 %v4055, %v4301
      %4303 = vmatmul.bf16.gmra.mxu0 %v3971
      %v4304 = vpop.f32.mrf.mxu0
      %v4305 = vadd.f32 %v4055, %v4304
      %v4306 = vpop.f32.mrf.mxu0
      %v4307 = vadd.f32 %v4055, %v4306
      %4308 = vmatmul.bf16.gmra.mxu0 %v3975
      %v4309 = vpop.f32.mrf.mxu0
      %v4310 = vadd.f32 %v4055, %v4309
      %v4311 = vpop.f32.mrf.mxu0
      %v4312 = vadd.f32 %v4055, %v4311
      %4313 = vdwg.mxu0
      %4314 = vmatpush.bf16.msra.mxu0 %v4216
      %4315 = vmatpush.bf16.msra.mxu0 %v4215
      %4316 = vmatpush.bf16.msra.mxu0 %v4214
      %4317 = vmatpush.bf16.msra.mxu0 %v4213
      %4318 = vmatpush.bf16.msra.mxu0 %v4212
      %4319 = vmatpush.bf16.msra.mxu0 %v4211
      %4320 = vmatpush.bf16.msra.mxu0 %v4210
      %4321 = vmatpush.bf16.msra.mxu0 %v4209
      %4322 = vmatmul.bf16.gmra.mxu0 %v3965
      %v4323 = vpop.f32.mrf.mxu0
      %v4324 = vadd.f32 %v4295, %v4323
      %v4325 = vpop.f32.mrf.mxu0
      %v4326 = vadd.f32 %v4297, %v4325
      %4327 = vmatmul.bf16.gmra.mxu0 %v3969
      %v4328 = vpop.f32.mrf.mxu0
      %v4329 = vadd.f32 %v4300, %v4328
      %v4330 = vpop.f32.mrf.mxu0
      %v4331 = vadd.f32 %v4302, %v4330
      %4332 = vmatmul.bf16.gmra.mxu0 %v3973
      %v4333 = vpop.f32.mrf.mxu0
      %v4334 = vadd.f32 %v4305, %v4333
      %v4335 = vpop.f32.mrf.mxu0
      %v4336 = vadd.f32 %v4307, %v4335
      %4337 = vmatmul.bf16.gmra.mxu0 %v3977
      %v4338 = vpop.f32.mrf.mxu0
      %v4339 = vadd.f32 %v4310, %v4338
      %v4340 = vpop.f32.mrf.mxu0
      %v4341 = vadd.f32 %v4312, %v4340
      %4342 = vdwg.mxu0
      %4343 = vmatpush.bf16.msra.mxu0 %v4224
      %4344 = vmatpush.bf16.msra.mxu0 %v4223
      %4345 = vmatpush.bf16.msra.mxu0 %v4222
      %4346 = vmatpush.bf16.msra.mxu0 %v4221
      %4347 = vmatpush.bf16.msra.mxu0 %v4220
      %4348 = vmatpush.bf16.msra.mxu0 %v4219
      %4349 = vmatpush.bf16.msra.mxu0 %v4218
      %4350 = vmatpush.bf16.msra.mxu0 %v4217
      %4351 = vmatmul.bf16.gmra.mxu0 %v3966
      %v4352 = vpop.f32.mrf.mxu0
      %v4353 = vadd.f32 %v4324, %v4352
      %v4354 = vpop.f32.mrf.mxu0
      %v4355 = vadd.f32 %v4326, %v4354
      %4356 = vmatmul.bf16.gmra.mxu0 %v3970
      %v4357 = vpop.f32.mrf.mxu0
      %v4358 = vadd.f32 %v4329, %v4357
      %v4359 = vpop.f32.mrf.mxu0
      %v4360 = vadd.f32 %v4331, %v4359
      %4361 = vmatmul.bf16.gmra.mxu0 %v3974
      %v4362 = vpop.f32.mrf.mxu0
      %v4363 = vadd.f32 %v4334, %v4362
      %v4364 = vpop.f32.mrf.mxu0
      %v4365 = vadd.f32 %v4336, %v4364
      %4366 = vmatmul.bf16.gmra.mxu0 %v3978
      %v4367 = vpop.f32.mrf.mxu0
      %v4368 = vadd.f32 %v4339, %v4367
      %v4369 = vpop.f32.mrf.mxu0
      %v4370 = vadd.f32 %v4341, %v4369
      %4371 = vdwg.mxu0
      %4372 = vmatpush.bf16.msra.mxu0 %v4232
      %4373 = vmatpush.bf16.msra.mxu0 %v4231
      %4374 = vmatpush.bf16.msra.mxu0 %v4230
      %4375 = vmatpush.bf16.msra.mxu0 %v4229
      %4376 = vmatpush.bf16.msra.mxu0 %v4228
      %4377 = vmatpush.bf16.msra.mxu0 %v4227
      %4378 = vmatpush.bf16.msra.mxu0 %v4226
      %4379 = vmatpush.bf16.msra.mxu0 %v4225
      %4380 = vmatmul.bf16.gmra.mxu0 %v3967
      %v4381 = vpop.f32.mrf.mxu0
      %v4382 = vadd.f32 %v4353, %v4381
      %v4383 = vpop.f32.mrf.mxu0
      %v4384 = vadd.f32 %v4355, %v4383
      %4385 = vmatmul.bf16.gmra.mxu0 %v3971
      %v4386 = vpop.f32.mrf.mxu0
      %v4387 = vadd.f32 %v4358, %v4386
      %v4388 = vpop.f32.mrf.mxu0
      %v4389 = vadd.f32 %v4360, %v4388
      %4390 = vmatmul.bf16.gmra.mxu0 %v3975
      %v4391 = vpop.f32.mrf.mxu0
      %v4392 = vadd.f32 %v4363, %v4391
      %v4393 = vpop.f32.mrf.mxu0
      %v4394 = vadd.f32 %v4365, %v4393
      %4395 = vmatmul.bf16.gmra.mxu0 %v3979
      %v4396 = vpop.f32.mrf.mxu0
      %v4397 = vadd.f32 %v4368, %v4396
      %v4398 = vpop.f32.mrf.mxu0
      %v4399 = vadd.f32 %v4370, %v4398
      %4400 = vdwg.mxu0
      %4401 = vmatpush.bf16.msra.mxu0 0
      %4402 = vmatpush.bf16.msra.mxu0 0
      %4403 = vmatpush.bf16.msra.mxu0 0
      %4404 = vmatpush.bf16.msra.mxu0 0
      %4405 = vmatpush.bf16.msra.mxu0 %v4236
      %4406 = vmatpush.bf16.msra.mxu0 %v4235
      %4407 = vmatpush.bf16.msra.mxu0 %v4234
      %4408 = vmatpush.bf16.msra.mxu0 %v4233
      %4409 = vmatmul.bf16.gmra.mxu0 %v4274
      %v4410 = vpop.f32.mrf.mxu0
      %v4411 = vadd.f32 %v4382, %v4410
      %v4412 = vpop.f32.mrf.mxu0
      %v4413 = vadd.f32 %v4384, %v4412
      %4414 = vmatmul.bf16.gmra.mxu0 %v4277
      %v4415 = vpop.f32.mrf.mxu0
      %v4416 = vadd.f32 %v4387, %v4415
      %v4417 = vpop.f32.mrf.mxu0
      %v4418 = vadd.f32 %v4389, %v4417
      %4419 = vmatmul.bf16.gmra.mxu0 %v4280
      %v4420 = vpop.f32.mrf.mxu0
      %v4421 = vadd.f32 %v4392, %v4420
      %v4422 = vpop.f32.mrf.mxu0
      %v4423 = vadd.f32 %v4394, %v4422
      %4424 = vmatmul.bf16.gmra.mxu0 %v4283
      %v4425 = vpop.f32.mrf.mxu0
      %v4426 = vadd.f32 %v4397, %v4425
      %v4427 = vpop.f32.mrf.mxu0
      %v4428 = vadd.f32 %v4399, %v4427
      %4429 = vdwg.mxu0
      %v4430 = vmax.f32 %v4411, 0.0
      %v4431 = vmax.f32 %v4413, 0.0
      %v4432 = vmax.f32 %v4416, 0.0
      %v4433 = vmax.f32 %v4418, 0.0
      %v4434 = vmax.f32 %v4421, 0.0
      %v4435 = vmax.f32 %v4423, 0.0
      %v4436 = vmax.f32 %v4426, 0.0
      %v4437 = vmax.f32 %v4428, 0.0
      %v4446 = vrot.slane %v4430, 2
      %v4447 = vrot.slane %v4430, 4
      %v4448 = vrot.slane %v4430, 6
      %v4449 = vrot.slane %v4431, 2
      %v4450 = vrot.slane %v4431, 4
      %v4451 = vrot.slane %v4431, 6
      %v4452 = vrot.slane %v4432, 2
      %v4453 = vrot.slane %v4432, 4
      %v4454 = vrot.slane %v4432, 6
      %v4455 = vrot.slane %v4433, 2
      %v4456 = vrot.slane %v4433, 4
      %v4457 = vrot.slane %v4433, 6
      %v4458 = vrot.slane %v4434, 2
      %v4459 = vrot.slane %v4434, 4
      %v4460 = vrot.slane %v4434, 6
      %v4461 = vrot.slane %v4435, 2
      %v4462 = vrot.slane %v4435, 4
      %v4463 = vrot.slane %v4435, 6
      %v4464 = vrot.slane %v4436, 2
      %v4465 = vrot.slane %v4436, 4
      %v4466 = vrot.slane %v4436, 6
      %v4467 = vrot.slane %v4437, 2
      %v4468 = vrot.slane %v4437, 4
      %v4469 = vrot.slane %v4437, 6
      %v4494 = vsel %vm846, %v4430, -inf
      %v4495 = vrot.slane %v4494, 4
      %v4496 = vmax.f32 %v4494, %v4495
      %v4497 = vrot.slane %v4496, 2
      %v4498 = vmax.f32 %v4496, %v4497
      %v4499 = vrot.slane %v4498, 1
      %v4500 = vmax.f32 %v4498, %v4499
      %v4501 = vsel %vm846, %v4446, -inf
      %v4502 = vrot.slane %v4501, 4
      %v4503 = vmax.f32 %v4501, %v4502
      %v4504 = vrot.slane %v4503, 2
      %v4505 = vmax.f32 %v4503, %v4504
      %v4506 = vrot.slane %v4505, 1
      %v4507 = vmax.f32 %v4505, %v4506
      %v4508 = vsel %vm846, %v4447, -inf
      %v4509 = vrot.slane %v4508, 4
      %v4510 = vmax.f32 %v4508, %v4509
      %v4511 = vrot.slane %v4510, 2
      %v4512 = vmax.f32 %v4510, %v4511
      %v4513 = vrot.slane %v4512, 1
      %v4514 = vmax.f32 %v4512, %v4513
      %v4515 = vsel %vm846, %v4448, -inf
      %v4516 = vrot.slane %v4515, 4
      %v4517 = vmax.f32 %v4515, %v4516
      %v4518 = vrot.slane %v4517, 2
      %v4519 = vmax.f32 %v4517, %v4518
      %v4520 = vrot.slane %v4519, 1
      %v4521 = vmax.f32 %v4519, %v4520
      %v4522 = vsel %vm846, %v4431, -inf
      %v4523 = vrot.slane %v4522, 4
      %v4524 = vmax.f32 %v4522, %v4523
      %v4525 = vrot.slane %v4524, 2
      %v4526 = vmax.f32 %v4524, %v4525
      %v4527 = vrot.slane %v4526, 1
      %v4528 = vmax.f32 %v4526, %v4527
      %v4529 = vsel %vm846, %v4449, -inf
      %v4530 = vrot.slane %v4529, 4
      %v4531 = vmax.f32 %v4529, %v4530
      %v4532 = vrot.slane %v4531, 2
      %v4533 = vmax.f32 %v4531, %v4532
      %v4534 = vrot.slane %v4533, 1
      %v4535 = vmax.f32 %v4533, %v4534
      %v4536 = vsel %vm846, %v4450, -inf
      %v4537 = vrot.slane %v4536, 4
      %v4538 = vmax.f32 %v4536, %v4537
      %v4539 = vrot.slane %v4538, 2
      %v4540 = vmax.f32 %v4538, %v4539
      %v4541 = vrot.slane %v4540, 1
      %v4542 = vmax.f32 %v4540, %v4541
      %v4543 = vsel %vm846, %v4451, -inf
      %v4544 = vrot.slane %v4543, 4
      %v4545 = vmax.f32 %v4543, %v4544
      %v4546 = vrot.slane %v4545, 2
      %v4547 = vmax.f32 %v4545, %v4546
      %v4548 = vrot.slane %v4547, 1
      %v4549 = vmax.f32 %v4547, %v4548
      %v4550 = vsel %vm846, %v4432, -inf
      %v4551 = vrot.slane %v4550, 4
      %v4552 = vmax.f32 %v4550, %v4551
      %v4553 = vrot.slane %v4552, 2
      %v4554 = vmax.f32 %v4552, %v4553
      %v4555 = vrot.slane %v4554, 1
      %v4556 = vmax.f32 %v4554, %v4555
      %v4557 = vsel %vm846, %v4452, -inf
      %v4558 = vrot.slane %v4557, 4
      %v4559 = vmax.f32 %v4557, %v4558
      %v4560 = vrot.slane %v4559, 2
      %v4561 = vmax.f32 %v4559, %v4560
      %v4562 = vrot.slane %v4561, 1
      %v4563 = vmax.f32 %v4561, %v4562
      %v4564 = vsel %vm846, %v4453, -inf
      %v4565 = vrot.slane %v4564, 4
      %v4566 = vmax.f32 %v4564, %v4565
      %v4567 = vrot.slane %v4566, 2
      %v4568 = vmax.f32 %v4566, %v4567
      %v4569 = vrot.slane %v4568, 1
      %v4570 = vmax.f32 %v4568, %v4569
      %v4571 = vsel %vm846, %v4454, -inf
      %v4572 = vrot.slane %v4571, 4
      %v4573 = vmax.f32 %v4571, %v4572
      %v4574 = vrot.slane %v4573, 2
      %v4575 = vmax.f32 %v4573, %v4574
      %v4576 = vrot.slane %v4575, 1
      %v4577 = vmax.f32 %v4575, %v4576
      %v4578 = vsel %vm846, %v4433, -inf
      %v4579 = vrot.slane %v4578, 4
      %v4580 = vmax.f32 %v4578, %v4579
      %v4581 = vrot.slane %v4580, 2
      %v4582 = vmax.f32 %v4580, %v4581
      %v4583 = vrot.slane %v4582, 1
      %v4584 = vmax.f32 %v4582, %v4583
      %v4585 = vsel %vm846, %v4455, -inf
      %v4586 = vrot.slane %v4585, 4
      %v4587 = vmax.f32 %v4585, %v4586
      %v4588 = vrot.slane %v4587, 2
      %v4589 = vmax.f32 %v4587, %v4588
      %v4590 = vrot.slane %v4589, 1
      %v4591 = vmax.f32 %v4589, %v4590
      %v4592 = vsel %vm846, %v4456, -inf
      %v4593 = vrot.slane %v4592, 4
      %v4594 = vmax.f32 %v4592, %v4593
      %v4595 = vrot.slane %v4594, 2
      %v4596 = vmax.f32 %v4594, %v4595
      %v4597 = vrot.slane %v4596, 1
      %v4598 = vmax.f32 %v4596, %v4597
      %v4599 = vsel %vm846, %v4457, -inf
      %v4600 = vrot.slane %v4599, 4
      %v4601 = vmax.f32 %v4599, %v4600
      %v4602 = vrot.slane %v4601, 2
      %v4603 = vmax.f32 %v4601, %v4602
      %v4604 = vrot.slane %v4603, 1
      %v4605 = vmax.f32 %v4603, %v4604
      %v4606 = vsel %vm846, %v4434, -inf
      %v4607 = vrot.slane %v4606, 4
      %v4608 = vmax.f32 %v4606, %v4607
      %v4609 = vrot.slane %v4608, 2
      %v4610 = vmax.f32 %v4608, %v4609
      %v4611 = vrot.slane %v4610, 1
      %v4612 = vmax.f32 %v4610, %v4611
      %v4613 = vsel %vm846, %v4458, -inf
      %v4614 = vrot.slane %v4613, 4
      %v4615 = vmax.f32 %v4613, %v4614
      %v4616 = vrot.slane %v4615, 2
      %v4617 = vmax.f32 %v4615, %v4616
      %v4618 = vrot.slane %v4617, 1
      %v4619 = vmax.f32 %v4617, %v4618
      %v4620 = vsel %vm846, %v4459, -inf
      %v4621 = vrot.slane %v4620, 4
      %v4622 = vmax.f32 %v4620, %v4621
      %v4623 = vrot.slane %v4622, 2
      %v4624 = vmax.f32 %v4622, %v4623
      %v4625 = vrot.slane %v4624, 1
      %v4626 = vmax.f32 %v4624, %v4625
      %v4627 = vsel %vm846, %v4460, -inf
      %v4628 = vrot.slane %v4627, 4
      %v4629 = vmax.f32 %v4627, %v4628
      %v4630 = vrot.slane %v4629, 2
      %v4631 = vmax.f32 %v4629, %v4630
      %v4632 = vrot.slane %v4631, 1
      %v4633 = vmax.f32 %v4631, %v4632
      %v4634 = vsel %vm846, %v4435, -inf
      %v4635 = vrot.slane %v4634, 4
      %v4636 = vmax.f32 %v4634, %v4635
      %v4637 = vrot.slane %v4636, 2
      %v4638 = vmax.f32 %v4636, %v4637
      %v4639 = vrot.slane %v4638, 1
      %v4640 = vmax.f32 %v4638, %v4639
      %v4641 = vsel %vm846, %v4461, -inf
      %v4642 = vrot.slane %v4641, 4
      %v4643 = vmax.f32 %v4641, %v4642
      %v4644 = vrot.slane %v4643, 2
      %v4645 = vmax.f32 %v4643, %v4644
      %v4646 = vrot.slane %v4645, 1
      %v4647 = vmax.f32 %v4645, %v4646
      %v4648 = vsel %vm846, %v4462, -inf
      %v4649 = vrot.slane %v4648, 4
      %v4650 = vmax.f32 %v4648, %v4649
      %v4651 = vrot.slane %v4650, 2
      %v4652 = vmax.f32 %v4650, %v4651
      %v4653 = vrot.slane %v4652, 1
      %v4654 = vmax.f32 %v4652, %v4653
      %v4655 = vsel %vm846, %v4463, -inf
      %v4656 = vrot.slane %v4655, 4
      %v4657 = vmax.f32 %v4655, %v4656
      %v4658 = vrot.slane %v4657, 2
      %v4659 = vmax.f32 %v4657, %v4658
      %v4660 = vrot.slane %v4659, 1
      %v4661 = vmax.f32 %v4659, %v4660
      %v4662 = vsel %vm846, %v4436, -inf
      %v4663 = vrot.slane %v4662, 4
      %v4664 = vmax.f32 %v4662, %v4663
      %v4665 = vrot.slane %v4664, 2
      %v4666 = vmax.f32 %v4664, %v4665
      %v4667 = vrot.slane %v4666, 1
      %v4668 = vmax.f32 %v4666, %v4667
      %v4669 = vsel %vm846, %v4464, -inf
      %v4670 = vrot.slane %v4669, 4
      %v4671 = vmax.f32 %v4669, %v4670
      %v4672 = vrot.slane %v4671, 2
      %v4673 = vmax.f32 %v4671, %v4672
      %v4674 = vrot.slane %v4673, 1
      %v4675 = vmax.f32 %v4673, %v4674
      %v4676 = vsel %vm846, %v4465, -inf
      %v4677 = vrot.slane %v4676, 4
      %v4678 = vmax.f32 %v4676, %v4677
      %v4679 = vrot.slane %v4678, 2
      %v4680 = vmax.f32 %v4678, %v4679
      %v4681 = vrot.slane %v4680, 1
      %v4682 = vmax.f32 %v4680, %v4681
      %v4683 = vsel %vm846, %v4466, -inf
      %v4684 = vrot.slane %v4683, 4
      %v4685 = vmax.f32 %v4683, %v4684
      %v4686 = vrot.slane %v4685, 2
      %v4687 = vmax.f32 %v4685, %v4686
      %v4688 = vrot.slane %v4687, 1
      %v4689 = vmax.f32 %v4687, %v4688
      %v4690 = vsel %vm846, %v4437, -inf
      %v4691 = vrot.slane %v4690, 4
      %v4692 = vmax.f32 %v4690, %v4691
      %v4693 = vrot.slane %v4692, 2
      %v4694 = vmax.f32 %v4692, %v4693
      %v4695 = vrot.slane %v4694, 1
      %v4696 = vmax.f32 %v4694, %v4695
      %v4697 = vsel %vm846, %v4467, -inf
      %v4698 = vrot.slane %v4697, 4
      %v4699 = vmax.f32 %v4697, %v4698
      %v4700 = vrot.slane %v4699, 2
      %v4701 = vmax.f32 %v4699, %v4700
      %v4702 = vrot.slane %v4701, 1
      %v4703 = vmax.f32 %v4701, %v4702
      %v4704 = vsel %vm846, %v4468, -inf
      %v4705 = vrot.slane %v4704, 4
      %v4706 = vmax.f32 %v4704, %v4705
      %v4707 = vrot.slane %v4706, 2
      %v4708 = vmax.f32 %v4706, %v4707
      %v4709 = vrot.slane %v4708, 1
      %v4710 = vmax.f32 %v4708, %v4709
      %v4711 = vsel %vm846, %v4469, -inf
      %v4712 = vrot.slane %v4711, 4
      %v4713 = vmax.f32 %v4711, %v4712
      %v4714 = vrot.slane %v4713, 2
      %v4715 = vmax.f32 %v4713, %v4714
      %v4716 = vrot.slane %v4715, 1
      %v4717 = vmax.f32 %v4715, %v4716
      %v4718 = vmax.f32 %v4500, %v4528
      %v4719 = vmax.f32 %v4507, %v4535
      %v4720 = vmax.f32 %v4514, %v4542
      %v4721 = vmax.f32 %v4521, %v4549
      %v4722 = vmax.f32 %v4556, %v4584
      %v4723 = vmax.f32 %v4563, %v4591
      %v4724 = vmax.f32 %v4570, %v4598
      %v4725 = vmax.f32 %v4577, %v4605
      %v4726 = vmax.f32 %v4612, %v4640
      %v4727 = vmax.f32 %v4619, %v4647
      %v4728 = vmax.f32 %v4626, %v4654
      %v4729 = vmax.f32 %v4633, %v4661
      %v4730 = vmax.f32 %v4668, %v4696
      %v4731 = vmax.f32 %v4675, %v4703
      %v4732 = vmax.f32 %v4682, %v4710
      %v4733 = vmax.f32 %v4689, %v4717
      %4734 = vst [vmem:[#allocation4] sm:$0x3f] 0.0
      %4735 = vst [vmem:[#allocation4 + $0x8] sm:$0x3f] 0.0
      %4736 = vst [vmem:[#allocation4 + $0x10] sm:$0x3f] 0.0
      %4737 = vst [vmem:[#allocation4 + $0x18] sm:$0x3f] 0.0
      %4738 = vst [vmem:[#allocation4 + $0x20] sm:$0x3f] 0.0
      %4739 = vst [vmem:[#allocation4 + $0x28] sm:$0x3f] 0.0
      %v4756 = vsel %vm3662, %v4719, %v4718
      %v4757 = vsel %vm3664, %v4720, %v4756
      %v4758 = vsel %vm3666, %v4721, %v4757
      %v4759 = vsel %vm3662, %v4723, %v4722
      %v4760 = vsel %vm3664, %v4724, %v4759
      %v4761 = vsel %vm3666, %v4725, %v4760
      %v4762 = vsel %vm3662, %v4727, %v4726
      %v4763 = vsel %vm3664, %v4728, %v4762
      %v4764 = vsel %vm3666, %v4729, %v4763
      %v4765 = vsel %vm3662, %v4731, %v4730
      %v4766 = vsel %vm3664, %v4732, %v4765
      %v4767 = vsel %vm3666, %v4733, %v4766
      %s4772 = scalar_lea.vmem [#allocation4], 8
      %4773 = vst [vmem:[%s4772 + $0x1] sm:$0xf] %v4758
      %4774 = vst [vmem:[%s4772 + $0x9] sm:$0xf] %v4761
      %4775 = vst [vmem:[%s4772 + $0x11] sm:$0xf] %v4764
      %4776 = vst [vmem:[%s4772 + $0x19] sm:$0xf] %v4767
      %v4777 = vld [vmem:[#allocation4] sm:$0x3f]
      %v4778 = vld [vmem:[#allocation4 + $0x8] sm:$0x3f]
      %v4779 = vld [vmem:[#allocation4 + $0x10] sm:$0x3f]
      %v4780 = vld [vmem:[#allocation4 + $0x18] sm:$0x3f]
      %v4781 = vld [vmem:[#allocation4 + $0x20] sm:$0x3f]
      %v4782 = vld [vmem:[#allocation4 + $0x28] sm:$0x3f]
      %v4787 = vrot.slane %v4777, 4
      %v4788 = vrot.slane %v4778, 4
      %v4789 = vrot.slane %v4779, 4
      %v4790 = vrot.slane %v4780, 4
      %vm4791 = vcmask 1042432
      %vm4792 = vcmask 1046532
      %vm4793 = vmor %vm4791, %vm4792
      %v4794 = vrot.slane %v4777, 5
      %v4795 = vrot.slane %v4794, 4
      %v4796 = vrot.slane %v4787, 5
      %v4797 = vsel %vm4793, %v4795, %v4796
      %v4798 = vrot.slane %v4778, 5
      %v4799 = vrot.slane %v4798, 4
      %v4800 = vrot.slane %v4788, 5
      %v4801 = vsel %vm4793, %v4799, %v4800
      %v4802 = vrot.slane %v4779, 5
      %v4803 = vrot.slane %v4802, 4
      %v4804 = vrot.slane %v4789, 5
      %v4805 = vsel %vm4793, %v4803, %v4804
      %v4806 = vrot.slane %v4780, 5
      %v4807 = vrot.slane %v4806, 4
      %v4808 = vrot.slane %v4790, 5
      %v4809 = vsel %vm4793, %v4807, %v4808
      %vm4810 = vcmask 1045508
      %vm4811 = vmor %vm846, %vm4810
      %v4812 = vrot.slane %v4777, 6
      %v4813 = vrot.slane %v4812, 4
      %v4814 = vrot.slane %v4787, 6
      %v4815 = vsel %vm4811, %v4813, %v4814
      %v4816 = vrot.slane %v4778, 6
      %v4817 = vrot.slane %v4816, 4
      %v4818 = vrot.slane %v4788, 6
      %v4819 = vsel %vm4811, %v4817, %v4818
      %v4820 = vrot.slane %v4779, 6
      %v4821 = vrot.slane %v4820, 4
      %v4822 = vrot.slane %v4789, 6
      %v4823 = vsel %vm4811, %v4821, %v4822
      %v4824 = vrot.slane %v4780, 6
      %v4825 = vrot.slane %v4824, 4
      %v4826 = vrot.slane %v4790, 6
      %v4827 = vsel %vm4811, %v4825, %v4826
      %v4829 = vrot.slane %v4781, 4
      %v4830 = vrot.slane %v4781, 5
      %v4831 = vrot.slane %v4830, 4
      %v4832 = vrot.slane %v4829, 5
      %v4833 = vsel %vm4793, %v4831, %v4832
      %v4834 = vrot.slane %v4781, 6
      %v4835 = vrot.slane %v4834, 4
      %v4836 = vrot.slane %v4829, 6
      %v4837 = vsel %vm4811, %v4835, %v4836
      %v4839 = vrot.slane %v4782, 4
      %v4840 = vrot.slane %v4782, 5
      %v4841 = vrot.slane %v4840, 4
      %v4842 = vrot.slane %v4839, 5
      %v4843 = vsel %vm4793, %v4841, %v4842
      %v4844 = vrot.slane %v4782, 6
      %v4845 = vrot.slane %v4844, 4
      %v4846 = vrot.slane %v4839, 6
      %v4847 = vsel %vm4811, %v4845, %v4846
      %4848 = vst [vmem:[#allocation1] ss:$2 sm:$0xff] %v4777
      %s4849 = scalar_lea.vmem [#allocation1], 1
      %4850 = vst [vmem:[%s4849] ss:$2 sm:$0xff] %v4778
      %s4851 = scalar_lea.vmem [#allocation1], 16
      %4852 = vst [vmem:[%s4851] ss:$2 sm:$0xff] %v4779
      %s4853 = scalar_lea.vmem [#allocation1], 17
      %4854 = vst [vmem:[%s4853] ss:$2 sm:$0xff] %v4780
      %v4855 = vld.sshfl [vmem:[#allocation1] sm:$0xff pattern:$0x75316420]
      %v4856 = vld.sshfl [vmem:[#allocation1 + $0x10] sm:$0xff pattern:$0x75316420]
      %4859 = vst [vmem:[#allocation1] ss:$2 sm:$0xff] %v4797
      %s4860 = scalar_lea.vmem [#allocation1], 1
      %4861 = vst [vmem:[%s4860] ss:$2 sm:$0xff] %v4801
      %s4862 = scalar_lea.vmem [#allocation1], 16
      %4863 = vst [vmem:[%s4862] ss:$2 sm:$0xff] %v4805
      %s4864 = scalar_lea.vmem [#allocation1], 17
      %4865 = vst [vmem:[%s4864] ss:$2 sm:$0xff] %v4809
      %v4866 = vld.sshfl [vmem:[#allocation1] sm:$0xff pattern:$0x75316420]
      %v4867 = vld.sshfl [vmem:[#allocation1 + $0x10] sm:$0xff pattern:$0x75316420]
      %4870 = vst [vmem:[#allocation1] ss:$2 sm:$0xff] %v4815
      %s4871 = scalar_lea.vmem [#allocation1], 1
      %4872 = vst [vmem:[%s4871] ss:$2 sm:$0xff] %v4819
      %s4873 = scalar_lea.vmem [#allocation1], 16
      %4874 = vst [vmem:[%s4873] ss:$2 sm:$0xff] %v4823
      %s4875 = scalar_lea.vmem [#allocation1], 17
      %4876 = vst [vmem:[%s4875] ss:$2 sm:$0xff] %v4827
      %v4877 = vld.sshfl [vmem:[#allocation1] sm:$0xff pattern:$0x75316420]
      %v4878 = vld.sshfl [vmem:[#allocation1 + $0x10] sm:$0xff pattern:$0x75316420]
      %4881 = vst [vmem:[#allocation1] ss:$2 sm:$0xff] %v4778
      %s4882 = scalar_lea.vmem [#allocation1], 1
      %4883 = vst [vmem:[%s4882] ss:$2 sm:$0xff] %v4779
      %s4884 = scalar_lea.vmem [#allocation1], 16
      %4885 = vst [vmem:[%s4884] ss:$2 sm:$0xff] %v4780
      %s4886 = scalar_lea.vmem [#allocation1], 17
      %4887 = vst [vmem:[%s4886] ss:$2 sm:$0xff] %v4781
      %v4888 = vld.sshfl [vmem:[#allocation1] sm:$0xff pattern:$0x75316420]
      %v4889 = vld.sshfl [vmem:[#allocation1 + $0x10] sm:$0xff pattern:$0x75316420]
      %4892 = vst [vmem:[#allocation1] ss:$2 sm:$0xff] %v4801
      %s4893 = scalar_lea.vmem [#allocation1], 1
      %4894 = vst [vmem:[%s4893] ss:$2 sm:$0xff] %v4805
      %s4895 = scalar_lea.vmem [#allocation1], 16
      %4896 = vst [vmem:[%s4895] ss:$2 sm:$0xff] %v4809
      %s4897 = scalar_lea.vmem [#allocation1], 17
      %4898 = vst [vmem:[%s4897] ss:$2 sm:$0xff] %v4833
      %v4899 = vld.sshfl [vmem:[#allocation1] sm:$0xff pattern:$0x75316420]
      %v4900 = vld.sshfl [vmem:[#allocation1 + $0x10] sm:$0xff pattern:$0x75316420]
      %4903 = vst [vmem:[#allocation1] ss:$2 sm:$0xff] %v4819
      %s4904 = scalar_lea.vmem [#allocation1], 1
      %4905 = vst [vmem:[%s4904] ss:$2 sm:$0xff] %v4823
      %s4906 = scalar_lea.vmem [#allocation1], 16
      %4907 = vst [vmem:[%s4906] ss:$2 sm:$0xff] %v4827
      %s4908 = scalar_lea.vmem [#allocation1], 17
      %4909 = vst [vmem:[%s4908] ss:$2 sm:$0xff] %v4837
      %v4910 = vld.sshfl [vmem:[#allocation1] sm:$0xff pattern:$0x75316420]
      %v4911 = vld.sshfl [vmem:[#allocation1 + $0x10] sm:$0xff pattern:$0x75316420]
      %4914 = vst [vmem:[#allocation1] ss:$2 sm:$0xff] %v4779
      %s4915 = scalar_lea.vmem [#allocation1], 1
      %4916 = vst [vmem:[%s4915] ss:$2 sm:$0xff] %v4780
      %s4917 = scalar_lea.vmem [#allocation1], 16
      %4918 = vst [vmem:[%s4917] ss:$2 sm:$0xff] %v4781
      %s4919 = scalar_lea.vmem [#allocation1], 17
      %4920 = vst [vmem:[%s4919] ss:$2 sm:$0xff] %v4782
      %v4921 = vld.sshfl [vmem:[#allocation1] sm:$0xff pattern:$0x75316420]
      %v4922 = vld.sshfl [vmem:[#allocation1 + $0x10] sm:$0xff pattern:$0x75316420]
      %4925 = vst [vmem:[#allocation1] ss:$2 sm:$0xff] %v4805
      %s4926 = scalar_lea.vmem [#allocation1], 1
      %4927 = vst [vmem:[%s4926] ss:$2 sm:$0xff] %v4809
      %s4928 = scalar_lea.vmem [#allocation1], 16
      %4929 = vst [vmem:[%s4928] ss:$2 sm:$0xff] %v4833
      %s4930 = scalar_lea.vmem [#allocation1], 17
      %4931 = vst [vmem:[%s4930] ss:$2 sm:$0xff] %v4843
      %v4932 = vld.sshfl [vmem:[#allocation1] sm:$0xff pattern:$0x75316420]
      %v4933 = vld.sshfl [vmem:[#allocation1 + $0x10] sm:$0xff pattern:$0x75316420]
      %4936 = vst [vmem:[#allocation1] ss:$2 sm:$0xff] %v4823
      %s4937 = scalar_lea.vmem [#allocation1], 1
      %4938 = vst [vmem:[%s4937] ss:$2 sm:$0xff] %v4827
      %s4939 = scalar_lea.vmem [#allocation1], 16
      %4940 = vst [vmem:[%s4939] ss:$2 sm:$0xff] %v4837
      %s4941 = scalar_lea.vmem [#allocation1], 17
      %4942 = vst [vmem:[%s4941] ss:$2 sm:$0xff] %v4847
      %v4943 = vld.sshfl [vmem:[#allocation1] sm:$0xff pattern:$0x75316420]
      %v4944 = vld.sshfl [vmem:[#allocation1 + $0x10] sm:$0xff pattern:$0x75316420]
      %v4947 = vpack.c.bf16 %v4856, %v4855
      %v4948 = vpack.c.bf16 %v4867, %v4866
      %v4949 = vpack.c.bf16 %v4878, %v4877
      %v4950 = vpack.c.bf16 %v4889, %v4888
      %v4951 = vpack.c.bf16 %v4900, %v4899
      %v4952 = vpack.c.bf16 %v4911, %v4910
      %v4953 = vpack.c.bf16 %v4922, %v4921
      %v4954 = vpack.c.bf16 %v4933, %v4932
      %v4955 = vpack.c.bf16 %v4944, %v4943
      %v4956 = vld [vmem:[%s5] sm:$0xf]
      %v4957 = vld [vmem:[%s5 + $0x4] sm:$0xf]
      %v4958 = vld [vmem:[%s5 + $0x8] sm:$0xf]
      %v4959 = vld [vmem:[%s5 + $0xc] sm:$0xf]
      %v4960 = vld [vmem:[%s5 + $0x10] sm:$0xf]
      %v4961 = vld [vmem:[%s5 + $0x14] sm:$0xf]
      %v4962 = vld [vmem:[%s5 + $0x18] sm:$0xf]
      %v4963 = vld [vmem:[%s5 + $0x1c] sm:$0xf]
      %v4964 = vld [vmem:[%s5 + $0x20] sm:$0xf]
      %v4965 = vld [vmem:[%s5 + $0x24] sm:$0xf]
      %v4966 = vld [vmem:[%s5 + $0x28] sm:$0xf]
      %v4967 = vld [vmem:[%s5 + $0x2c] sm:$0xf]
      %v4968 = vld [vmem:[%s5 + $0x30] sm:$0xf]
      %v4969 = vld [vmem:[%s5 + $0x34] sm:$0xf]
      %v4970 = vld [vmem:[%s5 + $0x38] sm:$0xf]
      %v4971 = vld [vmem:[%s5 + $0x3c] sm:$0xf]
      %v4972 = vld [vmem:[%s5 + $0x40] sm:$0xf]
      %v4973 = vld [vmem:[%s5 + $0x44] sm:$0xf]
      %v4974 = vld [vmem:[%s5 + $0x48] sm:$0xf]
      %v4975 = vld [vmem:[%s5 + $0x4c] sm:$0xf]
      %v4976 = vld [vmem:[%s5 + $0x50] sm:$0xf]
      %v4977 = vld [vmem:[%s5 + $0x54] sm:$0xf]
      %v4978 = vld [vmem:[%s5 + $0x58] sm:$0xf]
      %v4979 = vld [vmem:[%s5 + $0x5c] sm:$0xf]
      %v4980 = vld [vmem:[%s5 + $0x60] sm:$0xf]
      %v4981 = vld [vmem:[%s5 + $0x64] sm:$0xf]
      %v4982 = vld [vmem:[%s5 + $0x68] sm:$0xf]
      %v4983 = vld [vmem:[%s5 + $0x6c] sm:$0xf]
      %v4984 = vld [vmem:[%s5 + $0x70] sm:$0xf]
      %v4985 = vld [vmem:[%s5 + $0x74] sm:$0xf]
      %v4986 = vld [vmem:[%s5 + $0x78] sm:$0xf]
      %v4987 = vld [vmem:[%s5 + $0x7c] sm:$0xf]
      %v4988 = vld [vmem:[%s5 + $0x80] sm:$0xf]
      %v4989 = vld [vmem:[%s5 + $0x84] sm:$0xf]
      %v4990 = vld [vmem:[%s5 + $0x88] sm:$0xf]
      %v4991 = vld [vmem:[%s5 + $0x8c] sm:$0xf]
      %v4992 = vld [vmem:[%s5 + $0x90] sm:$0xf]
      %v4993 = vld [vmem:[%s5 + $0x94] sm:$0xf]
      %v4994 = vld [vmem:[%s5 + $0x98] sm:$0xf]
      %v4995 = vld [vmem:[%s5 + $0x9c] sm:$0xf]
      %v4996 = vld [vmem:[%s5 + $0xa0] sm:$0xf]
      %v4997 = vld [vmem:[%s5 + $0xa4] sm:$0xf]
      %v4998 = vld [vmem:[%s5 + $0xa8] sm:$0xf]
      %v4999 = vld [vmem:[%s5 + $0xac] sm:$0xf]
      %v5000 = vld [vmem:[%s5 + $0xb0] sm:$0xf]
      %v5001 = vld [vmem:[%s5 + $0xb4] sm:$0xf]
      %v5002 = vld [vmem:[%s5 + $0xb8] sm:$0xf]
      %v5003 = vld [vmem:[%s5 + $0xbc] sm:$0xf]
      %v5004 = vld [vmem:[%s5 + $0xc0] sm:$0xf]
      %v5005 = vld [vmem:[%s5 + $0xc4] sm:$0xf]
      %v5006 = vld [vmem:[%s5 + $0xc8] sm:$0xf]
      %v5007 = vld [vmem:[%s5 + $0xcc] sm:$0xf]
      %v5008 = vld [vmem:[%s5 + $0xd0] sm:$0xf]
      %v5009 = vld [vmem:[%s5 + $0xd4] sm:$0xf]
      %v5010 = vld [vmem:[%s5 + $0xd8] sm:$0xf]
      %v5011 = vld [vmem:[%s5 + $0xdc] sm:$0xf]
      %v5012 = vld [vmem:[%s5 + $0xe0] sm:$0xf]
      %v5013 = vld [vmem:[%s5 + $0xe4] sm:$0xf]
      %v5014 = vld [vmem:[%s5 + $0xe8] sm:$0xf]
      %v5015 = vld [vmem:[%s5 + $0xec] sm:$0xf]
      %v5016 = vld [vmem:[%s5 + $0xf0] sm:$0xf]
      %v5017 = vld [vmem:[%s5 + $0xf4] sm:$0xf]
      %v5018 = vld [vmem:[%s5 + $0xf8] sm:$0xf]
      %v5019 = vld [vmem:[%s5 + $0xfc] sm:$0xf]
      %v5020 = vld [vmem:[%s5 + $0x100] sm:$0xf]
      %v5021 = vld [vmem:[%s5 + $0x104] sm:$0xf]
      %v5022 = vld [vmem:[%s5 + $0x108] sm:$0xf]
      %v5023 = vld [vmem:[%s5 + $0x10c] sm:$0xf]
      %v5024 = vld [vmem:[%s5 + $0x110] sm:$0xf]
      %v5025 = vld [vmem:[%s5 + $0x114] sm:$0xf]
      %v5026 = vld [vmem:[%s5 + $0x118] sm:$0xf]
      %v5027 = vld [vmem:[%s5 + $0x11c] sm:$0xf]
      %v5028 = vld [vmem:[%s5 + $0x120] sm:$0xf]
      %v5029 = vld [vmem:[%s5 + $0x124] sm:$0xf]
      %v5030 = vld [vmem:[%s5 + $0x128] sm:$0xf]
      %v5031 = vld [vmem:[%s5 + $0x12c] sm:$0xf]
      %v5032 = vld [vmem:[%s5 + $0x130] sm:$0xf]
      %v5033 = vld [vmem:[%s5 + $0x134] sm:$0xf]
      %v5034 = vld [vmem:[%s5 + $0x138] sm:$0xf]
      %v5035 = vld [vmem:[%s5 + $0x13c] sm:$0xf]
      %v5036 = vld [vmem:[%s5 + $0x140] sm:$0xf]
      %v5037 = vld [vmem:[%s5 + $0x144] sm:$0xf]
      %v5038 = vld [vmem:[%s5 + $0x148] sm:$0xf]
      %v5039 = vld [vmem:[%s5 + $0x14c] sm:$0xf]
      %v5040 = vld [vmem:[%s5 + $0x150] sm:$0xf]
      %v5041 = vld [vmem:[%s5 + $0x154] sm:$0xf]
      %v5042 = vld [vmem:[%s5 + $0x158] sm:$0xf]
      %v5043 = vld [vmem:[%s5 + $0x15c] sm:$0xf]
      %v5044 = vld [vmem:[%s5 + $0x160] sm:$0xf]
      %v5045 = vld [vmem:[%s5 + $0x164] sm:$0xf]
      %v5046 = vld [vmem:[%s5 + $0x168] sm:$0xf]
      %v5047 = vld [vmem:[%s5 + $0x16c] sm:$0xf]
      %v5048 = vld [vmem:[%s5 + $0x170] sm:$0xf]
      %v5049 = vld [vmem:[%s5 + $0x174] sm:$0xf]
      %v5050 = vld [vmem:[%s5 + $0x178] sm:$0xf]
      %v5051 = vld [vmem:[%s5 + $0x17c] sm:$0xf]
      %v5052 = vld [vmem:[%s5 + $0x180] sm:$0xf]
      %v5053 = vld [vmem:[%s5 + $0x184] sm:$0xf]
      %v5054 = vld [vmem:[%s5 + $0x188] sm:$0xf]
      %v5055 = vld [vmem:[%s5 + $0x18c] sm:$0xf]
      %v5056 = vld [vmem:[%s5 + $0x190] sm:$0xf]
      %v5057 = vld [vmem:[%s5 + $0x194] sm:$0xf]
      %v5058 = vld [vmem:[%s5 + $0x198] sm:$0xf]
      %v5059 = vld [vmem:[%s5 + $0x19c] sm:$0xf]
      %v5060 = vld [vmem:[%s5 + $0x1a0] sm:$0xf]
      %v5061 = vld [vmem:[%s5 + $0x1a4] sm:$0xf]
      %v5062 = vld [vmem:[%s5 + $0x1a8] sm:$0xf]
      %v5063 = vld [vmem:[%s5 + $0x1ac] sm:$0xf]
      %v5064 = vld [vmem:[%s5 + $0x1b0] sm:$0xf]
      %v5065 = vld [vmem:[%s5 + $0x1b4] sm:$0xf]
      %v5066 = vld [vmem:[%s5 + $0x1b8] sm:$0xf]
      %v5067 = vld [vmem:[%s5 + $0x1bc] sm:$0xf]
      %v5068 = vld [vmem:[%s5 + $0x1c0] sm:$0xf]
      %v5069 = vld [vmem:[%s5 + $0x1c4] sm:$0xf]
      %v5070 = vld [vmem:[%s5 + $0x1c8] sm:$0xf]
      %v5071 = vld [vmem:[%s5 + $0x1cc] sm:$0xf]
      %v5072 = vld [vmem:[%s5 + $0x1d0] sm:$0xf]
      %v5073 = vld [vmem:[%s5 + $0x1d4] sm:$0xf]
      %v5074 = vld [vmem:[%s5 + $0x1d8] sm:$0xf]
      %v5075 = vld [vmem:[%s5 + $0x1dc] sm:$0xf]
      %v5076 = vld [vmem:[%s5 + $0x1e0] sm:$0xf]
      %v5077 = vld [vmem:[%s5 + $0x1e4] sm:$0xf]
      %v5078 = vld [vmem:[%s5 + $0x1e8] sm:$0xf]
      %v5079 = vld [vmem:[%s5 + $0x1ec] sm:$0xf]
      %v5080 = vld [vmem:[%s5 + $0x1f0] sm:$0xf]
      %v5081 = vld [vmem:[%s5 + $0x1f4] sm:$0xf]
      %v5082 = vld [vmem:[%s5 + $0x1f8] sm:$0xf]
      %v5083 = vld [vmem:[%s5 + $0x1fc] sm:$0xf]
      %v5084 = vld [vmem:[%s5 + $0x200] sm:$0xf]
      %v5085 = vld [vmem:[%s5 + $0x204] sm:$0xf]
      %v5086 = vld [vmem:[%s5 + $0x208] sm:$0xf]
      %v5087 = vld [vmem:[%s5 + $0x20c] sm:$0xf]
      %v5088 = vld [vmem:[%s5 + $0x210] sm:$0xf]
      %v5089 = vld [vmem:[%s5 + $0x214] sm:$0xf]
      %v5090 = vld [vmem:[%s5 + $0x218] sm:$0xf]
      %v5091 = vld [vmem:[%s5 + $0x21c] sm:$0xf]
      %v5092 = vld [vmem:[%s5 + $0x220] sm:$0xf]
      %v5093 = vld [vmem:[%s5 + $0x224] sm:$0xf]
      %v5094 = vld [vmem:[%s5 + $0x228] sm:$0xf]
      %v5095 = vld [vmem:[%s5 + $0x22c] sm:$0xf]
      %v5096 = vld [vmem:[%s5 + $0x230] sm:$0xf]
      %v5097 = vld [vmem:[%s5 + $0x234] sm:$0xf]
      %v5098 = vld [vmem:[%s5 + $0x238] sm:$0xf]
      %v5099 = vld [vmem:[%s5 + $0x23c] sm:$0xf]
      %v5100 = vld [vmem:[%s6] sm:$0x1]
      %v5102 = vperm.slane %v5100, 0
      %v5248 = vunpack.c.l.b16 %v4956
      %v5249 = vunpack.c.l.b16 %v4957
      %v5250 = vunpack.c.l.b16 %v4958
      %v5251 = vunpack.c.l.b16 %v4959
      %v5252 = vunpack.c.l.b16 %v4960
      %v5253 = vunpack.c.l.b16 %v4961
      %v5254 = vunpack.c.l.b16 %v4962
      %v5255 = vunpack.c.l.b16 %v4963
      %v5256 = vunpack.c.l.b16 %v4964
      %v5257 = vunpack.c.l.b16 %v4965
      %v5258 = vunpack.c.l.b16 %v4966
      %v5259 = vunpack.c.l.b16 %v4967
      %v5260 = vunpack.c.l.b16 %v4968
      %v5261 = vunpack.c.l.b16 %v4969
      %v5262 = vunpack.c.l.b16 %v4970
      %v5263 = vunpack.c.l.b16 %v4971
      %v5264 = vunpack.c.l.b16 %v4972
      %v5265 = vunpack.c.l.b16 %v4973
      %v5266 = vunpack.c.l.b16 %v4974
      %v5267 = vunpack.c.l.b16 %v4975
      %v5268 = vunpack.c.l.b16 %v4976
      %v5269 = vunpack.c.l.b16 %v4977
      %v5270 = vunpack.c.l.b16 %v4978
      %v5271 = vunpack.c.l.b16 %v4979
      %v5272 = vunpack.c.l.b16 %v4980
      %v5273 = vunpack.c.l.b16 %v4981
      %v5274 = vunpack.c.l.b16 %v4982
      %v5275 = vunpack.c.l.b16 %v4983
      %v5276 = vunpack.c.l.b16 %v4984
      %v5277 = vunpack.c.l.b16 %v4985
      %v5278 = vunpack.c.l.b16 %v4986
      %v5279 = vunpack.c.l.b16 %v4987
      %v5280 = vunpack.c.l.b16 %v4988
      %v5281 = vunpack.c.l.b16 %v4989
      %v5282 = vunpack.c.l.b16 %v4990
      %v5283 = vunpack.c.l.b16 %v4991
      %v5284 = vunpack.c.l.b16 %v4992
      %v5285 = vunpack.c.l.b16 %v4993
      %v5286 = vunpack.c.l.b16 %v4994
      %v5287 = vunpack.c.l.b16 %v4995
      %v5288 = vunpack.c.l.b16 %v4996
      %v5289 = vunpack.c.l.b16 %v4997
      %v5290 = vunpack.c.l.b16 %v4998
      %v5291 = vunpack.c.l.b16 %v4999
      %v5292 = vunpack.c.l.b16 %v5000
      %v5293 = vunpack.c.l.b16 %v5001
      %v5294 = vunpack.c.l.b16 %v5002
      %v5295 = vunpack.c.l.b16 %v5003
      %v5296 = vunpack.c.l.b16 %v5004
      %v5297 = vunpack.c.l.b16 %v5005
      %v5298 = vunpack.c.l.b16 %v5006
      %v5299 = vunpack.c.l.b16 %v5007
      %v5300 = vunpack.c.l.b16 %v5008
      %v5301 = vunpack.c.l.b16 %v5009
      %v5302 = vunpack.c.l.b16 %v5010
      %v5303 = vunpack.c.l.b16 %v5011
      %v5304 = vunpack.c.l.b16 %v5012
      %v5305 = vunpack.c.l.b16 %v5013
      %v5306 = vunpack.c.l.b16 %v5014
      %v5307 = vunpack.c.l.b16 %v5015
      %v5308 = vunpack.c.l.b16 %v5016
      %v5309 = vunpack.c.l.b16 %v5017
      %v5310 = vunpack.c.l.b16 %v5018
      %v5311 = vunpack.c.l.b16 %v5019
      %v5312 = vunpack.c.l.b16 %v5020
      %v5313 = vunpack.c.l.b16 %v5021
      %v5314 = vunpack.c.l.b16 %v5022
      %v5315 = vunpack.c.l.b16 %v5023
      %v5316 = vunpack.c.l.b16 %v5024
      %v5317 = vunpack.c.l.b16 %v5025
      %v5318 = vunpack.c.l.b16 %v5026
      %v5319 = vunpack.c.l.b16 %v5027
      %v5320 = vunpack.c.l.b16 %v5028
      %v5321 = vunpack.c.l.b16 %v5029
      %v5322 = vunpack.c.l.b16 %v5030
      %v5323 = vunpack.c.l.b16 %v5031
      %v5324 = vunpack.c.l.b16 %v5032
      %v5325 = vunpack.c.l.b16 %v5033
      %v5326 = vunpack.c.l.b16 %v5034
      %v5327 = vunpack.c.l.b16 %v5035
      %v5328 = vunpack.c.l.b16 %v5036
      %v5329 = vunpack.c.l.b16 %v5037
      %v5330 = vunpack.c.l.b16 %v5038
      %v5331 = vunpack.c.l.b16 %v5039
      %v5332 = vunpack.c.l.b16 %v5040
      %v5333 = vunpack.c.l.b16 %v5041
      %v5334 = vunpack.c.l.b16 %v5042
      %v5335 = vunpack.c.l.b16 %v5043
      %v5336 = vunpack.c.l.b16 %v5044
      %v5337 = vunpack.c.l.b16 %v5045
      %v5338 = vunpack.c.l.b16 %v5046
      %v5339 = vunpack.c.l.b16 %v5047
      %v5340 = vunpack.c.l.b16 %v5048
      %v5341 = vunpack.c.l.b16 %v5049
      %v5342 = vunpack.c.l.b16 %v5050
      %v5343 = vunpack.c.l.b16 %v5051
      %v5344 = vunpack.c.l.b16 %v5052
      %v5345 = vunpack.c.l.b16 %v5053
      %v5346 = vunpack.c.l.b16 %v5054
      %v5347 = vunpack.c.l.b16 %v5055
      %v5348 = vunpack.c.l.b16 %v5056
      %v5349 = vunpack.c.l.b16 %v5057
      %v5350 = vunpack.c.l.b16 %v5058
      %v5351 = vunpack.c.l.b16 %v5059
      %v5352 = vunpack.c.l.b16 %v5060
      %v5353 = vunpack.c.l.b16 %v5061
      %v5354 = vunpack.c.l.b16 %v5062
      %v5355 = vunpack.c.l.b16 %v5063
      %v5356 = vunpack.c.l.b16 %v5064
      %v5357 = vunpack.c.l.b16 %v5065
      %v5358 = vunpack.c.l.b16 %v5066
      %v5359 = vunpack.c.l.b16 %v5067
      %v5360 = vunpack.c.l.b16 %v5068
      %v5361 = vunpack.c.l.b16 %v5069
      %v5362 = vunpack.c.l.b16 %v5070
      %v5363 = vunpack.c.l.b16 %v5071
      %v5364 = vunpack.c.l.b16 %v5072
      %v5365 = vunpack.c.l.b16 %v5073
      %v5366 = vunpack.c.l.b16 %v5074
      %v5367 = vunpack.c.l.b16 %v5075
      %v5368 = vunpack.c.l.b16 %v5076
      %v5369 = vunpack.c.l.b16 %v5077
      %v5370 = vunpack.c.l.b16 %v5078
      %v5371 = vunpack.c.l.b16 %v5079
      %v5372 = vunpack.c.l.b16 %v5080
      %v5373 = vunpack.c.l.b16 %v5081
      %v5374 = vunpack.c.l.b16 %v5082
      %v5375 = vunpack.c.l.b16 %v5083
      %v5376 = vunpack.c.l.b16 %v5084
      %v5377 = vunpack.c.l.b16 %v5085
      %v5378 = vunpack.c.l.b16 %v5086
      %v5379 = vunpack.c.l.b16 %v5087
      %v5380 = vunpack.c.l.b16 %v5088
      %v5381 = vunpack.c.l.b16 %v5089
      %v5382 = vunpack.c.l.b16 %v5090
      %v5383 = vunpack.c.l.b16 %v5091
      %v5384 = vunpack.c.l.b16 %v5092
      %v5385 = vunpack.c.l.b16 %v5093
      %v5386 = vunpack.c.l.b16 %v5094
      %v5387 = vunpack.c.l.b16 %v5095
      %v5388 = vunpack.c.l.b16 %v5096
      %v5389 = vunpack.c.l.b16 %v5097
      %v5390 = vunpack.c.l.b16 %v5098
      %v5391 = vunpack.c.l.b16 %v5099
      %v5392 = vpack.c.b16 %v5249, %v5248
      %v5393 = vpack.c.b16 %v5251, %v5250
      %v5394 = vpack.c.b16 %v5253, %v5252
      %v5395 = vpack.c.b16 %v5255, %v5254
      %v5396 = vpack.c.b16 %v5257, %v5256
      %v5397 = vpack.c.b16 %v5259, %v5258
      %v5398 = vpack.c.b16 %v5261, %v5260
      %v5399 = vpack.c.b16 %v5263, %v5262
      %v5400 = vpack.c.b16 %v5265, %v5264
      %v5401 = vpack.c.b16 %v5267, %v5266
      %v5402 = vpack.c.b16 %v5269, %v5268
      %v5403 = vpack.c.b16 %v5271, %v5270
      %v5404 = vpack.c.b16 %v5273, %v5272
      %v5405 = vpack.c.b16 %v5275, %v5274
      %v5406 = vpack.c.b16 %v5277, %v5276
      %v5407 = vpack.c.b16 %v5279, %v5278
      %v5408 = vpack.c.b16 %v5281, %v5280
      %v5409 = vpack.c.b16 %v5283, %v5282
      %v5410 = vpack.c.b16 %v5285, %v5284
      %v5411 = vpack.c.b16 %v5287, %v5286
      %v5412 = vpack.c.b16 %v5289, %v5288
      %v5413 = vpack.c.b16 %v5291, %v5290
      %v5414 = vpack.c.b16 %v5293, %v5292
      %v5415 = vpack.c.b16 %v5295, %v5294
      %v5416 = vpack.c.b16 %v5297, %v5296
      %v5417 = vpack.c.b16 %v5299, %v5298
      %v5418 = vpack.c.b16 %v5301, %v5300
      %v5419 = vpack.c.b16 %v5303, %v5302
      %v5420 = vpack.c.b16 %v5305, %v5304
      %v5421 = vpack.c.b16 %v5307, %v5306
      %v5422 = vpack.c.b16 %v5309, %v5308
      %v5423 = vpack.c.b16 %v5311, %v5310
      %v5424 = vpack.c.b16 %v5313, %v5312
      %v5425 = vpack.c.b16 %v5315, %v5314
      %v5426 = vpack.c.b16 %v5317, %v5316
      %v5427 = vpack.c.b16 %v5319, %v5318
      %v5428 = vpack.c.b16 %v5321, %v5320
      %v5429 = vpack.c.b16 %v5323, %v5322
      %v5430 = vpack.c.b16 %v5325, %v5324
      %v5431 = vpack.c.b16 %v5327, %v5326
      %v5432 = vpack.c.b16 %v5329, %v5328
      %v5433 = vpack.c.b16 %v5331, %v5330
      %v5434 = vpack.c.b16 %v5333, %v5332
      %v5435 = vpack.c.b16 %v5335, %v5334
      %v5436 = vpack.c.b16 %v5337, %v5336
      %v5437 = vpack.c.b16 %v5339, %v5338
      %v5438 = vpack.c.b16 %v5341, %v5340
      %v5439 = vpack.c.b16 %v5343, %v5342
      %v5440 = vpack.c.b16 %v5345, %v5344
      %v5441 = vpack.c.b16 %v5347, %v5346
      %v5442 = vpack.c.b16 %v5349, %v5348
      %v5443 = vpack.c.b16 %v5351, %v5350
      %v5444 = vpack.c.b16 %v5353, %v5352
      %v5445 = vpack.c.b16 %v5355, %v5354
      %v5446 = vpack.c.b16 %v5357, %v5356
      %v5447 = vpack.c.b16 %v5359, %v5358
      %v5448 = vpack.c.b16 %v5361, %v5360
      %v5449 = vpack.c.b16 %v5363, %v5362
      %v5450 = vpack.c.b16 %v5365, %v5364
      %v5451 = vpack.c.b16 %v5367, %v5366
      %v5452 = vpack.c.b16 %v5369, %v5368
      %v5453 = vpack.c.b16 %v5371, %v5370
      %v5454 = vpack.c.b16 %v5373, %v5372
      %v5455 = vpack.c.b16 %v5375, %v5374
      %v5456 = vpack.c.b16 %v5377, %v5376
      %v5457 = vpack.c.b16 %v5379, %v5378
      %v5458 = vpack.c.b16 %v5381, %v5380
      %v5459 = vpack.c.b16 %v5383, %v5382
      %v5460 = vpack.c.b16 %v5385, %v5384
      %v5461 = vpack.c.b16 %v5387, %v5386
      %v5462 = vpack.c.b16 %v5389, %v5388
      %v5463 = vpack.c.b16 %v5391, %v5390
      %5536 = vmatpush.bf16.msra.mxu0 %v5399
      %5537 = vmatpush.bf16.msra.mxu0 %v5398
      %5538 = vmatpush.bf16.msra.mxu0 %v5397
      %5539 = vmatpush.bf16.msra.mxu0 %v5396
      %5540 = vmatpush.bf16.msra.mxu0 %v5395
      %5541 = vmatpush.bf16.msra.mxu0 %v5394
      %5542 = vmatpush.bf16.msra.mxu0 %v5393
      %5543 = vmatpush.bf16.msra.mxu0 %v5392
      %5544 = vmatmul.bf16.gmra.mxu0 %v4947
      %v5545 = vpop.f32.mrf.mxu0
      %v5546 = vadd.f32 %v5102, %v5545
      %v5547 = vpop.f32.mrf.mxu0
      %v5548 = vadd.f32 %v5102, %v5547
      %5549 = vdwg.mxu0
      %5550 = vmatpush.bf16.msra.mxu0 %v5407
      %5551 = vmatpush.bf16.msra.mxu0 %v5406
      %5552 = vmatpush.bf16.msra.mxu0 %v5405
      %5553 = vmatpush.bf16.msra.mxu0 %v5404
      %5554 = vmatpush.bf16.msra.mxu0 %v5403
      %5555 = vmatpush.bf16.msra.mxu0 %v5402
      %5556 = vmatpush.bf16.msra.mxu0 %v5401
      %5557 = vmatpush.bf16.msra.mxu0 %v5400
      %5558 = vmatmul.bf16.gmra.mxu0 %v4948
      %v5559 = vpop.f32.mrf.mxu0
      %v5560 = vadd.f32 %v5546, %v5559
      %v5561 = vpop.f32.mrf.mxu0
      %v5562 = vadd.f32 %v5548, %v5561
      %5563 = vdwg.mxu0
      %5564 = vmatpush.bf16.msra.mxu0 %v5415
      %5565 = vmatpush.bf16.msra.mxu0 %v5414
      %5566 = vmatpush.bf16.msra.mxu0 %v5413
      %5567 = vmatpush.bf16.msra.mxu0 %v5412
      %5568 = vmatpush.bf16.msra.mxu0 %v5411
      %5569 = vmatpush.bf16.msra.mxu0 %v5410
      %5570 = vmatpush.bf16.msra.mxu0 %v5409
      %5571 = vmatpush.bf16.msra.mxu0 %v5408
      %5572 = vmatmul.bf16.gmra.mxu0 %v4949
      %v5573 = vpop.f32.mrf.mxu0
      %v5574 = vadd.f32 %v5560, %v5573
      %v5575 = vpop.f32.mrf.mxu0
      %v5576 = vadd.f32 %v5562, %v5575
      %5577 = vdwg.mxu0
      %5578 = vmatpush.bf16.msra.mxu0 %v5423
      %5579 = vmatpush.bf16.msra.mxu0 %v5422
      %5580 = vmatpush.bf16.msra.mxu0 %v5421
      %5581 = vmatpush.bf16.msra.mxu0 %v5420
      %5582 = vmatpush.bf16.msra.mxu0 %v5419
      %5583 = vmatpush.bf16.msra.mxu0 %v5418
      %5584 = vmatpush.bf16.msra.mxu0 %v5417
      %5585 = vmatpush.bf16.msra.mxu0 %v5416
      %5586 = vmatmul.bf16.gmra.mxu0 %v4950
      %v5587 = vpop.f32.mrf.mxu0
      %v5588 = vadd.f32 %v5574, %v5587
      %v5589 = vpop.f32.mrf.mxu0
      %v5590 = vadd.f32 %v5576, %v5589
      %5591 = vdwg.mxu0
      %5592 = vmatpush.bf16.msra.mxu0 %v5431
      %5593 = vmatpush.bf16.msra.mxu0 %v5430
      %5594 = vmatpush.bf16.msra.mxu0 %v5429
      %5595 = vmatpush.bf16.msra.mxu0 %v5428
      %5596 = vmatpush.bf16.msra.mxu0 %v5427
      %5597 = vmatpush.bf16.msra.mxu0 %v5426
      %5598 = vmatpush.bf16.msra.mxu0 %v5425
      %5599 = vmatpush.bf16.msra.mxu0 %v5424
      %5600 = vmatmul.bf16.gmra.mxu0 %v4951
      %v5601 = vpop.f32.mrf.mxu0
      %v5602 = vadd.f32 %v5588, %v5601
      %v5603 = vpop.f32.mrf.mxu0
      %v5604 = vadd.f32 %v5590, %v5603
      %5605 = vdwg.mxu0
      %5606 = vmatpush.bf16.msra.mxu0 %v5439
      %5607 = vmatpush.bf16.msra.mxu0 %v5438
      %5608 = vmatpush.bf16.msra.mxu0 %v5437
      %5609 = vmatpush.bf16.msra.mxu0 %v5436
      %5610 = vmatpush.bf16.msra.mxu0 %v5435
      %5611 = vmatpush.bf16.msra.mxu0 %v5434
      %5612 = vmatpush.bf16.msra.mxu0 %v5433
      %5613 = vmatpush.bf16.msra.mxu0 %v5432
      %5614 = vmatmul.bf16.gmra.mxu0 %v4952
      %v5615 = vpop.f32.mrf.mxu0
      %v5616 = vadd.f32 %v5602, %v5615
      %v5617 = vpop.f32.mrf.mxu0
      %v5618 = vadd.f32 %v5604, %v5617
      %5619 = vdwg.mxu0
      %5620 = vmatpush.bf16.msra.mxu0 %v5447
      %5621 = vmatpush.bf16.msra.mxu0 %v5446
      %5622 = vmatpush.bf16.msra.mxu0 %v5445
      %5623 = vmatpush.bf16.msra.mxu0 %v5444
      %5624 = vmatpush.bf16.msra.mxu0 %v5443
      %5625 = vmatpush.bf16.msra.mxu0 %v5442
      %5626 = vmatpush.bf16.msra.mxu0 %v5441
      %5627 = vmatpush.bf16.msra.mxu0 %v5440
      %5628 = vmatmul.bf16.gmra.mxu0 %v4953
      %v5629 = vpop.f32.mrf.mxu0
      %v5630 = vadd.f32 %v5616, %v5629
      %v5631 = vpop.f32.mrf.mxu0
      %v5632 = vadd.f32 %v5618, %v5631
      %5633 = vdwg.mxu0
      %5634 = vmatpush.bf16.msra.mxu0 %v5455
      %5635 = vmatpush.bf16.msra.mxu0 %v5454
      %5636 = vmatpush.bf16.msra.mxu0 %v5453
      %5637 = vmatpush.bf16.msra.mxu0 %v5452
      %5638 = vmatpush.bf16.msra.mxu0 %v5451
      %5639 = vmatpush.bf16.msra.mxu0 %v5450
      %5640 = vmatpush.bf16.msra.mxu0 %v5449
      %5641 = vmatpush.bf16.msra.mxu0 %v5448
      %5642 = vmatmul.bf16.gmra.mxu0 %v4954
      %v5643 = vpop.f32.mrf.mxu0
      %v5644 = vadd.f32 %v5630, %v5643
      %v5645 = vpop.f32.mrf.mxu0
      %v5646 = vadd.f32 %v5632, %v5645
      %5647 = vdwg.mxu0
      %5648 = vmatpush.bf16.msra.mxu0 %v5463
      %5649 = vmatpush.bf16.msra.mxu0 %v5462
      %5650 = vmatpush.bf16.msra.mxu0 %v5461
      %5651 = vmatpush.bf16.msra.mxu0 %v5460
      %5652 = vmatpush.bf16.msra.mxu0 %v5459
      %5653 = vmatpush.bf16.msra.mxu0 %v5458
      %5654 = vmatpush.bf16.msra.mxu0 %v5457
      %5655 = vmatpush.bf16.msra.mxu0 %v5456
      %5656 = vmatmul.bf16.gmra.mxu0 %v4955
      %v5657 = vpop.f32.mrf.mxu0
      %v5658 = vadd.f32 %v5644, %v5657
      %v5659 = vpop.f32.mrf.mxu0
      %v5660 = vadd.f32 %v5646, %v5659
      %5661 = vdwg.mxu0
      %v5662 = vmax.f32 %v5658, 0.0
      %v5663 = vmax.f32 %v5660, 0.0
      %v5666 = vrot.slane %v5662, 1
      %v5667 = vrot.slane %v5662, 2
      %v5668 = vrot.slane %v5662, 3
      %v5669 = vrot.slane %v5662, 4
      %v5670 = vrot.slane %v5662, 5
      %v5671 = vrot.slane %v5662, 6
      %v5672 = vrot.slane %v5662, 7
      %v5673 = vrot.slane %v5663, 1
      %v5674 = vrot.slane %v5663, 2
      %v5675 = vrot.slane %v5663, 3
      %v5676 = vrot.slane %v5663, 4
      %v5677 = vrot.slane %v5663, 5
      %v5678 = vrot.slane %v5663, 6
      %v5679 = vrot.slane %v5663, 7
      %v5680 = vperm.slane %v5662, 0
      %v5681 = vperm.slane %v5666, 0
      %v5682 = vperm.slane %v5667, 0
      %v5683 = vperm.slane %v5668, 0
      %v5684 = vperm.slane %v5669, 0
      %v5685 = vperm.slane %v5670, 0
      %v5686 = vperm.slane %v5671, 0
      %v5687 = vperm.slane %v5672, 0
      %v5688 = vperm.slane %v5663, 0
      %v5689 = vperm.slane %v5673, 0
      %v5690 = vperm.slane %v5674, 0
      %v5691 = vperm.slane %v5675, 0
      %v5692 = vperm.slane %v5676, 0
      %v5693 = vperm.slane %v5677, 0
      %v5694 = vperm.slane %v5678, 0
      %v5695 = vperm.slane %v5679, 0
      %5696 = vst [vmem:[#allocation5] sm:$0xff] 0.0
      %5697 = vst [vmem:[#allocation5 + $0x8] sm:$0x3] 0.0
      %5698 = vst [vmem:[#allocation5 + $0x10] sm:$0xff] 0.0
      %5699 = vst [vmem:[#allocation5 + $0x18] sm:$0x3] 0.0
      %5700 = vst [vmem:[#allocation5 + $0x20] sm:$0xff] 0.0
      %5701 = vst [vmem:[#allocation5 + $0x28] sm:$0x3] 0.0
      %5702 = vst [vmem:[#allocation5 + $0x30] sm:$0xff] 0.0
      %5703 = vst [vmem:[#allocation5 + $0x38] sm:$0x3] 0.0
      %5704 = vst [vmem:[#allocation5 + $0x40] sm:$0xff] 0.0
      %5705 = vst [vmem:[#allocation5 + $0x48] sm:$0x3] 0.0
      %5706 = vst [vmem:[#allocation5 + $0x50] sm:$0xff] 0.0
      %5707 = vst [vmem:[#allocation5 + $0x58] sm:$0x3] 0.0
      %5708 = vst [vmem:[#allocation5 + $0x60] sm:$0xff] 0.0
      %5709 = vst [vmem:[#allocation5 + $0x68] sm:$0x3] 0.0
      %5710 = vst [vmem:[#allocation5 + $0x70] sm:$0xff] 0.0
      %5711 = vst [vmem:[#allocation5 + $0x78] sm:$0x3] 0.0
      %5712 = vst [vmem:[#allocation5 + $0x80] sm:$0xff] 0.0
      %5713 = vst [vmem:[#allocation5 + $0x88] sm:$0x3] 0.0
      %5714 = vst [vmem:[#allocation5 + $0x90] sm:$0xff] 0.0
      %5715 = vst [vmem:[#allocation5 + $0x98] sm:$0x3] 0.0
      %5716 = vst [vmem:[#allocation1] ss:$4 sm:$0xff] %v5680
      %s5717 = scalar_lea.vmem [#allocation1], 1
      %5718 = vst [vmem:[%s5717] ss:$4 sm:$0xff] %v5681
      %s5719 = scalar_lea.vmem [#allocation1], 2
      %5720 = vst [vmem:[%s5719] ss:$4 sm:$0xff] %v5682
      %s5721 = scalar_lea.vmem [#allocation1], 3
      %5722 = vst [vmem:[%s5721] ss:$4 sm:$0xff] %v5683
      %v5723 = vld.sshfl [vmem:[#allocation1] sm:$0xff pattern:$0x73625140]
      %s5724 = scalar_lea.vmem [#allocation1], 32
      %5725 = vst [vmem:[%s5724] ss:$4 sm:$0xff] %v5680
      %s5726 = scalar_lea.vmem [#allocation1], 33
      %5727 = vst [vmem:[%s5726] ss:$4 sm:$0xff] %v5681
      %s5728 = scalar_lea.vmem [#allocation1], 34
      %5729 = vst [vmem:[%s5728] ss:$4 sm:$0xff] %v5682
      %s5730 = scalar_lea.vmem [#allocation1], 35
      %5731 = vst [vmem:[%s5730] ss:$4 sm:$0xff] %v5683
      %v5732 = vld.sshfl [vmem:[#allocation1 + $0x20] sm:$0xff pattern:$0x73625140]
      %5733 = vst [vmem:[#allocation1] ss:$4 sm:$0xff] %v5684
      %5734 = vst [vmem:[%s5717] ss:$4 sm:$0xff] %v5685
      %5735 = vst [vmem:[%s5719] ss:$4 sm:$0xff] %v5686
      %5736 = vst [vmem:[%s5721] ss:$4 sm:$0xff] %v5687
      %v5737 = vld.sshfl [vmem:[#allocation1] sm:$0xff pattern:$0x73625140]
      %5738 = vst [vmem:[%s5724] ss:$4 sm:$0xff] %v5684
      %5739 = vst [vmem:[%s5726] ss:$4 sm:$0xff] %v5685
      %5740 = vst [vmem:[%s5728] ss:$4 sm:$0xff] %v5686
      %5741 = vst [vmem:[%s5730] ss:$4 sm:$0xff] %v5687
      %v5742 = vld.sshfl [vmem:[#allocation1 + $0x20] sm:$0xff pattern:$0x73625140]
      %5743 = vst [vmem:[#allocation1] ss:$4 sm:$0xff] %v5688
      %5744 = vst [vmem:[%s5717] ss:$4 sm:$0xff] %v5689
      %5745 = vst [vmem:[%s5719] ss:$4 sm:$0xff] %v5690
      %5746 = vst [vmem:[%s5721] ss:$4 sm:$0xff] %v5691
      %v5747 = vld.sshfl [vmem:[#allocation1] sm:$0xff pattern:$0x73625140]
      %5748 = vst [vmem:[%s5724] ss:$4 sm:$0xff] %v5688
      %5749 = vst [vmem:[%s5726] ss:$4 sm:$0xff] %v5689
      %5750 = vst [vmem:[%s5728] ss:$4 sm:$0xff] %v5690
      %5751 = vst [vmem:[%s5730] ss:$4 sm:$0xff] %v5691
      %v5752 = vld.sshfl [vmem:[#allocation1 + $0x20] sm:$0xff pattern:$0x73625140]
      %5753 = vst [vmem:[#allocation1] ss:$4 sm:$0xff] %v5692
      %5754 = vst [vmem:[%s5717] ss:$4 sm:$0xff] %v5693
      %5755 = vst [vmem:[%s5719] ss:$4 sm:$0xff] %v5694
      %5756 = vst [vmem:[%s5721] ss:$4 sm:$0xff] %v5695
      %v5757 = vld.sshfl [vmem:[#allocation1] sm:$0xff pattern:$0x73625140]
      %5758 = vst [vmem:[%s5724] ss:$4 sm:$0xff] %v5692
      %5759 = vst [vmem:[%s5726] ss:$4 sm:$0xff] %v5693
      %5760 = vst [vmem:[%s5728] ss:$4 sm:$0xff] %v5694
      %5761 = vst [vmem:[%s5730] ss:$4 sm:$0xff] %v5695
      %v5762 = vld.sshfl [vmem:[#allocation1 + $0x20] sm:$0xff pattern:$0x73625140]
      %s5771 = scalar_lea.vmem [#allocation5], 16
      %5772 = vst [vmem:[%s5771 + $0x1] sm:$0xff] %v5723
      %5773 = vst [vmem:[%s5771 + $0x11] sm:$0xff] %v5732
      %5774 = vst [vmem:[%s5771 + $0x21] sm:$0xff] %v5737
      %5775 = vst [vmem:[%s5771 + $0x31] sm:$0xff] %v5742
      %5776 = vst [vmem:[%s5771 + $0x41] sm:$0xff] %v5747
      %5777 = vst [vmem:[%s5771 + $0x51] sm:$0xff] %v5752
      %5778 = vst [vmem:[%s5771 + $0x61] sm:$0xff] %v5757
      %5779 = vst [vmem:[%s5771 + $0x71] sm:$0xff] %v5762
      %v5780 = vld [vmem:[#allocation5] sm:$0xff]
      %v5781 = vld [vmem:[#allocation5 + $0x8] sm:$0x3]
      %v5782 = vld [vmem:[#allocation5 + $0x10] sm:$0xff]
      %v5783 = vld [vmem:[#allocation5 + $0x18] sm:$0x3]
      %v5784 = vld [vmem:[#allocation5 + $0x20] sm:$0xff]
      %v5785 = vld [vmem:[#allocation5 + $0x28] sm:$0x3]
      %v5786 = vld [vmem:[#allocation5 + $0x30] sm:$0xff]
      %v5787 = vld [vmem:[#allocation5 + $0x38] sm:$0x3]
      %v5788 = vld [vmem:[#allocation5 + $0x40] sm:$0xff]
      %v5789 = vld [vmem:[#allocation5 + $0x48] sm:$0x3]
      %v5790 = vld [vmem:[#allocation5 + $0x50] sm:$0xff]
      %v5791 = vld [vmem:[#allocation5 + $0x58] sm:$0x3]
      %v5792 = vld [vmem:[#allocation5 + $0x60] sm:$0xff]
      %v5793 = vld [vmem:[#allocation5 + $0x68] sm:$0x3]
      %v5794 = vld [vmem:[#allocation5 + $0x70] sm:$0xff]
      %v5795 = vld [vmem:[#allocation5 + $0x78] sm:$0x3]
      %v5796 = vld [vmem:[#allocation5 + $0x80] sm:$0xff]
      %v5797 = vld [vmem:[#allocation5 + $0x88] sm:$0x3]
      %v5798 = vld [vmem:[#allocation5 + $0x90] sm:$0xff]
      %v5799 = vld [vmem:[#allocation5 + $0x98] sm:$0x3]
      %v5816 = vrot.slane %v5780, 1
      %v5817 = vrot.slane %v5781, 1
      %v5818 = vsel %vm667, %v5816, %v5817
      %v5819 = vrot.slane %v5782, 1
      %v5820 = vrot.slane %v5783, 1
      %v5821 = vsel %vm667, %v5819, %v5820
      %v5822 = vrot.slane %v5784, 1
      %v5823 = vrot.slane %v5785, 1
      %v5824 = vsel %vm667, %v5822, %v5823
      %v5825 = vrot.slane %v5786, 1
      %v5826 = vrot.slane %v5787, 1
      %v5827 = vsel %vm667, %v5825, %v5826
      %v5828 = vrot.slane %v5788, 1
      %v5829 = vrot.slane %v5789, 1
      %v5830 = vsel %vm667, %v5828, %v5829
      %v5831 = vrot.slane %v5790, 1
      %v5832 = vrot.slane %v5791, 1
      %v5833 = vsel %vm667, %v5831, %v5832
      %v5834 = vrot.slane %v5792, 1
      %v5835 = vrot.slane %v5793, 1
      %v5836 = vsel %vm667, %v5834, %v5835
      %v5837 = vrot.slane %v5794, 1
      %v5838 = vrot.slane %v5795, 1
      %v5839 = vsel %vm667, %v5837, %v5838
      %v5848 = vrot.slane %v5780, 2
      %v5849 = vrot.slane %v5781, 2
      %v5850 = vsel %vm1079, %v5848, %v5849
      %v5851 = vrot.slane %v5782, 2
      %v5852 = vrot.slane %v5783, 2
      %v5853 = vsel %vm1079, %v5851, %v5852
      %v5854 = vrot.slane %v5784, 2
      %v5855 = vrot.slane %v5785, 2
      %v5856 = vsel %vm1079, %v5854, %v5855
      %v5857 = vrot.slane %v5786, 2
      %v5858 = vrot.slane %v5787, 2
      %v5859 = vsel %vm1079, %v5857, %v5858
      %v5860 = vrot.slane %v5788, 2
      %v5861 = vrot.slane %v5789, 2
      %v5862 = vsel %vm1079, %v5860, %v5861
      %v5863 = vrot.slane %v5790, 2
      %v5864 = vrot.slane %v5791, 2
      %v5865 = vsel %vm1079, %v5863, %v5864
      %v5866 = vrot.slane %v5792, 2
      %v5867 = vrot.slane %v5793, 2
      %v5868 = vsel %vm1079, %v5866, %v5867
      %v5869 = vrot.slane %v5794, 2
      %v5870 = vrot.slane %v5795, 2
      %v5871 = vsel %vm1079, %v5869, %v5870
      %v5882 = vrot.slane %v5796, 1
      %v5883 = vrot.slane %v5797, 1
      %v5884 = vsel %vm667, %v5882, %v5883
      %v5886 = vrot.slane %v5796, 2
      %v5887 = vrot.slane %v5797, 2
      %v5888 = vsel %vm1079, %v5886, %v5887
      %v5892 = vrot.slane %v5798, 1
      %v5893 = vrot.slane %v5799, 1
      %v5894 = vsel %vm667, %v5892, %v5893
      %v5896 = vrot.slane %v5798, 2
      %v5897 = vrot.slane %v5799, 2
      %v5898 = vsel %vm1079, %v5896, %v5897
      %v5900 = vpack.c.bf16 %v5782, %v5780
      %v5901 = vpack.c.bf16 %v5821, %v5818
      %v5902 = vpack.c.bf16 %v5853, %v5850
      %v5903 = vpack.c.bf16 %v5784, %v5782
      %v5904 = vpack.c.bf16 %v5824, %v5821
      %v5905 = vpack.c.bf16 %v5856, %v5853
      %v5906 = vpack.c.bf16 %v5786, %v5784
      %v5907 = vpack.c.bf16 %v5827, %v5824
      %v5908 = vpack.c.bf16 %v5859, %v5856
      %v5909 = vpack.c.bf16 %v5788, %v5786
      %v5910 = vpack.c.bf16 %v5830, %v5827
      %v5911 = vpack.c.bf16 %v5862, %v5859
      %v5912 = vpack.c.bf16 %v5790, %v5788
      %v5913 = vpack.c.bf16 %v5833, %v5830
      %v5914 = vpack.c.bf16 %v5865, %v5862
      %v5915 = vpack.c.bf16 %v5792, %v5790
      %v5916 = vpack.c.bf16 %v5836, %v5833
      %v5917 = vpack.c.bf16 %v5868, %v5865
      %v5918 = vpack.c.bf16 %v5794, %v5792
      %v5919 = vpack.c.bf16 %v5839, %v5836
      %v5920 = vpack.c.bf16 %v5871, %v5868
      %v5921 = vpack.c.bf16 %v5796, %v5794
      %v5922 = vpack.c.bf16 %v5884, %v5839
      %v5923 = vpack.c.bf16 %v5888, %v5871
      %v5924 = vpack.c.bf16 %v5798, %v5796
      %v5925 = vpack.c.bf16 %v5894, %v5884
      %v5926 = vpack.c.bf16 %v5898, %v5888
      %v5927 = vld [vmem:[%s7] sm:$0xf]
      %v5928 = vld [vmem:[%s7 + $0x4] sm:$0xf]
      %v5929 = vld [vmem:[%s7 + $0x8] sm:$0xf]
      %v5930 = vld [vmem:[%s7 + $0xc] sm:$0xf]
      %v5931 = vld [vmem:[%s7 + $0x10] sm:$0xf]
      %v5932 = vld [vmem:[%s7 + $0x14] sm:$0xf]
      %v5933 = vld [vmem:[%s7 + $0x18] sm:$0xf]
      %v5934 = vld [vmem:[%s7 + $0x1c] sm:$0xf]
      %v5935 = vld [vmem:[%s7 + $0x20] sm:$0xf]
      %v5936 = vld [vmem:[%s7 + $0x24] sm:$0xf]
      %v5937 = vld [vmem:[%s7 + $0x28] sm:$0xf]
      %v5938 = vld [vmem:[%s7 + $0x2c] sm:$0xf]
      %v5939 = vld [vmem:[%s7 + $0x30] sm:$0xf]
      %v5940 = vld [vmem:[%s7 + $0x34] sm:$0xf]
      %v5941 = vld [vmem:[%s7 + $0x38] sm:$0xf]
      %v5942 = vld [vmem:[%s7 + $0x3c] sm:$0xf]
      %v5943 = vld [vmem:[%s7 + $0x40] sm:$0xf]
      %v5944 = vld [vmem:[%s7 + $0x44] sm:$0xf]
      %v5945 = vld [vmem:[%s7 + $0x48] sm:$0xf]
      %v5946 = vld [vmem:[%s7 + $0x4c] sm:$0xf]
      %v5947 = vld [vmem:[%s7 + $0x50] sm:$0xf]
      %v5948 = vld [vmem:[%s7 + $0x54] sm:$0xf]
      %v5949 = vld [vmem:[%s7 + $0x58] sm:$0xf]
      %v5950 = vld [vmem:[%s7 + $0x5c] sm:$0xf]
      %v5951 = vld [vmem:[%s7 + $0x60] sm:$0xf]
      %v5952 = vld [vmem:[%s7 + $0x64] sm:$0xf]
      %v5953 = vld [vmem:[%s7 + $0x68] sm:$0xf]
      %v5954 = vld [vmem:[%s7 + $0x6c] sm:$0xf]
      %v5955 = vld [vmem:[%s7 + $0x70] sm:$0xf]
      %v5956 = vld [vmem:[%s7 + $0x74] sm:$0xf]
      %v5957 = vld [vmem:[%s7 + $0x78] sm:$0xf]
      %v5958 = vld [vmem:[%s7 + $0x7c] sm:$0xf]
      %v5959 = vld [vmem:[%s7 + $0x80] sm:$0xf]
      %v5960 = vld [vmem:[%s7 + $0x84] sm:$0xf]
      %v5961 = vld [vmem:[%s7 + $0x88] sm:$0xf]
      %v5962 = vld [vmem:[%s7 + $0x8c] sm:$0xf]
      %v5963 = vld [vmem:[%s7 + $0x90] sm:$0xf]
      %v5964 = vld [vmem:[%s7 + $0x94] sm:$0xf]
      %v5965 = vld [vmem:[%s7 + $0x98] sm:$0xf]
      %v5966 = vld [vmem:[%s7 + $0x9c] sm:$0xf]
      %v5967 = vld [vmem:[%s7 + $0xa0] sm:$0xf]
      %v5968 = vld [vmem:[%s7 + $0xa4] sm:$0xf]
      %v5969 = vld [vmem:[%s7 + $0xa8] sm:$0xf]
      %v5970 = vld [vmem:[%s7 + $0xac] sm:$0xf]
      %v5971 = vld [vmem:[%s7 + $0xb0] sm:$0xf]
      %v5972 = vld [vmem:[%s7 + $0xb4] sm:$0xf]
      %v5973 = vld [vmem:[%s7 + $0xb8] sm:$0xf]
      %v5974 = vld [vmem:[%s7 + $0xbc] sm:$0xf]
      %v5975 = vld [vmem:[%s7 + $0xc0] sm:$0xf]
      %v5976 = vld [vmem:[%s7 + $0xc4] sm:$0xf]
      %v5977 = vld [vmem:[%s7 + $0xc8] sm:$0xf]
      %v5978 = vld [vmem:[%s7 + $0xcc] sm:$0xf]
      %v5979 = vld [vmem:[%s7 + $0xd0] sm:$0xf]
      %v5980 = vld [vmem:[%s7 + $0xd4] sm:$0xf]
      %v5981 = vld [vmem:[%s7 + $0xd8] sm:$0xf]
      %v5982 = vld [vmem:[%s7 + $0xdc] sm:$0xf]
      %v5983 = vld [vmem:[%s7 + $0xe0] sm:$0xf]
      %v5984 = vld [vmem:[%s7 + $0xe4] sm:$0xf]
      %v5985 = vld [vmem:[%s7 + $0xe8] sm:$0xf]
      %v5986 = vld [vmem:[%s7 + $0xec] sm:$0xf]
      %v5987 = vld [vmem:[%s7 + $0xf0] sm:$0xf]
      %v5988 = vld [vmem:[%s7 + $0xf4] sm:$0xf]
      %v5989 = vld [vmem:[%s7 + $0xf8] sm:$0xf]
      %v5990 = vld [vmem:[%s7 + $0xfc] sm:$0xf]
      %v5991 = vld [vmem:[%s7 + $0x100] sm:$0xf]
      %v5992 = vld [vmem:[%s7 + $0x104] sm:$0xf]
      %v5993 = vld [vmem:[%s7 + $0x108] sm:$0xf]
      %v5994 = vld [vmem:[%s7 + $0x10c] sm:$0xf]
      %v5995 = vld [vmem:[%s7 + $0x110] sm:$0xf]
      %v5996 = vld [vmem:[%s7 + $0x114] sm:$0xf]
      %v5997 = vld [vmem:[%s7 + $0x118] sm:$0xf]
      %v5998 = vld [vmem:[%s7 + $0x11c] sm:$0xf]
      %v5999 = vld [vmem:[%s7 + $0x120] sm:$0xf]
      %v6000 = vld [vmem:[%s7 + $0x124] sm:$0xf]
      %v6001 = vld [vmem:[%s7 + $0x128] sm:$0xf]
      %v6002 = vld [vmem:[%s7 + $0x12c] sm:$0xf]
      %v6003 = vld [vmem:[%s7 + $0x130] sm:$0xf]
      %v6004 = vld [vmem:[%s7 + $0x134] sm:$0xf]
      %v6005 = vld [vmem:[%s7 + $0x138] sm:$0xf]
      %v6006 = vld [vmem:[%s7 + $0x13c] sm:$0xf]
      %v6007 = vld [vmem:[%s7 + $0x140] sm:$0xf]
      %v6008 = vld [vmem:[%s7 + $0x144] sm:$0xf]
      %v6009 = vld [vmem:[%s7 + $0x148] sm:$0xf]
      %v6010 = vld [vmem:[%s7 + $0x14c] sm:$0xf]
      %v6011 = vld [vmem:[%s7 + $0x150] sm:$0xf]
      %v6012 = vld [vmem:[%s7 + $0x154] sm:$0xf]
      %v6013 = vld [vmem:[%s7 + $0x158] sm:$0xf]
      %v6014 = vld [vmem:[%s7 + $0x15c] sm:$0xf]
      %v6015 = vld [vmem:[%s7 + $0x160] sm:$0xf]
      %v6016 = vld [vmem:[%s7 + $0x164] sm:$0xf]
      %v6017 = vld [vmem:[%s7 + $0x168] sm:$0xf]
      %v6018 = vld [vmem:[%s7 + $0x16c] sm:$0xf]
      %v6019 = vld [vmem:[%s7 + $0x170] sm:$0xf]
      %v6020 = vld [vmem:[%s7 + $0x174] sm:$0xf]
      %v6021 = vld [vmem:[%s7 + $0x178] sm:$0xf]
      %v6022 = vld [vmem:[%s7 + $0x17c] sm:$0xf]
      %v6023 = vld [vmem:[%s7 + $0x180] sm:$0xf]
      %v6024 = vld [vmem:[%s7 + $0x184] sm:$0xf]
      %v6025 = vld [vmem:[%s7 + $0x188] sm:$0xf]
      %v6026 = vld [vmem:[%s7 + $0x18c] sm:$0xf]
      %v6027 = vld [vmem:[%s7 + $0x190] sm:$0xf]
      %v6028 = vld [vmem:[%s7 + $0x194] sm:$0xf]
      %v6029 = vld [vmem:[%s7 + $0x198] sm:$0xf]
      %v6030 = vld [vmem:[%s7 + $0x19c] sm:$0xf]
      %v6031 = vld [vmem:[%s7 + $0x1a0] sm:$0xf]
      %v6032 = vld [vmem:[%s7 + $0x1a4] sm:$0xf]
      %v6033 = vld [vmem:[%s7 + $0x1a8] sm:$0xf]
      %v6034 = vld [vmem:[%s7 + $0x1ac] sm:$0xf]
      %v6035 = vld [vmem:[%s7 + $0x1b0] sm:$0xf]
      %v6036 = vld [vmem:[%s7 + $0x1b4] sm:$0xf]
      %v6037 = vld [vmem:[%s7 + $0x1b8] sm:$0xf]
      %v6038 = vld [vmem:[%s7 + $0x1bc] sm:$0xf]
      %v6039 = vld [vmem:[%s7 + $0x1c0] sm:$0xf]
      %v6040 = vld [vmem:[%s7 + $0x1c4] sm:$0xf]
      %v6041 = vld [vmem:[%s7 + $0x1c8] sm:$0xf]
      %v6042 = vld [vmem:[%s7 + $0x1cc] sm:$0xf]
      %v6043 = vld [vmem:[%s7 + $0x1d0] sm:$0xf]
      %v6044 = vld [vmem:[%s7 + $0x1d4] sm:$0xf]
      %v6045 = vld [vmem:[%s7 + $0x1d8] sm:$0xf]
      %v6046 = vld [vmem:[%s7 + $0x1dc] sm:$0xf]
      %v6047 = vld [vmem:[%s7 + $0x1e0] sm:$0xf]
      %v6048 = vld [vmem:[%s7 + $0x1e4] sm:$0xf]
      %v6049 = vld [vmem:[%s7 + $0x1e8] sm:$0xf]
      %v6050 = vld [vmem:[%s7 + $0x1ec] sm:$0xf]
      %v6051 = vld [vmem:[%s7 + $0x1f0] sm:$0xf]
      %v6052 = vld [vmem:[%s7 + $0x1f4] sm:$0xf]
      %v6053 = vld [vmem:[%s7 + $0x1f8] sm:$0xf]
      %v6054 = vld [vmem:[%s7 + $0x1fc] sm:$0xf]
      %v6055 = vld [vmem:[%s7 + $0x200] sm:$0xf]
      %v6056 = vld [vmem:[%s7 + $0x204] sm:$0xf]
      %v6057 = vld [vmem:[%s7 + $0x208] sm:$0xf]
      %v6058 = vld [vmem:[%s7 + $0x20c] sm:$0xf]
      %v6059 = vld [vmem:[%s7 + $0x210] sm:$0xf]
      %v6060 = vld [vmem:[%s7 + $0x214] sm:$0xf]
      %v6061 = vld [vmem:[%s7 + $0x218] sm:$0xf]
      %v6062 = vld [vmem:[%s7 + $0x21c] sm:$0xf]
      %v6063 = vld [vmem:[%s7 + $0x220] sm:$0xf]
      %v6064 = vld [vmem:[%s7 + $0x224] sm:$0xf]
      %v6065 = vld [vmem:[%s7 + $0x228] sm:$0xf]
      %v6066 = vld [vmem:[%s7 + $0x22c] sm:$0xf]
      %v6067 = vld [vmem:[%s7 + $0x230] sm:$0xf]
      %v6068 = vld [vmem:[%s7 + $0x234] sm:$0xf]
      %v6069 = vld [vmem:[%s7 + $0x238] sm:$0xf]
      %v6070 = vld [vmem:[%s7 + $0x23c] sm:$0xf]
      %v6071 = vld [vmem:[%s8] sm:$0x1]
      %v6073 = vperm.slane %v6071, 0
      %v6219 = vunpack.c.l.b16 %v5927
      %v6220 = vunpack.c.l.b16 %v5928
      %v6221 = vunpack.c.l.b16 %v5929
      %v6222 = vunpack.c.l.b16 %v5930
      %v6223 = vunpack.c.l.b16 %v5931
      %v6224 = vunpack.c.l.b16 %v5932
      %v6225 = vunpack.c.l.b16 %v5933
      %v6226 = vunpack.c.l.b16 %v5934
      %v6227 = vunpack.c.l.b16 %v5935
      %v6228 = vunpack.c.l.b16 %v5936
      %v6229 = vunpack.c.l.b16 %v5937
      %v6230 = vunpack.c.l.b16 %v5938
      %v6231 = vunpack.c.l.b16 %v5939
      %v6232 = vunpack.c.l.b16 %v5940
      %v6233 = vunpack.c.l.b16 %v5941
      %v6234 = vunpack.c.l.b16 %v5942
      %v6235 = vunpack.c.l.b16 %v5943
      %v6236 = vunpack.c.l.b16 %v5944
      %v6237 = vunpack.c.l.b16 %v5945
      %v6238 = vunpack.c.l.b16 %v5946
      %v6239 = vunpack.c.l.b16 %v5947
      %v6240 = vunpack.c.l.b16 %v5948
      %v6241 = vunpack.c.l.b16 %v5949
      %v6242 = vunpack.c.l.b16 %v5950
      %v6243 = vunpack.c.l.b16 %v5951
      %v6244 = vunpack.c.l.b16 %v5952
      %v6245 = vunpack.c.l.b16 %v5953
      %v6246 = vunpack.c.l.b16 %v5954
      %v6247 = vunpack.c.l.b16 %v5955
      %v6248 = vunpack.c.l.b16 %v5956
      %v6249 = vunpack.c.l.b16 %v5957
      %v6250 = vunpack.c.l.b16 %v5958
      %v6251 = vunpack.c.l.b16 %v5959
      %v6252 = vunpack.c.l.b16 %v5960
      %v6253 = vunpack.c.l.b16 %v5961
      %v6254 = vunpack.c.l.b16 %v5962
      %v6255 = vunpack.c.l.b16 %v5963
      %v6256 = vunpack.c.l.b16 %v5964
      %v6257 = vunpack.c.l.b16 %v5965
      %v6258 = vunpack.c.l.b16 %v5966
      %v6259 = vunpack.c.l.b16 %v5967
      %v6260 = vunpack.c.l.b16 %v5968
      %v6261 = vunpack.c.l.b16 %v5969
      %v6262 = vunpack.c.l.b16 %v5970
      %v6263 = vunpack.c.l.b16 %v5971
      %v6264 = vunpack.c.l.b16 %v5972
      %v6265 = vunpack.c.l.b16 %v5973
      %v6266 = vunpack.c.l.b16 %v5974
      %v6267 = vunpack.c.l.b16 %v5975
      %v6268 = vunpack.c.l.b16 %v5976
      %v6269 = vunpack.c.l.b16 %v5977
      %v6270 = vunpack.c.l.b16 %v5978
      %v6271 = vunpack.c.l.b16 %v5979
      %v6272 = vunpack.c.l.b16 %v5980
      %v6273 = vunpack.c.l.b16 %v5981
      %v6274 = vunpack.c.l.b16 %v5982
      %v6275 = vunpack.c.l.b16 %v5983
      %v6276 = vunpack.c.l.b16 %v5984
      %v6277 = vunpack.c.l.b16 %v5985
      %v6278 = vunpack.c.l.b16 %v5986
      %v6279 = vunpack.c.l.b16 %v5987
      %v6280 = vunpack.c.l.b16 %v5988
      %v6281 = vunpack.c.l.b16 %v5989
      %v6282 = vunpack.c.l.b16 %v5990
      %v6283 = vunpack.c.l.b16 %v5991
      %v6284 = vunpack.c.l.b16 %v5992
      %v6285 = vunpack.c.l.b16 %v5993
      %v6286 = vunpack.c.l.b16 %v5994
      %v6287 = vunpack.c.l.b16 %v5995
      %v6288 = vunpack.c.l.b16 %v5996
      %v6289 = vunpack.c.l.b16 %v5997
      %v6290 = vunpack.c.l.b16 %v5998
      %v6291 = vunpack.c.l.b16 %v5999
      %v6292 = vunpack.c.l.b16 %v6000
      %v6293 = vunpack.c.l.b16 %v6001
      %v6294 = vunpack.c.l.b16 %v6002
      %v6295 = vunpack.c.l.b16 %v6003
      %v6296 = vunpack.c.l.b16 %v6004
      %v6297 = vunpack.c.l.b16 %v6005
      %v6298 = vunpack.c.l.b16 %v6006
      %v6299 = vunpack.c.l.b16 %v6007
      %v6300 = vunpack.c.l.b16 %v6008
      %v6301 = vunpack.c.l.b16 %v6009
      %v6302 = vunpack.c.l.b16 %v6010
      %v6303 = vunpack.c.l.b16 %v6011
      %v6304 = vunpack.c.l.b16 %v6012
      %v6305 = vunpack.c.l.b16 %v6013
      %v6306 = vunpack.c.l.b16 %v6014
      %v6307 = vunpack.c.l.b16 %v6015
      %v6308 = vunpack.c.l.b16 %v6016
      %v6309 = vunpack.c.l.b16 %v6017
      %v6310 = vunpack.c.l.b16 %v6018
      %v6311 = vunpack.c.l.b16 %v6019
      %v6312 = vunpack.c.l.b16 %v6020
      %v6313 = vunpack.c.l.b16 %v6021
      %v6314 = vunpack.c.l.b16 %v6022
      %v6315 = vunpack.c.l.b16 %v6023
      %v6316 = vunpack.c.l.b16 %v6024
      %v6317 = vunpack.c.l.b16 %v6025
      %v6318 = vunpack.c.l.b16 %v6026
      %v6319 = vunpack.c.l.b16 %v6027
      %v6320 = vunpack.c.l.b16 %v6028
      %v6321 = vunpack.c.l.b16 %v6029
      %v6322 = vunpack.c.l.b16 %v6030
      %v6323 = vunpack.c.l.b16 %v6031
      %v6324 = vunpack.c.l.b16 %v6032
      %v6325 = vunpack.c.l.b16 %v6033
      %v6326 = vunpack.c.l.b16 %v6034
      %v6327 = vunpack.c.l.b16 %v6035
      %v6328 = vunpack.c.l.b16 %v6036
      %v6329 = vunpack.c.l.b16 %v6037
      %v6330 = vunpack.c.l.b16 %v6038
      %v6331 = vunpack.c.l.b16 %v6039
      %v6332 = vunpack.c.l.b16 %v6040
      %v6333 = vunpack.c.l.b16 %v6041
      %v6334 = vunpack.c.l.b16 %v6042
      %v6335 = vunpack.c.l.b16 %v6043
      %v6336 = vunpack.c.l.b16 %v6044
      %v6337 = vunpack.c.l.b16 %v6045
      %v6338 = vunpack.c.l.b16 %v6046
      %v6339 = vunpack.c.l.b16 %v6047
      %v6340 = vunpack.c.l.b16 %v6048
      %v6341 = vunpack.c.l.b16 %v6049
      %v6342 = vunpack.c.l.b16 %v6050
      %v6343 = vunpack.c.l.b16 %v6051
      %v6344 = vunpack.c.l.b16 %v6052
      %v6345 = vunpack.c.l.b16 %v6053
      %v6346 = vunpack.c.l.b16 %v6054
      %v6347 = vunpack.c.l.b16 %v6055
      %v6348 = vunpack.c.l.b16 %v6056
      %v6349 = vunpack.c.l.b16 %v6057
      %v6350 = vunpack.c.l.b16 %v6058
      %v6351 = vunpack.c.l.b16 %v6059
      %v6352 = vunpack.c.l.b16 %v6060
      %v6353 = vunpack.c.l.b16 %v6061
      %v6354 = vunpack.c.l.b16 %v6062
      %v6355 = vunpack.c.l.b16 %v6063
      %v6356 = vunpack.c.l.b16 %v6064
      %v6357 = vunpack.c.l.b16 %v6065
      %v6358 = vunpack.c.l.b16 %v6066
      %v6359 = vunpack.c.l.b16 %v6067
      %v6360 = vunpack.c.l.b16 %v6068
      %v6361 = vunpack.c.l.b16 %v6069
      %v6362 = vunpack.c.l.b16 %v6070
      %v6363 = vpack.c.b16 %v6220, %v6219
      %v6364 = vpack.c.b16 %v6222, %v6221
      %v6365 = vpack.c.b16 %v6224, %v6223
      %v6366 = vpack.c.b16 %v6226, %v6225
      %v6367 = vpack.c.b16 %v6228, %v6227
      %v6368 = vpack.c.b16 %v6230, %v6229
      %v6369 = vpack.c.b16 %v6232, %v6231
      %v6370 = vpack.c.b16 %v6234, %v6233
      %v6371 = vpack.c.b16 %v6236, %v6235
      %v6372 = vpack.c.b16 %v6238, %v6237
      %v6373 = vpack.c.b16 %v6240, %v6239
      %v6374 = vpack.c.b16 %v6242, %v6241
      %v6375 = vpack.c.b16 %v6244, %v6243
      %v6376 = vpack.c.b16 %v6246, %v6245
      %v6377 = vpack.c.b16 %v6248, %v6247
      %v6378 = vpack.c.b16 %v6250, %v6249
      %v6379 = vpack.c.b16 %v6252, %v6251
      %v6380 = vpack.c.b16 %v6254, %v6253
      %v6381 = vpack.c.b16 %v6256, %v6255
      %v6382 = vpack.c.b16 %v6258, %v6257
      %v6383 = vpack.c.b16 %v6260, %v6259
      %v6384 = vpack.c.b16 %v6262, %v6261
      %v6385 = vpack.c.b16 %v6264, %v6263
      %v6386 = vpack.c.b16 %v6266, %v6265
      %v6387 = vpack.c.b16 %v6268, %v6267
      %v6388 = vpack.c.b16 %v6270, %v6269
      %v6389 = vpack.c.b16 %v6272, %v6271
      %v6390 = vpack.c.b16 %v6274, %v6273
      %v6391 = vpack.c.b16 %v6276, %v6275
      %v6392 = vpack.c.b16 %v6278, %v6277
      %v6393 = vpack.c.b16 %v6280, %v6279
      %v6394 = vpack.c.b16 %v6282, %v6281
      %v6395 = vpack.c.b16 %v6284, %v6283
      %v6396 = vpack.c.b16 %v6286, %v6285
      %v6397 = vpack.c.b16 %v6288, %v6287
      %v6398 = vpack.c.b16 %v6290, %v6289
      %v6399 = vpack.c.b16 %v6292, %v6291
      %v6400 = vpack.c.b16 %v6294, %v6293
      %v6401 = vpack.c.b16 %v6296, %v6295
      %v6402 = vpack.c.b16 %v6298, %v6297
      %v6403 = vpack.c.b16 %v6300, %v6299
      %v6404 = vpack.c.b16 %v6302, %v6301
      %v6405 = vpack.c.b16 %v6304, %v6303
      %v6406 = vpack.c.b16 %v6306, %v6305
      %v6407 = vpack.c.b16 %v6308, %v6307
      %v6408 = vpack.c.b16 %v6310, %v6309
      %v6409 = vpack.c.b16 %v6312, %v6311
      %v6410 = vpack.c.b16 %v6314, %v6313
      %v6411 = vpack.c.b16 %v6316, %v6315
      %v6412 = vpack.c.b16 %v6318, %v6317
      %v6413 = vpack.c.b16 %v6320, %v6319
      %v6414 = vpack.c.b16 %v6322, %v6321
      %v6415 = vpack.c.b16 %v6324, %v6323
      %v6416 = vpack.c.b16 %v6326, %v6325
      %v6417 = vpack.c.b16 %v6328, %v6327
      %v6418 = vpack.c.b16 %v6330, %v6329
      %v6419 = vpack.c.b16 %v6332, %v6331
      %v6420 = vpack.c.b16 %v6334, %v6333
      %v6421 = vpack.c.b16 %v6336, %v6335
      %v6422 = vpack.c.b16 %v6338, %v6337
      %v6423 = vpack.c.b16 %v6340, %v6339
      %v6424 = vpack.c.b16 %v6342, %v6341
      %v6425 = vpack.c.b16 %v6344, %v6343
      %v6426 = vpack.c.b16 %v6346, %v6345
      %v6427 = vpack.c.b16 %v6348, %v6347
      %v6428 = vpack.c.b16 %v6350, %v6349
      %v6429 = vpack.c.b16 %v6352, %v6351
      %v6430 = vpack.c.b16 %v6354, %v6353
      %v6431 = vpack.c.b16 %v6356, %v6355
      %v6432 = vpack.c.b16 %v6358, %v6357
      %v6433 = vpack.c.b16 %v6360, %v6359
      %v6434 = vpack.c.b16 %v6362, %v6361
      %6507 = vmatpush.bf16.msra.mxu0 %v6370
      %6508 = vmatpush.bf16.msra.mxu0 %v6369
      %6509 = vmatpush.bf16.msra.mxu0 %v6368
      %6510 = vmatpush.bf16.msra.mxu0 %v6367
      %6511 = vmatpush.bf16.msra.mxu0 %v6366
      %6512 = vmatpush.bf16.msra.mxu0 %v6365
      %6513 = vmatpush.bf16.msra.mxu0 %v6364
      %6514 = vmatpush.bf16.msra.mxu0 %v6363
      %6515 = vmatmul.bf16.gmra.mxu0 %v5900
      %v6516 = vpop.f32.mrf.mxu0
      %v6517 = vadd.f32 %v6073, %v6516
      %v6518 = vpop.f32.mrf.mxu0
      %v6519 = vadd.f32 %v6073, %v6518
      %6520 = vmatmul.bf16.gmra.mxu0 %v5906
      %v6521 = vpop.f32.mrf.mxu0
      %v6522 = vadd.f32 %v6073, %v6521
      %v6523 = vpop.f32.mrf.mxu0
      %v6524 = vadd.f32 %v6073, %v6523
      %6525 = vmatmul.bf16.gmra.mxu0 %v5912
      %v6526 = vpop.f32.mrf.mxu0
      %v6527 = vadd.f32 %v6073, %v6526
      %v6528 = vpop.f32.mrf.mxu0
      %v6529 = vadd.f32 %v6073, %v6528
      %6530 = vmatmul.bf16.gmra.mxu0 %v5918
      %v6531 = vpop.f32.mrf.mxu0
      %v6532 = vadd.f32 %v6073, %v6531
      %v6533 = vpop.f32.mrf.mxu0
      %v6534 = vadd.f32 %v6073, %v6533
      %6535 = vdwg.mxu0
      %6536 = vmatpush.bf16.msra.mxu0 %v6378
      %6537 = vmatpush.bf16.msra.mxu0 %v6377
      %6538 = vmatpush.bf16.msra.mxu0 %v6376
      %6539 = vmatpush.bf16.msra.mxu0 %v6375
      %6540 = vmatpush.bf16.msra.mxu0 %v6374
      %6541 = vmatpush.bf16.msra.mxu0 %v6373
      %6542 = vmatpush.bf16.msra.mxu0 %v6372
      %6543 = vmatpush.bf16.msra.mxu0 %v6371
      %6544 = vmatmul.bf16.gmra.mxu0 %v5901
      %v6545 = vpop.f32.mrf.mxu0
      %v6546 = vadd.f32 %v6517, %v6545
      %v6547 = vpop.f32.mrf.mxu0
      %v6548 = vadd.f32 %v6519, %v6547
      %6549 = vmatmul.bf16.gmra.mxu0 %v5907
      %v6550 = vpop.f32.mrf.mxu0
      %v6551 = vadd.f32 %v6522, %v6550
      %v6552 = vpop.f32.mrf.mxu0
      %v6553 = vadd.f32 %v6524, %v6552
      %6554 = vmatmul.bf16.gmra.mxu0 %v5913
      %v6555 = vpop.f32.mrf.mxu0
      %v6556 = vadd.f32 %v6527, %v6555
      %v6557 = vpop.f32.mrf.mxu0
      %v6558 = vadd.f32 %v6529, %v6557
      %6559 = vmatmul.bf16.gmra.mxu0 %v5919
      %v6560 = vpop.f32.mrf.mxu0
      %v6561 = vadd.f32 %v6532, %v6560
      %v6562 = vpop.f32.mrf.mxu0
      %v6563 = vadd.f32 %v6534, %v6562
      %6564 = vdwg.mxu0
      %6565 = vmatpush.bf16.msra.mxu0 %v6386
      %6566 = vmatpush.bf16.msra.mxu0 %v6385
      %6567 = vmatpush.bf16.msra.mxu0 %v6384
      %6568 = vmatpush.bf16.msra.mxu0 %v6383
      %6569 = vmatpush.bf16.msra.mxu0 %v6382
      %6570 = vmatpush.bf16.msra.mxu0 %v6381
      %6571 = vmatpush.bf16.msra.mxu0 %v6380
      %6572 = vmatpush.bf16.msra.mxu0 %v6379
      %6573 = vmatmul.bf16.gmra.mxu0 %v5902
      %v6574 = vpop.f32.mrf.mxu0
      %v6575 = vadd.f32 %v6546, %v6574
      %v6576 = vpop.f32.mrf.mxu0
      %v6577 = vadd.f32 %v6548, %v6576
      %6578 = vmatmul.bf16.gmra.mxu0 %v5908
      %v6579 = vpop.f32.mrf.mxu0
      %v6580 = vadd.f32 %v6551, %v6579
      %v6581 = vpop.f32.mrf.mxu0
      %v6582 = vadd.f32 %v6553, %v6581
      %6583 = vmatmul.bf16.gmra.mxu0 %v5914
      %v6584 = vpop.f32.mrf.mxu0
      %v6585 = vadd.f32 %v6556, %v6584
      %v6586 = vpop.f32.mrf.mxu0
      %v6587 = vadd.f32 %v6558, %v6586
      %6588 = vmatmul.bf16.gmra.mxu0 %v5920
      %v6589 = vpop.f32.mrf.mxu0
      %v6590 = vadd.f32 %v6561, %v6589
      %v6591 = vpop.f32.mrf.mxu0
      %v6592 = vadd.f32 %v6563, %v6591
      %6593 = vdwg.mxu0
      %6594 = vmatpush.bf16.msra.mxu0 %v6394
      %6595 = vmatpush.bf16.msra.mxu0 %v6393
      %6596 = vmatpush.bf16.msra.mxu0 %v6392
      %6597 = vmatpush.bf16.msra.mxu0 %v6391
      %6598 = vmatpush.bf16.msra.mxu0 %v6390
      %6599 = vmatpush.bf16.msra.mxu0 %v6389
      %6600 = vmatpush.bf16.msra.mxu0 %v6388
      %6601 = vmatpush.bf16.msra.mxu0 %v6387
      %6602 = vmatmul.bf16.gmra.mxu0 %v5903
      %v6603 = vpop.f32.mrf.mxu0
      %v6604 = vadd.f32 %v6575, %v6603
      %v6605 = vpop.f32.mrf.mxu0
      %v6606 = vadd.f32 %v6577, %v6605
      %6607 = vmatmul.bf16.gmra.mxu0 %v5909
      %v6608 = vpop.f32.mrf.mxu0
      %v6609 = vadd.f32 %v6580, %v6608
      %v6610 = vpop.f32.mrf.mxu0
      %v6611 = vadd.f32 %v6582, %v6610
      %6612 = vmatmul.bf16.gmra.mxu0 %v5915
      %v6613 = vpop.f32.mrf.mxu0
      %v6614 = vadd.f32 %v6585, %v6613
      %v6615 = vpop.f32.mrf.mxu0
      %v6616 = vadd.f32 %v6587, %v6615
      %6617 = vmatmul.bf16.gmra.mxu0 %v5921
      %v6618 = vpop.f32.mrf.mxu0
      %v6619 = vadd.f32 %v6590, %v6618
      %v6620 = vpop.f32.mrf.mxu0
      %v6621 = vadd.f32 %v6592, %v6620
      %6622 = vdwg.mxu0
      %6623 = vmatpush.bf16.msra.mxu0 %v6402
      %6624 = vmatpush.bf16.msra.mxu0 %v6401
      %6625 = vmatpush.bf16.msra.mxu0 %v6400
      %6626 = vmatpush.bf16.msra.mxu0 %v6399
      %6627 = vmatpush.bf16.msra.mxu0 %v6398
      %6628 = vmatpush.bf16.msra.mxu0 %v6397
      %6629 = vmatpush.bf16.msra.mxu0 %v6396
      %6630 = vmatpush.bf16.msra.mxu0 %v6395
      %6631 = vmatmul.bf16.gmra.mxu0 %v5904
      %v6632 = vpop.f32.mrf.mxu0
      %v6633 = vadd.f32 %v6604, %v6632
      %v6634 = vpop.f32.mrf.mxu0
      %v6635 = vadd.f32 %v6606, %v6634
      %6636 = vmatmul.bf16.gmra.mxu0 %v5910
      %v6637 = vpop.f32.mrf.mxu0
      %v6638 = vadd.f32 %v6609, %v6637
      %v6639 = vpop.f32.mrf.mxu0
      %v6640 = vadd.f32 %v6611, %v6639
      %6641 = vmatmul.bf16.gmra.mxu0 %v5916
      %v6642 = vpop.f32.mrf.mxu0
      %v6643 = vadd.f32 %v6614, %v6642
      %v6644 = vpop.f32.mrf.mxu0
      %v6645 = vadd.f32 %v6616, %v6644
      %6646 = vmatmul.bf16.gmra.mxu0 %v5922
      %v6647 = vpop.f32.mrf.mxu0
      %v6648 = vadd.f32 %v6619, %v6647
      %v6649 = vpop.f32.mrf.mxu0
      %v6650 = vadd.f32 %v6621, %v6649
      %6651 = vdwg.mxu0
      %6652 = vmatpush.bf16.msra.mxu0 %v6410
      %6653 = vmatpush.bf16.msra.mxu0 %v6409
      %6654 = vmatpush.bf16.msra.mxu0 %v6408
      %6655 = vmatpush.bf16.msra.mxu0 %v6407
      %6656 = vmatpush.bf16.msra.mxu0 %v6406
      %6657 = vmatpush.bf16.msra.mxu0 %v6405
      %6658 = vmatpush.bf16.msra.mxu0 %v6404
      %6659 = vmatpush.bf16.msra.mxu0 %v6403
      %6660 = vmatmul.bf16.gmra.mxu0 %v5905
      %v6661 = vpop.f32.mrf.mxu0
      %v6662 = vadd.f32 %v6633, %v6661
      %v6663 = vpop.f32.mrf.mxu0
      %v6664 = vadd.f32 %v6635, %v6663
      %6665 = vmatmul.bf16.gmra.mxu0 %v5911
      %v6666 = vpop.f32.mrf.mxu0
      %v6667 = vadd.f32 %v6638, %v6666
      %v6668 = vpop.f32.mrf.mxu0
      %v6669 = vadd.f32 %v6640, %v6668
      %6670 = vmatmul.bf16.gmra.mxu0 %v5917
      %v6671 = vpop.f32.mrf.mxu0
      %v6672 = vadd.f32 %v6643, %v6671
      %v6673 = vpop.f32.mrf.mxu0
      %v6674 = vadd.f32 %v6645, %v6673
      %6675 = vmatmul.bf16.gmra.mxu0 %v5923
      %v6676 = vpop.f32.mrf.mxu0
      %v6677 = vadd.f32 %v6648, %v6676
      %v6678 = vpop.f32.mrf.mxu0
      %v6679 = vadd.f32 %v6650, %v6678
      %6680 = vdwg.mxu0
      %6681 = vmatpush.bf16.msra.mxu0 %v6418
      %6682 = vmatpush.bf16.msra.mxu0 %v6417
      %6683 = vmatpush.bf16.msra.mxu0 %v6416
      %6684 = vmatpush.bf16.msra.mxu0 %v6415
      %6685 = vmatpush.bf16.msra.mxu0 %v6414
      %6686 = vmatpush.bf16.msra.mxu0 %v6413
      %6687 = vmatpush.bf16.msra.mxu0 %v6412
      %6688 = vmatpush.bf16.msra.mxu0 %v6411
      %6689 = vmatmul.bf16.gmra.mxu0 %v5906
      %v6690 = vpop.f32.mrf.mxu0
      %v6691 = vadd.f32 %v6662, %v6690
      %v6692 = vpop.f32.mrf.mxu0
      %v6693 = vadd.f32 %v6664, %v6692
      %6694 = vmatmul.bf16.gmra.mxu0 %v5912
      %v6695 = vpop.f32.mrf.mxu0
      %v6696 = vadd.f32 %v6667, %v6695
      %v6697 = vpop.f32.mrf.mxu0
      %v6698 = vadd.f32 %v6669, %v6697
      %6699 = vmatmul.bf16.gmra.mxu0 %v5918
      %v6700 = vpop.f32.mrf.mxu0
      %v6701 = vadd.f32 %v6672, %v6700
      %v6702 = vpop.f32.mrf.mxu0
      %v6703 = vadd.f32 %v6674, %v6702
      %6704 = vmatmul.bf16.gmra.mxu0 %v5924
      %v6705 = vpop.f32.mrf.mxu0
      %v6706 = vadd.f32 %v6677, %v6705
      %v6707 = vpop.f32.mrf.mxu0
      %v6708 = vadd.f32 %v6679, %v6707
      %6709 = vdwg.mxu0
      %6710 = vmatpush.bf16.msra.mxu0 %v6426
      %6711 = vmatpush.bf16.msra.mxu0 %v6425
      %6712 = vmatpush.bf16.msra.mxu0 %v6424
      %6713 = vmatpush.bf16.msra.mxu0 %v6423
      %6714 = vmatpush.bf16.msra.mxu0 %v6422
      %6715 = vmatpush.bf16.msra.mxu0 %v6421
      %6716 = vmatpush.bf16.msra.mxu0 %v6420
      %6717 = vmatpush.bf16.msra.mxu0 %v6419
      %6718 = vmatmul.bf16.gmra.mxu0 %v5907
      %v6719 = vpop.f32.mrf.mxu0
      %v6720 = vadd.f32 %v6691, %v6719
      %v6721 = vpop.f32.mrf.mxu0
      %v6722 = vadd.f32 %v6693, %v6721
      %6723 = vmatmul.bf16.gmra.mxu0 %v5913
      %v6724 = vpop.f32.mrf.mxu0
      %v6725 = vadd.f32 %v6696, %v6724
      %v6726 = vpop.f32.mrf.mxu0
      %v6727 = vadd.f32 %v6698, %v6726
      %6728 = vmatmul.bf16.gmra.mxu0 %v5919
      %v6729 = vpop.f32.mrf.mxu0
      %v6730 = vadd.f32 %v6701, %v6729
      %v6731 = vpop.f32.mrf.mxu0
      %v6732 = vadd.f32 %v6703, %v6731
      %6733 = vmatmul.bf16.gmra.mxu0 %v5925
      %v6734 = vpop.f32.mrf.mxu0
      %v6735 = vadd.f32 %v6706, %v6734
      %v6736 = vpop.f32.mrf.mxu0
      %v6737 = vadd.f32 %v6708, %v6736
      %6738 = vdwg.mxu0
      %6739 = vmatpush.bf16.msra.mxu0 %v6434
      %6740 = vmatpush.bf16.msra.mxu0 %v6433
      %6741 = vmatpush.bf16.msra.mxu0 %v6432
      %6742 = vmatpush.bf16.msra.mxu0 %v6431
      %6743 = vmatpush.bf16.msra.mxu0 %v6430
      %6744 = vmatpush.bf16.msra.mxu0 %v6429
      %6745 = vmatpush.bf16.msra.mxu0 %v6428
      %6746 = vmatpush.bf16.msra.mxu0 %v6427
      %6747 = vmatmul.bf16.gmra.mxu0 %v5908
      %v6748 = vpop.f32.mrf.mxu0
      %v6749 = vadd.f32 %v6720, %v6748
      %v6750 = vpop.f32.mrf.mxu0
      %v6751 = vadd.f32 %v6722, %v6750
      %6752 = vmatmul.bf16.gmra.mxu0 %v5914
      %v6753 = vpop.f32.mrf.mxu0
      %v6754 = vadd.f32 %v6725, %v6753
      %v6755 = vpop.f32.mrf.mxu0
      %v6756 = vadd.f32 %v6727, %v6755
      %6757 = vmatmul.bf16.gmra.mxu0 %v5920
      %v6758 = vpop.f32.mrf.mxu0
      %v6759 = vadd.f32 %v6730, %v6758
      %v6760 = vpop.f32.mrf.mxu0
      %v6761 = vadd.f32 %v6732, %v6760
      %6762 = vmatmul.bf16.gmra.mxu0 %v5926
      %v6763 = vpop.f32.mrf.mxu0
      %v6764 = vadd.f32 %v6735, %v6763
      %v6765 = vpop.f32.mrf.mxu0
      %v6766 = vadd.f32 %v6737, %v6765
      %6767 = vdwg.mxu0
      %v6768 = vmax.f32 %v6749, 0.0
      %v6769 = vmax.f32 %v6751, 0.0
      %v6770 = vmax.f32 %v6754, 0.0
      %v6771 = vmax.f32 %v6756, 0.0
      %v6772 = vmax.f32 %v6759, 0.0
      %v6773 = vmax.f32 %v6761, 0.0
      %v6774 = vmax.f32 %v6764, 0.0
      %v6775 = vmax.f32 %v6766, 0.0
      %v6784 = vrot.slane %v6768, 1
      %v6785 = vrot.slane %v6768, 2
      %v6786 = vrot.slane %v6768, 3
      %v6787 = vrot.slane %v6768, 4
      %v6788 = vrot.slane %v6768, 5
      %v6789 = vrot.slane %v6768, 6
      %v6790 = vrot.slane %v6768, 7
      %v6791 = vrot.slane %v6769, 1
      %v6792 = vrot.slane %v6769, 2
      %v6793 = vrot.slane %v6769, 3
      %v6794 = vrot.slane %v6769, 4
      %v6795 = vrot.slane %v6769, 5
      %v6796 = vrot.slane %v6769, 6
      %v6797 = vrot.slane %v6769, 7
      %v6798 = vrot.slane %v6770, 1
      %v6799 = vrot.slane %v6770, 2
      %v6800 = vrot.slane %v6770, 3
      %v6801 = vrot.slane %v6770, 4
      %v6802 = vrot.slane %v6770, 5
      %v6803 = vrot.slane %v6770, 6
      %v6804 = vrot.slane %v6770, 7
      %v6805 = vrot.slane %v6771, 1
      %v6806 = vrot.slane %v6771, 2
      %v6807 = vrot.slane %v6771, 3
      %v6808 = vrot.slane %v6771, 4
      %v6809 = vrot.slane %v6771, 5
      %v6810 = vrot.slane %v6771, 6
      %v6811 = vrot.slane %v6771, 7
      %v6812 = vrot.slane %v6772, 1
      %v6813 = vrot.slane %v6772, 2
      %v6814 = vrot.slane %v6772, 3
      %v6815 = vrot.slane %v6772, 4
      %v6816 = vrot.slane %v6772, 5
      %v6817 = vrot.slane %v6772, 6
      %v6818 = vrot.slane %v6772, 7
      %v6819 = vrot.slane %v6773, 1
      %v6820 = vrot.slane %v6773, 2
      %v6821 = vrot.slane %v6773, 3
      %v6822 = vrot.slane %v6773, 4
      %v6823 = vrot.slane %v6773, 5
      %v6824 = vrot.slane %v6773, 6
      %v6825 = vrot.slane %v6773, 7
      %v6826 = vrot.slane %v6774, 1
      %v6827 = vrot.slane %v6774, 2
      %v6828 = vrot.slane %v6774, 3
      %v6829 = vrot.slane %v6774, 4
      %v6830 = vrot.slane %v6774, 5
      %v6831 = vrot.slane %v6774, 6
      %v6832 = vrot.slane %v6774, 7
      %v6833 = vrot.slane %v6775, 1
      %v6834 = vrot.slane %v6775, 2
      %v6835 = vrot.slane %v6775, 3
      %v6836 = vrot.slane %v6775, 4
      %v6837 = vrot.slane %v6775, 5
      %v6838 = vrot.slane %v6775, 6
      %v6839 = vrot.slane %v6775, 7
      %v6840 = vperm.slane %v6768, 0
      %v6841 = vperm.slane %v6784, 0
      %v6842 = vperm.slane %v6785, 0
      %v6843 = vperm.slane %v6786, 0
      %v6844 = vperm.slane %v6787, 0
      %v6845 = vperm.slane %v6788, 0
      %v6846 = vperm.slane %v6789, 0
      %v6847 = vperm.slane %v6790, 0
      %v6848 = vperm.slane %v6769, 0
      %v6849 = vperm.slane %v6791, 0
      %v6850 = vperm.slane %v6792, 0
      %v6851 = vperm.slane %v6793, 0
      %v6852 = vperm.slane %v6794, 0
      %v6853 = vperm.slane %v6795, 0
      %v6854 = vperm.slane %v6796, 0
      %v6855 = vperm.slane %v6797, 0
      %v6856 = vperm.slane %v6770, 0
      %v6857 = vperm.slane %v6798, 0
      %v6858 = vperm.slane %v6799, 0
      %v6859 = vperm.slane %v6800, 0
      %v6860 = vperm.slane %v6801, 0
      %v6861 = vperm.slane %v6802, 0
      %v6862 = vperm.slane %v6803, 0
      %v6863 = vperm.slane %v6804, 0
      %v6864 = vperm.slane %v6771, 0
      %v6865 = vperm.slane %v6805, 0
      %v6866 = vperm.slane %v6806, 0
      %v6867 = vperm.slane %v6807, 0
      %v6868 = vperm.slane %v6808, 0
      %v6869 = vperm.slane %v6809, 0
      %v6870 = vperm.slane %v6810, 0
      %v6871 = vperm.slane %v6811, 0
      %v6872 = vperm.slane %v6772, 0
      %v6873 = vperm.slane %v6812, 0
      %v6874 = vperm.slane %v6813, 0
      %v6875 = vperm.slane %v6814, 0
      %v6876 = vperm.slane %v6815, 0
      %v6877 = vperm.slane %v6816, 0
      %v6878 = vperm.slane %v6817, 0
      %v6879 = vperm.slane %v6818, 0
      %v6880 = vperm.slane %v6773, 0
      %v6881 = vperm.slane %v6819, 0
      %v6882 = vperm.slane %v6820, 0
      %v6883 = vperm.slane %v6821, 0
      %v6884 = vperm.slane %v6822, 0
      %v6885 = vperm.slane %v6823, 0
      %v6886 = vperm.slane %v6824, 0
      %v6887 = vperm.slane %v6825, 0
      %v6888 = vperm.slane %v6774, 0
      %v6889 = vperm.slane %v6826, 0
      %v6890 = vperm.slane %v6827, 0
      %v6891 = vperm.slane %v6828, 0
      %v6892 = vperm.slane %v6829, 0
      %v6893 = vperm.slane %v6830, 0
      %v6894 = vperm.slane %v6831, 0
      %v6895 = vperm.slane %v6832, 0
      %v6896 = vperm.slane %v6775, 0
      %v6897 = vperm.slane %v6833, 0
      %v6898 = vperm.slane %v6834, 0
      %v6899 = vperm.slane %v6835, 0
      %v6900 = vperm.slane %v6836, 0
      %v6901 = vperm.slane %v6837, 0
      %v6902 = vperm.slane %v6838, 0
      %v6903 = vperm.slane %v6839, 0
      %vm6904 = vcmask 1040384
      %vm6905 = vmor %vm6904, %vm3664
      %vm6906 = vmor %vm6905, %vm3668
      %vm6907 = vmor %vm6906, %vm3672
      %v6908 = vrot.slane %v6840, 7
      %v6909 = vrot.slane %v6908, 2
      %v6910 = vrot.slane %v6841, 7
      %v6911 = vsel %vm6907, %v6909, %v6910
      %v6912 = vrot.slane %v6910, 2
      %v6913 = vrot.slane %v6842, 7
      %v6914 = vsel %vm6907, %v6912, %v6913
      %v6915 = vrot.slane %v6913, 2
      %v6916 = vrot.slane %v6843, 7
      %v6917 = vsel %vm6907, %v6915, %v6916
      %v6918 = vrot.slane %v6916, 2
      %v6919 = vrot.slane %v6844, 7
      %v6920 = vsel %vm6907, %v6918, %v6919
      %v6921 = vrot.slane %v6919, 2
      %v6922 = vrot.slane %v6845, 7
      %v6923 = vsel %vm6907, %v6921, %v6922
      %v6924 = vrot.slane %v6922, 2
      %v6925 = vrot.slane %v6846, 7
      %v6926 = vsel %vm6907, %v6924, %v6925
      %v6927 = vrot.slane %v6925, 2
      %v6928 = vrot.slane %v6847, 7
      %v6929 = vsel %vm6907, %v6927, %v6928
      %v6930 = vrot.slane %v6848, 7
      %v6931 = vrot.slane %v6930, 2
      %v6932 = vrot.slane %v6849, 7
      %v6933 = vsel %vm6907, %v6931, %v6932
      %v6934 = vrot.slane %v6932, 2
      %v6935 = vrot.slane %v6850, 7
      %v6936 = vsel %vm6907, %v6934, %v6935
      %v6937 = vrot.slane %v6935, 2
      %v6938 = vrot.slane %v6851, 7
      %v6939 = vsel %vm6907, %v6937, %v6938
      %v6940 = vrot.slane %v6938, 2
      %v6941 = vrot.slane %v6852, 7
      %v6942 = vsel %vm6907, %v6940, %v6941
      %v6943 = vrot.slane %v6941, 2
      %v6944 = vrot.slane %v6853, 7
      %v6945 = vsel %vm6907, %v6943, %v6944
      %v6946 = vrot.slane %v6944, 2
      %v6947 = vrot.slane %v6854, 7
      %v6948 = vsel %vm6907, %v6946, %v6947
      %v6949 = vrot.slane %v6947, 2
      %v6950 = vrot.slane %v6855, 7
      %v6951 = vsel %vm6907, %v6949, %v6950
      %v6952 = vrot.slane %v6856, 7
      %v6953 = vrot.slane %v6952, 2
      %v6954 = vrot.slane %v6857, 7
      %v6955 = vsel %vm6907, %v6953, %v6954
      %v6956 = vrot.slane %v6954, 2
      %v6957 = vrot.slane %v6858, 7
      %v6958 = vsel %vm6907, %v6956, %v6957
      %v6959 = vrot.slane %v6957, 2
      %v6960 = vrot.slane %v6859, 7
      %v6961 = vsel %vm6907, %v6959, %v6960
      %v6962 = vrot.slane %v6960, 2
      %v6963 = vrot.slane %v6860, 7
      %v6964 = vsel %vm6907, %v6962, %v6963
      %v6965 = vrot.slane %v6963, 2
      %v6966 = vrot.slane %v6861, 7
      %v6967 = vsel %vm6907, %v6965, %v6966
      %v6968 = vrot.slane %v6966, 2
      %v6969 = vrot.slane %v6862, 7
      %v6970 = vsel %vm6907, %v6968, %v6969
      %v6971 = vrot.slane %v6969, 2
      %v6972 = vrot.slane %v6863, 7
      %v6973 = vsel %vm6907, %v6971, %v6972
      %v6974 = vrot.slane %v6864, 7
      %v6975 = vrot.slane %v6974, 2
      %v6976 = vrot.slane %v6865, 7
      %v6977 = vsel %vm6907, %v6975, %v6976
      %v6978 = vrot.slane %v6976, 2
      %v6979 = vrot.slane %v6866, 7
      %v6980 = vsel %vm6907, %v6978, %v6979
      %v6981 = vrot.slane %v6979, 2
      %v6982 = vrot.slane %v6867, 7
      %v6983 = vsel %vm6907, %v6981, %v6982
      %v6984 = vrot.slane %v6982, 2
      %v6985 = vrot.slane %v6868, 7
      %v6986 = vsel %vm6907, %v6984, %v6985
      %v6987 = vrot.slane %v6985, 2
      %v6988 = vrot.slane %v6869, 7
      %v6989 = vsel %vm6907, %v6987, %v6988
      %v6990 = vrot.slane %v6988, 2
      %v6991 = vrot.slane %v6870, 7
      %v6992 = vsel %vm6907, %v6990, %v6991
      %v6993 = vrot.slane %v6991, 2
      %v6994 = vrot.slane %v6871, 7
      %v6995 = vsel %vm6907, %v6993, %v6994
      %v6996 = vrot.slane %v6872, 7
      %v6997 = vrot.slane %v6996, 2
      %v6998 = vrot.slane %v6873, 7
      %v6999 = vsel %vm6907, %v6997, %v6998
      %v7000 = vrot.slane %v6998, 2
      %v7001 = vrot.slane %v6874, 7
      %v7002 = vsel %vm6907, %v7000, %v7001
      %v7003 = vrot.slane %v7001, 2
      %v7004 = vrot.slane %v6875, 7
      %v7005 = vsel %vm6907, %v7003, %v7004
      %v7006 = vrot.slane %v7004, 2
      %v7007 = vrot.slane %v6876, 7
      %v7008 = vsel %vm6907, %v7006, %v7007
      %v7009 = vrot.slane %v7007, 2
      %v7010 = vrot.slane %v6877, 7
      %v7011 = vsel %vm6907, %v7009, %v7010
      %v7012 = vrot.slane %v7010, 2
      %v7013 = vrot.slane %v6878, 7
      %v7014 = vsel %vm6907, %v7012, %v7013
      %v7015 = vrot.slane %v7013, 2
      %v7016 = vrot.slane %v6879, 7
      %v7017 = vsel %vm6907, %v7015, %v7016
      %v7018 = vrot.slane %v6880, 7
      %v7019 = vrot.slane %v7018, 2
      %v7020 = vrot.slane %v6881, 7
      %v7021 = vsel %vm6907, %v7019, %v7020
      %v7022 = vrot.slane %v7020, 2
      %v7023 = vrot.slane %v6882, 7
      %v7024 = vsel %vm6907, %v7022, %v7023
      %v7025 = vrot.slane %v7023, 2
      %v7026 = vrot.slane %v6883, 7
      %v7027 = vsel %vm6907, %v7025, %v7026
      %v7028 = vrot.slane %v7026, 2
      %v7029 = vrot.slane %v6884, 7
      %v7030 = vsel %vm6907, %v7028, %v7029
      %v7031 = vrot.slane %v7029, 2
      %v7032 = vrot.slane %v6885, 7
      %v7033 = vsel %vm6907, %v7031, %v7032
      %v7034 = vrot.slane %v7032, 2
      %v7035 = vrot.slane %v6886, 7
      %v7036 = vsel %vm6907, %v7034, %v7035
      %v7037 = vrot.slane %v7035, 2
      %v7038 = vrot.slane %v6887, 7
      %v7039 = vsel %vm6907, %v7037, %v7038
      %v7040 = vrot.slane %v6888, 7
      %v7041 = vrot.slane %v7040, 2
      %v7042 = vrot.slane %v6889, 7
      %v7043 = vsel %vm6907, %v7041, %v7042
      %v7044 = vrot.slane %v7042, 2
      %v7045 = vrot.slane %v6890, 7
      %v7046 = vsel %vm6907, %v7044, %v7045
      %v7047 = vrot.slane %v7045, 2
      %v7048 = vrot.slane %v6891, 7
      %v7049 = vsel %vm6907, %v7047, %v7048
      %v7050 = vrot.slane %v7048, 2
      %v7051 = vrot.slane %v6892, 7
      %v7052 = vsel %vm6907, %v7050, %v7051
      %v7053 = vrot.slane %v7051, 2
      %v7054 = vrot.slane %v6893, 7
      %v7055 = vsel %vm6907, %v7053, %v7054
      %v7056 = vrot.slane %v7054, 2
      %v7057 = vrot.slane %v6894, 7
      %v7058 = vsel %vm6907, %v7056, %v7057
      %v7059 = vrot.slane %v7057, 2
      %v7060 = vrot.slane %v6895, 7
      %v7061 = vsel %vm6907, %v7059, %v7060
      %v7062 = vrot.slane %v6896, 7
      %v7063 = vrot.slane %v7062, 2
      %v7064 = vrot.slane %v6897, 7
      %v7065 = vsel %vm6907, %v7063, %v7064
      %v7066 = vrot.slane %v7064, 2
      %v7067 = vrot.slane %v6898, 7
      %v7068 = vsel %vm6907, %v7066, %v7067
      %v7069 = vrot.slane %v7067, 2
      %v7070 = vrot.slane %v6899, 7
      %v7071 = vsel %vm6907, %v7069, %v7070
      %v7072 = vrot.slane %v7070, 2
      %v7073 = vrot.slane %v6900, 7
      %v7074 = vsel %vm6907, %v7072, %v7073
      %v7075 = vrot.slane %v7073, 2
      %v7076 = vrot.slane %v6901, 7
      %v7077 = vsel %vm6907, %v7075, %v7076
      %v7078 = vrot.slane %v7076, 2
      %v7079 = vrot.slane %v6902, 7
      %v7080 = vsel %vm6907, %v7078, %v7079
      %v7081 = vrot.slane %v7079, 2
      %v7082 = vrot.slane %v6903, 7
      %v7083 = vsel %vm6907, %v7081, %v7082
      %7084 = vst [vmem:[#allocation1] ss:$4 sm:$0xff] %v6840
      %s7085 = scalar_lea.vmem [#allocation1], 1
      %7086 = vst [vmem:[%s7085] ss:$4 sm:$0xff] %v6841
      %s7087 = scalar_lea.vmem [#allocation1], 2
      %7088 = vst [vmem:[%s7087] ss:$4 sm:$0xff] %v6842
      %s7089 = scalar_lea.vmem [#allocation1], 3
      %7090 = vst [vmem:[%s7089] ss:$4 sm:$0xff] %v6843
      %s7091 = scalar_lea.vmem [#allocation1], 32
      %7092 = vst [vmem:[%s7091] ss:$4 sm:$0xff] %v6844
      %s7093 = scalar_lea.vmem [#allocation1], 33
      %7094 = vst [vmem:[%s7093] ss:$4 sm:$0xff] %v6845
      %s7095 = scalar_lea.vmem [#allocation1], 34
      %7096 = vst [vmem:[%s7095] ss:$4 sm:$0xff] %v6846
      %s7097 = scalar_lea.vmem [#allocation1], 35
      %7098 = vst [vmem:[%s7097] ss:$4 sm:$0xff] %v6840
      %v7099 = vld.sshfl [vmem:[#allocation1] sm:$0xff pattern:$0x73625140]
      %v7100 = vld.sshfl [vmem:[#allocation1 + $0x20] sm:$0xff pattern:$0x73625140]
      %7101 = vst [vmem:[#allocation1] ss:$4 sm:$0xff] %v6841
      %7102 = vst [vmem:[%s7085] ss:$4 sm:$0xff] %v6842
      %7103 = vst [vmem:[%s7087] ss:$4 sm:$0xff] %v6843
      %7104 = vst [vmem:[%s7089] ss:$4 sm:$0xff] %v6844
      %7105 = vst [vmem:[%s7091] ss:$4 sm:$0xff] %v6845
      %7106 = vst [vmem:[%s7093] ss:$4 sm:$0xff] %v6846
      %7107 = vst [vmem:[%s7095] ss:$4 sm:$0xff] %v6848
      %7108 = vst [vmem:[%s7097] ss:$4 sm:$0xff] %v6849
      %v7109 = vld.sshfl [vmem:[#allocation1] sm:$0xff pattern:$0x73625140]
      %v7110 = vld.sshfl [vmem:[#allocation1 + $0x20] sm:$0xff pattern:$0x73625140]
      %7111 = vst [vmem:[#allocation1] ss:$4 sm:$0xff] %v6850
      %7112 = vst [vmem:[%s7085] ss:$4 sm:$0xff] %v6851
      %7113 = vst [vmem:[%s7087] ss:$4 sm:$0xff] %v6852
      %7114 = vst [vmem:[%s7089] ss:$4 sm:$0xff] %v6853
      %7115 = vst [vmem:[%s7091] ss:$4 sm:$0xff] %v6854
      %7116 = vst [vmem:[%s7093] ss:$4 sm:$0xff] %v6848
      %7117 = vst [vmem:[%s7095] ss:$4 sm:$0xff] %v6849
      %7118 = vst [vmem:[%s7097] ss:$4 sm:$0xff] %v6850
      %v7119 = vld.sshfl [vmem:[#allocation1] sm:$0xff pattern:$0x73625140]
      %v7120 = vld.sshfl [vmem:[#allocation1 + $0x20] sm:$0xff pattern:$0x73625140]
      %7121 = vst [vmem:[#allocation1] ss:$4 sm:$0xff] %v6851
      %7122 = vst [vmem:[%s7085] ss:$4 sm:$0xff] %v6852
      %7123 = vst [vmem:[%s7087] ss:$4 sm:$0xff] %v6853
      %7124 = vst [vmem:[%s7089] ss:$4 sm:$0xff] %v6854
      %7125 = vst [vmem:[%s7091] ss:$4 sm:$0xff] %v6856
      %7126 = vst [vmem:[%s7093] ss:$4 sm:$0xff] %v6857
      %7127 = vst [vmem:[%s7095] ss:$4 sm:$0xff] %v6858
      %7128 = vst [vmem:[%s7097] ss:$4 sm:$0xff] %v6859
      %v7129 = vld.sshfl [vmem:[#allocation1] sm:$0xff pattern:$0x73625140]
      %v7130 = vld.sshfl [vmem:[#allocation1 + $0x20] sm:$0xff pattern:$0x73625140]
      %7131 = vst [vmem:[#allocation1] ss:$4 sm:$0xff] %v6860
      %7132 = vst [vmem:[%s7085] ss:$4 sm:$0xff] %v6861
      %7133 = vst [vmem:[%s7087] ss:$4 sm:$0xff] %v6862
      %7134 = vst [vmem:[%s7089] ss:$4 sm:$0xff] %v6856
      %7135 = vst [vmem:[%s7091] ss:$4 sm:$0xff] %v6857
      %7136 = vst [vmem:[%s7093] ss:$4 sm:$0xff] %v6858
      %7137 = vst [vmem:[%s7095] ss:$4 sm:$0xff] %v6859
      %7138 = vst [vmem:[%s7097] ss:$4 sm:$0xff] %v6860
      %v7139 = vld.sshfl [vmem:[#allocation1] sm:$0xff pattern:$0x73625140]
      %v7140 = vld.sshfl [vmem:[#allocation1 + $0x20] sm:$0xff pattern:$0x73625140]
      %7141 = vst [vmem:[#allocation1] ss:$4 sm:$0xff] %v6861
      %7142 = vst [vmem:[%s7085] ss:$4 sm:$0xff] %v6862
      %7143 = vst [vmem:[%s7087] ss:$4 sm:$0xff] %v6864
      %7144 = vst [vmem:[%s7089] ss:$4 sm:$0xff] %v6865
      %7145 = vst [vmem:[%s7091] ss:$4 sm:$0xff] %v6866
      %7146 = vst [vmem:[%s7093] ss:$4 sm:$0xff] %v6867
      %7147 = vst [vmem:[%s7095] ss:$4 sm:$0xff] %v6868
      %7148 = vst [vmem:[%s7097] ss:$4 sm:$0xff] %v6869
      %v7149 = vld.sshfl [vmem:[#allocation1] sm:$0xff pattern:$0x73625140]
      %v7150 = vld.sshfl [vmem:[#allocation1 + $0x20] sm:$0xff pattern:$0x73625140]
      %7151 = vst [vmem:[#allocation1] ss:$4 sm:$0xff] %v6870
      %7152 = vst [vmem:[%s7085] ss:$4 sm:$0xff] %v6864
      %7153 = vst [vmem:[%s7087] ss:$4 sm:$0xff] %v6865
      %7154 = vst [vmem:[%s7089] ss:$4 sm:$0xff] %v6866
      %7155 = vst [vmem:[%s7091] ss:$4 sm:$0xff] %v6867
      %7156 = vst [vmem:[%s7093] ss:$4 sm:$0xff] %v6868
      %7157 = vst [vmem:[%s7095] ss:$4 sm:$0xff] %v6869
      %7158 = vst [vmem:[%s7097] ss:$4 sm:$0xff] %v6870
      %v7159 = vld.sshfl [vmem:[#allocation1] sm:$0xff pattern:$0x73625140]
      %v7160 = vld.sshfl [vmem:[#allocation1 + $0x20] sm:$0xff pattern:$0x73625140]
      %7161 = vst [vmem:[#allocation1] ss:$4 sm:$0xff] %v6872
      %7162 = vst [vmem:[%s7085] ss:$4 sm:$0xff] %v6873
      %7163 = vst [vmem:[%s7087] ss:$4 sm:$0xff] %v6874
      %7164 = vst [vmem:[%s7089] ss:$4 sm:$0xff] %v6875
      %7165 = vst [vmem:[%s7091] ss:$4 sm:$0xff] %v6876
      %7166 = vst [vmem:[%s7093] ss:$4 sm:$0xff] %v6877
      %7167 = vst [vmem:[%s7095] ss:$4 sm:$0xff] %v6878
      %7168 = vst [vmem:[%s7097] ss:$4 sm:$0xff] %v6872
      %v7169 = vld.sshfl [vmem:[#allocation1] sm:$0xff pattern:$0x73625140]
      %v7170 = vld.sshfl [vmem:[#allocation1 + $0x20] sm:$0xff pattern:$0x73625140]
      %7171 = vst [vmem:[#allocation1] ss:$4 sm:$0xff] %v6873
      %7172 = vst [vmem:[%s7085] ss:$4 sm:$0xff] %v6874
      %7173 = vst [vmem:[%s7087] ss:$4 sm:$0xff] %v6875
      %7174 = vst [vmem:[%s7089] ss:$4 sm:$0xff] %v6876
      %7175 = vst [vmem:[%s7091] ss:$4 sm:$0xff] %v6877
      %7176 = vst [vmem:[%s7093] ss:$4 sm:$0xff] %v6878
      %7177 = vst [vmem:[%s7095] ss:$4 sm:$0xff] %v6880
      %7178 = vst [vmem:[%s7097] ss:$4 sm:$0xff] %v6881
      %v7179 = vld.sshfl [vmem:[#allocation1] sm:$0xff pattern:$0x73625140]
      %v7180 = vld.sshfl [vmem:[#allocation1 + $0x20] sm:$0xff pattern:$0x73625140]
      %7181 = vst [vmem:[#allocation1] ss:$4 sm:$0xff] %v6882
      %7182 = vst [vmem:[%s7085] ss:$4 sm:$0xff] %v6883
      %7183 = vst [vmem:[%s7087] ss:$4 sm:$0xff] %v6884
      %7184 = vst [vmem:[%s7089] ss:$4 sm:$0xff] %v6885
      %7185 = vst [vmem:[%s7091] ss:$4 sm:$0xff] %v6886
      %7186 = vst [vmem:[%s7093] ss:$4 sm:$0xff] %v6880
      %7187 = vst [vmem:[%s7095] ss:$4 sm:$0xff] %v6881
      %7188 = vst [vmem:[%s7097] ss:$4 sm:$0xff] %v6882
      %v7189 = vld.sshfl [vmem:[#allocation1] sm:$0xff pattern:$0x73625140]
      %v7190 = vld.sshfl [vmem:[#allocation1 + $0x20] sm:$0xff pattern:$0x73625140]
      %7191 = vst [vmem:[#allocation1] ss:$4 sm:$0xff] %v6883
      %7192 = vst [vmem:[%s7085] ss:$4 sm:$0xff] %v6884
      %7193 = vst [vmem:[%s7087] ss:$4 sm:$0xff] %v6885
      %7194 = vst [vmem:[%s7089] ss:$4 sm:$0xff] %v6886
      %7195 = vst [vmem:[%s7091] ss:$4 sm:$0xff] %v6888
      %7196 = vst [vmem:[%s7093] ss:$4 sm:$0xff] %v6889
      %7197 = vst [vmem:[%s7095] ss:$4 sm:$0xff] %v6890
      %7198 = vst [vmem:[%s7097] ss:$4 sm:$0xff] %v6891
      %v7199 = vld.sshfl [vmem:[#allocation1] sm:$0xff pattern:$0x73625140]
      %v7200 = vld.sshfl [vmem:[#allocation1 + $0x20] sm:$0xff pattern:$0x73625140]
      %7201 = vst [vmem:[#allocation1] ss:$4 sm:$0xff] %v6892
      %7202 = vst [vmem:[%s7085] ss:$4 sm:$0xff] %v6893
      %7203 = vst [vmem:[%s7087] ss:$4 sm:$0xff] %v6894
      %7204 = vst [vmem:[%s7089] ss:$4 sm:$0xff] %v6888
      %7205 = vst [vmem:[%s7091] ss:$4 sm:$0xff] %v6889
      %7206 = vst [vmem:[%s7093] ss:$4 sm:$0xff] %v6890
      %7207 = vst [vmem:[%s7095] ss:$4 sm:$0xff] %v6891
      %7208 = vst [vmem:[%s7097] ss:$4 sm:$0xff] %v6892
      %v7209 = vld.sshfl [vmem:[#allocation1] sm:$0xff pattern:$0x73625140]
      %v7210 = vld.sshfl [vmem:[#allocation1 + $0x20] sm:$0xff pattern:$0x73625140]
      %7211 = vst [vmem:[#allocation1] ss:$4 sm:$0xff] %v6893
      %7212 = vst [vmem:[%s7085] ss:$4 sm:$0xff] %v6894
      %v7213 = vld.sshfl [vmem:[#allocation1] sm:$0xff pattern:$0x73625140]
      %7239 = vst [vmem:[#allocation1] ss:$4 sm:$0xff] %v6911
      %s7240 = scalar_lea.vmem [#allocation1], 1
      %7241 = vst [vmem:[%s7240] ss:$4 sm:$0xff] %v6914
      %s7242 = scalar_lea.vmem [#allocation1], 2
      %7243 = vst [vmem:[%s7242] ss:$4 sm:$0xff] %v6917
      %s7244 = scalar_lea.vmem [#allocation1], 3
      %7245 = vst [vmem:[%s7244] ss:$4 sm:$0xff] %v6920
      %s7246 = scalar_lea.vmem [#allocation1], 32
      %7247 = vst [vmem:[%s7246] ss:$4 sm:$0xff] %v6923
      %s7248 = scalar_lea.vmem [#allocation1], 33
      %7249 = vst [vmem:[%s7248] ss:$4 sm:$0xff] %v6926
      %s7250 = scalar_lea.vmem [#allocation1], 34
      %7251 = vst [vmem:[%s7250] ss:$4 sm:$0xff] %v6929
      %s7252 = scalar_lea.vmem [#allocation1], 35
      %7253 = vst [vmem:[%s7252] ss:$4 sm:$0xff] %v6911
      %v7254 = vld.sshfl [vmem:[#allocation1] sm:$0xff pattern:$0x73625140]
      %v7255 = vld.sshfl [vmem:[#allocation1 + $0x20] sm:$0xff pattern:$0x73625140]
      %7256 = vst [vmem:[#allocation1] ss:$4 sm:$0xff] %v6914
      %7257 = vst [vmem:[%s7240] ss:$4 sm:$0xff] %v6917
      %7258 = vst [vmem:[%s7242] ss:$4 sm:$0xff] %v6920
      %7259 = vst [vmem:[%s7244] ss:$4 sm:$0xff] %v6923
      %7260 = vst [vmem:[%s7246] ss:$4 sm:$0xff] %v6926
      %7261 = vst [vmem:[%s7248] ss:$4 sm:$0xff] %v6929
      %7262 = vst [vmem:[%s7250] ss:$4 sm:$0xff] %v6933
      %7263 = vst [vmem:[%s7252] ss:$4 sm:$0xff] %v6936
      %v7264 = vld.sshfl [vmem:[#allocation1] sm:$0xff pattern:$0x73625140]
      %v7265 = vld.sshfl [vmem:[#allocation1 + $0x20] sm:$0xff pattern:$0x73625140]
      %7266 = vst [vmem:[#allocation1] ss:$4 sm:$0xff] %v6939
      %7267 = vst [vmem:[%s7240] ss:$4 sm:$0xff] %v6942
      %7268 = vst [vmem:[%s7242] ss:$4 sm:$0xff] %v6945
      %7269 = vst [vmem:[%s7244] ss:$4 sm:$0xff] %v6948
      %7270 = vst [vmem:[%s7246] ss:$4 sm:$0xff] %v6951
      %7271 = vst [vmem:[%s7248] ss:$4 sm:$0xff] %v6933
      %7272 = vst [vmem:[%s7250] ss:$4 sm:$0xff] %v6936
      %7273 = vst [vmem:[%s7252] ss:$4 sm:$0xff] %v6939
      %v7274 = vld.sshfl [vmem:[#allocation1] sm:$0xff pattern:$0x73625140]
      %v7275 = vld.sshfl [vmem:[#allocation1 + $0x20] sm:$0xff pattern:$0x73625140]
      %7276 = vst [vmem:[#allocation1] ss:$4 sm:$0xff] %v6942
      %7277 = vst [vmem:[%s7240] ss:$4 sm:$0xff] %v6945
      %7278 = vst [vmem:[%s7242] ss:$4 sm:$0xff] %v6948
      %7279 = vst [vmem:[%s7244] ss:$4 sm:$0xff] %v6951
      %7280 = vst [vmem:[%s7246] ss:$4 sm:$0xff] %v6955
      %7281 = vst [vmem:[%s7248] ss:$4 sm:$0xff] %v6958
      %7282 = vst [vmem:[%s7250] ss:$4 sm:$0xff] %v6961
      %7283 = vst [vmem:[%s7252] ss:$4 sm:$0xff] %v6964
      %v7284 = vld.sshfl [vmem:[#allocation1] sm:$0xff pattern:$0x73625140]
      %v7285 = vld.sshfl [vmem:[#allocation1 + $0x20] sm:$0xff pattern:$0x73625140]
      %7286 = vst [vmem:[#allocation1] ss:$4 sm:$0xff] %v6967
      %7287 = vst [vmem:[%s7240] ss:$4 sm:$0xff] %v6970
      %7288 = vst [vmem:[%s7242] ss:$4 sm:$0xff] %v6973
      %7289 = vst [vmem:[%s7244] ss:$4 sm:$0xff] %v6955
      %7290 = vst [vmem:[%s7246] ss:$4 sm:$0xff] %v6958
      %7291 = vst [vmem:[%s7248] ss:$4 sm:$0xff] %v6961
      %7292 = vst [vmem:[%s7250] ss:$4 sm:$0xff] %v6964
      %7293 = vst [vmem:[%s7252] ss:$4 sm:$0xff] %v6967
      %v7294 = vld.sshfl [vmem:[#allocation1] sm:$0xff pattern:$0x73625140]
      %v7295 = vld.sshfl [vmem:[#allocation1 + $0x20] sm:$0xff pattern:$0x73625140]
      %7296 = vst [vmem:[#allocation1] ss:$4 sm:$0xff] %v6970
      %7297 = vst [vmem:[%s7240] ss:$4 sm:$0xff] %v6973
      %7298 = vst [vmem:[%s7242] ss:$4 sm:$0xff] %v6977
      %7299 = vst [vmem:[%s7244] ss:$4 sm:$0xff] %v6980
      %7300 = vst [vmem:[%s7246] ss:$4 sm:$0xff] %v6983
      %7301 = vst [vmem:[%s7248] ss:$4 sm:$0xff] %v6986
      %7302 = vst [vmem:[%s7250] ss:$4 sm:$0xff] %v6989
      %7303 = vst [vmem:[%s7252] ss:$4 sm:$0xff] %v6992
      %v7304 = vld.sshfl [vmem:[#allocation1] sm:$0xff pattern:$0x73625140]
      %v7305 = vld.sshfl [vmem:[#allocation1 + $0x20] sm:$0xff pattern:$0x73625140]
      %7306 = vst [vmem:[#allocation1] ss:$4 sm:$0xff] %v6995
      %7307 = vst [vmem:[%s7240] ss:$4 sm:$0xff] %v6977
      %7308 = vst [vmem:[%s7242] ss:$4 sm:$0xff] %v6980
      %7309 = vst [vmem:[%s7244] ss:$4 sm:$0xff] %v6983
      %7310 = vst [vmem:[%s7246] ss:$4 sm:$0xff] %v6986
      %7311 = vst [vmem:[%s7248] ss:$4 sm:$0xff] %v6989
      %7312 = vst [vmem:[%s7250] ss:$4 sm:$0xff] %v6992
      %7313 = vst [vmem:[%s7252] ss:$4 sm:$0xff] %v6995
      %v7314 = vld.sshfl [vmem:[#allocation1] sm:$0xff pattern:$0x73625140]
      %v7315 = vld.sshfl [vmem:[#allocation1 + $0x20] sm:$0xff pattern:$0x73625140]
      %7316 = vst [vmem:[#allocation1] ss:$4 sm:$0xff] %v6999
      %7317 = vst [vmem:[%s7240] ss:$4 sm:$0xff] %v7002
      %7318 = vst [vmem:[%s7242] ss:$4 sm:$0xff] %v7005
      %7319 = vst [vmem:[%s7244] ss:$4 sm:$0xff] %v7008
      %7320 = vst [vmem:[%s7246] ss:$4 sm:$0xff] %v7011
      %7321 = vst [vmem:[%s7248] ss:$4 sm:$0xff] %v7014
      %7322 = vst [vmem:[%s7250] ss:$4 sm:$0xff] %v7017
      %7323 = vst [vmem:[%s7252] ss:$4 sm:$0xff] %v6999
      %v7324 = vld.sshfl [vmem:[#allocation1] sm:$0xff pattern:$0x73625140]
      %v7325 = vld.sshfl [vmem:[#allocation1 + $0x20] sm:$0xff pattern:$0x73625140]
      %7326 = vst [vmem:[#allocation1] ss:$4 sm:$0xff] %v7002
      %7327 = vst [vmem:[%s7240] ss:$4 sm:$0xff] %v7005
      %7328 = vst [vmem:[%s7242] ss:$4 sm:$0xff] %v7008
      %7329 = vst [vmem:[%s7244] ss:$4 sm:$0xff] %v7011
      %7330 = vst [vmem:[%s7246] ss:$4 sm:$0xff] %v7014
      %7331 = vst [vmem:[%s7248] ss:$4 sm:$0xff] %v7017
      %7332 = vst [vmem:[%s7250] ss:$4 sm:$0xff] %v7021
      %7333 = vst [vmem:[%s7252] ss:$4 sm:$0xff] %v7024
      %v7334 = vld.sshfl [vmem:[#allocation1] sm:$0xff pattern:$0x73625140]
      %v7335 = vld.sshfl [vmem:[#allocation1 + $0x20] sm:$0xff pattern:$0x73625140]
      %7336 = vst [vmem:[#allocation1] ss:$4 sm:$0xff] %v7027
      %7337 = vst [vmem:[%s7240] ss:$4 sm:$0xff] %v7030
      %7338 = vst [vmem:[%s7242] ss:$4 sm:$0xff] %v7033
      %7339 = vst [vmem:[%s7244] ss:$4 sm:$0xff] %v7036
      %7340 = vst [vmem:[%s7246] ss:$4 sm:$0xff] %v7039
      %7341 = vst [vmem:[%s7248] ss:$4 sm:$0xff] %v7021
      %7342 = vst [vmem:[%s7250] ss:$4 sm:$0xff] %v7024
      %7343 = vst [vmem:[%s7252] ss:$4 sm:$0xff] %v7027
      %v7344 = vld.sshfl [vmem:[#allocation1] sm:$0xff pattern:$0x73625140]
      %v7345 = vld.sshfl [vmem:[#allocation1 + $0x20] sm:$0xff pattern:$0x73625140]
      %7346 = vst [vmem:[#allocation1] ss:$4 sm:$0xff] %v7030
      %7347 = vst [vmem:[%s7240] ss:$4 sm:$0xff] %v7033
      %7348 = vst [vmem:[%s7242] ss:$4 sm:$0xff] %v7036
      %7349 = vst [vmem:[%s7244] ss:$4 sm:$0xff] %v7039
      %7350 = vst [vmem:[%s7246] ss:$4 sm:$0xff] %v7043
      %7351 = vst [vmem:[%s7248] ss:$4 sm:$0xff] %v7046
      %7352 = vst [vmem:[%s7250] ss:$4 sm:$0xff] %v7049
      %7353 = vst [vmem:[%s7252] ss:$4 sm:$0xff] %v7052
      %v7354 = vld.sshfl [vmem:[#allocation1] sm:$0xff pattern:$0x73625140]
      %v7355 = vld.sshfl [vmem:[#allocation1 + $0x20] sm:$0xff pattern:$0x73625140]
      %7356 = vst [vmem:[#allocation1] ss:$4 sm:$0xff] %v7055
      %7357 = vst [vmem:[%s7240] ss:$4 sm:$0xff] %v7058
      %7358 = vst [vmem:[%s7242] ss:$4 sm:$0xff] %v7061
      %7359 = vst [vmem:[%s7244] ss:$4 sm:$0xff] %v7043
      %7360 = vst [vmem:[%s7246] ss:$4 sm:$0xff] %v7046
      %7361 = vst [vmem:[%s7248] ss:$4 sm:$0xff] %v7049
      %7362 = vst [vmem:[%s7250] ss:$4 sm:$0xff] %v7052
      %7363 = vst [vmem:[%s7252] ss:$4 sm:$0xff] %v7055
      %v7364 = vld.sshfl [vmem:[#allocation1] sm:$0xff pattern:$0x73625140]
      %v7365 = vld.sshfl [vmem:[#allocation1 + $0x20] sm:$0xff pattern:$0x73625140]
      %7366 = vst [vmem:[#allocation1] ss:$4 sm:$0xff] %v7058
      %7367 = vst [vmem:[%s7240] ss:$4 sm:$0xff] %v7061
      %v7368 = vld.sshfl [vmem:[#allocation1] sm:$0xff pattern:$0x73625140]
      %7369 = vrot.lane.b32.xlu0 %v7254, 64
      %v7370 = vpop.permute.xlu0 %7369
      %7371 = vrot.lane.b32.xlu0 %v7255, 64
      %v7372 = vpop.permute.xlu0 %7371
      %7373 = vrot.lane.b32.xlu0 %v7264, 64
      %v7374 = vpop.permute.xlu0 %7373
      %7375 = vrot.lane.b32.xlu0 %v7265, 64
      %v7376 = vpop.permute.xlu0 %7375
      %7377 = vrot.lane.b32.xlu0 %v7274, 64
      %v7378 = vpop.permute.xlu0 %7377
      %7379 = vrot.lane.b32.xlu0 %v7275, 64
      %v7380 = vpop.permute.xlu0 %7379
      %7381 = vrot.lane.b32.xlu0 %v7284, 64
      %v7382 = vpop.permute.xlu0 %7381
      %7383 = vrot.lane.b32.xlu0 %v7285, 64
      %v7384 = vpop.permute.xlu0 %7383
      %7385 = vrot.lane.b32.xlu0 %v7294, 64
      %v7386 = vpop.permute.xlu0 %7385
      %7387 = vrot.lane.b32.xlu0 %v7295, 64
      %v7388 = vpop.permute.xlu0 %7387
      %7389 = vrot.lane.b32.xlu0 %v7304, 64
      %v7390 = vpop.permute.xlu0 %7389
      %7391 = vrot.lane.b32.xlu0 %v7305, 64
      %v7392 = vpop.permute.xlu0 %7391
      %7393 = vrot.lane.b32.xlu0 %v7314, 64
      %v7394 = vpop.permute.xlu0 %7393
      %7395 = vrot.lane.b32.xlu0 %v7315, 64
      %v7396 = vpop.permute.xlu0 %7395
      %7397 = vrot.lane.b32.xlu0 %v7324, 64
      %v7398 = vpop.permute.xlu0 %7397
      %7399 = vrot.lane.b32.xlu0 %v7325, 64
      %v7400 = vpop.permute.xlu0 %7399
      %7401 = vrot.lane.b32.xlu0 %v7334, 64
      %v7402 = vpop.permute.xlu0 %7401
      %7403 = vrot.lane.b32.xlu0 %v7335, 64
      %v7404 = vpop.permute.xlu0 %7403
      %7405 = vrot.lane.b32.xlu0 %v7344, 64
      %v7406 = vpop.permute.xlu0 %7405
      %7407 = vrot.lane.b32.xlu0 %v7345, 64
      %v7408 = vpop.permute.xlu0 %7407
      %7409 = vrot.lane.b32.xlu0 %v7354, 64
      %v7410 = vpop.permute.xlu0 %7409
      %7411 = vrot.lane.b32.xlu0 %v7355, 64
      %v7412 = vpop.permute.xlu0 %7411
      %7413 = vrot.lane.b32.xlu0 %v7364, 64
      %v7414 = vpop.permute.xlu0 %7413
      %7415 = vrot.lane.b32.xlu0 %v7365, 64
      %v7416 = vpop.permute.xlu0 %7415
      %7417 = vrot.lane.b32.xlu0 %v7368, 64
      %v7418 = vpop.permute.xlu0 %7417
      %7444 = vst [vmem:[#allocation1] ss:$4 sm:$0xff] %v6841
      %s7445 = scalar_lea.vmem [#allocation1], 1
      %7446 = vst [vmem:[%s7445] ss:$4 sm:$0xff] %v6842
      %s7447 = scalar_lea.vmem [#allocation1], 2
      %7448 = vst [vmem:[%s7447] ss:$4 sm:$0xff] %v6843
      %s7449 = scalar_lea.vmem [#allocation1], 3
      %7450 = vst [vmem:[%s7449] ss:$4 sm:$0xff] %v6844
      %s7451 = scalar_lea.vmem [#allocation1], 32
      %7452 = vst [vmem:[%s7451] ss:$4 sm:$0xff] %v6845
      %s7453 = scalar_lea.vmem [#allocation1], 33
      %7454 = vst [vmem:[%s7453] ss:$4 sm:$0xff] %v6846
      %s7455 = scalar_lea.vmem [#allocation1], 34
      %7456 = vst [vmem:[%s7455] ss:$4 sm:$0xff] %v6847
      %s7457 = scalar_lea.vmem [#allocation1], 35
      %7458 = vst [vmem:[%s7457] ss:$4 sm:$0xff] %v6841
      %v7459 = vld.sshfl [vmem:[#allocation1] sm:$0xff pattern:$0x73625140]
      %v7460 = vld.sshfl [vmem:[#allocation1 + $0x20] sm:$0xff pattern:$0x73625140]
      %7461 = vst [vmem:[#allocation1] ss:$4 sm:$0xff] %v6842
      %7462 = vst [vmem:[%s7445] ss:$4 sm:$0xff] %v6843
      %7463 = vst [vmem:[%s7447] ss:$4 sm:$0xff] %v6844
      %7464 = vst [vmem:[%s7449] ss:$4 sm:$0xff] %v6845
      %7465 = vst [vmem:[%s7451] ss:$4 sm:$0xff] %v6846
      %7466 = vst [vmem:[%s7453] ss:$4 sm:$0xff] %v6847
      %7467 = vst [vmem:[%s7455] ss:$4 sm:$0xff] %v6849
      %7468 = vst [vmem:[%s7457] ss:$4 sm:$0xff] %v6850
      %v7469 = vld.sshfl [vmem:[#allocation1] sm:$0xff pattern:$0x73625140]
      %v7470 = vld.sshfl [vmem:[#allocation1 + $0x20] sm:$0xff pattern:$0x73625140]
      %7471 = vst [vmem:[#allocation1] ss:$4 sm:$0xff] %v6851
      %7472 = vst [vmem:[%s7445] ss:$4 sm:$0xff] %v6852
      %7473 = vst [vmem:[%s7447] ss:$4 sm:$0xff] %v6853
      %7474 = vst [vmem:[%s7449] ss:$4 sm:$0xff] %v6854
      %7475 = vst [vmem:[%s7451] ss:$4 sm:$0xff] %v6855
      %7476 = vst [vmem:[%s7453] ss:$4 sm:$0xff] %v6849
      %7477 = vst [vmem:[%s7455] ss:$4 sm:$0xff] %v6850
      %7478 = vst [vmem:[%s7457] ss:$4 sm:$0xff] %v6851
      %v7479 = vld.sshfl [vmem:[#allocation1] sm:$0xff pattern:$0x73625140]
      %v7480 = vld.sshfl [vmem:[#allocation1 + $0x20] sm:$0xff pattern:$0x73625140]
      %7481 = vst [vmem:[#allocation1] ss:$4 sm:$0xff] %v6852
      %7482 = vst [vmem:[%s7445] ss:$4 sm:$0xff] %v6853
      %7483 = vst [vmem:[%s7447] ss:$4 sm:$0xff] %v6854
      %7484 = vst [vmem:[%s7449] ss:$4 sm:$0xff] %v6855
      %7485 = vst [vmem:[%s7451] ss:$4 sm:$0xff] %v6857
      %7486 = vst [vmem:[%s7453] ss:$4 sm:$0xff] %v6858
      %7487 = vst [vmem:[%s7455] ss:$4 sm:$0xff] %v6859
      %7488 = vst [vmem:[%s7457] ss:$4 sm:$0xff] %v6860
      %v7489 = vld.sshfl [vmem:[#allocation1] sm:$0xff pattern:$0x73625140]
      %v7490 = vld.sshfl [vmem:[#allocation1 + $0x20] sm:$0xff pattern:$0x73625140]
      %7491 = vst [vmem:[#allocation1] ss:$4 sm:$0xff] %v6861
      %7492 = vst [vmem:[%s7445] ss:$4 sm:$0xff] %v6862
      %7493 = vst [vmem:[%s7447] ss:$4 sm:$0xff] %v6863
      %7494 = vst [vmem:[%s7449] ss:$4 sm:$0xff] %v6857
      %7495 = vst [vmem:[%s7451] ss:$4 sm:$0xff] %v6858
      %7496 = vst [vmem:[%s7453] ss:$4 sm:$0xff] %v6859
      %7497 = vst [vmem:[%s7455] ss:$4 sm:$0xff] %v6860
      %7498 = vst [vmem:[%s7457] ss:$4 sm:$0xff] %v6861
      %v7499 = vld.sshfl [vmem:[#allocation1] sm:$0xff pattern:$0x73625140]
      %v7500 = vld.sshfl [vmem:[#allocation1 + $0x20] sm:$0xff pattern:$0x73625140]
      %7501 = vst [vmem:[#allocation1] ss:$4 sm:$0xff] %v6862
      %7502 = vst [vmem:[%s7445] ss:$4 sm:$0xff] %v6863
      %7503 = vst [vmem:[%s7447] ss:$4 sm:$0xff] %v6865
      %7504 = vst [vmem:[%s7449] ss:$4 sm:$0xff] %v6866
      %7505 = vst [vmem:[%s7451] ss:$4 sm:$0xff] %v6867
      %7506 = vst [vmem:[%s7453] ss:$4 sm:$0xff] %v6868
      %7507 = vst [vmem:[%s7455] ss:$4 sm:$0xff] %v6869
      %7508 = vst [vmem:[%s7457] ss:$4 sm:$0xff] %v6870
      %v7509 = vld.sshfl [vmem:[#allocation1] sm:$0xff pattern:$0x73625140]
      %v7510 = vld.sshfl [vmem:[#allocation1 + $0x20] sm:$0xff pattern:$0x73625140]
      %7511 = vst [vmem:[#allocation1] ss:$4 sm:$0xff] %v6871
      %7512 = vst [vmem:[%s7445] ss:$4 sm:$0xff] %v6865
      %7513 = vst [vmem:[%s7447] ss:$4 sm:$0xff] %v6866
      %7514 = vst [vmem:[%s7449] ss:$4 sm:$0xff] %v6867
      %7515 = vst [vmem:[%s7451] ss:$4 sm:$0xff] %v6868
      %7516 = vst [vmem:[%s7453] ss:$4 sm:$0xff] %v6869
      %7517 = vst [vmem:[%s7455] ss:$4 sm:$0xff] %v6870
      %7518 = vst [vmem:[%s7457] ss:$4 sm:$0xff] %v6871
      %v7519 = vld.sshfl [vmem:[#allocation1] sm:$0xff pattern:$0x73625140]
      %v7520 = vld.sshfl [vmem:[#allocation1 + $0x20] sm:$0xff pattern:$0x73625140]
      %7521 = vst [vmem:[#allocation1] ss:$4 sm:$0xff] %v6873
      %7522 = vst [vmem:[%s7445] ss:$4 sm:$0xff] %v6874
      %7523 = vst [vmem:[%s7447] ss:$4 sm:$0xff] %v6875
      %7524 = vst [vmem:[%s7449] ss:$4 sm:$0xff] %v6876
      %7525 = vst [vmem:[%s7451] ss:$4 sm:$0xff] %v6877
      %7526 = vst [vmem:[%s7453] ss:$4 sm:$0xff] %v6878
      %7527 = vst [vmem:[%s7455] ss:$4 sm:$0xff] %v6879
      %7528 = vst [vmem:[%s7457] ss:$4 sm:$0xff] %v6873
      %v7529 = vld.sshfl [vmem:[#allocation1] sm:$0xff pattern:$0x73625140]
      %v7530 = vld.sshfl [vmem:[#allocation1 + $0x20] sm:$0xff pattern:$0x73625140]
      %7531 = vst [vmem:[#allocation1] ss:$4 sm:$0xff] %v6874
      %7532 = vst [vmem:[%s7445] ss:$4 sm:$0xff] %v6875
      %7533 = vst [vmem:[%s7447] ss:$4 sm:$0xff] %v6876
      %7534 = vst [vmem:[%s7449] ss:$4 sm:$0xff] %v6877
      %7535 = vst [vmem:[%s7451] ss:$4 sm:$0xff] %v6878
      %7536 = vst [vmem:[%s7453] ss:$4 sm:$0xff] %v6879
      %7537 = vst [vmem:[%s7455] ss:$4 sm:$0xff] %v6881
      %7538 = vst [vmem:[%s7457] ss:$4 sm:$0xff] %v6882
      %v7539 = vld.sshfl [vmem:[#allocation1] sm:$0xff pattern:$0x73625140]
      %v7540 = vld.sshfl [vmem:[#allocation1 + $0x20] sm:$0xff pattern:$0x73625140]
      %7541 = vst [vmem:[#allocation1] ss:$4 sm:$0xff] %v6883
      %7542 = vst [vmem:[%s7445] ss:$4 sm:$0xff] %v6884
      %7543 = vst [vmem:[%s7447] ss:$4 sm:$0xff] %v6885
      %7544 = vst [vmem:[%s7449] ss:$4 sm:$0xff] %v6886
      %7545 = vst [vmem:[%s7451] ss:$4 sm:$0xff] %v6887
      %7546 = vst [vmem:[%s7453] ss:$4 sm:$0xff] %v6881
      %7547 = vst [vmem:[%s7455] ss:$4 sm:$0xff] %v6882
      %7548 = vst [vmem:[%s7457] ss:$4 sm:$0xff] %v6883
      %v7549 = vld.sshfl [vmem:[#allocation1] sm:$0xff pattern:$0x73625140]
      %v7550 = vld.sshfl [vmem:[#allocation1 + $0x20] sm:$0xff pattern:$0x73625140]
      %7551 = vst [vmem:[#allocation1] ss:$4 sm:$0xff] %v6884
      %7552 = vst [vmem:[%s7445] ss:$4 sm:$0xff] %v6885
      %7553 = vst [vmem:[%s7447] ss:$4 sm:$0xff] %v6886
      %7554 = vst [vmem:[%s7449] ss:$4 sm:$0xff] %v6887
      %7555 = vst [vmem:[%s7451] ss:$4 sm:$0xff] %v6889
      %7556 = vst [vmem:[%s7453] ss:$4 sm:$0xff] %v6890
      %7557 = vst [vmem:[%s7455] ss:$4 sm:$0xff] %v6891
      %7558 = vst [vmem:[%s7457] ss:$4 sm:$0xff] %v6892
      %v7559 = vld.sshfl [vmem:[#allocation1] sm:$0xff pattern:$0x73625140]
      %v7560 = vld.sshfl [vmem:[#allocation1 + $0x20] sm:$0xff pattern:$0x73625140]
      %7561 = vst [vmem:[#allocation1] ss:$4 sm:$0xff] %v6893
      %7562 = vst [vmem:[%s7445] ss:$4 sm:$0xff] %v6894
      %7563 = vst [vmem:[%s7447] ss:$4 sm:$0xff] %v6895
      %7564 = vst [vmem:[%s7449] ss:$4 sm:$0xff] %v6889
      %7565 = vst [vmem:[%s7451] ss:$4 sm:$0xff] %v6890
      %7566 = vst [vmem:[%s7453] ss:$4 sm:$0xff] %v6891
      %7567 = vst [vmem:[%s7455] ss:$4 sm:$0xff] %v6892
      %7568 = vst [vmem:[%s7457] ss:$4 sm:$0xff] %v6893
      %v7569 = vld.sshfl [vmem:[#allocation1] sm:$0xff pattern:$0x73625140]
      %v7570 = vld.sshfl [vmem:[#allocation1 + $0x20] sm:$0xff pattern:$0x73625140]
      %7571 = vst [vmem:[#allocation1] ss:$4 sm:$0xff] %v6894
      %7572 = vst [vmem:[%s7445] ss:$4 sm:$0xff] %v6895
      %v7573 = vld.sshfl [vmem:[#allocation1] sm:$0xff pattern:$0x73625140]
      %7599 = vst [vmem:[#allocation1] ss:$4 sm:$0xff] %v6840
      %s7600 = scalar_lea.vmem [#allocation1], 1
      %7601 = vst [vmem:[%s7600] ss:$4 sm:$0xff] %v6841
      %s7602 = scalar_lea.vmem [#allocation1], 2
      %7603 = vst [vmem:[%s7602] ss:$4 sm:$0xff] %v6842
      %s7604 = scalar_lea.vmem [#allocation1], 3
      %7605 = vst [vmem:[%s7604] ss:$4 sm:$0xff] %v6843
      %s7606 = scalar_lea.vmem [#allocation1], 32
      %7607 = vst [vmem:[%s7606] ss:$4 sm:$0xff] %v6844
      %s7608 = scalar_lea.vmem [#allocation1], 33
      %7609 = vst [vmem:[%s7608] ss:$4 sm:$0xff] %v6845
      %s7610 = scalar_lea.vmem [#allocation1], 34
      %7611 = vst [vmem:[%s7610] ss:$4 sm:$0xff] %v6846
      %s7612 = scalar_lea.vmem [#allocation1], 35
      %7613 = vst [vmem:[%s7612] ss:$4 sm:$0xff] %v6848
      %v7614 = vld.sshfl [vmem:[#allocation1] sm:$0xff pattern:$0x73625140]
      %v7615 = vld.sshfl [vmem:[#allocation1 + $0x20] sm:$0xff pattern:$0x73625140]
      %7616 = vst [vmem:[#allocation1] ss:$4 sm:$0xff] %v6849
      %7617 = vst [vmem:[%s7600] ss:$4 sm:$0xff] %v6850
      %7618 = vst [vmem:[%s7602] ss:$4 sm:$0xff] %v6851
      %7619 = vst [vmem:[%s7604] ss:$4 sm:$0xff] %v6852
      %7620 = vst [vmem:[%s7606] ss:$4 sm:$0xff] %v6853
      %7621 = vst [vmem:[%s7608] ss:$4 sm:$0xff] %v6854
      %7622 = vst [vmem:[%s7610] ss:$4 sm:$0xff] %v6848
      %7623 = vst [vmem:[%s7612] ss:$4 sm:$0xff] %v6849
      %v7624 = vld.sshfl [vmem:[#allocation1] sm:$0xff pattern:$0x73625140]
      %v7625 = vld.sshfl [vmem:[#allocation1 + $0x20] sm:$0xff pattern:$0x73625140]
      %7626 = vst [vmem:[#allocation1] ss:$4 sm:$0xff] %v6850
      %7627 = vst [vmem:[%s7600] ss:$4 sm:$0xff] %v6851
      %7628 = vst [vmem:[%s7602] ss:$4 sm:$0xff] %v6852
      %7629 = vst [vmem:[%s7604] ss:$4 sm:$0xff] %v6853
      %7630 = vst [vmem:[%s7606] ss:$4 sm:$0xff] %v6854
      %7631 = vst [vmem:[%s7608] ss:$4 sm:$0xff] %v6856
      %7632 = vst [vmem:[%s7610] ss:$4 sm:$0xff] %v6857
      %7633 = vst [vmem:[%s7612] ss:$4 sm:$0xff] %v6858
      %v7634 = vld.sshfl [vmem:[#allocation1] sm:$0xff pattern:$0x73625140]
      %v7635 = vld.sshfl [vmem:[#allocation1 + $0x20] sm:$0xff pattern:$0x73625140]
      %7636 = vst [vmem:[#allocation1] ss:$4 sm:$0xff] %v6859
      %7637 = vst [vmem:[%s7600] ss:$4 sm:$0xff] %v6860
      %7638 = vst [vmem:[%s7602] ss:$4 sm:$0xff] %v6861
      %7639 = vst [vmem:[%s7604] ss:$4 sm:$0xff] %v6862
      %7640 = vst [vmem:[%s7606] ss:$4 sm:$0xff] %v6856
      %7641 = vst [vmem:[%s7608] ss:$4 sm:$0xff] %v6857
      %7642 = vst [vmem:[%s7610] ss:$4 sm:$0xff] %v6858
      %7643 = vst [vmem:[%s7612] ss:$4 sm:$0xff] %v6859
      %v7644 = vld.sshfl [vmem:[#allocation1] sm:$0xff pattern:$0x73625140]
      %v7645 = vld.sshfl [vmem:[#allocation1 + $0x20] sm:$0xff pattern:$0x73625140]
      %7646 = vst [vmem:[#allocation1] ss:$4 sm:$0xff] %v6860
      %7647 = vst [vmem:[%s7600] ss:$4 sm:$0xff] %v6861
      %7648 = vst [vmem:[%s7602] ss:$4 sm:$0xff] %v6862
      %7649 = vst [vmem:[%s7604] ss:$4 sm:$0xff] %v6864
      %7650 = vst [vmem:[%s7606] ss:$4 sm:$0xff] %v6865
      %7651 = vst [vmem:[%s7608] ss:$4 sm:$0xff] %v6866
      %7652 = vst [vmem:[%s7610] ss:$4 sm:$0xff] %v6867
      %7653 = vst [vmem:[%s7612] ss:$4 sm:$0xff] %v6868
      %v7654 = vld.sshfl [vmem:[#allocation1] sm:$0xff pattern:$0x73625140]
      %v7655 = vld.sshfl [vmem:[#allocation1 + $0x20] sm:$0xff pattern:$0x73625140]
      %7656 = vst [vmem:[#allocation1] ss:$4 sm:$0xff] %v6869
      %7657 = vst [vmem:[%s7600] ss:$4 sm:$0xff] %v6870
      %7658 = vst [vmem:[%s7602] ss:$4 sm:$0xff] %v6864
      %7659 = vst [vmem:[%s7604] ss:$4 sm:$0xff] %v6865
      %7660 = vst [vmem:[%s7606] ss:$4 sm:$0xff] %v6866
      %7661 = vst [vmem:[%s7608] ss:$4 sm:$0xff] %v6867
      %7662 = vst [vmem:[%s7610] ss:$4 sm:$0xff] %v6868
      %7663 = vst [vmem:[%s7612] ss:$4 sm:$0xff] %v6869
      %v7664 = vld.sshfl [vmem:[#allocation1] sm:$0xff pattern:$0x73625140]
      %v7665 = vld.sshfl [vmem:[#allocation1 + $0x20] sm:$0xff pattern:$0x73625140]
      %7666 = vst [vmem:[#allocation1] ss:$4 sm:$0xff] %v6870
      %7667 = vst [vmem:[%s7600] ss:$4 sm:$0xff] %v6872
      %7668 = vst [vmem:[%s7602] ss:$4 sm:$0xff] %v6873
      %7669 = vst [vmem:[%s7604] ss:$4 sm:$0xff] %v6874
      %7670 = vst [vmem:[%s7606] ss:$4 sm:$0xff] %v6875
      %7671 = vst [vmem:[%s7608] ss:$4 sm:$0xff] %v6876
      %7672 = vst [vmem:[%s7610] ss:$4 sm:$0xff] %v6877
      %7673 = vst [vmem:[%s7612] ss:$4 sm:$0xff] %v6878
      %v7674 = vld.sshfl [vmem:[#allocation1] sm:$0xff pattern:$0x73625140]
      %v7675 = vld.sshfl [vmem:[#allocation1 + $0x20] sm:$0xff pattern:$0x73625140]
      %7676 = vst [vmem:[#allocation1] ss:$4 sm:$0xff] %v6872
      %7677 = vst [vmem:[%s7600] ss:$4 sm:$0xff] %v6873
      %7678 = vst [vmem:[%s7602] ss:$4 sm:$0xff] %v6874
      %7679 = vst [vmem:[%s7604] ss:$4 sm:$0xff] %v6875
      %7680 = vst [vmem:[%s7606] ss:$4 sm:$0xff] %v6876
      %7681 = vst [vmem:[%s7608] ss:$4 sm:$0xff] %v6877
      %7682 = vst [vmem:[%s7610] ss:$4 sm:$0xff] %v6878
      %7683 = vst [vmem:[%s7612] ss:$4 sm:$0xff] %v6880
      %v7684 = vld.sshfl [vmem:[#allocation1] sm:$0xff pattern:$0x73625140]
      %v7685 = vld.sshfl [vmem:[#allocation1 + $0x20] sm:$0xff pattern:$0x73625140]
      %7686 = vst [vmem:[#allocation1] ss:$4 sm:$0xff] %v6881
      %7687 = vst [vmem:[%s7600] ss:$4 sm:$0xff] %v6882
      %7688 = vst [vmem:[%s7602] ss:$4 sm:$0xff] %v6883
      %7689 = vst [vmem:[%s7604] ss:$4 sm:$0xff] %v6884
      %7690 = vst [vmem:[%s7606] ss:$4 sm:$0xff] %v6885
      %7691 = vst [vmem:[%s7608] ss:$4 sm:$0xff] %v6886
      %7692 = vst [vmem:[%s7610] ss:$4 sm:$0xff] %v6880
      %7693 = vst [vmem:[%s7612] ss:$4 sm:$0xff] %v6881
      %v7694 = vld.sshfl [vmem:[#allocation1] sm:$0xff pattern:$0x73625140]
      %v7695 = vld.sshfl [vmem:[#allocation1 + $0x20] sm:$0xff pattern:$0x73625140]
      %7696 = vst [vmem:[#allocation1] ss:$4 sm:$0xff] %v6882
      %7697 = vst [vmem:[%s7600] ss:$4 sm:$0xff] %v6883
      %7698 = vst [vmem:[%s7602] ss:$4 sm:$0xff] %v6884
      %7699 = vst [vmem:[%s7604] ss:$4 sm:$0xff] %v6885
      %7700 = vst [vmem:[%s7606] ss:$4 sm:$0xff] %v6886
      %7701 = vst [vmem:[%s7608] ss:$4 sm:$0xff] %v6888
      %7702 = vst [vmem:[%s7610] ss:$4 sm:$0xff] %v6889
      %7703 = vst [vmem:[%s7612] ss:$4 sm:$0xff] %v6890
      %v7704 = vld.sshfl [vmem:[#allocation1] sm:$0xff pattern:$0x73625140]
      %v7705 = vld.sshfl [vmem:[#allocation1 + $0x20] sm:$0xff pattern:$0x73625140]
      %7706 = vst [vmem:[#allocation1] ss:$4 sm:$0xff] %v6891
      %7707 = vst [vmem:[%s7600] ss:$4 sm:$0xff] %v6892
      %7708 = vst [vmem:[%s7602] ss:$4 sm:$0xff] %v6893
      %7709 = vst [vmem:[%s7604] ss:$4 sm:$0xff] %v6894
      %7710 = vst [vmem:[%s7606] ss:$4 sm:$0xff] %v6888
      %7711 = vst [vmem:[%s7608] ss:$4 sm:$0xff] %v6889
      %7712 = vst [vmem:[%s7610] ss:$4 sm:$0xff] %v6890
      %7713 = vst [vmem:[%s7612] ss:$4 sm:$0xff] %v6891
      %v7714 = vld.sshfl [vmem:[#allocation1] sm:$0xff pattern:$0x73625140]
      %v7715 = vld.sshfl [vmem:[#allocation1 + $0x20] sm:$0xff pattern:$0x73625140]
      %7716 = vst [vmem:[#allocation1] ss:$4 sm:$0xff] %v6892
      %7717 = vst [vmem:[%s7600] ss:$4 sm:$0xff] %v6893
      %7718 = vst [vmem:[%s7602] ss:$4 sm:$0xff] %v6894
      %7719 = vst [vmem:[%s7604] ss:$4 sm:$0xff] %v6896
      %7720 = vst [vmem:[%s7606] ss:$4 sm:$0xff] %v6897
      %7721 = vst [vmem:[%s7608] ss:$4 sm:$0xff] %v6898
      %7722 = vst [vmem:[%s7610] ss:$4 sm:$0xff] %v6899
      %7723 = vst [vmem:[%s7612] ss:$4 sm:$0xff] %v6900
      %v7724 = vld.sshfl [vmem:[#allocation1] sm:$0xff pattern:$0x73625140]
      %v7725 = vld.sshfl [vmem:[#allocation1 + $0x20] sm:$0xff pattern:$0x73625140]
      %7726 = vst [vmem:[#allocation1] ss:$4 sm:$0xff] %v6901
      %7727 = vst [vmem:[%s7600] ss:$4 sm:$0xff] %v6902
      %v7728 = vld.sshfl [vmem:[#allocation1] sm:$0xff pattern:$0x73625140]
      %7729 = vrot.lane.b32.xlu0 %v7614, 64
      %v7730 = vpop.permute.xlu0 %7729
      %7731 = vrot.lane.b32.xlu0 %v7615, 64
      %v7732 = vpop.permute.xlu0 %7731
      %7733 = vrot.lane.b32.xlu0 %v7624, 64
      %v7734 = vpop.permute.xlu0 %7733
      %7735 = vrot.lane.b32.xlu0 %v7625, 64
      %v7736 = vpop.permute.xlu0 %7735
      %7737 = vrot.lane.b32.xlu0 %v7634, 64
      %v7738 = vpop.permute.xlu0 %7737
      %7739 = vrot.lane.b32.xlu0 %v7635, 64
      %v7740 = vpop.permute.xlu0 %7739
      %7741 = vrot.lane.b32.xlu0 %v7644, 64
      %v7742 = vpop.permute.xlu0 %7741
      %7743 = vrot.lane.b32.xlu0 %v7645, 64
      %v7744 = vpop.permute.xlu0 %7743
      %7745 = vrot.lane.b32.xlu0 %v7654, 64
      %v7746 = vpop.permute.xlu0 %7745
      %7747 = vrot.lane.b32.xlu0 %v7655, 64
      %v7748 = vpop.permute.xlu0 %7747
      %7749 = vrot.lane.b32.xlu0 %v7664, 64
      %v7750 = vpop.permute.xlu0 %7749
      %7751 = vrot.lane.b32.xlu0 %v7665, 64
      %v7752 = vpop.permute.xlu0 %7751
      %7753 = vrot.lane.b32.xlu0 %v7674, 64
      %v7754 = vpop.permute.xlu0 %7753
      %7755 = vrot.lane.b32.xlu0 %v7675, 64
      %v7756 = vpop.permute.xlu0 %7755
      %7757 = vrot.lane.b32.xlu0 %v7684, 64
      %v7758 = vpop.permute.xlu0 %7757
      %7759 = vrot.lane.b32.xlu0 %v7685, 64
      %v7760 = vpop.permute.xlu0 %7759
      %7761 = vrot.lane.b32.xlu0 %v7694, 64
      %v7762 = vpop.permute.xlu0 %7761
      %7763 = vrot.lane.b32.xlu0 %v7695, 64
      %v7764 = vpop.permute.xlu0 %7763
      %7765 = vrot.lane.b32.xlu0 %v7704, 64
      %v7766 = vpop.permute.xlu0 %7765
      %7767 = vrot.lane.b32.xlu0 %v7705, 64
      %v7768 = vpop.permute.xlu0 %7767
      %7769 = vrot.lane.b32.xlu0 %v7714, 64
      %v7770 = vpop.permute.xlu0 %7769
      %7771 = vrot.lane.b32.xlu0 %v7715, 64
      %v7772 = vpop.permute.xlu0 %7771
      %7773 = vrot.lane.b32.xlu0 %v7724, 64
      %v7774 = vpop.permute.xlu0 %7773
      %7775 = vrot.lane.b32.xlu0 %v7725, 64
      %v7776 = vpop.permute.xlu0 %7775
      %7777 = vrot.lane.b32.xlu0 %v7728, 64
      %v7778 = vpop.permute.xlu0 %7777
      %7804 = vst [vmem:[#allocation1] ss:$4 sm:$0xff] %v6911
      %s7805 = scalar_lea.vmem [#allocation1], 1
      %7806 = vst [vmem:[%s7805] ss:$4 sm:$0xff] %v6914
      %s7807 = scalar_lea.vmem [#allocation1], 2
      %7808 = vst [vmem:[%s7807] ss:$4 sm:$0xff] %v6917
      %s7809 = scalar_lea.vmem [#allocation1], 3
      %7810 = vst [vmem:[%s7809] ss:$4 sm:$0xff] %v6920
      %s7811 = scalar_lea.vmem [#allocation1], 32
      %7812 = vst [vmem:[%s7811] ss:$4 sm:$0xff] %v6923
      %s7813 = scalar_lea.vmem [#allocation1], 33
      %7814 = vst [vmem:[%s7813] ss:$4 sm:$0xff] %v6926
      %s7815 = scalar_lea.vmem [#allocation1], 34
      %7816 = vst [vmem:[%s7815] ss:$4 sm:$0xff] %v6929
      %s7817 = scalar_lea.vmem [#allocation1], 35
      %7818 = vst [vmem:[%s7817] ss:$4 sm:$0xff] %v6933
      %v7819 = vld.sshfl [vmem:[#allocation1] sm:$0xff pattern:$0x73625140]
      %v7820 = vld.sshfl [vmem:[#allocation1 + $0x20] sm:$0xff pattern:$0x73625140]
      %7821 = vst [vmem:[#allocation1] ss:$4 sm:$0xff] %v6936
      %7822 = vst [vmem:[%s7805] ss:$4 sm:$0xff] %v6939
      %7823 = vst [vmem:[%s7807] ss:$4 sm:$0xff] %v6942
      %7824 = vst [vmem:[%s7809] ss:$4 sm:$0xff] %v6945
      %7825 = vst [vmem:[%s7811] ss:$4 sm:$0xff] %v6948
      %7826 = vst [vmem:[%s7813] ss:$4 sm:$0xff] %v6951
      %7827 = vst [vmem:[%s7815] ss:$4 sm:$0xff] %v6933
      %7828 = vst [vmem:[%s7817] ss:$4 sm:$0xff] %v6936
      %v7829 = vld.sshfl [vmem:[#allocation1] sm:$0xff pattern:$0x73625140]
      %v7830 = vld.sshfl [vmem:[#allocation1 + $0x20] sm:$0xff pattern:$0x73625140]
      %7831 = vst [vmem:[#allocation1] ss:$4 sm:$0xff] %v6939
      %7832 = vst [vmem:[%s7805] ss:$4 sm:$0xff] %v6942
      %7833 = vst [vmem:[%s7807] ss:$4 sm:$0xff] %v6945
      %7834 = vst [vmem:[%s7809] ss:$4 sm:$0xff] %v6948
      %7835 = vst [vmem:[%s7811] ss:$4 sm:$0xff] %v6951
      %7836 = vst [vmem:[%s7813] ss:$4 sm:$0xff] %v6955
      %7837 = vst [vmem:[%s7815] ss:$4 sm:$0xff] %v6958
      %7838 = vst [vmem:[%s7817] ss:$4 sm:$0xff] %v6961
      %v7839 = vld.sshfl [vmem:[#allocation1] sm:$0xff pattern:$0x73625140]
      %v7840 = vld.sshfl [vmem:[#allocation1 + $0x20] sm:$0xff pattern:$0x73625140]
      %7841 = vst [vmem:[#allocation1] ss:$4 sm:$0xff] %v6964
      %7842 = vst [vmem:[%s7805] ss:$4 sm:$0xff] %v6967
      %7843 = vst [vmem:[%s7807] ss:$4 sm:$0xff] %v6970
      %7844 = vst [vmem:[%s7809] ss:$4 sm:$0xff] %v6973
      %7845 = vst [vmem:[%s7811] ss:$4 sm:$0xff] %v6955
      %7846 = vst [vmem:[%s7813] ss:$4 sm:$0xff] %v6958
      %7847 = vst [vmem:[%s7815] ss:$4 sm:$0xff] %v6961
      %7848 = vst [vmem:[%s7817] ss:$4 sm:$0xff] %v6964
      %v7849 = vld.sshfl [vmem:[#allocation1] sm:$0xff pattern:$0x73625140]
      %v7850 = vld.sshfl [vmem:[#allocation1 + $0x20] sm:$0xff pattern:$0x73625140]
      %7851 = vst [vmem:[#allocation1] ss:$4 sm:$0xff] %v6967
      %7852 = vst [vmem:[%s7805] ss:$4 sm:$0xff] %v6970
      %7853 = vst [vmem:[%s7807] ss:$4 sm:$0xff] %v6973
      %7854 = vst [vmem:[%s7809] ss:$4 sm:$0xff] %v6977
      %7855 = vst [vmem:[%s7811] ss:$4 sm:$0xff] %v6980
      %7856 = vst [vmem:[%s7813] ss:$4 sm:$0xff] %v6983
      %7857 = vst [vmem:[%s7815] ss:$4 sm:$0xff] %v6986
      %7858 = vst [vmem:[%s7817] ss:$4 sm:$0xff] %v6989
      %v7859 = vld.sshfl [vmem:[#allocation1] sm:$0xff pattern:$0x73625140]
      %v7860 = vld.sshfl [vmem:[#allocation1 + $0x20] sm:$0xff pattern:$0x73625140]
      %7861 = vst [vmem:[#allocation1] ss:$4 sm:$0xff] %v6992
      %7862 = vst [vmem:[%s7805] ss:$4 sm:$0xff] %v6995
      %7863 = vst [vmem:[%s7807] ss:$4 sm:$0xff] %v6977
      %7864 = vst [vmem:[%s7809] ss:$4 sm:$0xff] %v6980
      %7865 = vst [vmem:[%s7811] ss:$4 sm:$0xff] %v6983
      %7866 = vst [vmem:[%s7813] ss:$4 sm:$0xff] %v6986
      %7867 = vst [vmem:[%s7815] ss:$4 sm:$0xff] %v6989
      %7868 = vst [vmem:[%s7817] ss:$4 sm:$0xff] %v6992
      %v7869 = vld.sshfl [vmem:[#allocation1] sm:$0xff pattern:$0x73625140]
      %v7870 = vld.sshfl [vmem:[#allocation1 + $0x20] sm:$0xff pattern:$0x73625140]
      %7871 = vst [vmem:[#allocation1] ss:$4 sm:$0xff] %v6995
      %7872 = vst [vmem:[%s7805] ss:$4 sm:$0xff] %v6999
      %7873 = vst [vmem:[%s7807] ss:$4 sm:$0xff] %v7002
      %7874 = vst [vmem:[%s7809] ss:$4 sm:$0xff] %v7005
      %7875 = vst [vmem:[%s7811] ss:$4 sm:$0xff] %v7008
      %7876 = vst [vmem:[%s7813] ss:$4 sm:$0xff] %v7011
      %7877 = vst [vmem:[%s7815] ss:$4 sm:$0xff] %v7014
      %7878 = vst [vmem:[%s7817] ss:$4 sm:$0xff] %v7017
      %v7879 = vld.sshfl [vmem:[#allocation1] sm:$0xff pattern:$0x73625140]
      %v7880 = vld.sshfl [vmem:[#allocation1 + $0x20] sm:$0xff pattern:$0x73625140]
      %7881 = vst [vmem:[#allocation1] ss:$4 sm:$0xff] %v6999
      %7882 = vst [vmem:[%s7805] ss:$4 sm:$0xff] %v7002
      %7883 = vst [vmem:[%s7807] ss:$4 sm:$0xff] %v7005
      %7884 = vst [vmem:[%s7809] ss:$4 sm:$0xff] %v7008
      %7885 = vst [vmem:[%s7811] ss:$4 sm:$0xff] %v7011
      %7886 = vst [vmem:[%s7813] ss:$4 sm:$0xff] %v7014
      %7887 = vst [vmem:[%s7815] ss:$4 sm:$0xff] %v7017
      %7888 = vst [vmem:[%s7817] ss:$4 sm:$0xff] %v7021
      %v7889 = vld.sshfl [vmem:[#allocation1] sm:$0xff pattern:$0x73625140]
      %v7890 = vld.sshfl [vmem:[#allocation1 + $0x20] sm:$0xff pattern:$0x73625140]
      %7891 = vst [vmem:[#allocation1] ss:$4 sm:$0xff] %v7024
      %7892 = vst [vmem:[%s7805] ss:$4 sm:$0xff] %v7027
      %7893 = vst [vmem:[%s7807] ss:$4 sm:$0xff] %v7030
      %7894 = vst [vmem:[%s7809] ss:$4 sm:$0xff] %v7033
      %7895 = vst [vmem:[%s7811] ss:$4 sm:$0xff] %v7036
      %7896 = vst [vmem:[%s7813] ss:$4 sm:$0xff] %v7039
      %7897 = vst [vmem:[%s7815] ss:$4 sm:$0xff] %v7021
      %7898 = vst [vmem:[%s7817] ss:$4 sm:$0xff] %v7024
      %v7899 = vld.sshfl [vmem:[#allocation1] sm:$0xff pattern:$0x73625140]
      %v7900 = vld.sshfl [vmem:[#allocation1 + $0x20] sm:$0xff pattern:$0x73625140]
      %7901 = vst [vmem:[#allocation1] ss:$4 sm:$0xff] %v7027
      %7902 = vst [vmem:[%s7805] ss:$4 sm:$0xff] %v7030
      %7903 = vst [vmem:[%s7807] ss:$4 sm:$0xff] %v7033
      %7904 = vst [vmem:[%s7809] ss:$4 sm:$0xff] %v7036
      %7905 = vst [vmem:[%s7811] ss:$4 sm:$0xff] %v7039
      %7906 = vst [vmem:[%s7813] ss:$4 sm:$0xff] %v7043
      %7907 = vst [vmem:[%s7815] ss:$4 sm:$0xff] %v7046
      %7908 = vst [vmem:[%s7817] ss:$4 sm:$0xff] %v7049
      %v7909 = vld.sshfl [vmem:[#allocation1] sm:$0xff pattern:$0x73625140]
      %v7910 = vld.sshfl [vmem:[#allocation1 + $0x20] sm:$0xff pattern:$0x73625140]
      %7911 = vst [vmem:[#allocation1] ss:$4 sm:$0xff] %v7052
      %7912 = vst [vmem:[%s7805] ss:$4 sm:$0xff] %v7055
      %7913 = vst [vmem:[%s7807] ss:$4 sm:$0xff] %v7058
      %7914 = vst [vmem:[%s7809] ss:$4 sm:$0xff] %v7061
      %7915 = vst [vmem:[%s7811] ss:$4 sm:$0xff] %v7043
      %7916 = vst [vmem:[%s7813] ss:$4 sm:$0xff] %v7046
      %7917 = vst [vmem:[%s7815] ss:$4 sm:$0xff] %v7049
      %7918 = vst [vmem:[%s7817] ss:$4 sm:$0xff] %v7052
      %v7919 = vld.sshfl [vmem:[#allocation1] sm:$0xff pattern:$0x73625140]
      %v7920 = vld.sshfl [vmem:[#allocation1 + $0x20] sm:$0xff pattern:$0x73625140]
      %7921 = vst [vmem:[#allocation1] ss:$4 sm:$0xff] %v7055
      %7922 = vst [vmem:[%s7805] ss:$4 sm:$0xff] %v7058
      %7923 = vst [vmem:[%s7807] ss:$4 sm:$0xff] %v7061
      %7924 = vst [vmem:[%s7809] ss:$4 sm:$0xff] %v7065
      %7925 = vst [vmem:[%s7811] ss:$4 sm:$0xff] %v7068
      %7926 = vst [vmem:[%s7813] ss:$4 sm:$0xff] %v7071
      %7927 = vst [vmem:[%s7815] ss:$4 sm:$0xff] %v7074
      %7928 = vst [vmem:[%s7817] ss:$4 sm:$0xff] %v7077
      %v7929 = vld.sshfl [vmem:[#allocation1] sm:$0xff pattern:$0x73625140]
      %v7930 = vld.sshfl [vmem:[#allocation1 + $0x20] sm:$0xff pattern:$0x73625140]
      %7931 = vst [vmem:[#allocation1] ss:$4 sm:$0xff] %v7080
      %7932 = vst [vmem:[%s7805] ss:$4 sm:$0xff] %v7083
      %v7933 = vld.sshfl [vmem:[#allocation1] sm:$0xff pattern:$0x73625140]
      %7959 = vst [vmem:[#allocation1] ss:$4 sm:$0xff] %v6841
      %s7960 = scalar_lea.vmem [#allocation1], 1
      %7961 = vst [vmem:[%s7960] ss:$4 sm:$0xff] %v6842
      %s7962 = scalar_lea.vmem [#allocation1], 2
      %7963 = vst [vmem:[%s7962] ss:$4 sm:$0xff] %v6843
      %s7964 = scalar_lea.vmem [#allocation1], 3
      %7965 = vst [vmem:[%s7964] ss:$4 sm:$0xff] %v6844
      %s7966 = scalar_lea.vmem [#allocation1], 32
      %7967 = vst [vmem:[%s7966] ss:$4 sm:$0xff] %v6845
      %s7968 = scalar_lea.vmem [#allocation1], 33
      %7969 = vst [vmem:[%s7968] ss:$4 sm:$0xff] %v6846
      %s7970 = scalar_lea.vmem [#allocation1], 34
      %7971 = vst [vmem:[%s7970] ss:$4 sm:$0xff] %v6847
      %s7972 = scalar_lea.vmem [#allocation1], 35
      %7973 = vst [vmem:[%s7972] ss:$4 sm:$0xff] %v6849
      %v7974 = vld.sshfl [vmem:[#allocation1] sm:$0xff pattern:$0x73625140]
      %v7975 = vld.sshfl [vmem:[#allocation1 + $0x20] sm:$0xff pattern:$0x73625140]
      %7976 = vst [vmem:[#allocation1] ss:$4 sm:$0xff] %v6850
      %7977 = vst [vmem:[%s7960] ss:$4 sm:$0xff] %v6851
      %7978 = vst [vmem:[%s7962] ss:$4 sm:$0xff] %v6852
      %7979 = vst [vmem:[%s7964] ss:$4 sm:$0xff] %v6853
      %7980 = vst [vmem:[%s7966] ss:$4 sm:$0xff] %v6854
      %7981 = vst [vmem:[%s7968] ss:$4 sm:$0xff] %v6855
      %7982 = vst [vmem:[%s7970] ss:$4 sm:$0xff] %v6849
      %7983 = vst [vmem:[%s7972] ss:$4 sm:$0xff] %v6850
      %v7984 = vld.sshfl [vmem:[#allocation1] sm:$0xff pattern:$0x73625140]
      %v7985 = vld.sshfl [vmem:[#allocation1 + $0x20] sm:$0xff pattern:$0x73625140]
      %7986 = vst [vmem:[#allocation1] ss:$4 sm:$0xff] %v6851
      %7987 = vst [vmem:[%s7960] ss:$4 sm:$0xff] %v6852
      %7988 = vst [vmem:[%s7962] ss:$4 sm:$0xff] %v6853
      %7989 = vst [vmem:[%s7964] ss:$4 sm:$0xff] %v6854
      %7990 = vst [vmem:[%s7966] ss:$4 sm:$0xff] %v6855
      %7991 = vst [vmem:[%s7968] ss:$4 sm:$0xff] %v6857
      %7992 = vst [vmem:[%s7970] ss:$4 sm:$0xff] %v6858
      %7993 = vst [vmem:[%s7972] ss:$4 sm:$0xff] %v6859
      %v7994 = vld.sshfl [vmem:[#allocation1] sm:$0xff pattern:$0x73625140]
      %v7995 = vld.sshfl [vmem:[#allocation1 + $0x20] sm:$0xff pattern:$0x73625140]
      %7996 = vst [vmem:[#allocation1] ss:$4 sm:$0xff] %v6860
      %7997 = vst [vmem:[%s7960] ss:$4 sm:$0xff] %v6861
      %7998 = vst [vmem:[%s7962] ss:$4 sm:$0xff] %v6862
      %7999 = vst [vmem:[%s7964] ss:$4 sm:$0xff] %v6863
      %8000 = vst [vmem:[%s7966] ss:$4 sm:$0xff] %v6857
      %8001 = vst [vmem:[%s7968] ss:$4 sm:$0xff] %v6858
      %8002 = vst [vmem:[%s7970] ss:$4 sm:$0xff] %v6859
      %8003 = vst [vmem:[%s7972] ss:$4 sm:$0xff] %v6860
      %v8004 = vld.sshfl [vmem:[#allocation1] sm:$0xff pattern:$0x73625140]
      %v8005 = vld.sshfl [vmem:[#allocation1 + $0x20] sm:$0xff pattern:$0x73625140]
      %8006 = vst [vmem:[#allocation1] ss:$4 sm:$0xff] %v6861
      %8007 = vst [vmem:[%s7960] ss:$4 sm:$0xff] %v6862
      %8008 = vst [vmem:[%s7962] ss:$4 sm:$0xff] %v6863
      %8009 = vst [vmem:[%s7964] ss:$4 sm:$0xff] %v6865
      %8010 = vst [vmem:[%s7966] ss:$4 sm:$0xff] %v6866
      %8011 = vst [vmem:[%s7968] ss:$4 sm:$0xff] %v6867
      %8012 = vst [vmem:[%s7970] ss:$4 sm:$0xff] %v6868
      %8013 = vst [vmem:[%s7972] ss:$4 sm:$0xff] %v6869
      %v8014 = vld.sshfl [vmem:[#allocation1] sm:$0xff pattern:$0x73625140]
      %v8015 = vld.sshfl [vmem:[#allocation1 + $0x20] sm:$0xff pattern:$0x73625140]
      %8016 = vst [vmem:[#allocation1] ss:$4 sm:$0xff] %v6870
      %8017 = vst [vmem:[%s7960] ss:$4 sm:$0xff] %v6871
      %8018 = vst [vmem:[%s7962] ss:$4 sm:$0xff] %v6865
      %8019 = vst [vmem:[%s7964] ss:$4 sm:$0xff] %v6866
      %8020 = vst [vmem:[%s7966] ss:$4 sm:$0xff] %v6867
      %8021 = vst [vmem:[%s7968] ss:$4 sm:$0xff] %v6868
      %8022 = vst [vmem:[%s7970] ss:$4 sm:$0xff] %v6869
      %8023 = vst [vmem:[%s7972] ss:$4 sm:$0xff] %v6870
      %v8024 = vld.sshfl [vmem:[#allocation1] sm:$0xff pattern:$0x73625140]
      %v8025 = vld.sshfl [vmem:[#allocation1 + $0x20] sm:$0xff pattern:$0x73625140]
      %8026 = vst [vmem:[#allocation1] ss:$4 sm:$0xff] %v6871
      %8027 = vst [vmem:[%s7960] ss:$4 sm:$0xff] %v6873
      %8028 = vst [vmem:[%s7962] ss:$4 sm:$0xff] %v6874
      %8029 = vst [vmem:[%s7964] ss:$4 sm:$0xff] %v6875
      %8030 = vst [vmem:[%s7966] ss:$4 sm:$0xff] %v6876
      %8031 = vst [vmem:[%s7968] ss:$4 sm:$0xff] %v6877
      %8032 = vst [vmem:[%s7970] ss:$4 sm:$0xff] %v6878
      %8033 = vst [vmem:[%s7972] ss:$4 sm:$0xff] %v6879
      %v8034 = vld.sshfl [vmem:[#allocation1] sm:$0xff pattern:$0x73625140]
      %v8035 = vld.sshfl [vmem:[#allocation1 + $0x20] sm:$0xff pattern:$0x73625140]
      %8036 = vst [vmem:[#allocation1] ss:$4 sm:$0xff] %v6873
      %8037 = vst [vmem:[%s7960] ss:$4 sm:$0xff] %v6874
      %8038 = vst [vmem:[%s7962] ss:$4 sm:$0xff] %v6875
      %8039 = vst [vmem:[%s7964] ss:$4 sm:$0xff] %v6876
      %8040 = vst [vmem:[%s7966] ss:$4 sm:$0xff] %v6877
      %8041 = vst [vmem:[%s7968] ss:$4 sm:$0xff] %v6878
      %8042 = vst [vmem:[%s7970] ss:$4 sm:$0xff] %v6879
      %8043 = vst [vmem:[%s7972] ss:$4 sm:$0xff] %v6881
      %v8044 = vld.sshfl [vmem:[#allocation1] sm:$0xff pattern:$0x73625140]
      %v8045 = vld.sshfl [vmem:[#allocation1 + $0x20] sm:$0xff pattern:$0x73625140]
      %8046 = vst [vmem:[#allocation1] ss:$4 sm:$0xff] %v6882
      %8047 = vst [vmem:[%s7960] ss:$4 sm:$0xff] %v6883
      %8048 = vst [vmem:[%s7962] ss:$4 sm:$0xff] %v6884
      %8049 = vst [vmem:[%s7964] ss:$4 sm:$0xff] %v6885
      %8050 = vst [vmem:[%s7966] ss:$4 sm:$0xff] %v6886
      %8051 = vst [vmem:[%s7968] ss:$4 sm:$0xff] %v6887
      %8052 = vst [vmem:[%s7970] ss:$4 sm:$0xff] %v6881
      %8053 = vst [vmem:[%s7972] ss:$4 sm:$0xff] %v6882
      %v8054 = vld.sshfl [vmem:[#allocation1] sm:$0xff pattern:$0x73625140]
      %v8055 = vld.sshfl [vmem:[#allocation1 + $0x20] sm:$0xff pattern:$0x73625140]
      %8056 = vst [vmem:[#allocation1] ss:$4 sm:$0xff] %v6883
      %8057 = vst [vmem:[%s7960] ss:$4 sm:$0xff] %v6884
      %8058 = vst [vmem:[%s7962] ss:$4 sm:$0xff] %v6885
      %8059 = vst [vmem:[%s7964] ss:$4 sm:$0xff] %v6886
      %8060 = vst [vmem:[%s7966] ss:$4 sm:$0xff] %v6887
      %8061 = vst [vmem:[%s7968] ss:$4 sm:$0xff] %v6889
      %8062 = vst [vmem:[%s7970] ss:$4 sm:$0xff] %v6890
      %8063 = vst [vmem:[%s7972] ss:$4 sm:$0xff] %v6891
      %v8064 = vld.sshfl [vmem:[#allocation1] sm:$0xff pattern:$0x73625140]
      %v8065 = vld.sshfl [vmem:[#allocation1 + $0x20] sm:$0xff pattern:$0x73625140]
      %8066 = vst [vmem:[#allocation1] ss:$4 sm:$0xff] %v6892
      %8067 = vst [vmem:[%s7960] ss:$4 sm:$0xff] %v6893
      %8068 = vst [vmem:[%s7962] ss:$4 sm:$0xff] %v6894
      %8069 = vst [vmem:[%s7964] ss:$4 sm:$0xff] %v6895
      %8070 = vst [vmem:[%s7966] ss:$4 sm:$0xff] %v6889
      %8071 = vst [vmem:[%s7968] ss:$4 sm:$0xff] %v6890
      %8072 = vst [vmem:[%s7970] ss:$4 sm:$0xff] %v6891
      %8073 = vst [vmem:[%s7972] ss:$4 sm:$0xff] %v6892
      %v8074 = vld.sshfl [vmem:[#allocation1] sm:$0xff pattern:$0x73625140]
      %v8075 = vld.sshfl [vmem:[#allocation1 + $0x20] sm:$0xff pattern:$0x73625140]
      %8076 = vst [vmem:[#allocation1] ss:$4 sm:$0xff] %v6893
      %8077 = vst [vmem:[%s7960] ss:$4 sm:$0xff] %v6894
      %8078 = vst [vmem:[%s7962] ss:$4 sm:$0xff] %v6895
      %8079 = vst [vmem:[%s7964] ss:$4 sm:$0xff] %v6897
      %8080 = vst [vmem:[%s7966] ss:$4 sm:$0xff] %v6898
      %8081 = vst [vmem:[%s7968] ss:$4 sm:$0xff] %v6899
      %8082 = vst [vmem:[%s7970] ss:$4 sm:$0xff] %v6900
      %8083 = vst [vmem:[%s7972] ss:$4 sm:$0xff] %v6901
      %v8084 = vld.sshfl [vmem:[#allocation1] sm:$0xff pattern:$0x73625140]
      %v8085 = vld.sshfl [vmem:[#allocation1 + $0x20] sm:$0xff pattern:$0x73625140]
      %8086 = vst [vmem:[#allocation1] ss:$4 sm:$0xff] %v6902
      %8087 = vst [vmem:[%s7960] ss:$4 sm:$0xff] %v6903
      %v8088 = vld.sshfl [vmem:[#allocation1] sm:$0xff pattern:$0x73625140]
      %8089 = vrot.lane.b32.xlu0 %v7974, 64
      %v8090 = vpop.permute.xlu0 %8089
      %8091 = vrot.lane.b32.xlu0 %v7975, 64
      %v8092 = vpop.permute.xlu0 %8091
      %8093 = vrot.lane.b32.xlu0 %v7984, 64
      %v8094 = vpop.permute.xlu0 %8093
      %8095 = vrot.lane.b32.xlu0 %v7985, 64
      %v8096 = vpop.permute.xlu0 %8095
      %8097 = vrot.lane.b32.xlu0 %v7994, 64
      %v8098 = vpop.permute.xlu0 %8097
      %8099 = vrot.lane.b32.xlu0 %v7995, 64
      %v8100 = vpop.permute.xlu0 %8099
      %8101 = vrot.lane.b32.xlu0 %v8004, 64
      %v8102 = vpop.permute.xlu0 %8101
      %8103 = vrot.lane.b32.xlu0 %v8005, 64
      %v8104 = vpop.permute.xlu0 %8103
      %8105 = vrot.lane.b32.xlu0 %v8014, 64
      %v8106 = vpop.permute.xlu0 %8105
      %8107 = vrot.lane.b32.xlu0 %v8015, 64
      %v8108 = vpop.permute.xlu0 %8107
      %8109 = vrot.lane.b32.xlu0 %v8024, 64
      %v8110 = vpop.permute.xlu0 %8109
      %8111 = vrot.lane.b32.xlu0 %v8025, 64
      %v8112 = vpop.permute.xlu0 %8111
      %8113 = vrot.lane.b32.xlu0 %v8034, 64
      %v8114 = vpop.permute.xlu0 %8113
      %8115 = vrot.lane.b32.xlu0 %v8035, 64
      %v8116 = vpop.permute.xlu0 %8115
      %8117 = vrot.lane.b32.xlu0 %v8044, 64
      %v8118 = vpop.permute.xlu0 %8117
      %8119 = vrot.lane.b32.xlu0 %v8045, 64
      %v8120 = vpop.permute.xlu0 %8119
      %8121 = vrot.lane.b32.xlu0 %v8054, 64
      %v8122 = vpop.permute.xlu0 %8121
      %8123 = vrot.lane.b32.xlu0 %v8055, 64
      %v8124 = vpop.permute.xlu0 %8123
      %8125 = vrot.lane.b32.xlu0 %v8064, 64
      %v8126 = vpop.permute.xlu0 %8125
      %8127 = vrot.lane.b32.xlu0 %v8065, 64
      %v8128 = vpop.permute.xlu0 %8127
      %8129 = vrot.lane.b32.xlu0 %v8074, 64
      %v8130 = vpop.permute.xlu0 %8129
      %8131 = vrot.lane.b32.xlu0 %v8075, 64
      %v8132 = vpop.permute.xlu0 %8131
      %8133 = vrot.lane.b32.xlu0 %v8084, 64
      %v8134 = vpop.permute.xlu0 %8133
      %8135 = vrot.lane.b32.xlu0 %v8085, 64
      %v8136 = vpop.permute.xlu0 %8135
      %8137 = vrot.lane.b32.xlu0 %v8088, 64
      %v8138 = vpop.permute.xlu0 %8137
      %8164 = vst [vmem:[#allocation1] ss:$4 sm:$0xff] %v6848
      %s8165 = scalar_lea.vmem [#allocation1], 1
      %8166 = vst [vmem:[%s8165] ss:$4 sm:$0xff] %v6849
      %s8167 = scalar_lea.vmem [#allocation1], 2
      %8168 = vst [vmem:[%s8167] ss:$4 sm:$0xff] %v6850
      %s8169 = scalar_lea.vmem [#allocation1], 3
      %8170 = vst [vmem:[%s8169] ss:$4 sm:$0xff] %v6851
      %s8171 = scalar_lea.vmem [#allocation1], 32
      %8172 = vst [vmem:[%s8171] ss:$4 sm:$0xff] %v6852
      %s8173 = scalar_lea.vmem [#allocation1], 33
      %8174 = vst [vmem:[%s8173] ss:$4 sm:$0xff] %v6853
      %s8175 = scalar_lea.vmem [#allocation1], 34
      %8176 = vst [vmem:[%s8175] ss:$4 sm:$0xff] %v6854
      %s8177 = scalar_lea.vmem [#allocation1], 35
      %8178 = vst [vmem:[%s8177] ss:$4 sm:$0xff] %v6848
      %v8179 = vld.sshfl [vmem:[#allocation1] sm:$0xff pattern:$0x73625140]
      %v8180 = vld.sshfl [vmem:[#allocation1 + $0x20] sm:$0xff pattern:$0x73625140]
      %8181 = vst [vmem:[#allocation1] ss:$4 sm:$0xff] %v6849
      %8182 = vst [vmem:[%s8165] ss:$4 sm:$0xff] %v6850
      %8183 = vst [vmem:[%s8167] ss:$4 sm:$0xff] %v6851
      %8184 = vst [vmem:[%s8169] ss:$4 sm:$0xff] %v6852
      %8185 = vst [vmem:[%s8171] ss:$4 sm:$0xff] %v6853
      %8186 = vst [vmem:[%s8173] ss:$4 sm:$0xff] %v6854
      %8187 = vst [vmem:[%s8175] ss:$4 sm:$0xff] %v6856
      %8188 = vst [vmem:[%s8177] ss:$4 sm:$0xff] %v6857
      %v8189 = vld.sshfl [vmem:[#allocation1] sm:$0xff pattern:$0x73625140]
      %v8190 = vld.sshfl [vmem:[#allocation1 + $0x20] sm:$0xff pattern:$0x73625140]
      %8191 = vst [vmem:[#allocation1] ss:$4 sm:$0xff] %v6858
      %8192 = vst [vmem:[%s8165] ss:$4 sm:$0xff] %v6859
      %8193 = vst [vmem:[%s8167] ss:$4 sm:$0xff] %v6860
      %8194 = vst [vmem:[%s8169] ss:$4 sm:$0xff] %v6861
      %8195 = vst [vmem:[%s8171] ss:$4 sm:$0xff] %v6862
      %8196 = vst [vmem:[%s8173] ss:$4 sm:$0xff] %v6856
      %8197 = vst [vmem:[%s8175] ss:$4 sm:$0xff] %v6857
      %8198 = vst [vmem:[%s8177] ss:$4 sm:$0xff] %v6858
      %v8199 = vld.sshfl [vmem:[#allocation1] sm:$0xff pattern:$0x73625140]
      %v8200 = vld.sshfl [vmem:[#allocation1 + $0x20] sm:$0xff pattern:$0x73625140]
      %8201 = vst [vmem:[#allocation1] ss:$4 sm:$0xff] %v6859
      %8202 = vst [vmem:[%s8165] ss:$4 sm:$0xff] %v6860
      %8203 = vst [vmem:[%s8167] ss:$4 sm:$0xff] %v6861
      %8204 = vst [vmem:[%s8169] ss:$4 sm:$0xff] %v6862
      %8205 = vst [vmem:[%s8171] ss:$4 sm:$0xff] %v6864
      %8206 = vst [vmem:[%s8173] ss:$4 sm:$0xff] %v6865
      %8207 = vst [vmem:[%s8175] ss:$4 sm:$0xff] %v6866
      %8208 = vst [vmem:[%s8177] ss:$4 sm:$0xff] %v6867
      %v8209 = vld.sshfl [vmem:[#allocation1] sm:$0xff pattern:$0x73625140]
      %v8210 = vld.sshfl [vmem:[#allocation1 + $0x20] sm:$0xff pattern:$0x73625140]
      %8211 = vst [vmem:[#allocation1] ss:$4 sm:$0xff] %v6868
      %8212 = vst [vmem:[%s8165] ss:$4 sm:$0xff] %v6869
      %8213 = vst [vmem:[%s8167] ss:$4 sm:$0xff] %v6870
      %8214 = vst [vmem:[%s8169] ss:$4 sm:$0xff] %v6864
      %8215 = vst [vmem:[%s8171] ss:$4 sm:$0xff] %v6865
      %8216 = vst [vmem:[%s8173] ss:$4 sm:$0xff] %v6866
      %8217 = vst [vmem:[%s8175] ss:$4 sm:$0xff] %v6867
      %8218 = vst [vmem:[%s8177] ss:$4 sm:$0xff] %v6868
      %v8219 = vld.sshfl [vmem:[#allocation1] sm:$0xff pattern:$0x73625140]
      %v8220 = vld.sshfl [vmem:[#allocation1 + $0x20] sm:$0xff pattern:$0x73625140]
      %8221 = vst [vmem:[#allocation1] ss:$4 sm:$0xff] %v6869
      %8222 = vst [vmem:[%s8165] ss:$4 sm:$0xff] %v6870
      %8223 = vst [vmem:[%s8167] ss:$4 sm:$0xff] %v6872
      %8224 = vst [vmem:[%s8169] ss:$4 sm:$0xff] %v6873
      %8225 = vst [vmem:[%s8171] ss:$4 sm:$0xff] %v6874
      %8226 = vst [vmem:[%s8173] ss:$4 sm:$0xff] %v6875
      %8227 = vst [vmem:[%s8175] ss:$4 sm:$0xff] %v6876
      %8228 = vst [vmem:[%s8177] ss:$4 sm:$0xff] %v6877
      %v8229 = vld.sshfl [vmem:[#allocation1] sm:$0xff pattern:$0x73625140]
      %v8230 = vld.sshfl [vmem:[#allocation1 + $0x20] sm:$0xff pattern:$0x73625140]
      %8231 = vst [vmem:[#allocation1] ss:$4 sm:$0xff] %v6878
      %8232 = vst [vmem:[%s8165] ss:$4 sm:$0xff] %v6872
      %8233 = vst [vmem:[%s8167] ss:$4 sm:$0xff] %v6873
      %8234 = vst [vmem:[%s8169] ss:$4 sm:$0xff] %v6874
      %8235 = vst [vmem:[%s8171] ss:$4 sm:$0xff] %v6875
      %8236 = vst [vmem:[%s8173] ss:$4 sm:$0xff] %v6876
      %8237 = vst [vmem:[%s8175] ss:$4 sm:$0xff] %v6877
      %8238 = vst [vmem:[%s8177] ss:$4 sm:$0xff] %v6878
      %v8239 = vld.sshfl [vmem:[#allocation1] sm:$0xff pattern:$0x73625140]
      %v8240 = vld.sshfl [vmem:[#allocation1 + $0x20] sm:$0xff pattern:$0x73625140]
      %8241 = vst [vmem:[#allocation1] ss:$4 sm:$0xff] %v6880
      %8242 = vst [vmem:[%s8165] ss:$4 sm:$0xff] %v6881
      %8243 = vst [vmem:[%s8167] ss:$4 sm:$0xff] %v6882
      %8244 = vst [vmem:[%s8169] ss:$4 sm:$0xff] %v6883
      %8245 = vst [vmem:[%s8171] ss:$4 sm:$0xff] %v6884
      %8246 = vst [vmem:[%s8173] ss:$4 sm:$0xff] %v6885
      %8247 = vst [vmem:[%s8175] ss:$4 sm:$0xff] %v6886
      %8248 = vst [vmem:[%s8177] ss:$4 sm:$0xff] %v6880
      %v8249 = vld.sshfl [vmem:[#allocation1] sm:$0xff pattern:$0x73625140]
      %v8250 = vld.sshfl [vmem:[#allocation1 + $0x20] sm:$0xff pattern:$0x73625140]
      %8251 = vst [vmem:[#allocation1] ss:$4 sm:$0xff] %v6881
      %8252 = vst [vmem:[%s8165] ss:$4 sm:$0xff] %v6882
      %8253 = vst [vmem:[%s8167] ss:$4 sm:$0xff] %v6883
      %8254 = vst [vmem:[%s8169] ss:$4 sm:$0xff] %v6884
      %8255 = vst [vmem:[%s8171] ss:$4 sm:$0xff] %v6885
      %8256 = vst [vmem:[%s8173] ss:$4 sm:$0xff] %v6886
      %8257 = vst [vmem:[%s8175] ss:$4 sm:$0xff] %v6888
      %8258 = vst [vmem:[%s8177] ss:$4 sm:$0xff] %v6889
      %v8259 = vld.sshfl [vmem:[#allocation1] sm:$0xff pattern:$0x73625140]
      %v8260 = vld.sshfl [vmem:[#allocation1 + $0x20] sm:$0xff pattern:$0x73625140]
      %8261 = vst [vmem:[#allocation1] ss:$4 sm:$0xff] %v6890
      %8262 = vst [vmem:[%s8165] ss:$4 sm:$0xff] %v6891
      %8263 = vst [vmem:[%s8167] ss:$4 sm:$0xff] %v6892
      %8264 = vst [vmem:[%s8169] ss:$4 sm:$0xff] %v6893
      %8265 = vst [vmem:[%s8171] ss:$4 sm:$0xff] %v6894
      %8266 = vst [vmem:[%s8173] ss:$4 sm:$0xff] %v6888
      %8267 = vst [vmem:[%s8175] ss:$4 sm:$0xff] %v6889
      %8268 = vst [vmem:[%s8177] ss:$4 sm:$0xff] %v6890
      %v8269 = vld.sshfl [vmem:[#allocation1] sm:$0xff pattern:$0x73625140]
      %v8270 = vld.sshfl [vmem:[#allocation1 + $0x20] sm:$0xff pattern:$0x73625140]
      %8271 = vst [vmem:[#allocation1] ss:$4 sm:$0xff] %v6891
      %8272 = vst [vmem:[%s8165] ss:$4 sm:$0xff] %v6892
      %8273 = vst [vmem:[%s8167] ss:$4 sm:$0xff] %v6893
      %8274 = vst [vmem:[%s8169] ss:$4 sm:$0xff] %v6894
      %8275 = vst [vmem:[%s8171] ss:$4 sm:$0xff] %v6896
      %8276 = vst [vmem:[%s8173] ss:$4 sm:$0xff] %v6897
      %8277 = vst [vmem:[%s8175] ss:$4 sm:$0xff] %v6898
      %8278 = vst [vmem:[%s8177] ss:$4 sm:$0xff] %v6899
      %v8279 = vld.sshfl [vmem:[#allocation1] sm:$0xff pattern:$0x73625140]
      %v8280 = vld.sshfl [vmem:[#allocation1 + $0x20] sm:$0xff pattern:$0x73625140]
      %8281 = vst [vmem:[#allocation1] ss:$4 sm:$0xff] %v6900
      %8282 = vst [vmem:[%s8165] ss:$4 sm:$0xff] %v6901
      %8283 = vst [vmem:[%s8167] ss:$4 sm:$0xff] %v6902
      %8284 = vst [vmem:[%s8169] ss:$4 sm:$0xff] %v6896
      %8285 = vst [vmem:[%s8171] ss:$4 sm:$0xff] %v6897
      %8286 = vst [vmem:[%s8173] ss:$4 sm:$0xff] %v6898
      %8287 = vst [vmem:[%s8175] ss:$4 sm:$0xff] %v6899
      %8288 = vst [vmem:[%s8177] ss:$4 sm:$0xff] %v6900
      %v8289 = vld.sshfl [vmem:[#allocation1] sm:$0xff pattern:$0x73625140]
      %v8290 = vld.sshfl [vmem:[#allocation1 + $0x20] sm:$0xff pattern:$0x73625140]
      %8291 = vst [vmem:[#allocation1] ss:$4 sm:$0xff] %v6901
      %8292 = vst [vmem:[%s8165] ss:$4 sm:$0xff] %v6902
      %v8293 = vld.sshfl [vmem:[#allocation1] sm:$0xff pattern:$0x73625140]
      %8319 = vst [vmem:[#allocation1] ss:$4 sm:$0xff] %v6933
      %s8320 = scalar_lea.vmem [#allocation1], 1
      %8321 = vst [vmem:[%s8320] ss:$4 sm:$0xff] %v6936
      %s8322 = scalar_lea.vmem [#allocation1], 2
      %8323 = vst [vmem:[%s8322] ss:$4 sm:$0xff] %v6939
      %s8324 = scalar_lea.vmem [#allocation1], 3
      %8325 = vst [vmem:[%s8324] ss:$4 sm:$0xff] %v6942
      %s8326 = scalar_lea.vmem [#allocation1], 32
      %8327 = vst [vmem:[%s8326] ss:$4 sm:$0xff] %v6945
      %s8328 = scalar_lea.vmem [#allocation1], 33
      %8329 = vst [vmem:[%s8328] ss:$4 sm:$0xff] %v6948
      %s8330 = scalar_lea.vmem [#allocation1], 34
      %8331 = vst [vmem:[%s8330] ss:$4 sm:$0xff] %v6951
      %s8332 = scalar_lea.vmem [#allocation1], 35
      %8333 = vst [vmem:[%s8332] ss:$4 sm:$0xff] %v6933
      %v8334 = vld.sshfl [vmem:[#allocation1] sm:$0xff pattern:$0x73625140]
      %v8335 = vld.sshfl [vmem:[#allocation1 + $0x20] sm:$0xff pattern:$0x73625140]
      %8336 = vst [vmem:[#allocation1] ss:$4 sm:$0xff] %v6936
      %8337 = vst [vmem:[%s8320] ss:$4 sm:$0xff] %v6939
      %8338 = vst [vmem:[%s8322] ss:$4 sm:$0xff] %v6942
      %8339 = vst [vmem:[%s8324] ss:$4 sm:$0xff] %v6945
      %8340 = vst [vmem:[%s8326] ss:$4 sm:$0xff] %v6948
      %8341 = vst [vmem:[%s8328] ss:$4 sm:$0xff] %v6951
      %8342 = vst [vmem:[%s8330] ss:$4 sm:$0xff] %v6955
      %8343 = vst [vmem:[%s8332] ss:$4 sm:$0xff] %v6958
      %v8344 = vld.sshfl [vmem:[#allocation1] sm:$0xff pattern:$0x73625140]
      %v8345 = vld.sshfl [vmem:[#allocation1 + $0x20] sm:$0xff pattern:$0x73625140]
      %8346 = vst [vmem:[#allocation1] ss:$4 sm:$0xff] %v6961
      %8347 = vst [vmem:[%s8320] ss:$4 sm:$0xff] %v6964
      %8348 = vst [vmem:[%s8322] ss:$4 sm:$0xff] %v6967
      %8349 = vst [vmem:[%s8324] ss:$4 sm:$0xff] %v6970
      %8350 = vst [vmem:[%s8326] ss:$4 sm:$0xff] %v6973
      %8351 = vst [vmem:[%s8328] ss:$4 sm:$0xff] %v6955
      %8352 = vst [vmem:[%s8330] ss:$4 sm:$0xff] %v6958
      %8353 = vst [vmem:[%s8332] ss:$4 sm:$0xff] %v6961
      %v8354 = vld.sshfl [vmem:[#allocation1] sm:$0xff pattern:$0x73625140]
      %v8355 = vld.sshfl [vmem:[#allocation1 + $0x20] sm:$0xff pattern:$0x73625140]
      %8356 = vst [vmem:[#allocation1] ss:$4 sm:$0xff] %v6964
      %8357 = vst [vmem:[%s8320] ss:$4 sm:$0xff] %v6967
      %8358 = vst [vmem:[%s8322] ss:$4 sm:$0xff] %v6970
      %8359 = vst [vmem:[%s8324] ss:$4 sm:$0xff] %v6973
      %8360 = vst [vmem:[%s8326] ss:$4 sm:$0xff] %v6977
      %8361 = vst [vmem:[%s8328] ss:$4 sm:$0xff] %v6980
      %8362 = vst [vmem:[%s8330] ss:$4 sm:$0xff] %v6983
      %8363 = vst [vmem:[%s8332] ss:$4 sm:$0xff] %v6986
      %v8364 = vld.sshfl [vmem:[#allocation1] sm:$0xff pattern:$0x73625140]
      %v8365 = vld.sshfl [vmem:[#allocation1 + $0x20] sm:$0xff pattern:$0x73625140]
      %8366 = vst [vmem:[#allocation1] ss:$4 sm:$0xff] %v6989
      %8367 = vst [vmem:[%s8320] ss:$4 sm:$0xff] %v6992
      %8368 = vst [vmem:[%s8322] ss:$4 sm:$0xff] %v6995
      %8369 = vst [vmem:[%s8324] ss:$4 sm:$0xff] %v6977
      %8370 = vst [vmem:[%s8326] ss:$4 sm:$0xff] %v6980
      %8371 = vst [vmem:[%s8328] ss:$4 sm:$0xff] %v6983
      %8372 = vst [vmem:[%s8330] ss:$4 sm:$0xff] %v6986
      %8373 = vst [vmem:[%s8332] ss:$4 sm:$0xff] %v6989
      %v8374 = vld.sshfl [vmem:[#allocation1] sm:$0xff pattern:$0x73625140]
      %v8375 = vld.sshfl [vmem:[#allocation1 + $0x20] sm:$0xff pattern:$0x73625140]
      %8376 = vst [vmem:[#allocation1] ss:$4 sm:$0xff] %v6992
      %8377 = vst [vmem:[%s8320] ss:$4 sm:$0xff] %v6995
      %8378 = vst [vmem:[%s8322] ss:$4 sm:$0xff] %v6999
      %8379 = vst [vmem:[%s8324] ss:$4 sm:$0xff] %v7002
      %8380 = vst [vmem:[%s8326] ss:$4 sm:$0xff] %v7005
      %8381 = vst [vmem:[%s8328] ss:$4 sm:$0xff] %v7008
      %8382 = vst [vmem:[%s8330] ss:$4 sm:$0xff] %v7011
      %8383 = vst [vmem:[%s8332] ss:$4 sm:$0xff] %v7014
      %v8384 = vld.sshfl [vmem:[#allocation1] sm:$0xff pattern:$0x73625140]
      %v8385 = vld.sshfl [vmem:[#allocation1 + $0x20] sm:$0xff pattern:$0x73625140]
      %8386 = vst [vmem:[#allocation1] ss:$4 sm:$0xff] %v7017
      %8387 = vst [vmem:[%s8320] ss:$4 sm:$0xff] %v6999
      %8388 = vst [vmem:[%s8322] ss:$4 sm:$0xff] %v7002
      %8389 = vst [vmem:[%s8324] ss:$4 sm:$0xff] %v7005
      %8390 = vst [vmem:[%s8326] ss:$4 sm:$0xff] %v7008
      %8391 = vst [vmem:[%s8328] ss:$4 sm:$0xff] %v7011
      %8392 = vst [vmem:[%s8330] ss:$4 sm:$0xff] %v7014
      %8393 = vst [vmem:[%s8332] ss:$4 sm:$0xff] %v7017
      %v8394 = vld.sshfl [vmem:[#allocation1] sm:$0xff pattern:$0x73625140]
      %v8395 = vld.sshfl [vmem:[#allocation1 + $0x20] sm:$0xff pattern:$0x73625140]
      %8396 = vst [vmem:[#allocation1] ss:$4 sm:$0xff] %v7021
      %8397 = vst [vmem:[%s8320] ss:$4 sm:$0xff] %v7024
      %8398 = vst [vmem:[%s8322] ss:$4 sm:$0xff] %v7027
      %8399 = vst [vmem:[%s8324] ss:$4 sm:$0xff] %v7030
      %8400 = vst [vmem:[%s8326] ss:$4 sm:$0xff] %v7033
      %8401 = vst [vmem:[%s8328] ss:$4 sm:$0xff] %v7036
      %8402 = vst [vmem:[%s8330] ss:$4 sm:$0xff] %v7039
      %8403 = vst [vmem:[%s8332] ss:$4 sm:$0xff] %v7021
      %v8404 = vld.sshfl [vmem:[#allocation1] sm:$0xff pattern:$0x73625140]
      %v8405 = vld.sshfl [vmem:[#allocation1 + $0x20] sm:$0xff pattern:$0x73625140]
      %8406 = vst [vmem:[#allocation1] ss:$4 sm:$0xff] %v7024
      %8407 = vst [vmem:[%s8320] ss:$4 sm:$0xff] %v7027
      %8408 = vst [vmem:[%s8322] ss:$4 sm:$0xff] %v7030
      %8409 = vst [vmem:[%s8324] ss:$4 sm:$0xff] %v7033
      %8410 = vst [vmem:[%s8326] ss:$4 sm:$0xff] %v7036
      %8411 = vst [vmem:[%s8328] ss:$4 sm:$0xff] %v7039
      %8412 = vst [vmem:[%s8330] ss:$4 sm:$0xff] %v7043
      %8413 = vst [vmem:[%s8332] ss:$4 sm:$0xff] %v7046
      %v8414 = vld.sshfl [vmem:[#allocation1] sm:$0xff pattern:$0x73625140]
      %v8415 = vld.sshfl [vmem:[#allocation1 + $0x20] sm:$0xff pattern:$0x73625140]
      %8416 = vst [vmem:[#allocation1] ss:$4 sm:$0xff] %v7049
      %8417 = vst [vmem:[%s8320] ss:$4 sm:$0xff] %v7052
      %8418 = vst [vmem:[%s8322] ss:$4 sm:$0xff] %v7055
      %8419 = vst [vmem:[%s8324] ss:$4 sm:$0xff] %v7058
      %8420 = vst [vmem:[%s8326] ss:$4 sm:$0xff] %v7061
      %8421 = vst [vmem:[%s8328] ss:$4 sm:$0xff] %v7043
      %8422 = vst [vmem:[%s8330] ss:$4 sm:$0xff] %v7046
      %8423 = vst [vmem:[%s8332] ss:$4 sm:$0xff] %v7049
      %v8424 = vld.sshfl [vmem:[#allocation1] sm:$0xff pattern:$0x73625140]
      %v8425 = vld.sshfl [vmem:[#allocation1 + $0x20] sm:$0xff pattern:$0x73625140]
      %8426 = vst [vmem:[#allocation1] ss:$4 sm:$0xff] %v7052
      %8427 = vst [vmem:[%s8320] ss:$4 sm:$0xff] %v7055
      %8428 = vst [vmem:[%s8322] ss:$4 sm:$0xff] %v7058
      %8429 = vst [vmem:[%s8324] ss:$4 sm:$0xff] %v7061
      %8430 = vst [vmem:[%s8326] ss:$4 sm:$0xff] %v7065
      %8431 = vst [vmem:[%s8328] ss:$4 sm:$0xff] %v7068
      %8432 = vst [vmem:[%s8330] ss:$4 sm:$0xff] %v7071
      %8433 = vst [vmem:[%s8332] ss:$4 sm:$0xff] %v7074
      %v8434 = vld.sshfl [vmem:[#allocation1] sm:$0xff pattern:$0x73625140]
      %v8435 = vld.sshfl [vmem:[#allocation1 + $0x20] sm:$0xff pattern:$0x73625140]
      %8436 = vst [vmem:[#allocation1] ss:$4 sm:$0xff] %v7077
      %8437 = vst [vmem:[%s8320] ss:$4 sm:$0xff] %v7080
      %8438 = vst [vmem:[%s8322] ss:$4 sm:$0xff] %v7083
      %8439 = vst [vmem:[%s8324] ss:$4 sm:$0xff] %v7065
      %8440 = vst [vmem:[%s8326] ss:$4 sm:$0xff] %v7068
      %8441 = vst [vmem:[%s8328] ss:$4 sm:$0xff] %v7071
      %8442 = vst [vmem:[%s8330] ss:$4 sm:$0xff] %v7074
      %8443 = vst [vmem:[%s8332] ss:$4 sm:$0xff] %v7077
      %v8444 = vld.sshfl [vmem:[#allocation1] sm:$0xff pattern:$0x73625140]
      %v8445 = vld.sshfl [vmem:[#allocation1 + $0x20] sm:$0xff pattern:$0x73625140]
      %8446 = vst [vmem:[#allocation1] ss:$4 sm:$0xff] %v7080
      %8447 = vst [vmem:[%s8320] ss:$4 sm:$0xff] %v7083
      %v8448 = vld.sshfl [vmem:[#allocation1] sm:$0xff pattern:$0x73625140]
      %8449 = vrot.lane.b32.xlu0 %v8334, 64
      %v8450 = vpop.permute.xlu0 %8449
      %8451 = vrot.lane.b32.xlu0 %v8335, 64
      %v8452 = vpop.permute.xlu0 %8451
      %8453 = vrot.lane.b32.xlu0 %v8344, 64
      %v8454 = vpop.permute.xlu0 %8453
      %8455 = vrot.lane.b32.xlu0 %v8345, 64
      %v8456 = vpop.permute.xlu0 %8455
      %8457 = vrot.lane.b32.xlu0 %v8354, 64
      %v8458 = vpop.permute.xlu0 %8457
      %8459 = vrot.lane.b32.xlu0 %v8355, 64
      %v8460 = vpop.permute.xlu0 %8459
      %8461 = vrot.lane.b32.xlu0 %v8364, 64
      %v8462 = vpop.permute.xlu0 %8461
      %8463 = vrot.lane.b32.xlu0 %v8365, 64
      %v8464 = vpop.permute.xlu0 %8463
      %8465 = vrot.lane.b32.xlu0 %v8374, 64
      %v8466 = vpop.permute.xlu0 %8465
      %8467 = vrot.lane.b32.xlu0 %v8375, 64
      %v8468 = vpop.permute.xlu0 %8467
      %8469 = vrot.lane.b32.xlu0 %v8384, 64
      %v8470 = vpop.permute.xlu0 %8469
      %8471 = vrot.lane.b32.xlu0 %v8385, 64
      %v8472 = vpop.permute.xlu0 %8471
      %8473 = vrot.lane.b32.xlu0 %v8394, 64
      %v8474 = vpop.permute.xlu0 %8473
      %8475 = vrot.lane.b32.xlu0 %v8395, 64
      %v8476 = vpop.permute.xlu0 %8475
      %8477 = vrot.lane.b32.xlu0 %v8404, 64
      %v8478 = vpop.permute.xlu0 %8477
      %8479 = vrot.lane.b32.xlu0 %v8405, 64
      %v8480 = vpop.permute.xlu0 %8479
      %8481 = vrot.lane.b32.xlu0 %v8414, 64
      %v8482 = vpop.permute.xlu0 %8481
      %8483 = vrot.lane.b32.xlu0 %v8415, 64
      %v8484 = vpop.permute.xlu0 %8483
      %8485 = vrot.lane.b32.xlu0 %v8424, 64
      %v8486 = vpop.permute.xlu0 %8485
      %8487 = vrot.lane.b32.xlu0 %v8425, 64
      %v8488 = vpop.permute.xlu0 %8487
      %8489 = vrot.lane.b32.xlu0 %v8434, 64
      %v8490 = vpop.permute.xlu0 %8489
      %8491 = vrot.lane.b32.xlu0 %v8435, 64
      %v8492 = vpop.permute.xlu0 %8491
      %8493 = vrot.lane.b32.xlu0 %v8444, 64
      %v8494 = vpop.permute.xlu0 %8493
      %8495 = vrot.lane.b32.xlu0 %v8445, 64
      %v8496 = vpop.permute.xlu0 %8495
      %8497 = vrot.lane.b32.xlu0 %v8448, 64
      %v8498 = vpop.permute.xlu0 %8497
      %8524 = vst [vmem:[#allocation1] ss:$4 sm:$0xff] %v6849
      %s8525 = scalar_lea.vmem [#allocation1], 1
      %8526 = vst [vmem:[%s8525] ss:$4 sm:$0xff] %v6850
      %s8527 = scalar_lea.vmem [#allocation1], 2
      %8528 = vst [vmem:[%s8527] ss:$4 sm:$0xff] %v6851
      %s8529 = scalar_lea.vmem [#allocation1], 3
      %8530 = vst [vmem:[%s8529] ss:$4 sm:$0xff] %v6852
      %s8531 = scalar_lea.vmem [#allocation1], 32
      %8532 = vst [vmem:[%s8531] ss:$4 sm:$0xff] %v6853
      %s8533 = scalar_lea.vmem [#allocation1], 33
      %8534 = vst [vmem:[%s8533] ss:$4 sm:$0xff] %v6854
      %s8535 = scalar_lea.vmem [#allocation1], 34
      %8536 = vst [vmem:[%s8535] ss:$4 sm:$0xff] %v6855
      %s8537 = scalar_lea.vmem [#allocation1], 35
      %8538 = vst [vmem:[%s8537] ss:$4 sm:$0xff] %v6849
      %v8539 = vld.sshfl [vmem:[#allocation1] sm:$0xff pattern:$0x73625140]
      %v8540 = vld.sshfl [vmem:[#allocation1 + $0x20] sm:$0xff pattern:$0x73625140]
      %8541 = vst [vmem:[#allocation1] ss:$4 sm:$0xff] %v6850
      %8542 = vst [vmem:[%s8525] ss:$4 sm:$0xff] %v6851
      %8543 = vst [vmem:[%s8527] ss:$4 sm:$0xff] %v6852
      %8544 = vst [vmem:[%s8529] ss:$4 sm:$0xff] %v6853
      %8545 = vst [vmem:[%s8531] ss:$4 sm:$0xff] %v6854
      %8546 = vst [vmem:[%s8533] ss:$4 sm:$0xff] %v6855
      %8547 = vst [vmem:[%s8535] ss:$4 sm:$0xff] %v6857
      %8548 = vst [vmem:[%s8537] ss:$4 sm:$0xff] %v6858
      %v8549 = vld.sshfl [vmem:[#allocation1] sm:$0xff pattern:$0x73625140]
      %v8550 = vld.sshfl [vmem:[#allocation1 + $0x20] sm:$0xff pattern:$0x73625140]
      %8551 = vst [vmem:[#allocation1] ss:$4 sm:$0xff] %v6859
      %8552 = vst [vmem:[%s8525] ss:$4 sm:$0xff] %v6860
      %8553 = vst [vmem:[%s8527] ss:$4 sm:$0xff] %v6861
      %8554 = vst [vmem:[%s8529] ss:$4 sm:$0xff] %v6862
      %8555 = vst [vmem:[%s8531] ss:$4 sm:$0xff] %v6863
      %8556 = vst [vmem:[%s8533] ss:$4 sm:$0xff] %v6857
      %8557 = vst [vmem:[%s8535] ss:$4 sm:$0xff] %v6858
      %8558 = vst [vmem:[%s8537] ss:$4 sm:$0xff] %v6859
      %v8559 = vld.sshfl [vmem:[#allocation1] sm:$0xff pattern:$0x73625140]
      %v8560 = vld.sshfl [vmem:[#allocation1 + $0x20] sm:$0xff pattern:$0x73625140]
      %8561 = vst [vmem:[#allocation1] ss:$4 sm:$0xff] %v6860
      %8562 = vst [vmem:[%s8525] ss:$4 sm:$0xff] %v6861
      %8563 = vst [vmem:[%s8527] ss:$4 sm:$0xff] %v6862
      %8564 = vst [vmem:[%s8529] ss:$4 sm:$0xff] %v6863
      %8565 = vst [vmem:[%s8531] ss:$4 sm:$0xff] %v6865
      %8566 = vst [vmem:[%s8533] ss:$4 sm:$0xff] %v6866
      %8567 = vst [vmem:[%s8535] ss:$4 sm:$0xff] %v6867
      %8568 = vst [vmem:[%s8537] ss:$4 sm:$0xff] %v6868
      %v8569 = vld.sshfl [vmem:[#allocation1] sm:$0xff pattern:$0x73625140]
      %v8570 = vld.sshfl [vmem:[#allocation1 + $0x20] sm:$0xff pattern:$0x73625140]
      %8571 = vst [vmem:[#allocation1] ss:$4 sm:$0xff] %v6869
      %8572 = vst [vmem:[%s8525] ss:$4 sm:$0xff] %v6870
      %8573 = vst [vmem:[%s8527] ss:$4 sm:$0xff] %v6871
      %8574 = vst [vmem:[%s8529] ss:$4 sm:$0xff] %v6865
      %8575 = vst [vmem:[%s8531] ss:$4 sm:$0xff] %v6866
      %8576 = vst [vmem:[%s8533] ss:$4 sm:$0xff] %v6867
      %8577 = vst [vmem:[%s8535] ss:$4 sm:$0xff] %v6868
      %8578 = vst [vmem:[%s8537] ss:$4 sm:$0xff] %v6869
      %v8579 = vld.sshfl [vmem:[#allocation1] sm:$0xff pattern:$0x73625140]
      %v8580 = vld.sshfl [vmem:[#allocation1 + $0x20] sm:$0xff pattern:$0x73625140]
      %8581 = vst [vmem:[#allocation1] ss:$4 sm:$0xff] %v6870
      %8582 = vst [vmem:[%s8525] ss:$4 sm:$0xff] %v6871
      %8583 = vst [vmem:[%s8527] ss:$4 sm:$0xff] %v6873
      %8584 = vst [vmem:[%s8529] ss:$4 sm:$0xff] %v6874
      %8585 = vst [vmem:[%s8531] ss:$4 sm:$0xff] %v6875
      %8586 = vst [vmem:[%s8533] ss:$4 sm:$0xff] %v6876
      %8587 = vst [vmem:[%s8535] ss:$4 sm:$0xff] %v6877
      %8588 = vst [vmem:[%s8537] ss:$4 sm:$0xff] %v6878
      %v8589 = vld.sshfl [vmem:[#allocation1] sm:$0xff pattern:$0x73625140]
      %v8590 = vld.sshfl [vmem:[#allocation1 + $0x20] sm:$0xff pattern:$0x73625140]
      %8591 = vst [vmem:[#allocation1] ss:$4 sm:$0xff] %v6879
      %8592 = vst [vmem:[%s8525] ss:$4 sm:$0xff] %v6873
      %8593 = vst [vmem:[%s8527] ss:$4 sm:$0xff] %v6874
      %8594 = vst [vmem:[%s8529] ss:$4 sm:$0xff] %v6875
      %8595 = vst [vmem:[%s8531] ss:$4 sm:$0xff] %v6876
      %8596 = vst [vmem:[%s8533] ss:$4 sm:$0xff] %v6877
      %8597 = vst [vmem:[%s8535] ss:$4 sm:$0xff] %v6878
      %8598 = vst [vmem:[%s8537] ss:$4 sm:$0xff] %v6879
      %v8599 = vld.sshfl [vmem:[#allocation1] sm:$0xff pattern:$0x73625140]
      %v8600 = vld.sshfl [vmem:[#allocation1 + $0x20] sm:$0xff pattern:$0x73625140]
      %8601 = vst [vmem:[#allocation1] ss:$4 sm:$0xff] %v6881
      %8602 = vst [vmem:[%s8525] ss:$4 sm:$0xff] %v6882
      %8603 = vst [vmem:[%s8527] ss:$4 sm:$0xff] %v6883
      %8604 = vst [vmem:[%s8529] ss:$4 sm:$0xff] %v6884
      %8605 = vst [vmem:[%s8531] ss:$4 sm:$0xff] %v6885
      %8606 = vst [vmem:[%s8533] ss:$4 sm:$0xff] %v6886
      %8607 = vst [vmem:[%s8535] ss:$4 sm:$0xff] %v6887
      %8608 = vst [vmem:[%s8537] ss:$4 sm:$0xff] %v6881
      %v8609 = vld.sshfl [vmem:[#allocation1] sm:$0xff pattern:$0x73625140]
      %v8610 = vld.sshfl [vmem:[#allocation1 + $0x20] sm:$0xff pattern:$0x73625140]
      %8611 = vst [vmem:[#allocation1] ss:$4 sm:$0xff] %v6882
      %8612 = vst [vmem:[%s8525] ss:$4 sm:$0xff] %v6883
      %8613 = vst [vmem:[%s8527] ss:$4 sm:$0xff] %v6884
      %8614 = vst [vmem:[%s8529] ss:$4 sm:$0xff] %v6885
      %8615 = vst [vmem:[%s8531] ss:$4 sm:$0xff] %v6886
      %8616 = vst [vmem:[%s8533] ss:$4 sm:$0xff] %v6887
      %8617 = vst [vmem:[%s8535] ss:$4 sm:$0xff] %v6889
      %8618 = vst [vmem:[%s8537] ss:$4 sm:$0xff] %v6890
      %v8619 = vld.sshfl [vmem:[#allocation1] sm:$0xff pattern:$0x73625140]
      %v8620 = vld.sshfl [vmem:[#allocation1 + $0x20] sm:$0xff pattern:$0x73625140]
      %8621 = vst [vmem:[#allocation1] ss:$4 sm:$0xff] %v6891
      %8622 = vst [vmem:[%s8525] ss:$4 sm:$0xff] %v6892
      %8623 = vst [vmem:[%s8527] ss:$4 sm:$0xff] %v6893
      %8624 = vst [vmem:[%s8529] ss:$4 sm:$0xff] %v6894
      %8625 = vst [vmem:[%s8531] ss:$4 sm:$0xff] %v6895
      %8626 = vst [vmem:[%s8533] ss:$4 sm:$0xff] %v6889
      %8627 = vst [vmem:[%s8535] ss:$4 sm:$0xff] %v6890
      %8628 = vst [vmem:[%s8537] ss:$4 sm:$0xff] %v6891
      %v8629 = vld.sshfl [vmem:[#allocation1] sm:$0xff pattern:$0x73625140]
      %v8630 = vld.sshfl [vmem:[#allocation1 + $0x20] sm:$0xff pattern:$0x73625140]
      %8631 = vst [vmem:[#allocation1] ss:$4 sm:$0xff] %v6892
      %8632 = vst [vmem:[%s8525] ss:$4 sm:$0xff] %v6893
      %8633 = vst [vmem:[%s8527] ss:$4 sm:$0xff] %v6894
      %8634 = vst [vmem:[%s8529] ss:$4 sm:$0xff] %v6895
      %8635 = vst [vmem:[%s8531] ss:$4 sm:$0xff] %v6897
      %8636 = vst [vmem:[%s8533] ss:$4 sm:$0xff] %v6898
      %8637 = vst [vmem:[%s8535] ss:$4 sm:$0xff] %v6899
      %8638 = vst [vmem:[%s8537] ss:$4 sm:$0xff] %v6900
      %v8639 = vld.sshfl [vmem:[#allocation1] sm:$0xff pattern:$0x73625140]
      %v8640 = vld.sshfl [vmem:[#allocation1 + $0x20] sm:$0xff pattern:$0x73625140]
      %8641 = vst [vmem:[#allocation1] ss:$4 sm:$0xff] %v6901
      %8642 = vst [vmem:[%s8525] ss:$4 sm:$0xff] %v6902
      %8643 = vst [vmem:[%s8527] ss:$4 sm:$0xff] %v6903
      %8644 = vst [vmem:[%s8529] ss:$4 sm:$0xff] %v6897
      %8645 = vst [vmem:[%s8531] ss:$4 sm:$0xff] %v6898
      %8646 = vst [vmem:[%s8533] ss:$4 sm:$0xff] %v6899
      %8647 = vst [vmem:[%s8535] ss:$4 sm:$0xff] %v6900
      %8648 = vst [vmem:[%s8537] ss:$4 sm:$0xff] %v6901
      %v8649 = vld.sshfl [vmem:[#allocation1] sm:$0xff pattern:$0x73625140]
      %v8650 = vld.sshfl [vmem:[#allocation1 + $0x20] sm:$0xff pattern:$0x73625140]
      %8651 = vst [vmem:[#allocation1] ss:$4 sm:$0xff] %v6902
      %8652 = vst [vmem:[%s8525] ss:$4 sm:$0xff] %v6903
      %v8653 = vld.sshfl [vmem:[#allocation1] sm:$0xff pattern:$0x73625140]
      %v8679 = vsel %vm3385, %v7099, %v7370
      %v8680 = vsel %vm3385, %v7100, %v7372
      %v8681 = vsel %vm3385, %v7109, %v7374
      %v8682 = vsel %vm3385, %v7110, %v7376
      %v8683 = vsel %vm3385, %v7119, %v7378
      %v8684 = vsel %vm3385, %v7120, %v7380
      %v8685 = vsel %vm3385, %v7129, %v7382
      %v8686 = vsel %vm3385, %v7130, %v7384
      %v8687 = vsel %vm3385, %v7139, %v7386
      %v8688 = vsel %vm3385, %v7140, %v7388
      %v8689 = vsel %vm3385, %v7149, %v7390
      %v8690 = vsel %vm3385, %v7150, %v7392
      %v8691 = vsel %vm3385, %v7159, %v7394
      %v8692 = vsel %vm3385, %v7160, %v7396
      %v8693 = vsel %vm3385, %v7169, %v7398
      %v8694 = vsel %vm3385, %v7170, %v7400
      %v8695 = vsel %vm3385, %v7179, %v7402
      %v8696 = vsel %vm3385, %v7180, %v7404
      %v8697 = vsel %vm3385, %v7189, %v7406
      %v8698 = vsel %vm3385, %v7190, %v7408
      %v8699 = vsel %vm3385, %v7199, %v7410
      %v8700 = vsel %vm3385, %v7200, %v7412
      %v8701 = vsel %vm3385, %v7209, %v7414
      %v8702 = vsel %vm3385, %v7210, %v7416
      %v8703 = vsel %vm3385, %v7213, %v7418
      %v8704 = vsel %vm3385, %v7459, %v7730
      %v8705 = vsel %vm3385, %v7460, %v7732
      %v8706 = vsel %vm3385, %v7469, %v7734
      %v8707 = vsel %vm3385, %v7470, %v7736
      %v8708 = vsel %vm3385, %v7479, %v7738
      %v8709 = vsel %vm3385, %v7480, %v7740
      %v8710 = vsel %vm3385, %v7489, %v7742
      %v8711 = vsel %vm3385, %v7490, %v7744
      %v8712 = vsel %vm3385, %v7499, %v7746
      %v8713 = vsel %vm3385, %v7500, %v7748
      %v8714 = vsel %vm3385, %v7509, %v7750
      %v8715 = vsel %vm3385, %v7510, %v7752
      %v8716 = vsel %vm3385, %v7519, %v7754
      %v8717 = vsel %vm3385, %v7520, %v7756
      %v8718 = vsel %vm3385, %v7529, %v7758
      %v8719 = vsel %vm3385, %v7530, %v7760
      %v8720 = vsel %vm3385, %v7539, %v7762
      %v8721 = vsel %vm3385, %v7540, %v7764
      %v8722 = vsel %vm3385, %v7549, %v7766
      %v8723 = vsel %vm3385, %v7550, %v7768
      %v8724 = vsel %vm3385, %v7559, %v7770
      %v8725 = vsel %vm3385, %v7560, %v7772
      %v8726 = vsel %vm3385, %v7569, %v7774
      %v8727 = vsel %vm3385, %v7570, %v7776
      %v8728 = vsel %vm3385, %v7573, %v7778
      %v8729 = vsel %vm3385, %v7819, %v8090
      %v8730 = vsel %vm3385, %v7820, %v8092
      %v8731 = vsel %vm3385, %v7829, %v8094
      %v8732 = vsel %vm3385, %v7830, %v8096
      %v8733 = vsel %vm3385, %v7839, %v8098
      %v8734 = vsel %vm3385, %v7840, %v8100
      %v8735 = vsel %vm3385, %v7849, %v8102
      %v8736 = vsel %vm3385, %v7850, %v8104
      %v8737 = vsel %vm3385, %v7859, %v8106
      %v8738 = vsel %vm3385, %v7860, %v8108
      %v8739 = vsel %vm3385, %v7869, %v8110
      %v8740 = vsel %vm3385, %v7870, %v8112
      %v8741 = vsel %vm3385, %v7879, %v8114
      %v8742 = vsel %vm3385, %v7880, %v8116
      %v8743 = vsel %vm3385, %v7889, %v8118
      %v8744 = vsel %vm3385, %v7890, %v8120
      %v8745 = vsel %vm3385, %v7899, %v8122
      %v8746 = vsel %vm3385, %v7900, %v8124
      %v8747 = vsel %vm3385, %v7909, %v8126
      %v8748 = vsel %vm3385, %v7910, %v8128
      %v8749 = vsel %vm3385, %v7919, %v8130
      %v8750 = vsel %vm3385, %v7920, %v8132
      %v8751 = vsel %vm3385, %v7929, %v8134
      %v8752 = vsel %vm3385, %v7930, %v8136
      %v8753 = vsel %vm3385, %v7933, %v8138
      %v8754 = vsel %vm3385, %v8179, %v8450
      %v8755 = vsel %vm3385, %v8180, %v8452
      %v8756 = vsel %vm3385, %v8189, %v8454
      %v8757 = vsel %vm3385, %v8190, %v8456
      %v8758 = vsel %vm3385, %v8199, %v8458
      %v8759 = vsel %vm3385, %v8200, %v8460
      %v8760 = vsel %vm3385, %v8209, %v8462
      %v8761 = vsel %vm3385, %v8210, %v8464
      %v8762 = vsel %vm3385, %v8219, %v8466
      %v8763 = vsel %vm3385, %v8220, %v8468
      %v8764 = vsel %vm3385, %v8229, %v8470
      %v8765 = vsel %vm3385, %v8230, %v8472
      %v8766 = vsel %vm3385, %v8239, %v8474
      %v8767 = vsel %vm3385, %v8240, %v8476
      %v8768 = vsel %vm3385, %v8249, %v8478
      %v8769 = vsel %vm3385, %v8250, %v8480
      %v8770 = vsel %vm3385, %v8259, %v8482
      %v8771 = vsel %vm3385, %v8260, %v8484
      %v8772 = vsel %vm3385, %v8269, %v8486
      %v8773 = vsel %vm3385, %v8270, %v8488
      %v8774 = vsel %vm3385, %v8279, %v8490
      %v8775 = vsel %vm3385, %v8280, %v8492
      %v8776 = vsel %vm3385, %v8289, %v8494
      %v8777 = vsel %vm3385, %v8290, %v8496
      %v8778 = vsel %vm3385, %v8293, %v8498
      %v8779 = vpack.c.bf16 %v8680, %v8679
      %v8780 = vpack.c.bf16 %v8705, %v8704
      %v8781 = vpack.c.bf16 %v8730, %v8729
      %v8782 = vpack.c.bf16 %v8755, %v8754
      %v8783 = vpack.c.bf16 %v8540, %v8539
      %v8784 = vpack.c.bf16 %v8682, %v8681
      %v8785 = vpack.c.bf16 %v8707, %v8706
      %v8786 = vpack.c.bf16 %v8732, %v8731
      %v8787 = vpack.c.bf16 %v8757, %v8756
      %v8788 = vpack.c.bf16 %v8550, %v8549
      %v8789 = vpack.c.bf16 %v8684, %v8683
      %v8790 = vpack.c.bf16 %v8709, %v8708
      %v8791 = vpack.c.bf16 %v8734, %v8733
      %v8792 = vpack.c.bf16 %v8759, %v8758
      %v8793 = vpack.c.bf16 %v8560, %v8559
      %v8794 = vpack.c.bf16 %v8686, %v8685
      %v8795 = vpack.c.bf16 %v8711, %v8710
      %v8796 = vpack.c.bf16 %v8736, %v8735
      %v8797 = vpack.c.bf16 %v8761, %v8760
      %v8798 = vpack.c.bf16 %v8570, %v8569
      %v8799 = vpack.c.bf16 %v8688, %v8687
      %v8800 = vpack.c.bf16 %v8713, %v8712
      %v8801 = vpack.c.bf16 %v8738, %v8737
      %v8802 = vpack.c.bf16 %v8763, %v8762
      %v8803 = vpack.c.bf16 %v8580, %v8579
      %v8804 = vpack.c.bf16 %v8690, %v8689
      %v8805 = vpack.c.bf16 %v8715, %v8714
      %v8806 = vpack.c.bf16 %v8740, %v8739
      %v8807 = vpack.c.bf16 %v8765, %v8764
      %v8808 = vpack.c.bf16 %v8590, %v8589
      %v8809 = vpack.c.bf16 %v8692, %v8691
      %v8810 = vpack.c.bf16 %v8717, %v8716
      %v8811 = vpack.c.bf16 %v8742, %v8741
      %v8812 = vpack.c.bf16 %v8767, %v8766
      %v8813 = vpack.c.bf16 %v8600, %v8599
      %v8814 = vpack.c.bf16 %v8694, %v8693
      %v8815 = vpack.c.bf16 %v8719, %v8718
      %v8816 = vpack.c.bf16 %v8744, %v8743
      %v8817 = vpack.c.bf16 %v8769, %v8768
      %v8818 = vpack.c.bf16 %v8610, %v8609
      %v8819 = vpack.c.bf16 %v8696, %v8695
      %v8820 = vpack.c.bf16 %v8721, %v8720
      %v8821 = vpack.c.bf16 %v8746, %v8745
      %v8822 = vpack.c.bf16 %v8771, %v8770
      %v8823 = vpack.c.bf16 %v8620, %v8619
      %v8824 = vpack.c.bf16 %v8698, %v8697
      %v8825 = vpack.c.bf16 %v8723, %v8722
      %v8826 = vpack.c.bf16 %v8748, %v8747
      %v8827 = vpack.c.bf16 %v8773, %v8772
      %v8828 = vpack.c.bf16 %v8630, %v8629
      %v8829 = vpack.c.bf16 %v8700, %v8699
      %v8830 = vpack.c.bf16 %v8725, %v8724
      %v8831 = vpack.c.bf16 %v8750, %v8749
      %v8832 = vpack.c.bf16 %v8775, %v8774
      %v8833 = vpack.c.bf16 %v8640, %v8639
      %v8834 = vpack.c.bf16 %v8702, %v8701
      %v8835 = vpack.c.bf16 %v8727, %v8726
      %v8836 = vpack.c.bf16 %v8752, %v8751
      %v8837 = vpack.c.bf16 %v8777, %v8776
      %v8838 = vpack.c.bf16 %v8650, %v8649
      %v8839 = vpack.c.bf16 %v8703, %v8703
      %v8840 = vpack.c.bf16 %v8728, %v8728
      %v8841 = vpack.c.bf16 %v8753, %v8753
      %v8842 = vpack.c.bf16 %v8778, %v8778
      %v8843 = vpack.c.bf16 %v8653, %v8653
      %v8844 = vld [vmem:[%s9] sm:$0xf]
      %v8845 = vld [vmem:[%s9 + $0x4] sm:$0xf]
      %v8846 = vld [vmem:[%s9 + $0x8] sm:$0xf]
      %v8847 = vld [vmem:[%s9 + $0xc] sm:$0xf]
      %v8848 = vld [vmem:[%s9 + $0x10] sm:$0xf]
      %v8849 = vld [vmem:[%s9 + $0x14] sm:$0xf]
      %v8850 = vld [vmem:[%s9 + $0x18] sm:$0xf]
      %v8851 = vld [vmem:[%s9 + $0x1c] sm:$0xf]
      %v8852 = vld [vmem:[%s9 + $0x20] sm:$0xf]
      %v8853 = vld [vmem:[%s9 + $0x24] sm:$0xf]
      %v8854 = vld [vmem:[%s9 + $0x28] sm:$0xf]
      %v8855 = vld [vmem:[%s9 + $0x2c] sm:$0xf]
      %v8856 = vld [vmem:[%s9 + $0x30] sm:$0xf]
      %v8857 = vld [vmem:[%s9 + $0x34] sm:$0xf]
      %v8858 = vld [vmem:[%s9 + $0x38] sm:$0xf]
      %v8859 = vld [vmem:[%s9 + $0x3c] sm:$0xf]
      %v8860 = vld [vmem:[%s9 + $0x40] sm:$0xf]
      %v8861 = vld [vmem:[%s9 + $0x44] sm:$0xf]
      %v8862 = vld [vmem:[%s9 + $0x48] sm:$0xf]
      %v8863 = vld [vmem:[%s9 + $0x4c] sm:$0xf]
      %v8864 = vld [vmem:[%s9 + $0x50] sm:$0xf]
      %v8865 = vld [vmem:[%s9 + $0x54] sm:$0xf]
      %v8866 = vld [vmem:[%s9 + $0x58] sm:$0xf]
      %v8867 = vld [vmem:[%s9 + $0x5c] sm:$0xf]
      %v8868 = vld [vmem:[%s9 + $0x60] sm:$0xf]
      %v8869 = vld [vmem:[%s9 + $0x64] sm:$0xf]
      %v8870 = vld [vmem:[%s9 + $0x68] sm:$0xf]
      %v8871 = vld [vmem:[%s9 + $0x6c] sm:$0xf]
      %v8872 = vld [vmem:[%s9 + $0x70] sm:$0xf]
      %v8873 = vld [vmem:[%s9 + $0x74] sm:$0xf]
      %v8874 = vld [vmem:[%s9 + $0x78] sm:$0xf]
      %v8875 = vld [vmem:[%s9 + $0x7c] sm:$0xf]
      %v8876 = vld [vmem:[%s9 + $0x80] sm:$0xf]
      %v8877 = vld [vmem:[%s9 + $0x84] sm:$0xf]
      %v8878 = vld [vmem:[%s9 + $0x88] sm:$0xf]
      %v8879 = vld [vmem:[%s9 + $0x8c] sm:$0xf]
      %v8880 = vld [vmem:[%s9 + $0x90] sm:$0xf]
      %v8881 = vld [vmem:[%s9 + $0x94] sm:$0xf]
      %v8882 = vld [vmem:[%s9 + $0x98] sm:$0xf]
      %v8883 = vld [vmem:[%s9 + $0x9c] sm:$0xf]
      %v8884 = vld [vmem:[%s9 + $0xa0] sm:$0xf]
      %v8885 = vld [vmem:[%s9 + $0xa4] sm:$0xf]
      %v8886 = vld [vmem:[%s9 + $0xa8] sm:$0xf]
      %v8887 = vld [vmem:[%s9 + $0xac] sm:$0xf]
      %v8888 = vld [vmem:[%s9 + $0xb0] sm:$0xf]
      %v8889 = vld [vmem:[%s9 + $0xb4] sm:$0xf]
      %v8890 = vld [vmem:[%s9 + $0xb8] sm:$0xf]
      %v8891 = vld [vmem:[%s9 + $0xbc] sm:$0xf]
      %v8892 = vld [vmem:[%s9 + $0xc0] sm:$0xf]
      %v8893 = vld [vmem:[%s9 + $0xc4] sm:$0xf]
      %v8894 = vld [vmem:[%s9 + $0xc8] sm:$0xf]
      %v8895 = vld [vmem:[%s9 + $0xcc] sm:$0xf]
      %v8896 = vld [vmem:[%s9 + $0xd0] sm:$0xf]
      %v8897 = vld [vmem:[%s9 + $0xd4] sm:$0xf]
      %v8898 = vld [vmem:[%s9 + $0xd8] sm:$0xf]
      %v8899 = vld [vmem:[%s9 + $0xdc] sm:$0xf]
      %v8900 = vld [vmem:[%s9 + $0xe0] sm:$0xf]
      %v8901 = vld [vmem:[%s9 + $0xe4] sm:$0xf]
      %v8902 = vld [vmem:[%s9 + $0xe8] sm:$0xf]
      %v8903 = vld [vmem:[%s9 + $0xec] sm:$0xf]
      %v8904 = vld [vmem:[%s9 + $0xf0] sm:$0xf]
      %v8905 = vld [vmem:[%s9 + $0xf4] sm:$0xf]
      %v8906 = vld [vmem:[%s9 + $0xf8] sm:$0xf]
      %v8907 = vld [vmem:[%s9 + $0xfc] sm:$0xf]
      %v8908 = vld [vmem:[%s9 + $0x100] sm:$0xf]
      %v8909 = vld [vmem:[%s9 + $0x104] sm:$0xf]
      %v8910 = vld [vmem:[%s9 + $0x108] sm:$0xf]
      %v8911 = vld [vmem:[%s9 + $0x10c] sm:$0xf]
      %v8912 = vld [vmem:[%s9 + $0x110] sm:$0xf]
      %v8913 = vld [vmem:[%s9 + $0x114] sm:$0xf]
      %v8914 = vld [vmem:[%s9 + $0x118] sm:$0xf]
      %v8915 = vld [vmem:[%s9 + $0x11c] sm:$0xf]
      %v8916 = vld [vmem:[%s10] sm:$0x1]
      %v8918 = vperm.slane %v8916, 0
      %v8992 = vunpack.c.l.b16 %v8844
      %v8993 = vunpack.c.l.b16 %v8845
      %v8994 = vunpack.c.l.b16 %v8846
      %v8995 = vunpack.c.l.b16 %v8847
      %v8996 = vunpack.c.l.b16 %v8848
      %v8997 = vunpack.c.l.b16 %v8849
      %v8998 = vunpack.c.l.b16 %v8850
      %v8999 = vunpack.c.l.b16 %v8851
      %v9000 = vunpack.c.l.b16 %v8852
      %v9001 = vunpack.c.l.b16 %v8853
      %v9002 = vunpack.c.l.b16 %v8854
      %v9003 = vunpack.c.l.b16 %v8855
      %v9004 = vunpack.c.l.b16 %v8856
      %v9005 = vunpack.c.l.b16 %v8857
      %v9006 = vunpack.c.l.b16 %v8858
      %v9007 = vunpack.c.l.b16 %v8859
      %v9008 = vunpack.c.l.b16 %v8860
      %v9009 = vunpack.c.l.b16 %v8861
      %v9010 = vunpack.c.l.b16 %v8862
      %v9011 = vunpack.c.l.b16 %v8863
      %v9012 = vunpack.c.l.b16 %v8864
      %v9013 = vunpack.c.l.b16 %v8865
      %v9014 = vunpack.c.l.b16 %v8866
      %v9015 = vunpack.c.l.b16 %v8867
      %v9016 = vunpack.c.l.b16 %v8868
      %v9017 = vunpack.c.l.b16 %v8869
      %v9018 = vunpack.c.l.b16 %v8870
      %v9019 = vunpack.c.l.b16 %v8871
      %v9020 = vunpack.c.l.b16 %v8872
      %v9021 = vunpack.c.l.b16 %v8873
      %v9022 = vunpack.c.l.b16 %v8874
      %v9023 = vunpack.c.l.b16 %v8875
      %v9024 = vunpack.c.l.b16 %v8876
      %v9025 = vunpack.c.l.b16 %v8877
      %v9026 = vunpack.c.l.b16 %v8878
      %v9027 = vunpack.c.l.b16 %v8879
      %v9028 = vunpack.c.l.b16 %v8880
      %v9029 = vunpack.c.l.b16 %v8881
      %v9030 = vunpack.c.l.b16 %v8882
      %v9031 = vunpack.c.l.b16 %v8883
      %v9032 = vunpack.c.l.b16 %v8884
      %v9033 = vunpack.c.l.b16 %v8885
      %v9034 = vunpack.c.l.b16 %v8886
      %v9035 = vunpack.c.l.b16 %v8887
      %v9036 = vunpack.c.l.b16 %v8888
      %v9037 = vunpack.c.l.b16 %v8889
      %v9038 = vunpack.c.l.b16 %v8890
      %v9039 = vunpack.c.l.b16 %v8891
      %v9040 = vunpack.c.l.b16 %v8892
      %v9041 = vunpack.c.l.b16 %v8893
      %v9042 = vunpack.c.l.b16 %v8894
      %v9043 = vunpack.c.l.b16 %v8895
      %v9044 = vunpack.c.l.b16 %v8896
      %v9045 = vunpack.c.l.b16 %v8897
      %v9046 = vunpack.c.l.b16 %v8898
      %v9047 = vunpack.c.l.b16 %v8899
      %v9048 = vunpack.c.l.b16 %v8900
      %v9049 = vunpack.c.l.b16 %v8901
      %v9050 = vunpack.c.l.b16 %v8902
      %v9051 = vunpack.c.l.b16 %v8903
      %v9052 = vunpack.c.l.b16 %v8904
      %v9053 = vunpack.c.l.b16 %v8905
      %v9054 = vunpack.c.l.b16 %v8906
      %v9055 = vunpack.c.l.b16 %v8907
      %v9056 = vunpack.c.l.b16 %v8908
      %v9057 = vunpack.c.l.b16 %v8909
      %v9058 = vunpack.c.l.b16 %v8910
      %v9059 = vunpack.c.l.b16 %v8911
      %v9060 = vunpack.c.l.b16 %v8912
      %v9061 = vunpack.c.l.b16 %v8913
      %v9062 = vunpack.c.l.b16 %v8914
      %v9063 = vunpack.c.l.b16 %v8915
      %v9064 = vpack.c.b16 %v8993, %v8992
      %v9065 = vpack.c.b16 %v8995, %v8994
      %v9066 = vpack.c.b16 %v8997, %v8996
      %v9067 = vpack.c.b16 %v8999, %v8998
      %v9068 = vpack.c.b16 %v9001, %v9000
      %v9069 = vpack.c.b16 %v9003, %v9002
      %v9070 = vpack.c.b16 %v9005, %v9004
      %v9071 = vpack.c.b16 %v9007, %v9006
      %v9072 = vpack.c.b16 %v9009, %v9008
      %v9073 = vpack.c.b16 %v9011, %v9010
      %v9074 = vpack.c.b16 %v9013, %v9012
      %v9075 = vpack.c.b16 %v9015, %v9014
      %v9076 = vpack.c.b16 %v9017, %v9016
      %v9077 = vpack.c.b16 %v9019, %v9018
      %v9078 = vpack.c.b16 %v9021, %v9020
      %v9079 = vpack.c.b16 %v9023, %v9022
      %v9080 = vpack.c.b16 %v9025, %v9024
      %v9081 = vpack.c.b16 %v9027, %v9026
      %v9082 = vpack.c.b16 %v9029, %v9028
      %v9083 = vpack.c.b16 %v9031, %v9030
      %v9084 = vpack.c.b16 %v9033, %v9032
      %v9085 = vpack.c.b16 %v9035, %v9034
      %v9086 = vpack.c.b16 %v9037, %v9036
      %v9087 = vpack.c.b16 %v9039, %v9038
      %v9088 = vpack.c.b16 %v9041, %v9040
      %v9089 = vpack.c.b16 %v9043, %v9042
      %v9090 = vpack.c.b16 %v9045, %v9044
      %v9091 = vpack.c.b16 %v9047, %v9046
      %v9092 = vpack.c.b16 %v9049, %v9048
      %v9093 = vpack.c.b16 %v9051, %v9050
      %v9094 = vpack.c.b16 %v9053, %v9052
      %v9095 = vpack.c.b16 %v9055, %v9054
      %v9096 = vpack.c.b16 %v9057, %v9056
      %v9097 = vpack.c.b16 %v9059, %v9058
      %v9098 = vpack.c.b16 %v9061, %v9060
      %v9099 = vpack.c.b16 %v9063, %v9062
      %v9137 = vsel %vm3385, %v8783, 0
      %v9140 = vsel %vm3385, %v8788, 0
      %v9143 = vsel %vm3385, %v8793, 0
      %v9146 = vsel %vm3385, %v8798, 0
      %v9149 = vsel %vm3385, %v8803, 0
      %v9152 = vsel %vm3385, %v8808, 0
      %v9155 = vsel %vm3385, %v8813, 0
      %v9158 = vsel %vm3385, %v8818, 0
      %v9161 = vsel %vm3385, %v8823, 0
      %v9164 = vsel %vm3385, %v8828, 0
      %v9167 = vsel %vm3385, %v8833, 0
      %v9170 = vsel %vm3385, %v8838, 0
      %v9173 = vsel %vm3385, %v8843, 0
      %9175 = vmatpush.bf16.msra.mxu0 %v9071
      %9176 = vmatpush.bf16.msra.mxu0 %v9070
      %9177 = vmatpush.bf16.msra.mxu0 %v9069
      %9178 = vmatpush.bf16.msra.mxu0 %v9068
      %9179 = vmatpush.bf16.msra.mxu0 %v9067
      %9180 = vmatpush.bf16.msra.mxu0 %v9066
      %9181 = vmatpush.bf16.msra.mxu0 %v9065
      %9182 = vmatpush.bf16.msra.mxu0 %v9064
      %9183 = vmatmul.bf16.gmra.mxu0 %v8779
      %v9184 = vpop.f32.mrf.mxu0
      %v9185 = vadd.f32 %v8918, %v9184
      %v9186 = vpop.f32.mrf.mxu0
      %v9187 = vadd.f32 %v8918, %v9186
      %9188 = vmatmul.bf16.gmra.mxu0 %v8784
      %v9189 = vpop.f32.mrf.mxu0
      %v9190 = vadd.f32 %v8918, %v9189
      %v9191 = vpop.f32.mrf.mxu0
      %v9192 = vadd.f32 %v8918, %v9191
      %9193 = vmatmul.bf16.gmra.mxu0 %v8789
      %v9194 = vpop.f32.mrf.mxu0
      %v9195 = vadd.f32 %v8918, %v9194
      %v9196 = vpop.f32.mrf.mxu0
      %v9197 = vadd.f32 %v8918, %v9196
      %9198 = vmatmul.bf16.gmra.mxu0 %v8794
      %v9199 = vpop.f32.mrf.mxu0
      %v9200 = vadd.f32 %v8918, %v9199
      %v9201 = vpop.f32.mrf.mxu0
      %v9202 = vadd.f32 %v8918, %v9201
      %9203 = vmatmul.bf16.gmra.mxu0 %v8799
      %v9204 = vpop.f32.mrf.mxu0
      %v9205 = vadd.f32 %v8918, %v9204
      %v9206 = vpop.f32.mrf.mxu0
      %v9207 = vadd.f32 %v8918, %v9206
      %9208 = vmatmul.bf16.gmra.mxu0 %v8804
      %v9209 = vpop.f32.mrf.mxu0
      %v9210 = vadd.f32 %v8918, %v9209
      %v9211 = vpop.f32.mrf.mxu0
      %v9212 = vadd.f32 %v8918, %v9211
      %9213 = vmatmul.bf16.gmra.mxu0 %v8809
      %v9214 = vpop.f32.mrf.mxu0
      %v9215 = vadd.f32 %v8918, %v9214
      %v9216 = vpop.f32.mrf.mxu0
      %v9217 = vadd.f32 %v8918, %v9216
      %9218 = vmatmul.bf16.gmra.mxu0 %v8814
      %v9219 = vpop.f32.mrf.mxu0
      %v9220 = vadd.f32 %v8918, %v9219
      %v9221 = vpop.f32.mrf.mxu0
      %v9222 = vadd.f32 %v8918, %v9221
      %9223 = vmatmul.bf16.gmra.mxu0 %v8819
      %v9224 = vpop.f32.mrf.mxu0
      %v9225 = vadd.f32 %v8918, %v9224
      %v9226 = vpop.f32.mrf.mxu0
      %v9227 = vadd.f32 %v8918, %v9226
      %9228 = vmatmul.bf16.gmra.mxu0 %v8824
      %v9229 = vpop.f32.mrf.mxu0
      %v9230 = vadd.f32 %v8918, %v9229
      %v9231 = vpop.f32.mrf.mxu0
      %v9232 = vadd.f32 %v8918, %v9231
      %9233 = vmatmul.bf16.gmra.mxu0 %v8829
      %v9234 = vpop.f32.mrf.mxu0
      %v9235 = vadd.f32 %v8918, %v9234
      %v9236 = vpop.f32.mrf.mxu0
      %v9237 = vadd.f32 %v8918, %v9236
      %9238 = vmatmul.bf16.gmra.mxu0 %v8834
      %v9239 = vpop.f32.mrf.mxu0
      %v9240 = vadd.f32 %v8918, %v9239
      %v9241 = vpop.f32.mrf.mxu0
      %v9242 = vadd.f32 %v8918, %v9241
      %9243 = vmatmul.bf16.gmra.mxu0 %v8839
      %v9244 = vpop.f32.mrf.mxu0
      %v9245 = vadd.f32 %v8918, %v9244
      %v9246 = vpop.f32.mrf.mxu0
      %9247 = vdwg.mxu0
      %9248 = vmatpush.bf16.msra.mxu0 %v9079
      %9249 = vmatpush.bf16.msra.mxu0 %v9078
      %9250 = vmatpush.bf16.msra.mxu0 %v9077
      %9251 = vmatpush.bf16.msra.mxu0 %v9076
      %9252 = vmatpush.bf16.msra.mxu0 %v9075
      %9253 = vmatpush.bf16.msra.mxu0 %v9074
      %9254 = vmatpush.bf16.msra.mxu0 %v9073
      %9255 = vmatpush.bf16.msra.mxu0 %v9072
      %9256 = vmatmul.bf16.gmra.mxu0 %v8780
      %v9257 = vpop.f32.mrf.mxu0
      %v9258 = vadd.f32 %v9185, %v9257
      %v9259 = vpop.f32.mrf.mxu0
      %v9260 = vadd.f32 %v9187, %v9259
      %9261 = vmatmul.bf16.gmra.mxu0 %v8785
      %v9262 = vpop.f32.mrf.mxu0
      %v9263 = vadd.f32 %v9190, %v9262
      %v9264 = vpop.f32.mrf.mxu0
      %v9265 = vadd.f32 %v9192, %v9264
      %9266 = vmatmul.bf16.gmra.mxu0 %v8790
      %v9267 = vpop.f32.mrf.mxu0
      %v9268 = vadd.f32 %v9195, %v9267
      %v9269 = vpop.f32.mrf.mxu0
      %v9270 = vadd.f32 %v9197, %v9269
      %9271 = vmatmul.bf16.gmra.mxu0 %v8795
      %v9272 = vpop.f32.mrf.mxu0
      %v9273 = vadd.f32 %v9200, %v9272
      %v9274 = vpop.f32.mrf.mxu0
      %v9275 = vadd.f32 %v9202, %v9274
      %9276 = vmatmul.bf16.gmra.mxu0 %v8800
      %v9277 = vpop.f32.mrf.mxu0
      %v9278 = vadd.f32 %v9205, %v9277
      %v9279 = vpop.f32.mrf.mxu0
      %v9280 = vadd.f32 %v9207, %v9279
      %9281 = vmatmul.bf16.gmra.mxu0 %v8805
      %v9282 = vpop.f32.mrf.mxu0
      %v9283 = vadd.f32 %v9210, %v9282
      %v9284 = vpop.f32.mrf.mxu0
      %v9285 = vadd.f32 %v9212, %v9284
      %9286 = vmatmul.bf16.gmra.mxu0 %v8810
      %v9287 = vpop.f32.mrf.mxu0
      %v9288 = vadd.f32 %v9215, %v9287
      %v9289 = vpop.f32.mrf.mxu0
      %v9290 = vadd.f32 %v9217, %v9289
      %9291 = vmatmul.bf16.gmra.mxu0 %v8815
      %v9292 = vpop.f32.mrf.mxu0
      %v9293 = vadd.f32 %v9220, %v9292
      %v9294 = vpop.f32.mrf.mxu0
      %v9295 = vadd.f32 %v9222, %v9294
      %9296 = vmatmul.bf16.gmra.mxu0 %v8820
      %v9297 = vpop.f32.mrf.mxu0
      %v9298 = vadd.f32 %v9225, %v9297
      %v9299 = vpop.f32.mrf.mxu0
      %v9300 = vadd.f32 %v9227, %v9299
      %9301 = vmatmul.bf16.gmra.mxu0 %v8825
      %v9302 = vpop.f32.mrf.mxu0
      %v9303 = vadd.f32 %v9230, %v9302
      %v9304 = vpop.f32.mrf.mxu0
      %v9305 = vadd.f32 %v9232, %v9304
      %9306 = vmatmul.bf16.gmra.mxu0 %v8830
      %v9307 = vpop.f32.mrf.mxu0
      %v9308 = vadd.f32 %v9235, %v9307
      %v9309 = vpop.f32.mrf.mxu0
      %v9310 = vadd.f32 %v9237, %v9309
      %9311 = vmatmul.bf16.gmra.mxu0 %v8835
      %v9312 = vpop.f32.mrf.mxu0
      %v9313 = vadd.f32 %v9240, %v9312
      %v9314 = vpop.f32.mrf.mxu0
      %v9315 = vadd.f32 %v9242, %v9314
      %9316 = vmatmul.bf16.gmra.mxu0 %v8840
      %v9317 = vpop.f32.mrf.mxu0
      %v9318 = vadd.f32 %v9245, %v9317
      %v9319 = vpop.f32.mrf.mxu0
      %9320 = vdwg.mxu0
      %9321 = vmatpush.bf16.msra.mxu0 %v9087
      %9322 = vmatpush.bf16.msra.mxu0 %v9086
      %9323 = vmatpush.bf16.msra.mxu0 %v9085
      %9324 = vmatpush.bf16.msra.mxu0 %v9084
      %9325 = vmatpush.bf16.msra.mxu0 %v9083
      %9326 = vmatpush.bf16.msra.mxu0 %v9082
      %9327 = vmatpush.bf16.msra.mxu0 %v9081
      %9328 = vmatpush.bf16.msra.mxu0 %v9080
      %9329 = vmatmul.bf16.gmra.mxu0 %v8781
      %v9330 = vpop.f32.mrf.mxu0
      %v9331 = vadd.f32 %v9258, %v9330
      %v9332 = vpop.f32.mrf.mxu0
      %v9333 = vadd.f32 %v9260, %v9332
      %9334 = vmatmul.bf16.gmra.mxu0 %v8786
      %v9335 = vpop.f32.mrf.mxu0
      %v9336 = vadd.f32 %v9263, %v9335
      %v9337 = vpop.f32.mrf.mxu0
      %v9338 = vadd.f32 %v9265, %v9337
      %9339 = vmatmul.bf16.gmra.mxu0 %v8791
      %v9340 = vpop.f32.mrf.mxu0
      %v9341 = vadd.f32 %v9268, %v9340
      %v9342 = vpop.f32.mrf.mxu0
      %v9343 = vadd.f32 %v9270, %v9342
      %9344 = vmatmul.bf16.gmra.mxu0 %v8796
      %v9345 = vpop.f32.mrf.mxu0
      %v9346 = vadd.f32 %v9273, %v9345
      %v9347 = vpop.f32.mrf.mxu0
      %v9348 = vadd.f32 %v9275, %v9347
      %9349 = vmatmul.bf16.gmra.mxu0 %v8801
      %v9350 = vpop.f32.mrf.mxu0
      %v9351 = vadd.f32 %v9278, %v9350
      %v9352 = vpop.f32.mrf.mxu0
      %v9353 = vadd.f32 %v9280, %v9352
      %9354 = vmatmul.bf16.gmra.mxu0 %v8806
      %v9355 = vpop.f32.mrf.mxu0
      %v9356 = vadd.f32 %v9283, %v9355
      %v9357 = vpop.f32.mrf.mxu0
      %v9358 = vadd.f32 %v9285, %v9357
      %9359 = vmatmul.bf16.gmra.mxu0 %v8811
      %v9360 = vpop.f32.mrf.mxu0
      %v9361 = vadd.f32 %v9288, %v9360
      %v9362 = vpop.f32.mrf.mxu0
      %v9363 = vadd.f32 %v9290, %v9362
      %9364 = vmatmul.bf16.gmra.mxu0 %v8816
      %v9365 = vpop.f32.mrf.mxu0
      %v9366 = vadd.f32 %v9293, %v9365
      %v9367 = vpop.f32.mrf.mxu0
      %v9368 = vadd.f32 %v9295, %v9367
      %9369 = vmatmul.bf16.gmra.mxu0 %v8821
      %v9370 = vpop.f32.mrf.mxu0
      %v9371 = vadd.f32 %v9298, %v9370
      %v9372 = vpop.f32.mrf.mxu0
      %v9373 = vadd.f32 %v9300, %v9372
      %9374 = vmatmul.bf16.gmra.mxu0 %v8826
      %v9375 = vpop.f32.mrf.mxu0
      %v9376 = vadd.f32 %v9303, %v9375
      %v9377 = vpop.f32.mrf.mxu0
      %v9378 = vadd.f32 %v9305, %v9377
      %9379 = vmatmul.bf16.gmra.mxu0 %v8831
      %v9380 = vpop.f32.mrf.mxu0
      %v9381 = vadd.f32 %v9308, %v9380
      %v9382 = vpop.f32.mrf.mxu0
      %v9383 = vadd.f32 %v9310, %v9382
      %9384 = vmatmul.bf16.gmra.mxu0 %v8836
      %v9385 = vpop.f32.mrf.mxu0
      %v9386 = vadd.f32 %v9313, %v9385
      %v9387 = vpop.f32.mrf.mxu0
      %v9388 = vadd.f32 %v9315, %v9387
      %9389 = vmatmul.bf16.gmra.mxu0 %v8841
      %v9390 = vpop.f32.mrf.mxu0
      %v9391 = vadd.f32 %v9318, %v9390
      %v9392 = vpop.f32.mrf.mxu0
      %9393 = vdwg.mxu0
      %9394 = vmatpush.bf16.msra.mxu0 %v9095
      %9395 = vmatpush.bf16.msra.mxu0 %v9094
      %9396 = vmatpush.bf16.msra.mxu0 %v9093
      %9397 = vmatpush.bf16.msra.mxu0 %v9092
      %9398 = vmatpush.bf16.msra.mxu0 %v9091
      %9399 = vmatpush.bf16.msra.mxu0 %v9090
      %9400 = vmatpush.bf16.msra.mxu0 %v9089
      %9401 = vmatpush.bf16.msra.mxu0 %v9088
      %9402 = vmatmul.bf16.gmra.mxu0 %v8782
      %v9403 = vpop.f32.mrf.mxu0
      %v9404 = vadd.f32 %v9331, %v9403
      %v9405 = vpop.f32.mrf.mxu0
      %v9406 = vadd.f32 %v9333, %v9405
      %9407 = vmatmul.bf16.gmra.mxu0 %v8787
      %v9408 = vpop.f32.mrf.mxu0
      %v9409 = vadd.f32 %v9336, %v9408
      %v9410 = vpop.f32.mrf.mxu0
      %v9411 = vadd.f32 %v9338, %v9410
      %9412 = vmatmul.bf16.gmra.mxu0 %v8792
      %v9413 = vpop.f32.mrf.mxu0
      %v9414 = vadd.f32 %v9341, %v9413
      %v9415 = vpop.f32.mrf.mxu0
      %v9416 = vadd.f32 %v9343, %v9415
      %9417 = vmatmul.bf16.gmra.mxu0 %v8797
      %v9418 = vpop.f32.mrf.mxu0
      %v9419 = vadd.f32 %v9346, %v9418
      %v9420 = vpop.f32.mrf.mxu0
      %v9421 = vadd.f32 %v9348, %v9420
      %9422 = vmatmul.bf16.gmra.mxu0 %v8802
      %v9423 = vpop.f32.mrf.mxu0
      %v9424 = vadd.f32 %v9351, %v9423
      %v9425 = vpop.f32.mrf.mxu0
      %v9426 = vadd.f32 %v9353, %v9425
      %9427 = vmatmul.bf16.gmra.mxu0 %v8807
      %v9428 = vpop.f32.mrf.mxu0
      %v9429 = vadd.f32 %v9356, %v9428
      %v9430 = vpop.f32.mrf.mxu0
      %v9431 = vadd.f32 %v9358, %v9430
      %9432 = vmatmul.bf16.gmra.mxu0 %v8812
      %v9433 = vpop.f32.mrf.mxu0
      %v9434 = vadd.f32 %v9361, %v9433
      %v9435 = vpop.f32.mrf.mxu0
      %v9436 = vadd.f32 %v9363, %v9435
      %9437 = vmatmul.bf16.gmra.mxu0 %v8817
      %v9438 = vpop.f32.mrf.mxu0
      %v9439 = vadd.f32 %v9366, %v9438
      %v9440 = vpop.f32.mrf.mxu0
      %v9441 = vadd.f32 %v9368, %v9440
      %9442 = vmatmul.bf16.gmra.mxu0 %v8822
      %v9443 = vpop.f32.mrf.mxu0
      %v9444 = vadd.f32 %v9371, %v9443
      %v9445 = vpop.f32.mrf.mxu0
      %v9446 = vadd.f32 %v9373, %v9445
      %9447 = vmatmul.bf16.gmra.mxu0 %v8827
      %v9448 = vpop.f32.mrf.mxu0
      %v9449 = vadd.f32 %v9376, %v9448
      %v9450 = vpop.f32.mrf.mxu0
      %v9451 = vadd.f32 %v9378, %v9450
      %9452 = vmatmul.bf16.gmra.mxu0 %v8832
      %v9453 = vpop.f32.mrf.mxu0
      %v9454 = vadd.f32 %v9381, %v9453
      %v9455 = vpop.f32.mrf.mxu0
      %v9456 = vadd.f32 %v9383, %v9455
      %9457 = vmatmul.bf16.gmra.mxu0 %v8837
      %v9458 = vpop.f32.mrf.mxu0
      %v9459 = vadd.f32 %v9386, %v9458
      %v9460 = vpop.f32.mrf.mxu0
      %v9461 = vadd.f32 %v9388, %v9460
      %9462 = vmatmul.bf16.gmra.mxu0 %v8842
      %v9463 = vpop.f32.mrf.mxu0
      %v9464 = vadd.f32 %v9391, %v9463
      %v9465 = vpop.f32.mrf.mxu0
      %9466 = vdwg.mxu0
      %9467 = vmatpush.bf16.msra.mxu0 0
      %9468 = vmatpush.bf16.msra.mxu0 0
      %9469 = vmatpush.bf16.msra.mxu0 0
      %9470 = vmatpush.bf16.msra.mxu0 0
      %9471 = vmatpush.bf16.msra.mxu0 %v9099
      %9472 = vmatpush.bf16.msra.mxu0 %v9098
      %9473 = vmatpush.bf16.msra.mxu0 %v9097
      %9474 = vmatpush.bf16.msra.mxu0 %v9096
      %9475 = vmatmul.bf16.gmra.mxu0 %v9137
      %v9476 = vpop.f32.mrf.mxu0
      %v9477 = vadd.f32 %v9404, %v9476
      %v9478 = vpop.f32.mrf.mxu0
      %v9479 = vadd.f32 %v9406, %v9478
      %9480 = vmatmul.bf16.gmra.mxu0 %v9140
      %v9481 = vpop.f32.mrf.mxu0
      %v9482 = vadd.f32 %v9409, %v9481
      %v9483 = vpop.f32.mrf.mxu0
      %v9484 = vadd.f32 %v9411, %v9483
      %9485 = vmatmul.bf16.gmra.mxu0 %v9143
      %v9486 = vpop.f32.mrf.mxu0
      %v9487 = vadd.f32 %v9414, %v9486
      %v9488 = vpop.f32.mrf.mxu0
      %v9489 = vadd.f32 %v9416, %v9488
      %9490 = vmatmul.bf16.gmra.mxu0 %v9146
      %v9491 = vpop.f32.mrf.mxu0
      %v9492 = vadd.f32 %v9419, %v9491
      %v9493 = vpop.f32.mrf.mxu0
      %v9494 = vadd.f32 %v9421, %v9493
      %9495 = vmatmul.bf16.gmra.mxu0 %v9149
      %v9496 = vpop.f32.mrf.mxu0
      %v9497 = vadd.f32 %v9424, %v9496
      %v9498 = vpop.f32.mrf.mxu0
      %v9499 = vadd.f32 %v9426, %v9498
      %9500 = vmatmul.bf16.gmra.mxu0 %v9152
      %v9501 = vpop.f32.mrf.mxu0
      %v9502 = vadd.f32 %v9429, %v9501
      %v9503 = vpop.f32.mrf.mxu0
      %v9504 = vadd.f32 %v9431, %v9503
      %9505 = vmatmul.bf16.gmra.mxu0 %v9155
      %v9506 = vpop.f32.mrf.mxu0
      %v9507 = vadd.f32 %v9434, %v9506
      %v9508 = vpop.f32.mrf.mxu0
      %v9509 = vadd.f32 %v9436, %v9508
      %9510 = vmatmul.bf16.gmra.mxu0 %v9158
      %v9511 = vpop.f32.mrf.mxu0
      %v9512 = vadd.f32 %v9439, %v9511
      %v9513 = vpop.f32.mrf.mxu0
      %v9514 = vadd.f32 %v9441, %v9513
      %9515 = vmatmul.bf16.gmra.mxu0 %v9161
      %v9516 = vpop.f32.mrf.mxu0
      %v9517 = vadd.f32 %v9444, %v9516
      %v9518 = vpop.f32.mrf.mxu0
      %v9519 = vadd.f32 %v9446, %v9518
      %9520 = vmatmul.bf16.gmra.mxu0 %v9164
      %v9521 = vpop.f32.mrf.mxu0
      %v9522 = vadd.f32 %v9449, %v9521
      %v9523 = vpop.f32.mrf.mxu0
      %v9524 = vadd.f32 %v9451, %v9523
      %9525 = vmatmul.bf16.gmra.mxu0 %v9167
      %v9526 = vpop.f32.mrf.mxu0
      %v9527 = vadd.f32 %v9454, %v9526
      %v9528 = vpop.f32.mrf.mxu0
      %v9529 = vadd.f32 %v9456, %v9528
      %9530 = vmatmul.bf16.gmra.mxu0 %v9170
      %v9531 = vpop.f32.mrf.mxu0
      %v9532 = vadd.f32 %v9459, %v9531
      %v9533 = vpop.f32.mrf.mxu0
      %v9534 = vadd.f32 %v9461, %v9533
      %9535 = vmatmul.bf16.gmra.mxu0 %v9173
      %v9536 = vpop.f32.mrf.mxu0
      %v9537 = vadd.f32 %v9464, %v9536
      %v9538 = vpop.f32.mrf.mxu0
      %9539 = vdwg.mxu0
      %v9540 = vxor.u32 %v9477, 2147483648
      %v9541 = vxor.u32 %v9479, 2147483648
      %v9542 = vxor.u32 %v9482, 2147483648
      %v9543 = vxor.u32 %v9484, 2147483648
      %v9544 = vxor.u32 %v9487, 2147483648
      %v9545 = vxor.u32 %v9489, 2147483648
      %v9546 = vxor.u32 %v9492, 2147483648
      %v9547 = vxor.u32 %v9494, 2147483648
      %v9548 = vxor.u32 %v9497, 2147483648
      %v9549 = vxor.u32 %v9499, 2147483648
      %v9550 = vxor.u32 %v9502, 2147483648
      %v9551 = vxor.u32 %v9504, 2147483648
      %v9552 = vxor.u32 %v9507, 2147483648
      %v9553 = vxor.u32 %v9509, 2147483648
      %v9554 = vxor.u32 %v9512, 2147483648
      %v9555 = vxor.u32 %v9514, 2147483648
      %v9556 = vxor.u32 %v9517, 2147483648
      %v9557 = vxor.u32 %v9519, 2147483648
      %v9558 = vxor.u32 %v9522, 2147483648
      %v9559 = vxor.u32 %v9524, 2147483648
      %v9560 = vxor.u32 %v9527, 2147483648
      %v9561 = vxor.u32 %v9529, 2147483648
      %v9562 = vxor.u32 %v9532, 2147483648
      %v9563 = vxor.u32 %v9534, 2147483648
      %v9564 = vxor.u32 %v9537, 2147483648
      %v9565 = vmul.f32 %v9540, 1.442695
      %v9566 = vpow.pop %v9565
      %v9567 = vmul.f32 %v9541, 1.442695
      %v9568 = vpow.pop %v9567
      %v9569 = vmul.f32 %v9542, 1.442695
      %v9570 = vpow.pop %v9569
      %v9571 = vmul.f32 %v9543, 1.442695
      %v9572 = vpow.pop %v9571
      %v9573 = vmul.f32 %v9544, 1.442695
      %v9574 = vpow.pop %v9573
      %v9575 = vmul.f32 %v9545, 1.442695
      %v9576 = vpow.pop %v9575
      %v9577 = vmul.f32 %v9546, 1.442695
      %v9578 = vpow.pop %v9577
      %v9579 = vmul.f32 %v9547, 1.442695
      %v9580 = vpow.pop %v9579
      %v9581 = vmul.f32 %v9548, 1.442695
      %v9582 = vpow.pop %v9581
      %v9583 = vmul.f32 %v9549, 1.442695
      %v9584 = vpow.pop %v9583
      %v9585 = vmul.f32 %v9550, 1.442695
      %v9586 = vpow.pop %v9585
      %v9587 = vmul.f32 %v9551, 1.442695
      %v9588 = vpow.pop %v9587
      %v9589 = vmul.f32 %v9552, 1.442695
      %v9590 = vpow.pop %v9589
      %v9591 = vmul.f32 %v9553, 1.442695
      %v9592 = vpow.pop %v9591
      %v9593 = vmul.f32 %v9554, 1.442695
      %v9594 = vpow.pop %v9593
      %v9595 = vmul.f32 %v9555, 1.442695
      %v9596 = vpow.pop %v9595
      %v9597 = vmul.f32 %v9556, 1.442695
      %v9598 = vpow.pop %v9597
      %v9599 = vmul.f32 %v9557, 1.442695
      %v9600 = vpow.pop %v9599
      %v9601 = vmul.f32 %v9558, 1.442695
      %v9602 = vpow.pop %v9601
      %v9603 = vmul.f32 %v9559, 1.442695
      %v9604 = vpow.pop %v9603
      %v9605 = vmul.f32 %v9560, 1.442695
      %v9606 = vpow.pop %v9605
      %v9607 = vmul.f32 %v9561, 1.442695
      %v9608 = vpow.pop %v9607
      %v9609 = vmul.f32 %v9562, 1.442695
      %v9610 = vpow.pop %v9609
      %v9611 = vmul.f32 %v9563, 1.442695
      %v9612 = vpow.pop %v9611
      %v9613 = vmul.f32 %v9564, 1.442695
      %v9614 = vpow.pop %v9613
      %v9615 = vadd.f32 %v9566, 1.0
      %v9616 = vadd.f32 %v9568, 1.0
      %v9617 = vadd.f32 %v9570, 1.0
      %v9618 = vadd.f32 %v9572, 1.0
      %v9619 = vadd.f32 %v9574, 1.0
      %v9620 = vadd.f32 %v9576, 1.0
      %v9621 = vadd.f32 %v9578, 1.0
      %v9622 = vadd.f32 %v9580, 1.0
      %v9623 = vadd.f32 %v9582, 1.0
      %v9624 = vadd.f32 %v9584, 1.0
      %v9625 = vadd.f32 %v9586, 1.0
      %v9626 = vadd.f32 %v9588, 1.0
      %v9627 = vadd.f32 %v9590, 1.0
      %v9628 = vadd.f32 %v9592, 1.0
      %v9629 = vadd.f32 %v9594, 1.0
      %v9630 = vadd.f32 %v9596, 1.0
      %v9631 = vadd.f32 %v9598, 1.0
      %v9632 = vadd.f32 %v9600, 1.0
      %v9633 = vadd.f32 %v9602, 1.0
      %v9634 = vadd.f32 %v9604, 1.0
      %v9635 = vadd.f32 %v9606, 1.0
      %v9636 = vadd.f32 %v9608, 1.0
      %v9637 = vadd.f32 %v9610, 1.0
      %v9638 = vadd.f32 %v9612, 1.0
      %v9639 = vadd.f32 %v9614, 1.0
      %v9640 = vrcp.pop %v9615
      %v9641 = vmul.f32 %v9615, %v9640
      %v9642 = vsub.f32 1.0, %v9641
      %v9643 = vmul.f32 %v9640, %v9642
      %v9644 = vadd.f32 %v9640, %v9643
      %vm9645 = vweird.f32 %v9615
      %vm9646 = vweird.f32 %v9640
      %vm9647 = vmor %vm9645, %vm9646
      %v9648 = vsel %vm9647, %v9640, %v9644
      %v9649 = vand.u32 2147483647, %v9615
      %vm9650 = vcmp.eq.f32.partialorder %v9649, 8.507059e+37
      %v9651 = vand.u32 %v9615, 2147483648
      %v9652 = vor.u32 1.1754944e-38, %v9651
      %v9653 = vsel %vm9650, %v9652, %v9648
      %v9654 = vmul.f32 1.0, %v9653
      %v9655 = vrcp.pop %v9616
      %v9656 = vmul.f32 %v9616, %v9655
      %v9657 = vsub.f32 1.0, %v9656
      %v9658 = vmul.f32 %v9655, %v9657
      %v9659 = vadd.f32 %v9655, %v9658
      %vm9660 = vweird.f32 %v9616
      %vm9661 = vweird.f32 %v9655
      %vm9662 = vmor %vm9660, %vm9661
      %v9663 = vsel %vm9662, %v9655, %v9659
      %v9664 = vand.u32 2147483647, %v9616
      %vm9665 = vcmp.eq.f32.partialorder %v9664, 8.507059e+37
      %v9666 = vand.u32 %v9616, 2147483648
      %v9667 = vor.u32 1.1754944e-38, %v9666
      %v9668 = vsel %vm9665, %v9667, %v9663
      %v9669 = vmul.f32 1.0, %v9668
      %v9670 = vrcp.pop %v9617
      %v9671 = vmul.f32 %v9617, %v9670
      %v9672 = vsub.f32 1.0, %v9671
      %v9673 = vmul.f32 %v9670, %v9672
      %v9674 = vadd.f32 %v9670, %v9673
      %vm9675 = vweird.f32 %v9617
      %vm9676 = vweird.f32 %v9670
      %vm9677 = vmor %vm9675, %vm9676
      %v9678 = vsel %vm9677, %v9670, %v9674
      %v9679 = vand.u32 2147483647, %v9617
      %vm9680 = vcmp.eq.f32.partialorder %v9679, 8.507059e+37
      %v9681 = vand.u32 %v9617, 2147483648
      %v9682 = vor.u32 1.1754944e-38, %v9681
      %v9683 = vsel %vm9680, %v9682, %v9678
      %v9684 = vmul.f32 1.0, %v9683
      %v9685 = vrcp.pop %v9618
      %v9686 = vmul.f32 %v9618, %v9685
      %v9687 = vsub.f32 1.0, %v9686
      %v9688 = vmul.f32 %v9685, %v9687
      %v9689 = vadd.f32 %v9685, %v9688
      %vm9690 = vweird.f32 %v9618
      %vm9691 = vweird.f32 %v9685
      %vm9692 = vmor %vm9690, %vm9691
      %v9693 = vsel %vm9692, %v9685, %v9689
      %v9694 = vand.u32 2147483647, %v9618
      %vm9695 = vcmp.eq.f32.partialorder %v9694, 8.507059e+37
      %v9696 = vand.u32 %v9618, 2147483648
      %v9697 = vor.u32 1.1754944e-38, %v9696
      %v9698 = vsel %vm9695, %v9697, %v9693
      %v9699 = vmul.f32 1.0, %v9698
      %v9700 = vrcp.pop %v9619
      %v9701 = vmul.f32 %v9619, %v9700
      %v9702 = vsub.f32 1.0, %v9701
      %v9703 = vmul.f32 %v9700, %v9702
      %v9704 = vadd.f32 %v9700, %v9703
      %vm9705 = vweird.f32 %v9619
      %vm9706 = vweird.f32 %v9700
      %vm9707 = vmor %vm9705, %vm9706
      %v9708 = vsel %vm9707, %v9700, %v9704
      %v9709 = vand.u32 2147483647, %v9619
      %vm9710 = vcmp.eq.f32.partialorder %v9709, 8.507059e+37
      %v9711 = vand.u32 %v9619, 2147483648
      %v9712 = vor.u32 1.1754944e-38, %v9711
      %v9713 = vsel %vm9710, %v9712, %v9708
      %v9714 = vmul.f32 1.0, %v9713
      %v9715 = vrcp.pop %v9620
      %v9716 = vmul.f32 %v9620, %v9715
      %v9717 = vsub.f32 1.0, %v9716
      %v9718 = vmul.f32 %v9715, %v9717
      %v9719 = vadd.f32 %v9715, %v9718
      %vm9720 = vweird.f32 %v9620
      %vm9721 = vweird.f32 %v9715
      %vm9722 = vmor %vm9720, %vm9721
      %v9723 = vsel %vm9722, %v9715, %v9719
      %v9724 = vand.u32 2147483647, %v9620
      %vm9725 = vcmp.eq.f32.partialorder %v9724, 8.507059e+37
      %v9726 = vand.u32 %v9620, 2147483648
      %v9727 = vor.u32 1.1754944e-38, %v9726
      %v9728 = vsel %vm9725, %v9727, %v9723
      %v9729 = vmul.f32 1.0, %v9728
      %v9730 = vrcp.pop %v9621
      %v9731 = vmul.f32 %v9621, %v9730
      %v9732 = vsub.f32 1.0, %v9731
      %v9733 = vmul.f32 %v9730, %v9732
      %v9734 = vadd.f32 %v9730, %v9733
      %vm9735 = vweird.f32 %v9621
      %vm9736 = vweird.f32 %v9730
      %vm9737 = vmor %vm9735, %vm9736
      %v9738 = vsel %vm9737, %v9730, %v9734
      %v9739 = vand.u32 2147483647, %v9621
      %vm9740 = vcmp.eq.f32.partialorder %v9739, 8.507059e+37
      %v9741 = vand.u32 %v9621, 2147483648
      %v9742 = vor.u32 1.1754944e-38, %v9741
      %v9743 = vsel %vm9740, %v9742, %v9738
      %v9744 = vmul.f32 1.0, %v9743
      %v9745 = vrcp.pop %v9622
      %v9746 = vmul.f32 %v9622, %v9745
      %v9747 = vsub.f32 1.0, %v9746
      %v9748 = vmul.f32 %v9745, %v9747
      %v9749 = vadd.f32 %v9745, %v9748
      %vm9750 = vweird.f32 %v9622
      %vm9751 = vweird.f32 %v9745
      %vm9752 = vmor %vm9750, %vm9751
      %v9753 = vsel %vm9752, %v9745, %v9749
      %v9754 = vand.u32 2147483647, %v9622
      %vm9755 = vcmp.eq.f32.partialorder %v9754, 8.507059e+37
      %v9756 = vand.u32 %v9622, 2147483648
      %v9757 = vor.u32 1.1754944e-38, %v9756
      %v9758 = vsel %vm9755, %v9757, %v9753
      %v9759 = vmul.f32 1.0, %v9758
      %v9760 = vrcp.pop %v9623
      %v9761 = vmul.f32 %v9623, %v9760
      %v9762 = vsub.f32 1.0, %v9761
      %v9763 = vmul.f32 %v9760, %v9762
      %v9764 = vadd.f32 %v9760, %v9763
      %vm9765 = vweird.f32 %v9623
      %vm9766 = vweird.f32 %v9760
      %vm9767 = vmor %vm9765, %vm9766
      %v9768 = vsel %vm9767, %v9760, %v9764
      %v9769 = vand.u32 2147483647, %v9623
      %vm9770 = vcmp.eq.f32.partialorder %v9769, 8.507059e+37
      %v9771 = vand.u32 %v9623, 2147483648
      %v9772 = vor.u32 1.1754944e-38, %v9771
      %v9773 = vsel %vm9770, %v9772, %v9768
      %v9774 = vmul.f32 1.0, %v9773
      %v9775 = vrcp.pop %v9624
      %v9776 = vmul.f32 %v9624, %v9775
      %v9777 = vsub.f32 1.0, %v9776
      %v9778 = vmul.f32 %v9775, %v9777
      %v9779 = vadd.f32 %v9775, %v9778
      %vm9780 = vweird.f32 %v9624
      %vm9781 = vweird.f32 %v9775
      %vm9782 = vmor %vm9780, %vm9781
      %v9783 = vsel %vm9782, %v9775, %v9779
      %v9784 = vand.u32 2147483647, %v9624
      %vm9785 = vcmp.eq.f32.partialorder %v9784, 8.507059e+37
      %v9786 = vand.u32 %v9624, 2147483648
      %v9787 = vor.u32 1.1754944e-38, %v9786
      %v9788 = vsel %vm9785, %v9787, %v9783
      %v9789 = vmul.f32 1.0, %v9788
      %v9790 = vrcp.pop %v9625
      %v9791 = vmul.f32 %v9625, %v9790
      %v9792 = vsub.f32 1.0, %v9791
      %v9793 = vmul.f32 %v9790, %v9792
      %v9794 = vadd.f32 %v9790, %v9793
      %vm9795 = vweird.f32 %v9625
      %vm9796 = vweird.f32 %v9790
      %vm9797 = vmor %vm9795, %vm9796
      %v9798 = vsel %vm9797, %v9790, %v9794
      %v9799 = vand.u32 2147483647, %v9625
      %vm9800 = vcmp.eq.f32.partialorder %v9799, 8.507059e+37
      %v9801 = vand.u32 %v9625, 2147483648
      %v9802 = vor.u32 1.1754944e-38, %v9801
      %v9803 = vsel %vm9800, %v9802, %v9798
      %v9804 = vmul.f32 1.0, %v9803
      %v9805 = vrcp.pop %v9626
      %v9806 = vmul.f32 %v9626, %v9805
      %v9807 = vsub.f32 1.0, %v9806
      %v9808 = vmul.f32 %v9805, %v9807
      %v9809 = vadd.f32 %v9805, %v9808
      %vm9810 = vweird.f32 %v9626
      %vm9811 = vweird.f32 %v9805
      %vm9812 = vmor %vm9810, %vm9811
      %v9813 = vsel %vm9812, %v9805, %v9809
      %v9814 = vand.u32 2147483647, %v9626
      %vm9815 = vcmp.eq.f32.partialorder %v9814, 8.507059e+37
      %v9816 = vand.u32 %v9626, 2147483648
      %v9817 = vor.u32 1.1754944e-38, %v9816
      %v9818 = vsel %vm9815, %v9817, %v9813
      %v9819 = vmul.f32 1.0, %v9818
      %v9820 = vrcp.pop %v9627
      %v9821 = vmul.f32 %v9627, %v9820
      %v9822 = vsub.f32 1.0, %v9821
      %v9823 = vmul.f32 %v9820, %v9822
      %v9824 = vadd.f32 %v9820, %v9823
      %vm9825 = vweird.f32 %v9627
      %vm9826 = vweird.f32 %v9820
      %vm9827 = vmor %vm9825, %vm9826
      %v9828 = vsel %vm9827, %v9820, %v9824
      %v9829 = vand.u32 2147483647, %v9627
      %vm9830 = vcmp.eq.f32.partialorder %v9829, 8.507059e+37
      %v9831 = vand.u32 %v9627, 2147483648
      %v9832 = vor.u32 1.1754944e-38, %v9831
      %v9833 = vsel %vm9830, %v9832, %v9828
      %v9834 = vmul.f32 1.0, %v9833
      %v9835 = vrcp.pop %v9628
      %v9836 = vmul.f32 %v9628, %v9835
      %v9837 = vsub.f32 1.0, %v9836
      %v9838 = vmul.f32 %v9835, %v9837
      %v9839 = vadd.f32 %v9835, %v9838
      %vm9840 = vweird.f32 %v9628
      %vm9841 = vweird.f32 %v9835
      %vm9842 = vmor %vm9840, %vm9841
      %v9843 = vsel %vm9842, %v9835, %v9839
      %v9844 = vand.u32 2147483647, %v9628
      %vm9845 = vcmp.eq.f32.partialorder %v9844, 8.507059e+37
      %v9846 = vand.u32 %v9628, 2147483648
      %v9847 = vor.u32 1.1754944e-38, %v9846
      %v9848 = vsel %vm9845, %v9847, %v9843
      %v9849 = vmul.f32 1.0, %v9848
      %v9850 = vrcp.pop %v9629
      %v9851 = vmul.f32 %v9629, %v9850
      %v9852 = vsub.f32 1.0, %v9851
      %v9853 = vmul.f32 %v9850, %v9852
      %v9854 = vadd.f32 %v9850, %v9853
      %vm9855 = vweird.f32 %v9629
      %vm9856 = vweird.f32 %v9850
      %vm9857 = vmor %vm9855, %vm9856
      %v9858 = vsel %vm9857, %v9850, %v9854
      %v9859 = vand.u32 2147483647, %v9629
      %vm9860 = vcmp.eq.f32.partialorder %v9859, 8.507059e+37
      %v9861 = vand.u32 %v9629, 2147483648
      %v9862 = vor.u32 1.1754944e-38, %v9861
      %v9863 = vsel %vm9860, %v9862, %v9858
      %v9864 = vmul.f32 1.0, %v9863
      %v9865 = vrcp.pop %v9630
      %v9866 = vmul.f32 %v9630, %v9865
      %v9867 = vsub.f32 1.0, %v9866
      %v9868 = vmul.f32 %v9865, %v9867
      %v9869 = vadd.f32 %v9865, %v9868
      %vm9870 = vweird.f32 %v9630
      %vm9871 = vweird.f32 %v9865
      %vm9872 = vmor %vm9870, %vm9871
      %v9873 = vsel %vm9872, %v9865, %v9869
      %v9874 = vand.u32 2147483647, %v9630
      %vm9875 = vcmp.eq.f32.partialorder %v9874, 8.507059e+37
      %v9876 = vand.u32 %v9630, 2147483648
      %v9877 = vor.u32 1.1754944e-38, %v9876
      %v9878 = vsel %vm9875, %v9877, %v9873
      %v9879 = vmul.f32 1.0, %v9878
      %v9880 = vrcp.pop %v9631
      %v9881 = vmul.f32 %v9631, %v9880
      %v9882 = vsub.f32 1.0, %v9881
      %v9883 = vmul.f32 %v9880, %v9882
      %v9884 = vadd.f32 %v9880, %v9883
      %vm9885 = vweird.f32 %v9631
      %vm9886 = vweird.f32 %v9880
      %vm9887 = vmor %vm9885, %vm9886
      %v9888 = vsel %vm9887, %v9880, %v9884
      %v9889 = vand.u32 2147483647, %v9631
      %vm9890 = vcmp.eq.f32.partialorder %v9889, 8.507059e+37
      %v9891 = vand.u32 %v9631, 2147483648
      %v9892 = vor.u32 1.1754944e-38, %v9891
      %v9893 = vsel %vm9890, %v9892, %v9888
      %v9894 = vmul.f32 1.0, %v9893
      %v9895 = vrcp.pop %v9632
      %v9896 = vmul.f32 %v9632, %v9895
      %v9897 = vsub.f32 1.0, %v9896
      %v9898 = vmul.f32 %v9895, %v9897
      %v9899 = vadd.f32 %v9895, %v9898
      %vm9900 = vweird.f32 %v9632
      %vm9901 = vweird.f32 %v9895
      %vm9902 = vmor %vm9900, %vm9901
      %v9903 = vsel %vm9902, %v9895, %v9899
      %v9904 = vand.u32 2147483647, %v9632
      %vm9905 = vcmp.eq.f32.partialorder %v9904, 8.507059e+37
      %v9906 = vand.u32 %v9632, 2147483648
      %v9907 = vor.u32 1.1754944e-38, %v9906
      %v9908 = vsel %vm9905, %v9907, %v9903
      %v9909 = vmul.f32 1.0, %v9908
      %v9910 = vrcp.pop %v9633
      %v9911 = vmul.f32 %v9633, %v9910
      %v9912 = vsub.f32 1.0, %v9911
      %v9913 = vmul.f32 %v9910, %v9912
      %v9914 = vadd.f32 %v9910, %v9913
      %vm9915 = vweird.f32 %v9633
      %vm9916 = vweird.f32 %v9910
      %vm9917 = vmor %vm9915, %vm9916
      %v9918 = vsel %vm9917, %v9910, %v9914
      %v9919 = vand.u32 2147483647, %v9633
      %vm9920 = vcmp.eq.f32.partialorder %v9919, 8.507059e+37
      %v9921 = vand.u32 %v9633, 2147483648
      %v9922 = vor.u32 1.1754944e-38, %v9921
      %v9923 = vsel %vm9920, %v9922, %v9918
      %v9924 = vmul.f32 1.0, %v9923
      %v9925 = vrcp.pop %v9634
      %v9926 = vmul.f32 %v9634, %v9925
      %v9927 = vsub.f32 1.0, %v9926
      %v9928 = vmul.f32 %v9925, %v9927
      %v9929 = vadd.f32 %v9925, %v9928
      %vm9930 = vweird.f32 %v9634
      %vm9931 = vweird.f32 %v9925
      %vm9932 = vmor %vm9930, %vm9931
      %v9933 = vsel %vm9932, %v9925, %v9929
      %v9934 = vand.u32 2147483647, %v9634
      %vm9935 = vcmp.eq.f32.partialorder %v9934, 8.507059e+37
      %v9936 = vand.u32 %v9634, 2147483648
      %v9937 = vor.u32 1.1754944e-38, %v9936
      %v9938 = vsel %vm9935, %v9937, %v9933
      %v9939 = vmul.f32 1.0, %v9938
      %v9940 = vrcp.pop %v9635
      %v9941 = vmul.f32 %v9635, %v9940
      %v9942 = vsub.f32 1.0, %v9941
      %v9943 = vmul.f32 %v9940, %v9942
      %v9944 = vadd.f32 %v9940, %v9943
      %vm9945 = vweird.f32 %v9635
      %vm9946 = vweird.f32 %v9940
      %vm9947 = vmor %vm9945, %vm9946
      %v9948 = vsel %vm9947, %v9940, %v9944
      %v9949 = vand.u32 2147483647, %v9635
      %vm9950 = vcmp.eq.f32.partialorder %v9949, 8.507059e+37
      %v9951 = vand.u32 %v9635, 2147483648
      %v9952 = vor.u32 1.1754944e-38, %v9951
      %v9953 = vsel %vm9950, %v9952, %v9948
      %v9954 = vmul.f32 1.0, %v9953
      %v9955 = vrcp.pop %v9636
      %v9956 = vmul.f32 %v9636, %v9955
      %v9957 = vsub.f32 1.0, %v9956
      %v9958 = vmul.f32 %v9955, %v9957
      %v9959 = vadd.f32 %v9955, %v9958
      %vm9960 = vweird.f32 %v9636
      %vm9961 = vweird.f32 %v9955
      %vm9962 = vmor %vm9960, %vm9961
      %v9963 = vsel %vm9962, %v9955, %v9959
      %v9964 = vand.u32 2147483647, %v9636
      %vm9965 = vcmp.eq.f32.partialorder %v9964, 8.507059e+37
      %v9966 = vand.u32 %v9636, 2147483648
      %v9967 = vor.u32 1.1754944e-38, %v9966
      %v9968 = vsel %vm9965, %v9967, %v9963
      %v9969 = vmul.f32 1.0, %v9968
      %v9970 = vrcp.pop %v9637
      %v9971 = vmul.f32 %v9637, %v9970
      %v9972 = vsub.f32 1.0, %v9971
      %v9973 = vmul.f32 %v9970, %v9972
      %v9974 = vadd.f32 %v9970, %v9973
      %vm9975 = vweird.f32 %v9637
      %vm9976 = vweird.f32 %v9970
      %vm9977 = vmor %vm9975, %vm9976
      %v9978 = vsel %vm9977, %v9970, %v9974
      %v9979 = vand.u32 2147483647, %v9637
      %vm9980 = vcmp.eq.f32.partialorder %v9979, 8.507059e+37
      %v9981 = vand.u32 %v9637, 2147483648
      %v9982 = vor.u32 1.1754944e-38, %v9981
      %v9983 = vsel %vm9980, %v9982, %v9978
      %v9984 = vmul.f32 1.0, %v9983
      %v9985 = vrcp.pop %v9638
      %v9986 = vmul.f32 %v9638, %v9985
      %v9987 = vsub.f32 1.0, %v9986
      %v9988 = vmul.f32 %v9985, %v9987
      %v9989 = vadd.f32 %v9985, %v9988
      %vm9990 = vweird.f32 %v9638
      %vm9991 = vweird.f32 %v9985
      %vm9992 = vmor %vm9990, %vm9991
      %v9993 = vsel %vm9992, %v9985, %v9989
      %v9994 = vand.u32 2147483647, %v9638
      %vm9995 = vcmp.eq.f32.partialorder %v9994, 8.507059e+37
      %v9996 = vand.u32 %v9638, 2147483648
      %v9997 = vor.u32 1.1754944e-38, %v9996
      %v9998 = vsel %vm9995, %v9997, %v9993
      %v9999 = vmul.f32 1.0, %v9998
      %v10000 = vrcp.pop %v9639
      %v10001 = vmul.f32 %v9639, %v10000
      %v10002 = vsub.f32 1.0, %v10001
      %v10003 = vmul.f32 %v10000, %v10002
      %v10004 = vadd.f32 %v10000, %v10003
      %vm10005 = vweird.f32 %v9639
      %vm10006 = vweird.f32 %v10000
      %vm10007 = vmor %vm10005, %vm10006
      %v10008 = vsel %vm10007, %v10000, %v10004
      %v10009 = vand.u32 2147483647, %v9639
      %vm10010 = vcmp.eq.f32.partialorder %v10009, 8.507059e+37
      %v10011 = vand.u32 %v9639, 2147483648
      %v10012 = vor.u32 1.1754944e-38, %v10011
      %v10013 = vsel %vm10010, %v10012, %v10008
      %v10014 = vmul.f32 1.0, %v10013
      %10015 = vxpose.xlu0.b32.start [1/16] %v9654, 128
      %10016 = vxpose.xlu0.b32.cont [2/16] %v9669, 128
      %10017 = vxpose.xlu0.b32.cont [3/16] %v9684, 128
      %10018 = vxpose.xlu0.b32.cont [4/16] %v9699, 128
      %10019 = vxpose.xlu0.b32.cont [5/16] %v9714, 128
      %10020 = vxpose.xlu0.b32.cont [6/16] %v9729, 128
      %10021 = vxpose.xlu0.b32.cont [7/16] %v9744, 128
      %10022 = vxpose.xlu0.b32.cont [8/16] %v9759, 128
      %10023 = vxpose.xlu0.b32.cont [9/16] %v9774, 128
      %10024 = vxpose.xlu0.b32.cont [10/16] %v9789, 128
      %10025 = vxpose.xlu0.b32.cont [11/16] %v9804, 128
      %10026 = vxpose.xlu0.b32.cont [12/16] %v9819, 128
      %10027 = vxpose.xlu0.b32.cont [13/16] %v9834, 128
      %10028 = vxpose.xlu0.b32.cont [14/16] %v9849, 128
      %10029 = vxpose.xlu0.b32.cont [15/16] %v9864, 128
      %10030 = vxpose.xlu0.b32.end [16/16] %v9879, 128
      %v10031 = vpop.trf.xlu0
      %v10032 = vpop.trf.xlu0
      %v10033 = vpop.trf.xlu0
      %v10034 = vpop.trf.xlu0
      %v10035 = vpop.trf.xlu0
      %v10036 = vpop.trf.xlu0
      %v10037 = vpop.trf.xlu0
      %v10038 = vpop.trf.xlu0
      %v10039 = vpop.trf.xlu0
      %v10040 = vpop.trf.xlu0
      %v10041 = vpop.trf.xlu0
      %v10042 = vpop.trf.xlu0
      %v10043 = vpop.trf.xlu0
      %v10044 = vpop.trf.xlu0
      %v10045 = vpop.trf.xlu0
      %v10046 = vpop.trf.xlu0
      %10047 = vxpose.xlu0.b32.start [1/16] %v9894, 128
      %10048 = vxpose.xlu0.b32.cont [2/16] %v9909, 128
      %10049 = vxpose.xlu0.b32.cont [3/16] %v9924, 128
      %10050 = vxpose.xlu0.b32.cont [4/16] %v9939, 128
      %10051 = vxpose.xlu0.b32.cont [5/16] %v9954, 128
      %10052 = vxpose.xlu0.b32.cont [6/16] %v9969, 128
      %10053 = vxpose.xlu0.b32.cont [7/16] %v9984, 128
      %10054 = vxpose.xlu0.b32.cont [8/16] %v9999, 128
      %10055 = vxpose.xlu0.b32.cont [9/16] %v10014, 128
      %10056 = vxpose.xlu0.b32.cont [10/16] 0.0, 128
      %10057 = vxpose.xlu0.b32.cont [11/16] 0.0, 128
      %10058 = vxpose.xlu0.b32.cont [12/16] 0.0, 128
      %10059 = vxpose.xlu0.b32.cont [13/16] 0.0, 128
      %10060 = vxpose.xlu0.b32.cont [14/16] 0.0, 128
      %10061 = vxpose.xlu0.b32.cont [15/16] 0.0, 128
      %10062 = vxpose.xlu0.b32.end [16/16] 0.0, 128
      %v10063 = vpop.trf.xlu0
      %v10064 = vpop.trf.xlu0
      %v10065 = vpop.trf.xlu0
      %v10066 = vpop.trf.xlu0
      %v10067 = vpop.trf.xlu0
      %v10068 = vpop.trf.xlu0
      %v10069 = vpop.trf.xlu0
      %v10070 = vpop.trf.xlu0
      %v10071 = vpop.trf.xlu0
      %v10072 = vpop.trf.xlu0
      %v10073 = vpop.trf.xlu0
      %v10074 = vpop.trf.xlu0
      %v10075 = vpop.trf.xlu0
      %v10076 = vpop.trf.xlu0
      %v10077 = vpop.trf.xlu0
      %v10078 = vpop.trf.xlu0
      %v10081 = vrot.slane %v10063, 4
      %vm10082 = vcmask 1043456
      %v10083 = vsel %vm10082, %v10031, %v10081
      %vm10085 = vcmask 556036
      %vm10086 = vmor %vm10085, %vm10082
      %10087 = vst.msk [vmem:[%s386] sm:$0xff] %vm10086, %v10083
      %p10088 = scmp.lt.s32.totalorder %s22, 1
      %s10089 = scalar_select %p10088, %s22, 1
      %s10090 = smul.addr %s10089, 2
      %s10091 = smul.addr %s10090, 4
      %s10092 = scalar_lea.vmem %s11, %s10091
      // Predicated region
      $region65: #{denoising_autoencoder_forward.1} parent=63 // pred_check
        %p10093 = pneg %p276
      $region66: #{denoising_autoencoder_forward.1} parent=63 // pred_check_branch
        %10095 = sbr.rel (%p10093) target = $region68
      $region67: #{denoising_autoencoder_forward.1} parent=63 // pred_region
        _
      $region68: #{denoising_autoencoder_forward.1} parent=63 // pred_fallthru
        _
    $region64: #{denoising_autoencoder_forward.1} parent=5 // pred_fallthru
      _
    %p10096 = scmp.le.s32.totalorder 2, %s17
    // Predicated region
    $region69: #{denoising_autoencoder_forward.1} parent=5 // pred_check
      %p10097 = pneg %p10096
    $region70: #{denoising_autoencoder_forward.1} parent=5 // pred_check_branch
      %10099 = sbr.rel (%p10097) target = $region72
    $region71: #{denoising_autoencoder_forward.1} parent=5 // pred_region
      %s10100 = ssub.s32 %s17, 2
      // Predicated region
      $region73: #{denoising_autoencoder_forward.1} parent=71 // pred_check
        %p10101 = pneg %p282
      $region74: #{denoising_autoencoder_forward.1} parent=71 // pred_check_branch
        %10103 = sbr.rel (%p10101) target = $region76
      $region75: #{denoising_autoencoder_forward.1} parent=71 // pred_region
        %p10104 = scmp.lt.s32.totalorder %s23, 1
        %s10105 = scalar_select %p10104, %s23, 1
        %s10106 = smul.addr %s10105, 2
        %s10107 = smul.addr %s10106, 4
        %s10108 = scalar_lea.vmem %s11, %s10107
      $region76: #{denoising_autoencoder_forward.1} parent=71 // pred_fallthru
        _
    $region72: #{denoising_autoencoder_forward.1} parent=5 // pred_fallthru
      _
  $region6: #{denoising_autoencoder_forward.1} parent=0 // loop_footer
    %s21 = sadd.s32 1, %s17
  $region7: #{denoising_autoencoder_forward.1} parent=0 // loop_footer_branch
    %16 = sbr.rel target = $region3
  $region8: #{denoising_autoencoder_forward.1} parent=0 // loop_exit
    _

</llo_original>
